<compile_context>
chip_gen: v7x
topology: tpu7x:2x2x1
jax: 0.10.0
libtpu: 0.0.40
codegen_flags: <defaults>
</compile_context>

<pallas_src>
import numpy as np
import jax
import jax.numpy as jnp
from jax import lax
from jax.experimental import pallas as pl
from jax.experimental.pallas import tpu as pltpu

LN_EPS = 1e-5


# ----------------------------- in-kernel helpers -----------------------------

def _ln(x, gamma, beta):
    """LayerNorm over the last (channel) dim, like nn.LayerNorm(embed_dim)."""
    mu = jnp.mean(x, axis=-1, keepdims=True)
    var = jnp.mean((x - mu) ** 2, axis=-1, keepdims=True)
    return (x - mu) * lax.rsqrt(var + LN_EPS) * gamma + beta


# ----------------------------- the fused kernel -----------------------------

def _safecount_fused_kernel(
    # data
    x_ref,          # (S, C)        tgt rows (row = y*wq + x, channel-last)
    kvt_ref,        # (C, P*MN)     raw exemplars, transposed, col = p*MN + m
    kvagg_ref,      # (P*H*MN, C)   raw exemplars, flipped taps, dup'd per head
    # structural 0/1 constants (bf16 on the wire, values exactly representable)
    shifta_ref,     # (S, P*S)      zero-padded shift taps of the (hp,wp) window
    shift3a_ref,    # (S, 9*S)      zero-padded shift taps of the 3x3 convs
    repq_ref,       # (C, P*C)      column replicator  x -> [x | x | ... | x]
    repa_ref,       # (H*MN, P*H*MN)
    rept_ref,       # (C, 9*C)
    reph_ref,       # (mid, 9*mid)
    maskq_ref,      # (P*S, P*C)    kron(I_P, ones(S,C)) block-diagonal mask
    maska_ref,      # (P*S, P*H*MN)
    maskt_ref,      # (9*S, 9*C)
    maskh_ref,      # (9*S, 9*mid)
    selm_ref,       # (P*C, P*MN)   kron(I_P, ones(C,MN)) tap-selection mask
    coldup_ref,     # (P*MN, H*MN)  collapses taps & duplicates per head
    hmk_ref,        # (P*C, H*MN)   0/1 head-channel mask for the keys
    hmrow_ref,      # (P*H*MN, C)   0/1 head-channel mask for the values
    gsum_ref,       # (H*MN, H*MN)  within-head group-sum (exemplar softmax)
    # per-block weight stacks (leading dim = n_block)
    w_in_ref, w_inT_ref, b_in_ref, b_in_col_ref,
    g_ref, be_ref, g_col_ref, be_col_ref,
    w_out_ref, b_out_ref,
    w1_ref, b1_ref, w2_ref, b2_ref,
    g1_ref, be1_ref, g2_ref, be2_ref,
    o_ref,          # (S, C)
):
    f32 = jnp.float32
    S, C = x_ref.shape
    PMN = kvt_ref.shape[1]
    P = maskq_ref.shape[0] // S            # hp * wp taps
    n_block = w_in_ref.shape[0]
    scale = float(C * P) ** (-0.5)         # embed_dim * h_p * w_p (per reference)

    # Hoisted constant loads (one bf16 -> f32 convert per call, not per block).
    shifta = shifta_ref[...].astype(f32)
    shift3a = shift3a_ref[...].astype(f32)
    repq = repq_ref[...].astype(f32)
    repa = repa_ref[...].astype(f32)
    rept = rept_ref[...].astype(f32)
    reph = reph_ref[...].astype(f32)
    maskq = maskq_ref[...].astype(f32)
    maska = maska_ref[...].astype(f32)
    maskt = maskt_ref[...].astype(f32)
    maskh = maskh_ref[...].astype(f32)
    selm = selm_ref[...].astype(f32)
    coldup = coldup_ref[...].astype(f32)
    hmk = hmk_ref[...].astype(f32)
    hmrow = hmrow_ref[...].astype(f32)
    gsum = gsum_ref[...].astype(f32)
    kvt = kvt_ref[...]
    kvagg = kvagg_ref[...]

    def im2col(data, rep, mask, shift_flat):
        """data (S, W) -> (S, ntap*W) with col p*W + w = data[src(p, r), w].

        One column-replicate matmul + leading broadcast + 0/1 mask + ONE
        large-K shift matmul (the fused form of the old per-tap loops)."""
        ntap = mask.shape[0] // data.shape[0]
        exp = jnp.dot(data, rep, preferred_element_type=f32)      # (S, ntap*W)
        tiled = jnp.broadcast_to(exp[None], (ntap,) + exp.shape)
        tiled = tiled.reshape(ntap * exp.shape[0], exp.shape[1])  # (ntap*S, ntap*W)
        return jnp.dot(shift_flat, tiled * mask, preferred_element_type=f32)

    x = x_ref[...]                          # running tgt rows (S, C)

    # TODO(synk): if n_block grows, move this to an "arbitrary" grid axis with
    # BlockSpec-indexed weight stacks and x carried in a VMEM scratch.
    for blk in range(n_block):              # static unroll (n_block == 2)
        w_in = w_in_ref[blk]
        b_in = b_in_ref[blk]

        # ---- query: in_conv (1x1) + LayerNorm, row layout (S, C) ----
        q_n = _ln(jnp.dot(x, w_in, preferred_element_type=f32) + b_in,
                  g_ref[blk], be_ref[blk])

        # ---- keys: in_conv + LayerNorm computed directly in (C, P*MN) layout
        #      (avoids any in-kernel transpose; LN is a per-column norm here).
        k_lin = (jnp.dot(w_inT_ref[blk], kvt, preferred_element_type=f32)
                 + b_in_col_ref[blk])
        mu = jnp.mean(k_lin, axis=0, keepdims=True)
        var = jnp.mean((k_lin - mu) ** 2, axis=0, keepdims=True)
        k_nT = ((k_lin - mu) * lax.rsqrt(var + LN_EPS) * g_col_ref[blk]
                + be_col_ref[blk])                           # (C, P*MN)
        # reorganize to rows (tap, channel) and duplicate/mask per head:
        # kbh[p*C + c, h*MN + m] = k_nT[c, p*MN + m] * [c in head h]
        ktile = jnp.broadcast_to(k_nT[None], (P,) + k_nT.shape)
        ktile = ktile.reshape(P * C, PMN)
        kbh = jnp.dot(ktile * selm, coldup, preferred_element_type=f32) * hmk

        # ---- values: in_conv on host-gathered flipped taps, head-masked ----
        # (values get NO LayerNorm, exactly like the reference)
        vfh = (jnp.dot(kvagg, w_in, preferred_element_type=f32) + b_in) * hmrow

        # ---- correlation logits for all heads & exemplars: one fused matmul
        qi = im2col(q_n, repq, maskq, shifta)                # (S, P*C)
        logit = jnp.dot(qi, kbh, preferred_element_type=f32)  # (S, H*MN)

        # ---- exp, self-norm * exemplar-norm (stable, lane-packed) ----
        a = logit * scale
        sn = jnp.exp(a - jnp.max(a, axis=0, keepdims=True))   # / max over spatial
        e_row = jnp.exp(a - jnp.max(a, axis=1, keepdims=True))
        den = jnp.dot(e_row, gsum, preferred_element_type=f32)  # within-head sums
        w_att = sn * (e_row / den)                             # (S, H*MN)
        # TODO(synk): nn.Dropout on the attention map is identity (eval mode).

        # ---- flipped-kernel aggregation, fused across taps/heads/exemplars
        wi = im2col(w_att, repa, maska, shifta)              # (S, P*H*MN)
        agg = jnp.dot(wi, vfh, preferred_element_type=f32)   # (S, C)

        # ---- out_conv (1x1) + residual + norm1 (dropout1 = identity) ----
        t = (jnp.dot(agg, w_out_ref[blk], preferred_element_type=f32)
             + b_out_ref[blk])
        t = _ln(x + t, g1_ref[blk], be1_ref[blk])

        # ---- conv1 (3x3, pad 1) + ReLU (dropout = identity) ----
        ti = im2col(t, rept, maskt, shift3a)                 # (S, 9*C)
        h1 = jnp.maximum(
            jnp.dot(ti, w1_ref[blk], preferred_element_type=f32) + b1_ref[blk],
            0.0)

        # ---- conv2 (3x3, pad 1) ----
        hi = im2col(h1, reph, maskh, shift3a)                # (S, 9*mid)
        h2 = (jnp.dot(hi, w2_ref[blk], preferred_element_type=f32)
              + b2_ref[blk])

        # ---- residual + norm2 (dropout2 = identity) ----
        x = _ln(t + h2, g2_ref[blk], be2_ref[blk])

    o_ref[...] = x


# ----------------------------- host-side constants -----------------------------

def _shift_matrices(hq, wq, kh, kw):
    """SHIFT[p, r, r'] = 1 iff r' is the (zero-padded) source pixel of output r
    for tap p = dy*kw + dx, i.e. (y + dy - kh//2, x + dx - kw//2)."""
    ph, pw = kh // 2, kw // 2
    s = hq * wq
    out = np.zeros((kh * kw, s, s), np.float32)
    for dy in range(kh):
        for dx in range(kw):
            p = dy * kw + dx
            for y in range(hq):
                for x in range(wq):
                    sy, sx = y + dy - ph, x + dx - pw
                    if 0 <= sy < hq and 0 <= sx < wq:
                        out[p, y * wq + x, sy * wq + sx] = 1.0
    return out


def _flat_shift(shift):
    """(P, S, S) -> (S, P*S) with column index p*S + r' (host flatten)."""
    p, s, _ = shift.shape
    return np.transpose(shift, (1, 0, 2)).reshape(s, p * s)


def _rep_matrix(width, ntap):
    r = np.zeros((width, ntap * width), np.float32)
    for p in range(ntap):
        r[np.arange(width), p * width + np.arange(width)] = 1.0
    return r


def _kron_mask(ntap, nrow, width):
    m = np.zeros((ntap * nrow, ntap * width), np.float32)
    for p in range(ntap):
        m[p * nrow:(p + 1) * nrow, p * width:(p + 1) * width] = 1.0
    return m


def _tap_select_mask(p_taps, c, mn):
    m = np.zeros((p_taps * c, p_taps * mn), np.float32)
    for p in range(p_taps):
        m[p * c:(p + 1) * c, p * mn:(p + 1) * mn] = 1.0
    return m


def _col_dup(p_taps, mn, head):
    d = np.zeros((p_taps * mn, head * mn), np.float32)
    for p in range(p_taps):
        for m in range(mn):
            for h in range(head):
                d[p * mn + m, h * mn + m] = 1.0
    return d


def _head_mask_cols(p_taps, c, head, mn):
    hd = c // head
    m = np.zeros((p_taps * c, head * mn), np.float32)
    for p in range(p_taps):
        for cc in range(c):
            h = cc // hd
            m[p * c + cc, h * mn:(h + 1) * mn] = 1.0
    return m


def _head_mask_rows(p_taps, c, head, mn):
    hd = c // head
    m = np.zeros((p_taps * head * mn, c), np.float32)
    for p in range(p_taps):
        for h in range(head):
            for mm in range(mn):
                m[p * head * mn + h * mn + mm, h * hd:(h + 1) * hd] = 1.0
    return m


def _group_sum(head, mn):
    g = np.zeros((head * mn, head * mn), np.float32)
    for h in range(head):
        g[h * mn:(h + 1) * mn, h * mn:(h + 1) * mn] = 1.0
    return g


def _full_spec(shape):
    nd = len(shape)
    return pl.BlockSpec(shape, lambda i, _nd=nd: (0,) * _nd)


# ----------------------------- model wrapper -----------------------------

def safecount_multiblock(feat, feat_boxes, params, head, mid_dim, n_block):
    """feat: (1, C, H, W), feat_boxes: (MN, C, hp, wp) — NCHW, like PyTorch."""
    _, C, hq, wq = feat.shape
    MN, _, hp, wp = feat_boxes.shape
    assert hp % 2 == 1 and wp % 2 == 1, "exemplar spatial size must be odd"
    assert C % head == 0
    S, P, P3, HMN = hq * wq, hp * wp, 9, head * MN

    # NCHW -> channel-last slabs, host-reordered so the kernel needs no gathers.
    q_rows = jnp.transpose(feat[0], (1, 2, 0)).reshape(S, C)
    kv_cl = jnp.transpose(feat_boxes, (0, 2, 3, 1)).reshape(MN, P, C)
    kvt = jnp.transpose(kv_cl, (2, 1, 0)).reshape(C, P * MN)     # keys, transposed
    kv_flip = kv_cl[:, ::-1, :]                                  # flipped taps
    kv_agg = jnp.broadcast_to(
        jnp.transpose(kv_flip, (1, 0, 2))[:, None], (P, head, MN, C)
    ).reshape(P * HMN, C)                                        # values operand

    bf16 = jnp.bfloat16                      # 0/1 constants, exact in bf16
    shifta = jnp.asarray(_flat_shift(_shift_matrices(hq, wq, hp, wp)), bf16)
    shift3a = jnp.asarray(_flat_shift(_shift_matrices(hq, wq, 3, 3)), bf16)
    repq = jnp.asarray(_rep_matrix(C, P), bf16)
    repa = jnp.asarray(_rep_matrix(HMN, P), bf16)
    rept = jnp.asarray(_rep_matrix(C, P3), bf16)
    reph = jnp.asarray(_rep_matrix(mid_dim, P3), bf16)
    maskq = jnp.asarray(_kron_mask(P, S, C), bf16)
    maska = jnp.asarray(_kron_mask(P, S, HMN), bf16)
    maskt = jnp.asarray(_kron_mask(P3, S, C), bf16)
    maskh = jnp.asarray(_kron_mask(P3, S, mid_dim), bf16)
    selm = jnp.asarray(_tap_select_mask(P, C, MN), bf16)
    coldup = jnp.asarray(_col_dup(P, MN, head), bf16)
    hmk = jnp.asarray(_head_mask_cols(P, C, head, MN), bf16)
    hmrow = jnp.asarray(_head_mask_rows(P, C, head, MN), bf16)
    gsum = jnp.asarray(_group_sum(head, MN), bf16)

    # per-block weight stacks (+ transposed / flattened views derived here)
    w_in = params["in_conv_w"]
    w_inT = jnp.transpose(w_in, (0, 2, 1))
    b_in = params["in_conv_b"]
    b_in_col = jnp.transpose(b_in, (0, 2, 1))
    g_col = jnp.transpose(params["norm_g"], (0, 2, 1))
    be_col = jnp.transpose(params["norm_b"], (0, 2, 1))
    w1f = params["conv1_w"].reshape(n_block, P3 * C, mid_dim)
    w2f = params["conv2_w"].reshape(n_block, P3 * mid_dim, C)

    inputs = [
        q_rows, kvt, kv_agg,
        shifta, shift3a,
        repq, repa, rept, reph,
        maskq, maska, maskt, maskh,
        selm, coldup, hmk, hmrow, gsum,
        w_in, w_inT, b_in, b_in_col,
        params["norm_g"], params["norm_b"], g_col, be_col,
        params["out_conv_w"], params["out_conv_b"],
        w1f, params["conv1_b"], w2f, params["conv2_b"],
        params["norm1_g"], params["norm1_b"],
        params["norm2_g"], params["norm2_b"],
    ]

    # NOTE(perf): at this size everything fits in the default scoped VMEM; for
    # larger maps raise vmem_limit_bytes and row-tile over a "parallel" grid
    # axis (also keeps v7x's second TensorCore busy and avoids the O(S^2)
    # shift-matrix VMEM cliff by switching taps to in-kernel shifted slices).
    out_rows = pl.pallas_call(
        _safecount_fused_kernel,
        out_shape=jax.ShapeDtypeStruct((S, C), jnp.float32),
        grid=(1,),
        in_specs=[_full_spec(tuple(a.shape)) for a in inputs],
        out_specs=_full_spec((S, C)),
        compiler_params=pltpu.CompilerParams(
            dimension_semantics=("arbitrary",)),
    )(*inputs)

    return jnp.transpose(out_rows.reshape(hq, wq, C), (2, 0, 1))[None]


# ----------------------------- parameter init -----------------------------

def init_params(key, n_block, embed_dim, mid_dim):
    """Per-block parameter stacks (leading dim = n_block), mirroring get_clones.
    Layout notes for porting torch weights:
      - 1x1 convs stored as (C_in, C_out): w[:, :, 0, 0].T
      - 3x3 convs stored per-tap as (9, C_in, C_out): w[o, ci, dy, dx] -> [dy*3+dx, ci, o]
    """
    C = embed_dim
    B = n_block
    ks = jax.random.split(key, 8)
    s = 0.05
    return {
        "in_conv_w": s * jax.random.normal(ks[0], (B, C, C), jnp.float32),
        "in_conv_b": s * jax.random.normal(ks[1], (B, 1, C), jnp.float32),
        "out_conv_w": s * jax.random.normal(ks[2], (B, C, C), jnp.float32),
        "out_conv_b": s * jax.random.normal(ks[3], (B, 1, C), jnp.float32),
        "norm_g": jnp.ones((B, 1, C), jnp.float32),
        "norm_b": jnp.zeros((B, 1, C), jnp.float32),
        "conv1_w": s * jax.random.normal(ks[4], (B, 9, C, mid_dim), jnp.float32),
        "conv1_b": s * jax.random.normal(ks[5], (B, 1, mid_dim), jnp.float32),
        "conv2_w": s * jax.random.normal(ks[6], (B, 9, mid_dim, C), jnp.float32),
        "conv2_b": s * jax.random.normal(ks[7], (B, 1, C), jnp.float32),
        "norm1_g": jnp.ones((B, 1, C), jnp.float32),
        "norm1_b": jnp.zeros((B, 1, C), jnp.float32),
        "norm2_g": jnp.ones((B, 1, C), jnp.float32),
        "norm2_b": jnp.zeros((B, 1, C), jnp.float32),
    }


# ----------------------------- main -----------------------------

if __name__ == "__main__":
    embed_dim = 16      # C
    head = 2            # head_dim = 8
    mid_dim = 16
    n_block = 2
    Hq = Wq = 8         # query spatial size
    Hp = Wp = 3         # exemplar (box) spatial size; must be odd
    MN = 3              # number of exemplar boxes

    key = jax.random.PRNGKey(0)
    k_feat, k_box, k_par = jax.random.split(key, 3)
    feat = jax.random.normal(k_feat, (1, embed_dim, Hq, Wq), jnp.float32)
    feat_boxes = jax.random.normal(k_box, (MN, embed_dim, Hp, Wp), jnp.float32)
    params = init_params(k_par, n_block, embed_dim, mid_dim)

    out = safecount_multiblock(feat, feat_boxes, params, head, mid_dim, n_block)
    out = jax.block_until_ready(out)

    assert out.shape == (1, embed_dim, Hq, Wq)
    assert bool(jnp.all(jnp.isfinite(out)))
    print("KERNEL_OK")
</pallas_src>

<mosaic_0001>
module attributes {stable_mosaic.version = 11 : i64} {
  func.func @_safecount_fused_kernel(%arg0: i32, %arg1: memref<64x16xf32, #tpu.memory_space<vmem>>, %arg2: memref<16x27xf32, #tpu.memory_space<vmem>>, %arg3: memref<54x16xf32, #tpu.memory_space<vmem>>, %arg4: memref<64x576xbf16, #tpu.memory_space<vmem>>, %arg5: memref<64x576xbf16, #tpu.memory_space<vmem>>, %arg6: memref<16x144xbf16, #tpu.memory_space<vmem>>, %arg7: memref<6x54xbf16, #tpu.memory_space<vmem>>, %arg8: memref<16x144xbf16, #tpu.memory_space<vmem>>, %arg9: memref<16x144xbf16, #tpu.memory_space<vmem>>, %arg10: memref<576x144xbf16, #tpu.memory_space<vmem>>, %arg11: memref<576x54xbf16, #tpu.memory_space<vmem>>, %arg12: memref<576x144xbf16, #tpu.memory_space<vmem>>, %arg13: memref<576x144xbf16, #tpu.memory_space<vmem>>, %arg14: memref<144x27xbf16, #tpu.memory_space<vmem>>, %arg15: memref<27x6xbf16, #tpu.memory_space<vmem>>, %arg16: memref<144x6xbf16, #tpu.memory_space<vmem>>, %arg17: memref<54x16xbf16, #tpu.memory_space<vmem>>, %arg18: memref<6x6xbf16, #tpu.memory_space<vmem>>, %arg19: memref<2x16x16xf32, #tpu.memory_space<vmem>>, %arg20: memref<2x16x16xf32, #tpu.memory_space<vmem>>, %arg21: memref<2x1x16xf32, #tpu.memory_space<vmem>>, %arg22: memref<2x16x1xf32, #tpu.memory_space<vmem>>, %arg23: memref<2x1x16xf32, #tpu.memory_space<vmem>>, %arg24: memref<2x1x16xf32, #tpu.memory_space<vmem>>, %arg25: memref<2x16x1xf32, #tpu.memory_space<vmem>>, %arg26: memref<2x16x1xf32, #tpu.memory_space<vmem>>, %arg27: memref<2x16x16xf32, #tpu.memory_space<vmem>>, %arg28: memref<2x1x16xf32, #tpu.memory_space<vmem>>, %arg29: memref<2x144x16xf32, #tpu.memory_space<vmem>>, %arg30: memref<2x1x16xf32, #tpu.memory_space<vmem>>, %arg31: memref<2x144x16xf32, #tpu.memory_space<vmem>>, %arg32: memref<2x1x16xf32, #tpu.memory_space<vmem>>, %arg33: memref<2x1x16xf32, #tpu.memory_space<vmem>>, %arg34: memref<2x1x16xf32, #tpu.memory_space<vmem>>, %arg35: memref<2x1x16xf32, #tpu.memory_space<vmem>>, %arg36: memref<2x1x16xf32, #tpu.memory_space<vmem>>, %arg37: memref<64x16xf32, #tpu.memory_space<vmem>>) attributes {dimension_semantics = [#tpu.dimension_semantics<arbitrary>], iteration_bounds = array<i64: 1>, scalar_prefetch = 0 : i64, scratch_operands = 0 : i64, tpu.core_type = #tpu.core_type<tc>, window_params = [{pipeline_mode = #tpu.pipeline_mode<synchronous>, transform_indices = @transform_0, window_bounds = array<i64: 64, 16>}, {pipeline_mode = #tpu.pipeline_mode<synchronous>, transform_indices = @transform_1, window_bounds = array<i64: 16, 27>}, {pipeline_mode = #tpu.pipeline_mode<synchronous>, transform_indices = @transform_2, window_bounds = array<i64: 54, 16>}, {pipeline_mode = #tpu.pipeline_mode<synchronous>, transform_indices = @transform_3, window_bounds = array<i64: 64, 576>}, {pipeline_mode = #tpu.pipeline_mode<synchronous>, transform_indices = @transform_4, window_bounds = array<i64: 64, 576>}, {pipeline_mode = #tpu.pipeline_mode<synchronous>, transform_indices = @transform_5, window_bounds = array<i64: 16, 144>}, {pipeline_mode = #tpu.pipeline_mode<synchronous>, transform_indices = @transform_6, window_bounds = array<i64: 6, 54>}, {pipeline_mode = #tpu.pipeline_mode<synchronous>, transform_indices = @transform_7, window_bounds = array<i64: 16, 144>}, {pipeline_mode = #tpu.pipeline_mode<synchronous>, transform_indices = @transform_8, window_bounds = array<i64: 16, 144>}, {pipeline_mode = #tpu.pipeline_mode<synchronous>, transform_indices = @transform_9, window_bounds = array<i64: 576, 144>}, {pipeline_mode = #tpu.pipeline_mode<synchronous>, transform_indices = @transform_10, window_bounds = array<i64: 576, 54>}, {pipeline_mode = #tpu.pipeline_mode<synchronous>, transform_indices = @transform_11, window_bounds = array<i64: 576, 144>}, {pipeline_mode = #tpu.pipeline_mode<synchronous>, transform_indices = @transform_12, window_bounds = array<i64: 576, 144>}, {pipeline_mode = #tpu.pipeline_mode<synchronous>, transform_indices = @transform_13, window_bounds = array<i64: 144, 27>}, {pipeline_mode = #tpu.pipeline_mode<synchronous>, transform_indices = @transform_14, window_bounds = array<i64: 27, 6>}, {pipeline_mode = #tpu.pipeline_mode<synchronous>, transform_indices = @transform_15, window_bounds = array<i64: 144, 6>}, {pipeline_mode = #tpu.pipeline_mode<synchronous>, transform_indices = @transform_16, window_bounds = array<i64: 54, 16>}, {pipeline_mode = #tpu.pipeline_mode<synchronous>, transform_indices = @transform_17, window_bounds = array<i64: 6, 6>}, {pipeline_mode = #tpu.pipeline_mode<synchronous>, transform_indices = @transform_18, window_bounds = array<i64: 2, 16, 16>}, {pipeline_mode = #tpu.pipeline_mode<synchronous>, transform_indices = @transform_19, window_bounds = array<i64: 2, 16, 16>}, {pipeline_mode = #tpu.pipeline_mode<synchronous>, transform_indices = @transform_20, window_bounds = array<i64: 2, 1, 16>}, {pipeline_mode = #tpu.pipeline_mode<synchronous>, transform_indices = @transform_21, window_bounds = array<i64: 2, 16, 1>}, {pipeline_mode = #tpu.pipeline_mode<synchronous>, transform_indices = @transform_22, window_bounds = array<i64: 2, 1, 16>}, {pipeline_mode = #tpu.pipeline_mode<synchronous>, transform_indices = @transform_23, window_bounds = array<i64: 2, 1, 16>}, {pipeline_mode = #tpu.pipeline_mode<synchronous>, transform_indices = @transform_24, window_bounds = array<i64: 2, 16, 1>}, {pipeline_mode = #tpu.pipeline_mode<synchronous>, transform_indices = @transform_25, window_bounds = array<i64: 2, 16, 1>}, {pipeline_mode = #tpu.pipeline_mode<synchronous>, transform_indices = @transform_26, window_bounds = array<i64: 2, 16, 16>}, {pipeline_mode = #tpu.pipeline_mode<synchronous>, transform_indices = @transform_27, window_bounds = array<i64: 2, 1, 16>}, {pipeline_mode = #tpu.pipeline_mode<synchronous>, transform_indices = @transform_28, window_bounds = array<i64: 2, 144, 16>}, {pipeline_mode = #tpu.pipeline_mode<synchronous>, transform_indices = @transform_29, window_bounds = array<i64: 2, 1, 16>}, {pipeline_mode = #tpu.pipeline_mode<synchronous>, transform_indices = @transform_30, window_bounds = array<i64: 2, 144, 16>}, {pipeline_mode = #tpu.pipeline_mode<synchronous>, transform_indices = @transform_31, window_bounds = array<i64: 2, 1, 16>}, {pipeline_mode = #tpu.pipeline_mode<synchronous>, transform_indices = @transform_32, window_bounds = array<i64: 2, 1, 16>}, {pipeline_mode = #tpu.pipeline_mode<synchronous>, transform_indices = @transform_33, window_bounds = array<i64: 2, 1, 16>}, {pipeline_mode = #tpu.pipeline_mode<synchronous>, transform_indices = @transform_34, window_bounds = array<i64: 2, 1, 16>}, {pipeline_mode = #tpu.pipeline_mode<synchronous>, transform_indices = @transform_35, window_bounds = array<i64: 2, 1, 16>}, {pipeline_mode = #tpu.pipeline_mode<synchronous>, transform_indices = @transform_36, window_bounds = array<i64: 64, 16>}]} {
    %c0 = arith.constant 0 : index
    %c0_0 = arith.constant 0 : index
    %0 = vector.load %arg4[%c0, %c0_0] : memref<64x576xbf16, #tpu.memory_space<vmem>>, vector<64x576xbf16>
    %1 = arith.extf %0 : vector<64x576xbf16> to vector<64x576xf32>
    %c0_1 = arith.constant 0 : index
    %c0_2 = arith.constant 0 : index
    %2 = vector.load %arg5[%c0_1, %c0_2] : memref<64x576xbf16, #tpu.memory_space<vmem>>, vector<64x576xbf16>
    %3 = arith.extf %2 : vector<64x576xbf16> to vector<64x576xf32>
    %c0_3 = arith.constant 0 : index
    %c0_4 = arith.constant 0 : index
    %4 = vector.load %arg6[%c0_3, %c0_4] : memref<16x144xbf16, #tpu.memory_space<vmem>>, vector<16x144xbf16>
    %5 = arith.extf %4 : vector<16x144xbf16> to vector<16x144xf32>
    %c0_5 = arith.constant 0 : index
    %c0_6 = arith.constant 0 : index
    %6 = vector.load %arg7[%c0_5, %c0_6] : memref<6x54xbf16, #tpu.memory_space<vmem>>, vector<6x54xbf16>
    %7 = arith.extf %6 : vector<6x54xbf16> to vector<6x54xf32>
    %c0_7 = arith.constant 0 : index
    %c0_8 = arith.constant 0 : index
    %8 = vector.load %arg8[%c0_7, %c0_8] : memref<16x144xbf16, #tpu.memory_space<vmem>>, vector<16x144xbf16>
    %9 = arith.extf %8 : vector<16x144xbf16> to vector<16x144xf32>
    %c0_9 = arith.constant 0 : index
    %c0_10 = arith.constant 0 : index
    %10 = vector.load %arg9[%c0_9, %c0_10] : memref<16x144xbf16, #tpu.memory_space<vmem>>, vector<16x144xbf16>
    %11 = arith.extf %10 : vector<16x144xbf16> to vector<16x144xf32>
    %c0_11 = arith.constant 0 : index
    %c0_12 = arith.constant 0 : index
    %12 = vector.load %arg10[%c0_11, %c0_12] : memref<576x144xbf16, #tpu.memory_space<vmem>>, vector<576x144xbf16>
    %13 = arith.extf %12 : vector<576x144xbf16> to vector<576x144xf32>
    %c0_13 = arith.constant 0 : index
    %c0_14 = arith.constant 0 : index
    %14 = vector.load %arg11[%c0_13, %c0_14] : memref<576x54xbf16, #tpu.memory_space<vmem>>, vector<576x54xbf16>
    %15 = arith.extf %14 : vector<576x54xbf16> to vector<576x54xf32>
    %c0_15 = arith.constant 0 : index
    %c0_16 = arith.constant 0 : index
    %16 = vector.load %arg12[%c0_15, %c0_16] : memref<576x144xbf16, #tpu.memory_space<vmem>>, vector<576x144xbf16>
    %17 = arith.extf %16 : vector<576x144xbf16> to vector<576x144xf32>
    %c0_17 = arith.constant 0 : index
    %c0_18 = arith.constant 0 : index
    %18 = vector.load %arg13[%c0_17, %c0_18] : memref<576x144xbf16, #tpu.memory_space<vmem>>, vector<576x144xbf16>
    %19 = arith.extf %18 : vector<576x144xbf16> to vector<576x144xf32>
    %c0_19 = arith.constant 0 : index
    %c0_20 = arith.constant 0 : index
    %20 = vector.load %arg14[%c0_19, %c0_20] : memref<144x27xbf16, #tpu.memory_space<vmem>>, vector<144x27xbf16>
    %21 = arith.extf %20 : vector<144x27xbf16> to vector<144x27xf32>
    %c0_21 = arith.constant 0 : index
    %c0_22 = arith.constant 0 : index
    %22 = vector.load %arg15[%c0_21, %c0_22] : memref<27x6xbf16, #tpu.memory_space<vmem>>, vector<27x6xbf16>
    %23 = arith.extf %22 : vector<27x6xbf16> to vector<27x6xf32>
    %c0_23 = arith.constant 0 : index
    %c0_24 = arith.constant 0 : index
    %24 = vector.load %arg16[%c0_23, %c0_24] : memref<144x6xbf16, #tpu.memory_space<vmem>>, vector<144x6xbf16>
    %25 = arith.extf %24 : vector<144x6xbf16> to vector<144x6xf32>
    %c0_25 = arith.constant 0 : index
    %c0_26 = arith.constant 0 : index
    %26 = vector.load %arg17[%c0_25, %c0_26] : memref<54x16xbf16, #tpu.memory_space<vmem>>, vector<54x16xbf16>
    %27 = arith.extf %26 : vector<54x16xbf16> to vector<54x16xf32>
    %c0_27 = arith.constant 0 : index
    %c0_28 = arith.constant 0 : index
    %28 = vector.load %arg18[%c0_27, %c0_28] : memref<6x6xbf16, #tpu.memory_space<vmem>>, vector<6x6xbf16>
    %29 = arith.extf %28 : vector<6x6xbf16> to vector<6x6xf32>
    %c0_29 = arith.constant 0 : index
    %c0_30 = arith.constant 0 : index
    %30 = vector.load %arg2[%c0_29, %c0_30] : memref<16x27xf32, #tpu.memory_space<vmem>>, vector<16x27xf32>
    %c0_31 = arith.constant 0 : index
    %c0_32 = arith.constant 0 : index
    %31 = vector.load %arg3[%c0_31, %c0_32] : memref<54x16xf32, #tpu.memory_space<vmem>>, vector<54x16xf32>
    %c0_33 = arith.constant 0 : index
    %c0_34 = arith.constant 0 : index
    %32 = vector.load %arg1[%c0_33, %c0_34] : memref<64x16xf32, #tpu.memory_space<vmem>>, vector<64x16xf32>
    %c0_35 = arith.constant 0 : index
    %c0_36 = arith.constant 0 : index
    %c0_37 = arith.constant 0 : index
    %33 = vector.load %arg19[%c0_35, %c0_36, %c0_37] : memref<2x16x16xf32, #tpu.memory_space<vmem>>, vector<1x16x16xf32>
    %34 = vector.shape_cast %33 : vector<1x16x16xf32> to vector<16x16xf32>
    %c0_38 = arith.constant 0 : index
    %c0_39 = arith.constant 0 : index
    %c0_40 = arith.constant 0 : index
    %35 = vector.load %arg21[%c0_38, %c0_39, %c0_40] : memref<2x1x16xf32, #tpu.memory_space<vmem>>, vector<1x1x16xf32>
    %36 = vector.shape_cast %35 : vector<1x1x16xf32> to vector<1x16xf32>
    %cst = arith.constant dense<0.000000e+00> : vector<64x16xf32>
    %37 = tpu.matmul %32, %34, %cst {dimension_numbers = #tpu.dot_dimension_numbers<[1], [0], [0], [1], [0, 0, 1, 1], [], []>} : vector<64x16xf32>, vector<16x16xf32>, vector<64x16xf32> -> vector<64x16xf32>
    %38 = vector.broadcast %36 : vector<1x16xf32> to vector<64x16xf32>
    %39 = arith.addf %37, %38 : vector<64x16xf32>
    %c0_41 = arith.constant 0 : index
    %c0_42 = arith.constant 0 : index
    %c0_43 = arith.constant 0 : index
    %40 = vector.load %arg23[%c0_41, %c0_42, %c0_43] : memref<2x1x16xf32, #tpu.memory_space<vmem>>, vector<1x1x16xf32>
    %41 = vector.shape_cast %40 : vector<1x1x16xf32> to vector<1x16xf32>
    %c0_44 = arith.constant 0 : index
    %c0_45 = arith.constant 0 : index
    %c0_46 = arith.constant 0 : index
    %42 = vector.load %arg24[%c0_44, %c0_45, %c0_46] : memref<2x1x16xf32, #tpu.memory_space<vmem>>, vector<1x1x16xf32>
    %43 = vector.shape_cast %42 : vector<1x1x16xf32> to vector<1x16xf32>
    %cst_47 = arith.constant dense<0.000000e+00> : vector<64xf32>
    %44 = vector.multi_reduction <add>, %39, %cst_47 [1] : vector<64x16xf32> to vector<64xf32>
    %45 = vector.shape_cast %44 : vector<64xf32> to vector<64x1xf32>
    %cst_48 = arith.constant 1.600000e+01 : f32
    %46 = vector.broadcast %cst_48 : f32 to vector<64x1xf32>
    %47 = arith.divf %45, %46 : vector<64x1xf32>
    %48 = vector.broadcast %47 : vector<64x1xf32> to vector<64x16xf32>
    %49 = arith.subf %39, %48 : vector<64x16xf32>
    %50 = arith.mulf %49, %49 : vector<64x16xf32>
    %cst_49 = arith.constant dense<0.000000e+00> : vector<64xf32>
    %51 = vector.multi_reduction <add>, %50, %cst_49 [1] : vector<64x16xf32> to vector<64xf32>
    %52 = vector.shape_cast %51 : vector<64xf32> to vector<64x1xf32>
    %cst_50 = arith.constant 1.600000e+01 : f32
    %53 = vector.broadcast %cst_50 : f32 to vector<64x1xf32>
    %54 = arith.divf %52, %53 : vector<64x1xf32>
    %55 = vector.broadcast %47 : vector<64x1xf32> to vector<64x16xf32>
    %56 = arith.subf %39, %55 : vector<64x16xf32>
    %cst_51 = arith.constant 9.99999974E-6 : f32
    %57 = vector.broadcast %cst_51 : f32 to vector<64x1xf32>
    %58 = arith.addf %54, %57 : vector<64x1xf32>
    %59 = math.rsqrt %58 : vector<64x1xf32>
    %60 = vector.broadcast %59 : vector<64x1xf32> to vector<64x16xf32>
    %61 = arith.mulf %56, %60 : vector<64x16xf32>
    %62 = vector.broadcast %41 : vector<1x16xf32> to vector<64x16xf32>
    %63 = arith.mulf %61, %62 : vector<64x16xf32>
    %64 = vector.broadcast %43 : vector<1x16xf32> to vector<64x16xf32>
    %65 = arith.addf %63, %64 : vector<64x16xf32>
    %c0_52 = arith.constant 0 : index
    %c0_53 = arith.constant 0 : index
    %c0_54 = arith.constant 0 : index
    %66 = vector.load %arg20[%c0_52, %c0_53, %c0_54] : memref<2x16x16xf32, #tpu.memory_space<vmem>>, vector<1x16x16xf32>
    %67 = vector.shape_cast %66 : vector<1x16x16xf32> to vector<16x16xf32>
    %cst_55 = arith.constant dense<0.000000e+00> : vector<16x27xf32>
    %68 = tpu.matmul %67, %30, %cst_55 {dimension_numbers = #tpu.dot_dimension_numbers<[1], [0], [0], [1], [0, 0, 1, 1], [], []>} : vector<16x16xf32>, vector<16x27xf32>, vector<16x27xf32> -> vector<16x27xf32>
    %c0_56 = arith.constant 0 : index
    %c0_57 = arith.constant 0 : index
    %c0_58 = arith.constant 0 : index
    %69 = vector.load %arg22[%c0_56, %c0_57, %c0_58] : memref<2x16x1xf32, #tpu.memory_space<vmem>>, vector<1x16x1xf32>
    %70 = vector.shape_cast %69 : vector<1x16x1xf32> to vector<16x1xf32>
    %71 = vector.broadcast %70 : vector<16x1xf32> to vector<16x27xf32>
    %72 = arith.addf %68, %71 : vector<16x27xf32>
    %cst_59 = arith.constant dense<0.000000e+00> : vector<27xf32>
    %73 = vector.multi_reduction <add>, %72, %cst_59 [0] : vector<16x27xf32> to vector<27xf32>
    %74 = vector.shape_cast %73 : vector<27xf32> to vector<1x27xf32>
    %cst_60 = arith.constant 1.600000e+01 : f32
    %75 = vector.broadcast %cst_60 : f32 to vector<1x27xf32>
    %76 = arith.divf %74, %75 : vector<1x27xf32>
    %77 = vector.broadcast %76 : vector<1x27xf32> to vector<16x27xf32>
    %78 = arith.subf %72, %77 : vector<16x27xf32>
    %79 = arith.mulf %78, %78 : vector<16x27xf32>
    %cst_61 = arith.constant dense<0.000000e+00> : vector<27xf32>
    %80 = vector.multi_reduction <add>, %79, %cst_61 [0] : vector<16x27xf32> to vector<27xf32>
    %81 = vector.shape_cast %80 : vector<27xf32> to vector<1x27xf32>
    %cst_62 = arith.constant 1.600000e+01 : f32
    %82 = vector.broadcast %cst_62 : f32 to vector<1x27xf32>
    %83 = arith.divf %81, %82 : vector<1x27xf32>
    %84 = vector.broadcast %76 : vector<1x27xf32> to vector<16x27xf32>
    %85 = arith.subf %72, %84 : vector<16x27xf32>
    %cst_63 = arith.constant 9.99999974E-6 : f32
    %86 = vector.broadcast %cst_63 : f32 to vector<1x27xf32>
    %87 = arith.addf %83, %86 : vector<1x27xf32>
    %88 = math.rsqrt %87 : vector<1x27xf32>
    %89 = vector.broadcast %88 : vector<1x27xf32> to vector<16x27xf32>
    %90 = arith.mulf %85, %89 : vector<16x27xf32>
    %c0_64 = arith.constant 0 : index
    %c0_65 = arith.constant 0 : index
    %c0_66 = arith.constant 0 : index
    %91 = vector.load %arg25[%c0_64, %c0_65, %c0_66] : memref<2x16x1xf32, #tpu.memory_space<vmem>>, vector<1x16x1xf32>
    %92 = vector.shape_cast %91 : vector<1x16x1xf32> to vector<16x1xf32>
    %93 = vector.broadcast %92 : vector<16x1xf32> to vector<16x27xf32>
    %94 = arith.mulf %90, %93 : vector<16x27xf32>
    %c0_67 = arith.constant 0 : index
    %c0_68 = arith.constant 0 : index
    %c0_69 = arith.constant 0 : index
    %95 = vector.load %arg26[%c0_67, %c0_68, %c0_69] : memref<2x16x1xf32, #tpu.memory_space<vmem>>, vector<1x16x1xf32>
    %96 = vector.shape_cast %95 : vector<1x16x1xf32> to vector<16x1xf32>
    %97 = vector.broadcast %96 : vector<16x1xf32> to vector<16x27xf32>
    %98 = arith.addf %94, %97 : vector<16x27xf32>
    %99 = vector.shape_cast %98 : vector<16x27xf32> to vector<1x16x27xf32>
    %100 = vector.shape_cast %99 : vector<1x16x27xf32> to vector<1x16x27xf32>
    %101 = vector.broadcast %100 : vector<1x16x27xf32> to vector<9x16x27xf32>
    %102 = vector.shape_cast %101 : vector<9x16x27xf32> to vector<144x27xf32>
    %103 = arith.mulf %102, %21 : vector<144x27xf32>
    %cst_70 = arith.constant dense<0.000000e+00> : vector<144x6xf32>
    %104 = tpu.matmul %103, %23, %cst_70 {dimension_numbers = #tpu.dot_dimension_numbers<[1], [0], [0], [1], [0, 0, 1, 1], [], []>} : vector<144x27xf32>, vector<27x6xf32>, vector<144x6xf32> -> vector<144x6xf32>
    %105 = arith.mulf %104, %25 : vector<144x6xf32>
    %cst_71 = arith.constant dense<0.000000e+00> : vector<54x16xf32>
    %106 = tpu.matmul %31, %34, %cst_71 {dimension_numbers = #tpu.dot_dimension_numbers<[1], [0], [0], [1], [0, 0, 1, 1], [], []>} : vector<54x16xf32>, vector<16x16xf32>, vector<54x16xf32> -> vector<54x16xf32>
    %107 = vector.broadcast %36 : vector<1x16xf32> to vector<54x16xf32>
    %108 = arith.addf %106, %107 : vector<54x16xf32>
    %109 = arith.mulf %108, %27 : vector<54x16xf32>
    %cst_72 = arith.constant dense<0.000000e+00> : vector<64x144xf32>
    %110 = tpu.matmul %65, %5, %cst_72 {dimension_numbers = #tpu.dot_dimension_numbers<[1], [0], [0], [1], [0, 0, 1, 1], [], []>} : vector<64x16xf32>, vector<16x144xf32>, vector<64x144xf32> -> vector<64x144xf32>
    %111 = vector.shape_cast %110 : vector<64x144xf32> to vector<1x64x144xf32>
    %112 = vector.shape_cast %111 : vector<1x64x144xf32> to vector<1x64x144xf32>
    %113 = vector.broadcast %112 : vector<1x64x144xf32> to vector<9x64x144xf32>
    %114 = vector.shape_cast %113 : vector<9x64x144xf32> to vector<576x144xf32>
    %115 = arith.mulf %114, %13 : vector<576x144xf32>
    %cst_73 = arith.constant dense<0.000000e+00> : vector<64x144xf32>
    %116 = tpu.matmul %1, %115, %cst_73 {dimension_numbers = #tpu.dot_dimension_numbers<[1], [0], [0], [1], [0, 0, 1, 1], [], []>} : vector<64x576xf32>, vector<576x144xf32>, vector<64x144xf32> -> vector<64x144xf32>
    %cst_74 = arith.constant dense<0.000000e+00> : vector<64x6xf32>
    %117 = tpu.matmul %116, %105, %cst_74 {dimension_numbers = #tpu.dot_dimension_numbers<[1], [0], [0], [1], [0, 0, 1, 1], [], []>} : vector<64x144xf32>, vector<144x6xf32>, vector<64x6xf32> -> vector<64x6xf32>
    %cst_75 = arith.constant 0.0833333358 : f32
    %118 = vector.broadcast %cst_75 : f32 to vector<64x6xf32>
    %119 = arith.mulf %117, %118 : vector<64x6xf32>
    %cst_76 = arith.constant dense<0xFF800000> : vector<6xf32>
    %120 = vector.multi_reduction <maximumf>, %119, %cst_76 [0] : vector<64x6xf32> to vector<6xf32>
    %121 = vector.shape_cast %120 : vector<6xf32> to vector<1x6xf32>
    %122 = vector.broadcast %121 : vector<1x6xf32> to vector<64x6xf32>
    %123 = arith.subf %119, %122 : vector<64x6xf32>
    %124 = math.exp %123 : vector<64x6xf32>
    %cst_77 = arith.constant dense<0xFF800000> : vector<64xf32>
    %125 = vector.multi_reduction <maximumf>, %119, %cst_77 [1] : vector<64x6xf32> to vector<64xf32>
    %126 = vector.shape_cast %125 : vector<64xf32> to vector<64x1xf32>
    %127 = vector.broadcast %126 : vector<64x1xf32> to vector<64x6xf32>
    %128 = arith.subf %119, %127 : vector<64x6xf32>
    %129 = math.exp %128 : vector<64x6xf32>
    %cst_78 = arith.constant dense<0.000000e+00> : vector<64x6xf32>
    %130 = tpu.matmul %129, %29, %cst_78 {dimension_numbers = #tpu.dot_dimension_numbers<[1], [0], [0], [1], [0, 0, 1, 1], [], []>} : vector<64x6xf32>, vector<6x6xf32>, vector<64x6xf32> -> vector<64x6xf32>
    %131 = arith.divf %129, %130 : vector<64x6xf32>
    %132 = arith.mulf %124, %131 : vector<64x6xf32>
    %cst_79 = arith.constant dense<0.000000e+00> : vector<64x54xf32>
    %133 = tpu.matmul %132, %7, %cst_79 {dimension_numbers = #tpu.dot_dimension_numbers<[1], [0], [0], [1], [0, 0, 1, 1], [], []>} : vector<64x6xf32>, vector<6x54xf32>, vector<64x54xf32> -> vector<64x54xf32>
    %134 = vector.shape_cast %133 : vector<64x54xf32> to vector<1x64x54xf32>
    %135 = vector.shape_cast %134 : vector<1x64x54xf32> to vector<1x64x54xf32>
    %136 = vector.broadcast %135 : vector<1x64x54xf32> to vector<9x64x54xf32>
    %137 = vector.shape_cast %136 : vector<9x64x54xf32> to vector<576x54xf32>
    %138 = arith.mulf %137, %15 : vector<576x54xf32>
    %cst_80 = arith.constant dense<0.000000e+00> : vector<64x54xf32>
    %139 = tpu.matmul %1, %138, %cst_80 {dimension_numbers = #tpu.dot_dimension_numbers<[1], [0], [0], [1], [0, 0, 1, 1], [], []>} : vector<64x576xf32>, vector<576x54xf32>, vector<64x54xf32> -> vector<64x54xf32>
    %cst_81 = arith.constant dense<0.000000e+00> : vector<64x16xf32>
    %140 = tpu.matmul %139, %109, %cst_81 {dimension_numbers = #tpu.dot_dimension_numbers<[1], [0], [0], [1], [0, 0, 1, 1], [], []>} : vector<64x54xf32>, vector<54x16xf32>, vector<64x16xf32> -> vector<64x16xf32>
    %c0_82 = arith.constant 0 : index
    %c0_83 = arith.constant 0 : index
    %c0_84 = arith.constant 0 : index
    %141 = vector.load %arg27[%c0_82, %c0_83, %c0_84] : memref<2x16x16xf32, #tpu.memory_space<vmem>>, vector<1x16x16xf32>
    %142 = vector.shape_cast %141 : vector<1x16x16xf32> to vector<16x16xf32>
    %cst_85 = arith.constant dense<0.000000e+00> : vector<64x16xf32>
    %143 = tpu.matmul %140, %142, %cst_85 {dimension_numbers = #tpu.dot_dimension_numbers<[1], [0], [0], [1], [0, 0, 1, 1], [], []>} : vector<64x16xf32>, vector<16x16xf32>, vector<64x16xf32> -> vector<64x16xf32>
    %c0_86 = arith.constant 0 : index
    %c0_87 = arith.constant 0 : index
    %c0_88 = arith.constant 0 : index
    %144 = vector.load %arg28[%c0_86, %c0_87, %c0_88] : memref<2x1x16xf32, #tpu.memory_space<vmem>>, vector<1x1x16xf32>
    %145 = vector.shape_cast %144 : vector<1x1x16xf32> to vector<1x16xf32>
    %146 = vector.broadcast %145 : vector<1x16xf32> to vector<64x16xf32>
    %147 = arith.addf %143, %146 : vector<64x16xf32>
    %148 = arith.addf %32, %147 : vector<64x16xf32>
    %c0_89 = arith.constant 0 : index
    %c0_90 = arith.constant 0 : index
    %c0_91 = arith.constant 0 : index
    %149 = vector.load %arg33[%c0_89, %c0_90, %c0_91] : memref<2x1x16xf32, #tpu.memory_space<vmem>>, vector<1x1x16xf32>
    %150 = vector.shape_cast %149 : vector<1x1x16xf32> to vector<1x16xf32>
    %c0_92 = arith.constant 0 : index
    %c0_93 = arith.constant 0 : index
    %c0_94 = arith.constant 0 : index
    %151 = vector.load %arg34[%c0_92, %c0_93, %c0_94] : memref<2x1x16xf32, #tpu.memory_space<vmem>>, vector<1x1x16xf32>
    %152 = vector.shape_cast %151 : vector<1x1x16xf32> to vector<1x16xf32>
    %cst_95 = arith.constant dense<0.000000e+00> : vector<64xf32>
    %153 = vector.multi_reduction <add>, %148, %cst_95 [1] : vector<64x16xf32> to vector<64xf32>
    %154 = vector.shape_cast %153 : vector<64xf32> to vector<64x1xf32>
    %cst_96 = arith.constant 1.600000e+01 : f32
    %155 = vector.broadcast %cst_96 : f32 to vector<64x1xf32>
    %156 = arith.divf %154, %155 : vector<64x1xf32>
    %157 = vector.broadcast %156 : vector<64x1xf32> to vector<64x16xf32>
    %158 = arith.subf %148, %157 : vector<64x16xf32>
    %159 = arith.mulf %158, %158 : vector<64x16xf32>
    %cst_97 = arith.constant dense<0.000000e+00> : vector<64xf32>
    %160 = vector.multi_reduction <add>, %159, %cst_97 [1] : vector<64x16xf32> to vector<64xf32>
    %161 = vector.shape_cast %160 : vector<64xf32> to vector<64x1xf32>
    %cst_98 = arith.constant 1.600000e+01 : f32
    %162 = vector.broadcast %cst_98 : f32 to vector<64x1xf32>
    %163 = arith.divf %161, %162 : vector<64x1xf32>
    %164 = vector.broadcast %156 : vector<64x1xf32> to vector<64x16xf32>
    %165 = arith.subf %148, %164 : vector<64x16xf32>
    %cst_99 = arith.constant 9.99999974E-6 : f32
    %166 = vector.broadcast %cst_99 : f32 to vector<64x1xf32>
    %167 = arith.addf %163, %166 : vector<64x1xf32>
    %168 = math.rsqrt %167 : vector<64x1xf32>
    %169 = vector.broadcast %168 : vector<64x1xf32> to vector<64x16xf32>
    %170 = arith.mulf %165, %169 : vector<64x16xf32>
    %171 = vector.broadcast %150 : vector<1x16xf32> to vector<64x16xf32>
    %172 = arith.mulf %170, %171 : vector<64x16xf32>
    %173 = vector.broadcast %152 : vector<1x16xf32> to vector<64x16xf32>
    %174 = arith.addf %172, %173 : vector<64x16xf32>
    %cst_100 = arith.constant dense<0.000000e+00> : vector<64x144xf32>
    %175 = tpu.matmul %174, %9, %cst_100 {dimension_numbers = #tpu.dot_dimension_numbers<[1], [0], [0], [1], [0, 0, 1, 1], [], []>} : vector<64x16xf32>, vector<16x144xf32>, vector<64x144xf32> -> vector<64x144xf32>
    %176 = vector.shape_cast %175 : vector<64x144xf32> to vector<1x64x144xf32>
    %177 = vector.shape_cast %176 : vector<1x64x144xf32> to vector<1x64x144xf32>
    %178 = vector.broadcast %177 : vector<1x64x144xf32> to vector<9x64x144xf32>
    %179 = vector.shape_cast %178 : vector<9x64x144xf32> to vector<576x144xf32>
    %180 = arith.mulf %179, %17 : vector<576x144xf32>
    %cst_101 = arith.constant dense<0.000000e+00> : vector<64x144xf32>
    %181 = tpu.matmul %3, %180, %cst_101 {dimension_numbers = #tpu.dot_dimension_numbers<[1], [0], [0], [1], [0, 0, 1, 1], [], []>} : vector<64x576xf32>, vector<576x144xf32>, vector<64x144xf32> -> vector<64x144xf32>
    %c0_102 = arith.constant 0 : index
    %c0_103 = arith.constant 0 : index
    %c0_104 = arith.constant 0 : index
    %182 = vector.load %arg29[%c0_102, %c0_103, %c0_104] : memref<2x144x16xf32, #tpu.memory_space<vmem>>, vector<1x144x16xf32>
    %183 = vector.shape_cast %182 : vector<1x144x16xf32> to vector<144x16xf32>
    %cst_105 = arith.constant dense<0.000000e+00> : vector<64x16xf32>
    %184 = tpu.matmul %181, %183, %cst_105 {dimension_numbers = #tpu.dot_dimension_numbers<[1], [0], [0], [1], [0, 0, 1, 1], [], []>} : vector<64x144xf32>, vector<144x16xf32>, vector<64x16xf32> -> vector<64x16xf32>
    %c0_106 = arith.constant 0 : index
    %c0_107 = arith.constant 0 : index
    %c0_108 = arith.constant 0 : index
    %185 = vector.load %arg30[%c0_106, %c0_107, %c0_108] : memref<2x1x16xf32, #tpu.memory_space<vmem>>, vector<1x1x16xf32>
    %186 = vector.shape_cast %185 : vector<1x1x16xf32> to vector<1x16xf32>
    %187 = vector.broadcast %186 : vector<1x16xf32> to vector<64x16xf32>
    %188 = arith.addf %184, %187 : vector<64x16xf32>
    %cst_109 = arith.constant 0.000000e+00 : f32
    %189 = vector.broadcast %cst_109 : f32 to vector<64x16xf32>
    %190 = arith.maximumf %188, %189 : vector<64x16xf32>
    %cst_110 = arith.constant dense<0.000000e+00> : vector<64x144xf32>
    %191 = tpu.matmul %190, %11, %cst_110 {dimension_numbers = #tpu.dot_dimension_numbers<[1], [0], [0], [1], [0, 0, 1, 1], [], []>} : vector<64x16xf32>, vector<16x144xf32>, vector<64x144xf32> -> vector<64x144xf32>
    %192 = vector.shape_cast %191 : vector<64x144xf32> to vector<1x64x144xf32>
    %193 = vector.shape_cast %192 : vector<1x64x144xf32> to vector<1x64x144xf32>
    %194 = vector.broadcast %193 : vector<1x64x144xf32> to vector<9x64x144xf32>
    %195 = vector.shape_cast %194 : vector<9x64x144xf32> to vector<576x144xf32>
    %196 = arith.mulf %195, %19 : vector<576x144xf32>
    %cst_111 = arith.constant dense<0.000000e+00> : vector<64x144xf32>
    %197 = tpu.matmul %3, %196, %cst_111 {dimension_numbers = #tpu.dot_dimension_numbers<[1], [0], [0], [1], [0, 0, 1, 1], [], []>} : vector<64x576xf32>, vector<576x144xf32>, vector<64x144xf32> -> vector<64x144xf32>
    %c0_112 = arith.constant 0 : index
    %c0_113 = arith.constant 0 : index
    %c0_114 = arith.constant 0 : index
    %198 = vector.load %arg31[%c0_112, %c0_113, %c0_114] : memref<2x144x16xf32, #tpu.memory_space<vmem>>, vector<1x144x16xf32>
    %199 = vector.shape_cast %198 : vector<1x144x16xf32> to vector<144x16xf32>
    %cst_115 = arith.constant dense<0.000000e+00> : vector<64x16xf32>
    %200 = tpu.matmul %197, %199, %cst_115 {dimension_numbers = #tpu.dot_dimension_numbers<[1], [0], [0], [1], [0, 0, 1, 1], [], []>} : vector<64x144xf32>, vector<144x16xf32>, vector<64x16xf32> -> vector<64x16xf32>
    %c0_116 = arith.constant 0 : index
    %c0_117 = arith.constant 0 : index
    %c0_118 = arith.constant 0 : index
    %201 = vector.load %arg32[%c0_116, %c0_117, %c0_118] : memref<2x1x16xf32, #tpu.memory_space<vmem>>, vector<1x1x16xf32>
    %202 = vector.shape_cast %201 : vector<1x1x16xf32> to vector<1x16xf32>
    %203 = vector.broadcast %202 : vector<1x16xf32> to vector<64x16xf32>
    %204 = arith.addf %200, %203 : vector<64x16xf32>
    %205 = arith.addf %174, %204 : vector<64x16xf32>
    %c0_119 = arith.constant 0 : index
    %c0_120 = arith.constant 0 : index
    %c0_121 = arith.constant 0 : index
    %206 = vector.load %arg35[%c0_119, %c0_120, %c0_121] : memref<2x1x16xf32, #tpu.memory_space<vmem>>, vector<1x1x16xf32>
    %207 = vector.shape_cast %206 : vector<1x1x16xf32> to vector<1x16xf32>
    %c0_122 = arith.constant 0 : index
    %c0_123 = arith.constant 0 : index
    %c0_124 = arith.constant 0 : index
    %208 = vector.load %arg36[%c0_122, %c0_123, %c0_124] : memref<2x1x16xf32, #tpu.memory_space<vmem>>, vector<1x1x16xf32>
    %209 = vector.shape_cast %208 : vector<1x1x16xf32> to vector<1x16xf32>
    %cst_125 = arith.constant dense<0.000000e+00> : vector<64xf32>
    %210 = vector.multi_reduction <add>, %205, %cst_125 [1] : vector<64x16xf32> to vector<64xf32>
    %211 = vector.shape_cast %210 : vector<64xf32> to vector<64x1xf32>
    %cst_126 = arith.constant 1.600000e+01 : f32
    %212 = vector.broadcast %cst_126 : f32 to vector<64x1xf32>
    %213 = arith.divf %211, %212 : vector<64x1xf32>
    %214 = vector.broadcast %213 : vector<64x1xf32> to vector<64x16xf32>
    %215 = arith.subf %205, %214 : vector<64x16xf32>
    %216 = arith.mulf %215, %215 : vector<64x16xf32>
    %cst_127 = arith.constant dense<0.000000e+00> : vector<64xf32>
    %217 = vector.multi_reduction <add>, %216, %cst_127 [1] : vector<64x16xf32> to vector<64xf32>
    %218 = vector.shape_cast %217 : vector<64xf32> to vector<64x1xf32>
    %cst_128 = arith.constant 1.600000e+01 : f32
    %219 = vector.broadcast %cst_128 : f32 to vector<64x1xf32>
    %220 = arith.divf %218, %219 : vector<64x1xf32>
    %221 = vector.broadcast %213 : vector<64x1xf32> to vector<64x16xf32>
    %222 = arith.subf %205, %221 : vector<64x16xf32>
    %cst_129 = arith.constant 9.99999974E-6 : f32
    %223 = vector.broadcast %cst_129 : f32 to vector<64x1xf32>
    %224 = arith.addf %220, %223 : vector<64x1xf32>
    %225 = math.rsqrt %224 : vector<64x1xf32>
    %226 = vector.broadcast %225 : vector<64x1xf32> to vector<64x16xf32>
    %227 = arith.mulf %222, %226 : vector<64x16xf32>
    %228 = vector.broadcast %207 : vector<1x16xf32> to vector<64x16xf32>
    %229 = arith.mulf %227, %228 : vector<64x16xf32>
    %230 = vector.broadcast %209 : vector<1x16xf32> to vector<64x16xf32>
    %231 = arith.addf %229, %230 : vector<64x16xf32>
    %c1 = arith.constant 1 : index
    %c0_130 = arith.constant 0 : index
    %c0_131 = arith.constant 0 : index
    %232 = vector.load %arg19[%c1, %c0_130, %c0_131] : memref<2x16x16xf32, #tpu.memory_space<vmem>>, vector<1x16x16xf32>
    %233 = vector.shape_cast %232 : vector<1x16x16xf32> to vector<16x16xf32>
    %c1_132 = arith.constant 1 : index
    %c0_133 = arith.constant 0 : index
    %c0_134 = arith.constant 0 : index
    %234 = vector.load %arg21[%c1_132, %c0_133, %c0_134] : memref<2x1x16xf32, #tpu.memory_space<vmem>>, vector<1x1x16xf32>
    %235 = vector.shape_cast %234 : vector<1x1x16xf32> to vector<1x16xf32>
    %cst_135 = arith.constant dense<0.000000e+00> : vector<64x16xf32>
    %236 = tpu.matmul %231, %233, %cst_135 {dimension_numbers = #tpu.dot_dimension_numbers<[1], [0], [0], [1], [0, 0, 1, 1], [], []>} : vector<64x16xf32>, vector<16x16xf32>, vector<64x16xf32> -> vector<64x16xf32>
    %237 = vector.broadcast %235 : vector<1x16xf32> to vector<64x16xf32>
    %238 = arith.addf %236, %237 : vector<64x16xf32>
    %c1_136 = arith.constant 1 : index
    %c0_137 = arith.constant 0 : index
    %c0_138 = arith.constant 0 : index
    %239 = vector.load %arg23[%c1_136, %c0_137, %c0_138] : memref<2x1x16xf32, #tpu.memory_space<vmem>>, vector<1x1x16xf32>
    %240 = vector.shape_cast %239 : vector<1x1x16xf32> to vector<1x16xf32>
    %c1_139 = arith.constant 1 : index
    %c0_140 = arith.constant 0 : index
    %c0_141 = arith.constant 0 : index
    %241 = vector.load %arg24[%c1_139, %c0_140, %c0_141] : memref<2x1x16xf32, #tpu.memory_space<vmem>>, vector<1x1x16xf32>
    %242 = vector.shape_cast %241 : vector<1x1x16xf32> to vector<1x16xf32>
    %cst_142 = arith.constant dense<0.000000e+00> : vector<64xf32>
    %243 = vector.multi_reduction <add>, %238, %cst_142 [1] : vector<64x16xf32> to vector<64xf32>
    %244 = vector.shape_cast %243 : vector<64xf32> to vector<64x1xf32>
    %cst_143 = arith.constant 1.600000e+01 : f32
    %245 = vector.broadcast %cst_143 : f32 to vector<64x1xf32>
    %246 = arith.divf %244, %245 : vector<64x1xf32>
    %247 = vector.broadcast %246 : vector<64x1xf32> to vector<64x16xf32>
    %248 = arith.subf %238, %247 : vector<64x16xf32>
    %249 = arith.mulf %248, %248 : vector<64x16xf32>
    %cst_144 = arith.constant dense<0.000000e+00> : vector<64xf32>
    %250 = vector.multi_reduction <add>, %249, %cst_144 [1] : vector<64x16xf32> to vector<64xf32>
    %251 = vector.shape_cast %250 : vector<64xf32> to vector<64x1xf32>
    %cst_145 = arith.constant 1.600000e+01 : f32
    %252 = vector.broadcast %cst_145 : f32 to vector<64x1xf32>
    %253 = arith.divf %251, %252 : vector<64x1xf32>
    %254 = vector.broadcast %246 : vector<64x1xf32> to vector<64x16xf32>
    %255 = arith.subf %238, %254 : vector<64x16xf32>
    %cst_146 = arith.constant 9.99999974E-6 : f32
    %256 = vector.broadcast %cst_146 : f32 to vector<64x1xf32>
    %257 = arith.addf %253, %256 : vector<64x1xf32>
    %258 = math.rsqrt %257 : vector<64x1xf32>
    %259 = vector.broadcast %258 : vector<64x1xf32> to vector<64x16xf32>
    %260 = arith.mulf %255, %259 : vector<64x16xf32>
    %261 = vector.broadcast %240 : vector<1x16xf32> to vector<64x16xf32>
    %262 = arith.mulf %260, %261 : vector<64x16xf32>
    %263 = vector.broadcast %242 : vector<1x16xf32> to vector<64x16xf32>
    %264 = arith.addf %262, %263 : vector<64x16xf32>
    %c1_147 = arith.constant 1 : index
    %c0_148 = arith.constant 0 : index
    %c0_149 = arith.constant 0 : index
    %265 = vector.load %arg20[%c1_147, %c0_148, %c0_149] : memref<2x16x16xf32, #tpu.memory_space<vmem>>, vector<1x16x16xf32>
    %266 = vector.shape_cast %265 : vector<1x16x16xf32> to vector<16x16xf32>
    %cst_150 = arith.constant dense<0.000000e+00> : vector<16x27xf32>
    %267 = tpu.matmul %266, %30, %cst_150 {dimension_numbers = #tpu.dot_dimension_numbers<[1], [0], [0], [1], [0, 0, 1, 1], [], []>} : vector<16x16xf32>, vector<16x27xf32>, vector<16x27xf32> -> vector<16x27xf32>
    %c1_151 = arith.constant 1 : index
    %c0_152 = arith.constant 0 : index
    %c0_153 = arith.constant 0 : index
    %268 = vector.load %arg22[%c1_151, %c0_152, %c0_153] : memref<2x16x1xf32, #tpu.memory_space<vmem>>, vector<1x16x1xf32>
    %269 = vector.shape_cast %268 : vector<1x16x1xf32> to vector<16x1xf32>
    %270 = vector.broadcast %269 : vector<16x1xf32> to vector<16x27xf32>
    %271 = arith.addf %267, %270 : vector<16x27xf32>
    %cst_154 = arith.constant dense<0.000000e+00> : vector<27xf32>
    %272 = vector.multi_reduction <add>, %271, %cst_154 [0] : vector<16x27xf32> to vector<27xf32>
    %273 = vector.shape_cast %272 : vector<27xf32> to vector<1x27xf32>
    %cst_155 = arith.constant 1.600000e+01 : f32
    %274 = vector.broadcast %cst_155 : f32 to vector<1x27xf32>
    %275 = arith.divf %273, %274 : vector<1x27xf32>
    %276 = vector.broadcast %275 : vector<1x27xf32> to vector<16x27xf32>
    %277 = arith.subf %271, %276 : vector<16x27xf32>
    %278 = arith.mulf %277, %277 : vector<16x27xf32>
    %cst_156 = arith.constant dense<0.000000e+00> : vector<27xf32>
    %279 = vector.multi_reduction <add>, %278, %cst_156 [0] : vector<16x27xf32> to vector<27xf32>
    %280 = vector.shape_cast %279 : vector<27xf32> to vector<1x27xf32>
    %cst_157 = arith.constant 1.600000e+01 : f32
    %281 = vector.broadcast %cst_157 : f32 to vector<1x27xf32>
    %282 = arith.divf %280, %281 : vector<1x27xf32>
    %283 = vector.broadcast %275 : vector<1x27xf32> to vector<16x27xf32>
    %284 = arith.subf %271, %283 : vector<16x27xf32>
    %cst_158 = arith.constant 9.99999974E-6 : f32
    %285 = vector.broadcast %cst_158 : f32 to vector<1x27xf32>
    %286 = arith.addf %282, %285 : vector<1x27xf32>
    %287 = math.rsqrt %286 : vector<1x27xf32>
    %288 = vector.broadcast %287 : vector<1x27xf32> to vector<16x27xf32>
    %289 = arith.mulf %284, %288 : vector<16x27xf32>
    %c1_159 = arith.constant 1 : index
    %c0_160 = arith.constant 0 : index
    %c0_161 = arith.constant 0 : index
    %290 = vector.load %arg25[%c1_159, %c0_160, %c0_161] : memref<2x16x1xf32, #tpu.memory_space<vmem>>, vector<1x16x1xf32>
    %291 = vector.shape_cast %290 : vector<1x16x1xf32> to vector<16x1xf32>
    %292 = vector.broadcast %291 : vector<16x1xf32> to vector<16x27xf32>
    %293 = arith.mulf %289, %292 : vector<16x27xf32>
    %c1_162 = arith.constant 1 : index
    %c0_163 = arith.constant 0 : index
    %c0_164 = arith.constant 0 : index
    %294 = vector.load %arg26[%c1_162, %c0_163, %c0_164] : memref<2x16x1xf32, #tpu.memory_space<vmem>>, vector<1x16x1xf32>
    %295 = vector.shape_cast %294 : vector<1x16x1xf32> to vector<16x1xf32>
    %296 = vector.broadcast %295 : vector<16x1xf32> to vector<16x27xf32>
    %297 = arith.addf %293, %296 : vector<16x27xf32>
    %298 = vector.shape_cast %297 : vector<16x27xf32> to vector<1x16x27xf32>
    %299 = vector.shape_cast %298 : vector<1x16x27xf32> to vector<1x16x27xf32>
    %300 = vector.broadcast %299 : vector<1x16x27xf32> to vector<9x16x27xf32>
    %301 = vector.shape_cast %300 : vector<9x16x27xf32> to vector<144x27xf32>
    %302 = arith.mulf %301, %21 : vector<144x27xf32>
    %cst_165 = arith.constant dense<0.000000e+00> : vector<144x6xf32>
    %303 = tpu.matmul %302, %23, %cst_165 {dimension_numbers = #tpu.dot_dimension_numbers<[1], [0], [0], [1], [0, 0, 1, 1], [], []>} : vector<144x27xf32>, vector<27x6xf32>, vector<144x6xf32> -> vector<144x6xf32>
    %304 = arith.mulf %303, %25 : vector<144x6xf32>
    %cst_166 = arith.constant dense<0.000000e+00> : vector<54x16xf32>
    %305 = tpu.matmul %31, %233, %cst_166 {dimension_numbers = #tpu.dot_dimension_numbers<[1], [0], [0], [1], [0, 0, 1, 1], [], []>} : vector<54x16xf32>, vector<16x16xf32>, vector<54x16xf32> -> vector<54x16xf32>
    %306 = vector.broadcast %235 : vector<1x16xf32> to vector<54x16xf32>
    %307 = arith.addf %305, %306 : vector<54x16xf32>
    %308 = arith.mulf %307, %27 : vector<54x16xf32>
    %cst_167 = arith.constant dense<0.000000e+00> : vector<64x144xf32>
    %309 = tpu.matmul %264, %5, %cst_167 {dimension_numbers = #tpu.dot_dimension_numbers<[1], [0], [0], [1], [0, 0, 1, 1], [], []>} : vector<64x16xf32>, vector<16x144xf32>, vector<64x144xf32> -> vector<64x144xf32>
    %310 = vector.shape_cast %309 : vector<64x144xf32> to vector<1x64x144xf32>
    %311 = vector.shape_cast %310 : vector<1x64x144xf32> to vector<1x64x144xf32>
    %312 = vector.broadcast %311 : vector<1x64x144xf32> to vector<9x64x144xf32>
    %313 = vector.shape_cast %312 : vector<9x64x144xf32> to vector<576x144xf32>
    %314 = arith.mulf %313, %13 : vector<576x144xf32>
    %cst_168 = arith.constant dense<0.000000e+00> : vector<64x144xf32>
    %315 = tpu.matmul %1, %314, %cst_168 {dimension_numbers = #tpu.dot_dimension_numbers<[1], [0], [0], [1], [0, 0, 1, 1], [], []>} : vector<64x576xf32>, vector<576x144xf32>, vector<64x144xf32> -> vector<64x144xf32>
    %cst_169 = arith.constant dense<0.000000e+00> : vector<64x6xf32>
    %316 = tpu.matmul %315, %304, %cst_169 {dimension_numbers = #tpu.dot_dimension_numbers<[1], [0], [0], [1], [0, 0, 1, 1], [], []>} : vector<64x144xf32>, vector<144x6xf32>, vector<64x6xf32> -> vector<64x6xf32>
    %cst_170 = arith.constant 0.0833333358 : f32
    %317 = vector.broadcast %cst_170 : f32 to vector<64x6xf32>
    %318 = arith.mulf %316, %317 : vector<64x6xf32>
    %cst_171 = arith.constant dense<0xFF800000> : vector<6xf32>
    %319 = vector.multi_reduction <maximumf>, %318, %cst_171 [0] : vector<64x6xf32> to vector<6xf32>
    %320 = vector.shape_cast %319 : vector<6xf32> to vector<1x6xf32>
    %321 = vector.broadcast %320 : vector<1x6xf32> to vector<64x6xf32>
    %322 = arith.subf %318, %321 : vector<64x6xf32>
    %323 = math.exp %322 : vector<64x6xf32>
    %cst_172 = arith.constant dense<0xFF800000> : vector<64xf32>
    %324 = vector.multi_reduction <maximumf>, %318, %cst_172 [1] : vector<64x6xf32> to vector<64xf32>
    %325 = vector.shape_cast %324 : vector<64xf32> to vector<64x1xf32>
    %326 = vector.broadcast %325 : vector<64x1xf32> to vector<64x6xf32>
    %327 = arith.subf %318, %326 : vector<64x6xf32>
    %328 = math.exp %327 : vector<64x6xf32>
    %cst_173 = arith.constant dense<0.000000e+00> : vector<64x6xf32>
    %329 = tpu.matmul %328, %29, %cst_173 {dimension_numbers = #tpu.dot_dimension_numbers<[1], [0], [0], [1], [0, 0, 1, 1], [], []>} : vector<64x6xf32>, vector<6x6xf32>, vector<64x6xf32> -> vector<64x6xf32>
    %330 = arith.divf %328, %329 : vector<64x6xf32>
    %331 = arith.mulf %323, %330 : vector<64x6xf32>
    %cst_174 = arith.constant dense<0.000000e+00> : vector<64x54xf32>
    %332 = tpu.matmul %331, %7, %cst_174 {dimension_numbers = #tpu.dot_dimension_numbers<[1], [0], [0], [1], [0, 0, 1, 1], [], []>} : vector<64x6xf32>, vector<6x54xf32>, vector<64x54xf32> -> vector<64x54xf32>
    %333 = vector.shape_cast %332 : vector<64x54xf32> to vector<1x64x54xf32>
    %334 = vector.shape_cast %333 : vector<1x64x54xf32> to vector<1x64x54xf32>
    %335 = vector.broadcast %334 : vector<1x64x54xf32> to vector<9x64x54xf32>
    %336 = vector.shape_cast %335 : vector<9x64x54xf32> to vector<576x54xf32>
    %337 = arith.mulf %336, %15 : vector<576x54xf32>
    %cst_175 = arith.constant dense<0.000000e+00> : vector<64x54xf32>
    %338 = tpu.matmul %1, %337, %cst_175 {dimension_numbers = #tpu.dot_dimension_numbers<[1], [0], [0], [1], [0, 0, 1, 1], [], []>} : vector<64x576xf32>, vector<576x54xf32>, vector<64x54xf32> -> vector<64x54xf32>
    %cst_176 = arith.constant dense<0.000000e+00> : vector<64x16xf32>
    %339 = tpu.matmul %338, %308, %cst_176 {dimension_numbers = #tpu.dot_dimension_numbers<[1], [0], [0], [1], [0, 0, 1, 1], [], []>} : vector<64x54xf32>, vector<54x16xf32>, vector<64x16xf32> -> vector<64x16xf32>
    %c1_177 = arith.constant 1 : index
    %c0_178 = arith.constant 0 : index
    %c0_179 = arith.constant 0 : index
    %340 = vector.load %arg27[%c1_177, %c0_178, %c0_179] : memref<2x16x16xf32, #tpu.memory_space<vmem>>, vector<1x16x16xf32>
    %341 = vector.shape_cast %340 : vector<1x16x16xf32> to vector<16x16xf32>
    %cst_180 = arith.constant dense<0.000000e+00> : vector<64x16xf32>
    %342 = tpu.matmul %339, %341, %cst_180 {dimension_numbers = #tpu.dot_dimension_numbers<[1], [0], [0], [1], [0, 0, 1, 1], [], []>} : vector<64x16xf32>, vector<16x16xf32>, vector<64x16xf32> -> vector<64x16xf32>
    %c1_181 = arith.constant 1 : index
    %c0_182 = arith.constant 0 : index
    %c0_183 = arith.constant 0 : index
    %343 = vector.load %arg28[%c1_181, %c0_182, %c0_183] : memref<2x1x16xf32, #tpu.memory_space<vmem>>, vector<1x1x16xf32>
    %344 = vector.shape_cast %343 : vector<1x1x16xf32> to vector<1x16xf32>
    %345 = vector.broadcast %344 : vector<1x16xf32> to vector<64x16xf32>
    %346 = arith.addf %342, %345 : vector<64x16xf32>
    %347 = arith.addf %231, %346 : vector<64x16xf32>
    %c1_184 = arith.constant 1 : index
    %c0_185 = arith.constant 0 : index
    %c0_186 = arith.constant 0 : index
    %348 = vector.load %arg33[%c1_184, %c0_185, %c0_186] : memref<2x1x16xf32, #tpu.memory_space<vmem>>, vector<1x1x16xf32>
    %349 = vector.shape_cast %348 : vector<1x1x16xf32> to vector<1x16xf32>
    %c1_187 = arith.constant 1 : index
    %c0_188 = arith.constant 0 : index
    %c0_189 = arith.constant 0 : index
    %350 = vector.load %arg34[%c1_187, %c0_188, %c0_189] : memref<2x1x16xf32, #tpu.memory_space<vmem>>, vector<1x1x16xf32>
    %351 = vector.shape_cast %350 : vector<1x1x16xf32> to vector<1x16xf32>
    %cst_190 = arith.constant dense<0.000000e+00> : vector<64xf32>
    %352 = vector.multi_reduction <add>, %347, %cst_190 [1] : vector<64x16xf32> to vector<64xf32>
    %353 = vector.shape_cast %352 : vector<64xf32> to vector<64x1xf32>
    %cst_191 = arith.constant 1.600000e+01 : f32
    %354 = vector.broadcast %cst_191 : f32 to vector<64x1xf32>
    %355 = arith.divf %353, %354 : vector<64x1xf32>
    %356 = vector.broadcast %355 : vector<64x1xf32> to vector<64x16xf32>
    %357 = arith.subf %347, %356 : vector<64x16xf32>
    %358 = arith.mulf %357, %357 : vector<64x16xf32>
    %cst_192 = arith.constant dense<0.000000e+00> : vector<64xf32>
    %359 = vector.multi_reduction <add>, %358, %cst_192 [1] : vector<64x16xf32> to vector<64xf32>
    %360 = vector.shape_cast %359 : vector<64xf32> to vector<64x1xf32>
    %cst_193 = arith.constant 1.600000e+01 : f32
    %361 = vector.broadcast %cst_193 : f32 to vector<64x1xf32>
    %362 = arith.divf %360, %361 : vector<64x1xf32>
    %363 = vector.broadcast %355 : vector<64x1xf32> to vector<64x16xf32>
    %364 = arith.subf %347, %363 : vector<64x16xf32>
    %cst_194 = arith.constant 9.99999974E-6 : f32
    %365 = vector.broadcast %cst_194 : f32 to vector<64x1xf32>
    %366 = arith.addf %362, %365 : vector<64x1xf32>
    %367 = math.rsqrt %366 : vector<64x1xf32>
    %368 = vector.broadcast %367 : vector<64x1xf32> to vector<64x16xf32>
    %369 = arith.mulf %364, %368 : vector<64x16xf32>
    %370 = vector.broadcast %349 : vector<1x16xf32> to vector<64x16xf32>
    %371 = arith.mulf %369, %370 : vector<64x16xf32>
    %372 = vector.broadcast %351 : vector<1x16xf32> to vector<64x16xf32>
    %373 = arith.addf %371, %372 : vector<64x16xf32>
    %cst_195 = arith.constant dense<0.000000e+00> : vector<64x144xf32>
    %374 = tpu.matmul %373, %9, %cst_195 {dimension_numbers = #tpu.dot_dimension_numbers<[1], [0], [0], [1], [0, 0, 1, 1], [], []>} : vector<64x16xf32>, vector<16x144xf32>, vector<64x144xf32> -> vector<64x144xf32>
    %375 = vector.shape_cast %374 : vector<64x144xf32> to vector<1x64x144xf32>
    %376 = vector.shape_cast %375 : vector<1x64x144xf32> to vector<1x64x144xf32>
    %377 = vector.broadcast %376 : vector<1x64x144xf32> to vector<9x64x144xf32>
    %378 = vector.shape_cast %377 : vector<9x64x144xf32> to vector<576x144xf32>
    %379 = arith.mulf %378, %17 : vector<576x144xf32>
    %cst_196 = arith.constant dense<0.000000e+00> : vector<64x144xf32>
    %380 = tpu.matmul %3, %379, %cst_196 {dimension_numbers = #tpu.dot_dimension_numbers<[1], [0], [0], [1], [0, 0, 1, 1], [], []>} : vector<64x576xf32>, vector<576x144xf32>, vector<64x144xf32> -> vector<64x144xf32>
    %c1_197 = arith.constant 1 : index
    %c0_198 = arith.constant 0 : index
    %c0_199 = arith.constant 0 : index
    %381 = vector.load %arg29[%c1_197, %c0_198, %c0_199] : memref<2x144x16xf32, #tpu.memory_space<vmem>>, vector<1x144x16xf32>
    %382 = vector.shape_cast %381 : vector<1x144x16xf32> to vector<144x16xf32>
    %cst_200 = arith.constant dense<0.000000e+00> : vector<64x16xf32>
    %383 = tpu.matmul %380, %382, %cst_200 {dimension_numbers = #tpu.dot_dimension_numbers<[1], [0], [0], [1], [0, 0, 1, 1], [], []>} : vector<64x144xf32>, vector<144x16xf32>, vector<64x16xf32> -> vector<64x16xf32>
    %c1_201 = arith.constant 1 : index
    %c0_202 = arith.constant 0 : index
    %c0_203 = arith.constant 0 : index
    %384 = vector.load %arg30[%c1_201, %c0_202, %c0_203] : memref<2x1x16xf32, #tpu.memory_space<vmem>>, vector<1x1x16xf32>
    %385 = vector.shape_cast %384 : vector<1x1x16xf32> to vector<1x16xf32>
    %386 = vector.broadcast %385 : vector<1x16xf32> to vector<64x16xf32>
    %387 = arith.addf %383, %386 : vector<64x16xf32>
    %cst_204 = arith.constant 0.000000e+00 : f32
    %388 = vector.broadcast %cst_204 : f32 to vector<64x16xf32>
    %389 = arith.maximumf %387, %388 : vector<64x16xf32>
    %cst_205 = arith.constant dense<0.000000e+00> : vector<64x144xf32>
    %390 = tpu.matmul %389, %11, %cst_205 {dimension_numbers = #tpu.dot_dimension_numbers<[1], [0], [0], [1], [0, 0, 1, 1], [], []>} : vector<64x16xf32>, vector<16x144xf32>, vector<64x144xf32> -> vector<64x144xf32>
    %391 = vector.shape_cast %390 : vector<64x144xf32> to vector<1x64x144xf32>
    %392 = vector.shape_cast %391 : vector<1x64x144xf32> to vector<1x64x144xf32>
    %393 = vector.broadcast %392 : vector<1x64x144xf32> to vector<9x64x144xf32>
    %394 = vector.shape_cast %393 : vector<9x64x144xf32> to vector<576x144xf32>
    %395 = arith.mulf %394, %19 : vector<576x144xf32>
    %cst_206 = arith.constant dense<0.000000e+00> : vector<64x144xf32>
    %396 = tpu.matmul %3, %395, %cst_206 {dimension_numbers = #tpu.dot_dimension_numbers<[1], [0], [0], [1], [0, 0, 1, 1], [], []>} : vector<64x576xf32>, vector<576x144xf32>, vector<64x144xf32> -> vector<64x144xf32>
    %c1_207 = arith.constant 1 : index
    %c0_208 = arith.constant 0 : index
    %c0_209 = arith.constant 0 : index
    %397 = vector.load %arg31[%c1_207, %c0_208, %c0_209] : memref<2x144x16xf32, #tpu.memory_space<vmem>>, vector<1x144x16xf32>
    %398 = vector.shape_cast %397 : vector<1x144x16xf32> to vector<144x16xf32>
    %cst_210 = arith.constant dense<0.000000e+00> : vector<64x16xf32>
    %399 = tpu.matmul %396, %398, %cst_210 {dimension_numbers = #tpu.dot_dimension_numbers<[1], [0], [0], [1], [0, 0, 1, 1], [], []>} : vector<64x144xf32>, vector<144x16xf32>, vector<64x16xf32> -> vector<64x16xf32>
    %c1_211 = arith.constant 1 : index
    %c0_212 = arith.constant 0 : index
    %c0_213 = arith.constant 0 : index
    %400 = vector.load %arg32[%c1_211, %c0_212, %c0_213] : memref<2x1x16xf32, #tpu.memory_space<vmem>>, vector<1x1x16xf32>
    %401 = vector.shape_cast %400 : vector<1x1x16xf32> to vector<1x16xf32>
    %402 = vector.broadcast %401 : vector<1x16xf32> to vector<64x16xf32>
    %403 = arith.addf %399, %402 : vector<64x16xf32>
    %404 = arith.addf %373, %403 : vector<64x16xf32>
    %c1_214 = arith.constant 1 : index
    %c0_215 = arith.constant 0 : index
    %c0_216 = arith.constant 0 : index
    %405 = vector.load %arg35[%c1_214, %c0_215, %c0_216] : memref<2x1x16xf32, #tpu.memory_space<vmem>>, vector<1x1x16xf32>
    %406 = vector.shape_cast %405 : vector<1x1x16xf32> to vector<1x16xf32>
    %c1_217 = arith.constant 1 : index
    %c0_218 = arith.constant 0 : index
    %c0_219 = arith.constant 0 : index
    %407 = vector.load %arg36[%c1_217, %c0_218, %c0_219] : memref<2x1x16xf32, #tpu.memory_space<vmem>>, vector<1x1x16xf32>
    %408 = vector.shape_cast %407 : vector<1x1x16xf32> to vector<1x16xf32>
    %cst_220 = arith.constant dense<0.000000e+00> : vector<64xf32>
    %409 = vector.multi_reduction <add>, %404, %cst_220 [1] : vector<64x16xf32> to vector<64xf32>
    %410 = vector.shape_cast %409 : vector<64xf32> to vector<64x1xf32>
    %cst_221 = arith.constant 1.600000e+01 : f32
    %411 = vector.broadcast %cst_221 : f32 to vector<64x1xf32>
    %412 = arith.divf %410, %411 : vector<64x1xf32>
    %413 = vector.broadcast %412 : vector<64x1xf32> to vector<64x16xf32>
    %414 = arith.subf %404, %413 : vector<64x16xf32>
    %415 = arith.mulf %414, %414 : vector<64x16xf32>
    %cst_222 = arith.constant dense<0.000000e+00> : vector<64xf32>
    %416 = vector.multi_reduction <add>, %415, %cst_222 [1] : vector<64x16xf32> to vector<64xf32>
    %417 = vector.shape_cast %416 : vector<64xf32> to vector<64x1xf32>
    %cst_223 = arith.constant 1.600000e+01 : f32
    %418 = vector.broadcast %cst_223 : f32 to vector<64x1xf32>
    %419 = arith.divf %417, %418 : vector<64x1xf32>
    %420 = vector.broadcast %412 : vector<64x1xf32> to vector<64x16xf32>
    %421 = arith.subf %404, %420 : vector<64x16xf32>
    %cst_224 = arith.constant 9.99999974E-6 : f32
    %422 = vector.broadcast %cst_224 : f32 to vector<64x1xf32>
    %423 = arith.addf %419, %422 : vector<64x1xf32>
    %424 = math.rsqrt %423 : vector<64x1xf32>
    %425 = vector.broadcast %424 : vector<64x1xf32> to vector<64x16xf32>
    %426 = arith.mulf %421, %425 : vector<64x16xf32>
    %427 = vector.broadcast %406 : vector<1x16xf32> to vector<64x16xf32>
    %428 = arith.mulf %426, %427 : vector<64x16xf32>
    %429 = vector.broadcast %408 : vector<1x16xf32> to vector<64x16xf32>
    %430 = arith.addf %428, %429 : vector<64x16xf32>
    %c0_225 = arith.constant 0 : index
    %c0_226 = arith.constant 0 : index
    %431 = vector.load %arg37[%c0_225, %c0_226] : memref<64x16xf32, #tpu.memory_space<vmem>>, vector<64x16xf32>
    tpu.vector_store %arg37[%c0_225, %c0_226], %430 {strides = array<i32>} : memref<64x16xf32, #tpu.memory_space<vmem>>, vector<64x16xf32>,
    return
  }
  func.func @transform_0(%arg0: i32) -> (i32, i32) {
    %c0_i32 = arith.constant 0 : i32
    %c0_i32_0 = arith.constant 0 : i32
    %c0_i32_1 = arith.constant 0 : i32
    return %c0_i32, %c0_i32_0 : i32, i32
  }
  func.func @transform_1(%arg0: i32) -> (i32, i32) {
    %c0_i32 = arith.constant 0 : i32
    %c0_i32_0 = arith.constant 0 : i32
    %c0_i32_1 = arith.constant 0 : i32
    return %c0_i32, %c0_i32_0 : i32, i32
  }
  func.func @transform_2(%arg0: i32) -> (i32, i32) {
    %c0_i32 = arith.constant 0 : i32
    %c0_i32_0 = arith.constant 0 : i32
    %c0_i32_1 = arith.constant 0 : i32
    return %c0_i32, %c0_i32_0 : i32, i32
  }
  func.func @transform_3(%arg0: i32) -> (i32, i32) {
    %c0_i32 = arith.constant 0 : i32
    %c0_i32_0 = arith.constant 0 : i32
    %c0_i32_1 = arith.constant 0 : i32
    return %c0_i32, %c0_i32_0 : i32, i32
  }
  func.func @transform_4(%arg0: i32) -> (i32, i32) {
    %c0_i32 = arith.constant 0 : i32
    %c0_i32_0 = arith.constant 0 : i32
    %c0_i32_1 = arith.constant 0 : i32
    return %c0_i32, %c0_i32_0 : i32, i32
  }
  func.func @transform_5(%arg0: i32) -> (i32, i32) {
    %c0_i32 = arith.constant 0 : i32
    %c0_i32_0 = arith.constant 0 : i32
    %c0_i32_1 = arith.constant 0 : i32
    return %c0_i32, %c0_i32_0 : i32, i32
  }
  func.func @transform_6(%arg0: i32) -> (i32, i32) {
    %c0_i32 = arith.constant 0 : i32
    %c0_i32_0 = arith.constant 0 : i32
    %c0_i32_1 = arith.constant 0 : i32
    return %c0_i32, %c0_i32_0 : i32, i32
  }
  func.func @transform_7(%arg0: i32) -> (i32, i32) {
    %c0_i32 = arith.constant 0 : i32
    %c0_i32_0 = arith.constant 0 : i32
    %c0_i32_1 = arith.constant 0 : i32
    return %c0_i32, %c0_i32_0 : i32, i32
  }
  func.func @transform_8(%arg0: i32) -> (i32, i32) {
    %c0_i32 = arith.constant 0 : i32
    %c0_i32_0 = arith.constant 0 : i32
    %c0_i32_1 = arith.constant 0 : i32
    return %c0_i32, %c0_i32_0 : i32, i32
  }
  func.func @transform_9(%arg0: i32) -> (i32, i32) {
    %c0_i32 = arith.constant 0 : i32
    %c0_i32_0 = arith.constant 0 : i32
    %c0_i32_1 = arith.constant 0 : i32
    return %c0_i32, %c0_i32_0 : i32, i32
  }
  func.func @transform_10(%arg0: i32) -> (i32, i32) {
    %c0_i32 = arith.constant 0 : i32
    %c0_i32_0 = arith.constant 0 : i32
    %c0_i32_1 = arith.constant 0 : i32
    return %c0_i32, %c0_i32_0 : i32, i32
  }
  func.func @transform_11(%arg0: i32) -> (i32, i32) {
    %c0_i32 = arith.constant 0 : i32
    %c0_i32_0 = arith.constant 0 : i32
    %c0_i32_1 = arith.constant 0 : i32
    return %c0_i32, %c0_i32_0 : i32, i32
  }
  func.func @transform_12(%arg0: i32) -> (i32, i32) {
    %c0_i32 = arith.constant 0 : i32
    %c0_i32_0 = arith.constant 0 : i32
    %c0_i32_1 = arith.constant 0 : i32
    return %c0_i32, %c0_i32_0 : i32, i32
  }
  func.func @transform_13(%arg0: i32) -> (i32, i32) {
    %c0_i32 = arith.constant 0 : i32
    %c0_i32_0 = arith.constant 0 : i32
    %c0_i32_1 = arith.constant 0 : i32
    return %c0_i32, %c0_i32_0 : i32, i32
  }
  func.func @transform_14(%arg0: i32) -> (i32, i32) {
    %c0_i32 = arith.constant 0 : i32
    %c0_i32_0 = arith.constant 0 : i32
    %c0_i32_1 = arith.constant 0 : i32
    return %c0_i32, %c0_i32_0 : i32, i32
  }
  func.func @transform_15(%arg0: i32) -> (i32, i32) {
    %c0_i32 = arith.constant 0 : i32
    %c0_i32_0 = arith.constant 0 : i32
    %c0_i32_1 = arith.constant 0 : i32
    return %c0_i32, %c0_i32_0 : i32, i32
  }
  func.func @transform_16(%arg0: i32) -> (i32, i32) {
    %c0_i32 = arith.constant 0 : i32
    %c0_i32_0 = arith.constant 0 : i32
    %c0_i32_1 = arith.constant 0 : i32
    return %c0_i32, %c0_i32_0 : i32, i32
  }
  func.func @transform_17(%arg0: i32) -> (i32, i32) {
    %c0_i32 = arith.constant 0 : i32
    %c0_i32_0 = arith.constant 0 : i32
    %c0_i32_1 = arith.constant 0 : i32
    return %c0_i32, %c0_i32_0 : i32, i32
  }
  func.func @transform_18(%arg0: i32) -> (i32, i32, i32) {
    %c0_i32 = arith.constant 0 : i32
    %c0_i32_0 = arith.constant 0 : i32
    %c0_i32_1 = arith.constant 0 : i32
    %c0_i32_2 = arith.constant 0 : i32
    return %c0_i32, %c0_i32_0, %c0_i32_1 : i32, i32, i32
  }
  func.func @transform_19(%arg0: i32) -> (i32, i32, i32) {
    %c0_i32 = arith.constant 0 : i32
    %c0_i32_0 = arith.constant 0 : i32
    %c0_i32_1 = arith.constant 0 : i32
    %c0_i32_2 = arith.constant 0 : i32
    return %c0_i32, %c0_i32_0, %c0_i32_1 : i32, i32, i32
  }
  func.func @transform_20(%arg0: i32) -> (i32, i32, i32) {
    %c0_i32 = arith.constant 0 : i32
    %c0_i32_0 = arith.constant 0 : i32
    %c0_i32_1 = arith.constant 0 : i32
    %c0_i32_2 = arith.constant 0 : i32
    return %c0_i32, %c0_i32_0, %c0_i32_1 : i32, i32, i32
  }
  func.func @transform_21(%arg0: i32) -> (i32, i32, i32) {
    %c0_i32 = arith.constant 0 : i32
    %c0_i32_0 = arith.constant 0 : i32
    %c0_i32_1 = arith.constant 0 : i32
    %c0_i32_2 = arith.constant 0 : i32
    return %c0_i32, %c0_i32_0, %c0_i32_1 : i32, i32, i32
  }
  func.func @transform_22(%arg0: i32) -> (i32, i32, i32) {
    %c0_i32 = arith.constant 0 : i32
    %c0_i32_0 = arith.constant 0 : i32
    %c0_i32_1 = arith.constant 0 : i32
    %c0_i32_2 = arith.constant 0 : i32
    return %c0_i32, %c0_i32_0, %c0_i32_1 : i32, i32, i32
  }
  func.func @transform_23(%arg0: i32) -> (i32, i32, i32) {
    %c0_i32 = arith.constant 0 : i32
    %c0_i32_0 = arith.constant 0 : i32
    %c0_i32_1 = arith.constant 0 : i32
    %c0_i32_2 = arith.constant 0 : i32
    return %c0_i32, %c0_i32_0, %c0_i32_1 : i32, i32, i32
  }
  func.func @transform_24(%arg0: i32) -> (i32, i32, i32) {
    %c0_i32 = arith.constant 0 : i32
    %c0_i32_0 = arith.constant 0 : i32
    %c0_i32_1 = arith.constant 0 : i32
    %c0_i32_2 = arith.constant 0 : i32
    return %c0_i32, %c0_i32_0, %c0_i32_1 : i32, i32, i32
  }
  func.func @transform_25(%arg0: i32) -> (i32, i32, i32) {
    %c0_i32 = arith.constant 0 : i32
    %c0_i32_0 = arith.constant 0 : i32
    %c0_i32_1 = arith.constant 0 : i32
    %c0_i32_2 = arith.constant 0 : i32
    return %c0_i32, %c0_i32_0, %c0_i32_1 : i32, i32, i32
  }
  func.func @transform_26(%arg0: i32) -> (i32, i32, i32) {
    %c0_i32 = arith.constant 0 : i32
    %c0_i32_0 = arith.constant 0 : i32
    %c0_i32_1 = arith.constant 0 : i32
    %c0_i32_2 = arith.constant 0 : i32
    return %c0_i32, %c0_i32_0, %c0_i32_1 : i32, i32, i32
  }
  func.func @transform_27(%arg0: i32) -> (i32, i32, i32) {
    %c0_i32 = arith.constant 0 : i32
    %c0_i32_0 = arith.constant 0 : i32
    %c0_i32_1 = arith.constant 0 : i32
    %c0_i32_2 = arith.constant 0 : i32
    return %c0_i32, %c0_i32_0, %c0_i32_1 : i32, i32, i32
  }
  func.func @transform_28(%arg0: i32) -> (i32, i32, i32) {
    %c0_i32 = arith.constant 0 : i32
    %c0_i32_0 = arith.constant 0 : i32
    %c0_i32_1 = arith.constant 0 : i32
    %c0_i32_2 = arith.constant 0 : i32
    return %c0_i32, %c0_i32_0, %c0_i32_1 : i32, i32, i32
  }
  func.func @transform_29(%arg0: i32) -> (i32, i32, i32) {
    %c0_i32 = arith.constant 0 : i32
    %c0_i32_0 = arith.constant 0 : i32
    %c0_i32_1 = arith.constant 0 : i32
    %c0_i32_2 = arith.constant 0 : i32
    return %c0_i32, %c0_i32_0, %c0_i32_1 : i32, i32, i32
  }
  func.func @transform_30(%arg0: i32) -> (i32, i32, i32) {
    %c0_i32 = arith.constant 0 : i32
    %c0_i32_0 = arith.constant 0 : i32
    %c0_i32_1 = arith.constant 0 : i32
    %c0_i32_2 = arith.constant 0 : i32
    return %c0_i32, %c0_i32_0, %c0_i32_1 : i32, i32, i32
  }
  func.func @transform_31(%arg0: i32) -> (i32, i32, i32) {
    %c0_i32 = arith.constant 0 : i32
    %c0_i32_0 = arith.constant 0 : i32
    %c0_i32_1 = arith.constant 0 : i32
    %c0_i32_2 = arith.constant 0 : i32
    return %c0_i32, %c0_i32_0, %c0_i32_1 : i32, i32, i32
  }
  func.func @transform_32(%arg0: i32) -> (i32, i32, i32) {
    %c0_i32 = arith.constant 0 : i32
    %c0_i32_0 = arith.constant 0 : i32
    %c0_i32_1 = arith.constant 0 : i32
    %c0_i32_2 = arith.constant 0 : i32
    return %c0_i32, %c0_i32_0, %c0_i32_1 : i32, i32, i32
  }
  func.func @transform_33(%arg0: i32) -> (i32, i32, i32) {
    %c0_i32 = arith.constant 0 : i32
    %c0_i32_0 = arith.constant 0 : i32
    %c0_i32_1 = arith.constant 0 : i32
    %c0_i32_2 = arith.constant 0 : i32
    return %c0_i32, %c0_i32_0, %c0_i32_1 : i32, i32, i32
  }
  func.func @transform_34(%arg0: i32) -> (i32, i32, i32) {
    %c0_i32 = arith.constant 0 : i32
    %c0_i32_0 = arith.constant 0 : i32
    %c0_i32_1 = arith.constant 0 : i32
    %c0_i32_2 = arith.constant 0 : i32
    return %c0_i32, %c0_i32_0, %c0_i32_1 : i32, i32, i32
  }
  func.func @transform_35(%arg0: i32) -> (i32, i32, i32) {
    %c0_i32 = arith.constant 0 : i32
    %c0_i32_0 = arith.constant 0 : i32
    %c0_i32_1 = arith.constant 0 : i32
    %c0_i32_2 = arith.constant 0 : i32
    return %c0_i32, %c0_i32_0, %c0_i32_1 : i32, i32, i32
  }
  func.func @transform_36(%arg0: i32) -> (i32, i32) {
    %c0_i32 = arith.constant 0 : i32
    %c0_i32_0 = arith.constant 0 : i32
    %c0_i32_1 = arith.constant 0 : i32
    return %c0_i32, %c0_i32_0 : i32, i32
  }
}

</mosaic_0001>

<llo_original>
// kernel: tpu_custom_call.1
$region0: #{tpu_custom_call.1}
  #allocation0 [shape = 'u32[]', space=smem, size = 0x4, offset = 0x4, fixed_abs, tag = 'smem constant byte address 0x4 - core index']
  #allocation1 [shape = 'u32[144,128]{1,0:T(1,128)}', space=vmem, size = 0x12000, scoped, tag = 'internal scratch']
  %s0 = inlined_call_operand.smem [shape: u32[37], index: -1, kind: input, shape index: {}]
  %s1 = sld [smem:[%s0]]
  %s2 = scalar_lea.smem %s0, 1
  %s3 = sld [smem:[%s2]]
  %s4 = scalar_lea.smem %s0, 2
  %s5 = sld [smem:[%s4]]
  %s6 = scalar_lea.smem %s0, 3
  %s7 = sld [smem:[%s6]]
  %s8 = scalar_lea.smem %s0, 4
  %s9 = sld [smem:[%s8]]
  %s10 = scalar_lea.smem %s0, 5
  %s11 = sld [smem:[%s10]]
  %s12 = scalar_lea.smem %s0, 6
  %s13 = sld [smem:[%s12]]
  %s14 = scalar_lea.smem %s0, 7
  %s15 = sld [smem:[%s14]]
  %s16 = scalar_lea.smem %s0, 8
  %s17 = sld [smem:[%s16]]
  %s18 = scalar_lea.smem %s0, 9
  %s19 = sld [smem:[%s18]]
  %s20 = scalar_lea.smem %s0, 10
  %s21 = sld [smem:[%s20]]
  %s22 = scalar_lea.smem %s0, 11
  %s23 = sld [smem:[%s22]]
  %s24 = scalar_lea.smem %s0, 12
  %s25 = sld [smem:[%s24]]
  %s26 = scalar_lea.smem %s0, 13
  %s27 = sld [smem:[%s26]]
  %s28 = scalar_lea.smem %s0, 14
  %s29 = sld [smem:[%s28]]
  %s30 = scalar_lea.smem %s0, 15
  %s31 = sld [smem:[%s30]]
  %s32 = scalar_lea.smem %s0, 16
  %s33 = sld [smem:[%s32]]
  %s34 = scalar_lea.smem %s0, 17
  %s35 = sld [smem:[%s34]]
  %s36 = scalar_lea.smem %s0, 18
  %s37 = sld [smem:[%s36]]
  %s38 = scalar_lea.smem %s0, 19
  %s39 = sld [smem:[%s38]]
  %s40 = scalar_lea.smem %s0, 20
  %s41 = sld [smem:[%s40]]
  %s42 = scalar_lea.smem %s0, 21
  %s43 = sld [smem:[%s42]]
  %s44 = scalar_lea.smem %s0, 22
  %s45 = sld [smem:[%s44]]
  %s46 = scalar_lea.smem %s0, 23
  %s47 = sld [smem:[%s46]]
  %s48 = scalar_lea.smem %s0, 24
  %s49 = sld [smem:[%s48]]
  %s50 = scalar_lea.smem %s0, 25
  %s51 = sld [smem:[%s50]]
  %s52 = scalar_lea.smem %s0, 26
  %s53 = sld [smem:[%s52]]
  %s54 = scalar_lea.smem %s0, 27
  %s55 = sld [smem:[%s54]]
  %s56 = scalar_lea.smem %s0, 28
  %s57 = sld [smem:[%s56]]
  %s58 = scalar_lea.smem %s0, 29
  %s59 = sld [smem:[%s58]]
  %s60 = scalar_lea.smem %s0, 30
  %s61 = sld [smem:[%s60]]
  %s62 = scalar_lea.smem %s0, 31
  %s63 = sld [smem:[%s62]]
  %s64 = scalar_lea.smem %s0, 32
  %s65 = sld [smem:[%s64]]
  %s66 = scalar_lea.smem %s0, 33
  %s67 = sld [smem:[%s66]]
  %s68 = scalar_lea.smem %s0, 34
  %s69 = sld [smem:[%s68]]
  %s70 = scalar_lea.smem %s0, 35
  %s71 = sld [smem:[%s70]]
  %s72 = scalar_lea.smem %s0, 36
  %s73 = sld [smem:[%s72]]
  %s74 = sld [smem:[#allocation0]]
  $region154: #{tpu_custom_call.1} parent=0
    _
  %s76 = ssub.s32 1, %s74
  %s77 = scalar_select 0, %s76, %s74
  // Predicated region
  $region2: #{tpu_custom_call.1} parent=0 // pred_check
    _
  $region3: #{tpu_custom_call.1} parent=0 // pred_check_branch
    %79 = sbr.rel (0) target = $region5
  $region4: #{tpu_custom_call.1} parent=0 // pred_region
    _
  $region5: #{tpu_custom_call.1} parent=0 // pred_fallthru
    _
  // Predicated region
  $region6: #{tpu_custom_call.1} parent=0 // pred_check
    _
  $region7: #{tpu_custom_call.1} parent=0 // pred_check_branch
    %81 = sbr.rel (0) target = $region9
  $region8: #{tpu_custom_call.1} parent=0 // pred_region
    _
  $region9: #{tpu_custom_call.1} parent=0 // pred_fallthru
    _
  // Predicated region
  $region10: #{tpu_custom_call.1} parent=0 // pred_check
    _
  $region11: #{tpu_custom_call.1} parent=0 // pred_check_branch
    %83 = sbr.rel (0) target = $region13
  $region12: #{tpu_custom_call.1} parent=0 // pred_region
    _
  $region13: #{tpu_custom_call.1} parent=0 // pred_fallthru
    _
  // Predicated region
  $region14: #{tpu_custom_call.1} parent=0 // pred_check
    _
  $region15: #{tpu_custom_call.1} parent=0 // pred_check_branch
    %85 = sbr.rel (0) target = $region17
  $region16: #{tpu_custom_call.1} parent=0 // pred_region
    _
  $region17: #{tpu_custom_call.1} parent=0 // pred_fallthru
    _
  // Predicated region
  $region18: #{tpu_custom_call.1} parent=0 // pred_check
    _
  $region19: #{tpu_custom_call.1} parent=0 // pred_check_branch
    %87 = sbr.rel (0) target = $region21
  $region20: #{tpu_custom_call.1} parent=0 // pred_region
    _
  $region21: #{tpu_custom_call.1} parent=0 // pred_fallthru
    _
  // Predicated region
  $region22: #{tpu_custom_call.1} parent=0 // pred_check
    _
  $region23: #{tpu_custom_call.1} parent=0 // pred_check_branch
    %89 = sbr.rel (0) target = $region25
  $region24: #{tpu_custom_call.1} parent=0 // pred_region
    _
  $region25: #{tpu_custom_call.1} parent=0 // pred_fallthru
    _
  // Predicated region
  $region26: #{tpu_custom_call.1} parent=0 // pred_check
    _
  $region27: #{tpu_custom_call.1} parent=0 // pred_check_branch
    %91 = sbr.rel (0) target = $region29
  $region28: #{tpu_custom_call.1} parent=0 // pred_region
    _
  $region29: #{tpu_custom_call.1} parent=0 // pred_fallthru
    _
  // Predicated region
  $region30: #{tpu_custom_call.1} parent=0 // pred_check
    _
  $region31: #{tpu_custom_call.1} parent=0 // pred_check_branch
    %93 = sbr.rel (0) target = $region33
  $region32: #{tpu_custom_call.1} parent=0 // pred_region
    _
  $region33: #{tpu_custom_call.1} parent=0 // pred_fallthru
    _
  // Predicated region
  $region34: #{tpu_custom_call.1} parent=0 // pred_check
    _
  $region35: #{tpu_custom_call.1} parent=0 // pred_check_branch
    %95 = sbr.rel (0) target = $region37
  $region36: #{tpu_custom_call.1} parent=0 // pred_region
    _
  $region37: #{tpu_custom_call.1} parent=0 // pred_fallthru
    _
  // Predicated region
  $region38: #{tpu_custom_call.1} parent=0 // pred_check
    _
  $region39: #{tpu_custom_call.1} parent=0 // pred_check_branch
    %97 = sbr.rel (0) target = $region41
  $region40: #{tpu_custom_call.1} parent=0 // pred_region
    _
  $region41: #{tpu_custom_call.1} parent=0 // pred_fallthru
    _
  // Predicated region
  $region42: #{tpu_custom_call.1} parent=0 // pred_check
    _
  $region43: #{tpu_custom_call.1} parent=0 // pred_check_branch
    %99 = sbr.rel (0) target = $region45
  $region44: #{tpu_custom_call.1} parent=0 // pred_region
    _
  $region45: #{tpu_custom_call.1} parent=0 // pred_fallthru
    _
  // Predicated region
  $region46: #{tpu_custom_call.1} parent=0 // pred_check
    _
  $region47: #{tpu_custom_call.1} parent=0 // pred_check_branch
    %101 = sbr.rel (0) target = $region49
  $region48: #{tpu_custom_call.1} parent=0 // pred_region
    _
  $region49: #{tpu_custom_call.1} parent=0 // pred_fallthru
    _
  // Predicated region
  $region50: #{tpu_custom_call.1} parent=0 // pred_check
    _
  $region51: #{tpu_custom_call.1} parent=0 // pred_check_branch
    %103 = sbr.rel (0) target = $region53
  $region52: #{tpu_custom_call.1} parent=0 // pred_region
    _
  $region53: #{tpu_custom_call.1} parent=0 // pred_fallthru
    _
  // Predicated region
  $region54: #{tpu_custom_call.1} parent=0 // pred_check
    _
  $region55: #{tpu_custom_call.1} parent=0 // pred_check_branch
    %105 = sbr.rel (0) target = $region57
  $region56: #{tpu_custom_call.1} parent=0 // pred_region
    _
  $region57: #{tpu_custom_call.1} parent=0 // pred_fallthru
    _
  // Predicated region
  $region58: #{tpu_custom_call.1} parent=0 // pred_check
    _
  $region59: #{tpu_custom_call.1} parent=0 // pred_check_branch
    %107 = sbr.rel (0) target = $region61
  $region60: #{tpu_custom_call.1} parent=0 // pred_region
    _
  $region61: #{tpu_custom_call.1} parent=0 // pred_fallthru
    _
  // Predicated region
  $region62: #{tpu_custom_call.1} parent=0 // pred_check
    _
  $region63: #{tpu_custom_call.1} parent=0 // pred_check_branch
    %109 = sbr.rel (0) target = $region65
  $region64: #{tpu_custom_call.1} parent=0 // pred_region
    _
  $region65: #{tpu_custom_call.1} parent=0 // pred_fallthru
    _
  // Predicated region
  $region66: #{tpu_custom_call.1} parent=0 // pred_check
    _
  $region67: #{tpu_custom_call.1} parent=0 // pred_check_branch
    %111 = sbr.rel (0) target = $region69
  $region68: #{tpu_custom_call.1} parent=0 // pred_region
    _
  $region69: #{tpu_custom_call.1} parent=0 // pred_fallthru
    _
  // Predicated region
  $region70: #{tpu_custom_call.1} parent=0 // pred_check
    _
  $region71: #{tpu_custom_call.1} parent=0 // pred_check_branch
    %113 = sbr.rel (0) target = $region73
  $region72: #{tpu_custom_call.1} parent=0 // pred_region
    _
  $region73: #{tpu_custom_call.1} parent=0 // pred_fallthru
    _
  // Predicated region
  $region74: #{tpu_custom_call.1} parent=0 // pred_check
    _
  $region75: #{tpu_custom_call.1} parent=0 // pred_check_branch
    %115 = sbr.rel (0) target = $region77
  $region76: #{tpu_custom_call.1} parent=0 // pred_region
    _
  $region77: #{tpu_custom_call.1} parent=0 // pred_fallthru
    _
  // Predicated region
  $region78: #{tpu_custom_call.1} parent=0 // pred_check
    _
  $region79: #{tpu_custom_call.1} parent=0 // pred_check_branch
    %117 = sbr.rel (0) target = $region81
  $region80: #{tpu_custom_call.1} parent=0 // pred_region
    _
  $region81: #{tpu_custom_call.1} parent=0 // pred_fallthru
    _
  // Predicated region
  $region82: #{tpu_custom_call.1} parent=0 // pred_check
    _
  $region83: #{tpu_custom_call.1} parent=0 // pred_check_branch
    %119 = sbr.rel (0) target = $region85
  $region84: #{tpu_custom_call.1} parent=0 // pred_region
    _
  $region85: #{tpu_custom_call.1} parent=0 // pred_fallthru
    _
  // Predicated region
  $region86: #{tpu_custom_call.1} parent=0 // pred_check
    _
  $region87: #{tpu_custom_call.1} parent=0 // pred_check_branch
    %121 = sbr.rel (0) target = $region89
  $region88: #{tpu_custom_call.1} parent=0 // pred_region
    _
  $region89: #{tpu_custom_call.1} parent=0 // pred_fallthru
    _
  // Predicated region
  $region90: #{tpu_custom_call.1} parent=0 // pred_check
    _
  $region91: #{tpu_custom_call.1} parent=0 // pred_check_branch
    %123 = sbr.rel (0) target = $region93
  $region92: #{tpu_custom_call.1} parent=0 // pred_region
    _
  $region93: #{tpu_custom_call.1} parent=0 // pred_fallthru
    _
  // Predicated region
  $region94: #{tpu_custom_call.1} parent=0 // pred_check
    _
  $region95: #{tpu_custom_call.1} parent=0 // pred_check_branch
    %125 = sbr.rel (0) target = $region97
  $region96: #{tpu_custom_call.1} parent=0 // pred_region
    _
  $region97: #{tpu_custom_call.1} parent=0 // pred_fallthru
    _
  // Predicated region
  $region98: #{tpu_custom_call.1} parent=0 // pred_check
    _
  $region99: #{tpu_custom_call.1} parent=0 // pred_check_branch
    %127 = sbr.rel (0) target = $region101
  $region100: #{tpu_custom_call.1} parent=0 // pred_region
    _
  $region101: #{tpu_custom_call.1} parent=0 // pred_fallthru
    _
  // Predicated region
  $region102: #{tpu_custom_call.1} parent=0 // pred_check
    _
  $region103: #{tpu_custom_call.1} parent=0 // pred_check_branch
    %129 = sbr.rel (0) target = $region105
  $region104: #{tpu_custom_call.1} parent=0 // pred_region
    _
  $region105: #{tpu_custom_call.1} parent=0 // pred_fallthru
    _
  // Predicated region
  $region106: #{tpu_custom_call.1} parent=0 // pred_check
    _
  $region107: #{tpu_custom_call.1} parent=0 // pred_check_branch
    %131 = sbr.rel (0) target = $region109
  $region108: #{tpu_custom_call.1} parent=0 // pred_region
    _
  $region109: #{tpu_custom_call.1} parent=0 // pred_fallthru
    _
  // Predicated region
  $region110: #{tpu_custom_call.1} parent=0 // pred_check
    _
  $region111: #{tpu_custom_call.1} parent=0 // pred_check_branch
    %133 = sbr.rel (0) target = $region113
  $region112: #{tpu_custom_call.1} parent=0 // pred_region
    _
  $region113: #{tpu_custom_call.1} parent=0 // pred_fallthru
    _
  // Predicated region
  $region114: #{tpu_custom_call.1} parent=0 // pred_check
    _
  $region115: #{tpu_custom_call.1} parent=0 // pred_check_branch
    %135 = sbr.rel (0) target = $region117
  $region116: #{tpu_custom_call.1} parent=0 // pred_region
    _
  $region117: #{tpu_custom_call.1} parent=0 // pred_fallthru
    _
  // Predicated region
  $region118: #{tpu_custom_call.1} parent=0 // pred_check
    _
  $region119: #{tpu_custom_call.1} parent=0 // pred_check_branch
    %137 = sbr.rel (0) target = $region121
  $region120: #{tpu_custom_call.1} parent=0 // pred_region
    _
  $region121: #{tpu_custom_call.1} parent=0 // pred_fallthru
    _
  // Predicated region
  $region122: #{tpu_custom_call.1} parent=0 // pred_check
    _
  $region123: #{tpu_custom_call.1} parent=0 // pred_check_branch
    %139 = sbr.rel (0) target = $region125
  $region124: #{tpu_custom_call.1} parent=0 // pred_region
    _
  $region125: #{tpu_custom_call.1} parent=0 // pred_fallthru
    _
  // Predicated region
  $region126: #{tpu_custom_call.1} parent=0 // pred_check
    _
  $region127: #{tpu_custom_call.1} parent=0 // pred_check_branch
    %141 = sbr.rel (0) target = $region129
  $region128: #{tpu_custom_call.1} parent=0 // pred_region
    _
  $region129: #{tpu_custom_call.1} parent=0 // pred_fallthru
    _
  // Predicated region
  $region130: #{tpu_custom_call.1} parent=0 // pred_check
    _
  $region131: #{tpu_custom_call.1} parent=0 // pred_check_branch
    %143 = sbr.rel (0) target = $region133
  $region132: #{tpu_custom_call.1} parent=0 // pred_region
    _
  $region133: #{tpu_custom_call.1} parent=0 // pred_fallthru
    _
  // Predicated region
  $region134: #{tpu_custom_call.1} parent=0 // pred_check
    _
  $region135: #{tpu_custom_call.1} parent=0 // pred_check_branch
    %145 = sbr.rel (0) target = $region137
  $region136: #{tpu_custom_call.1} parent=0 // pred_region
    _
  $region137: #{tpu_custom_call.1} parent=0 // pred_fallthru
    _
  // Predicated region
  $region138: #{tpu_custom_call.1} parent=0 // pred_check
    _
  $region139: #{tpu_custom_call.1} parent=0 // pred_check_branch
    %147 = sbr.rel (0) target = $region141
  $region140: #{tpu_custom_call.1} parent=0 // pred_region
    _
  $region141: #{tpu_custom_call.1} parent=0 // pred_fallthru
    _
  // Predicated region
  $region142: #{tpu_custom_call.1} parent=0 // pred_check
    _
  $region143: #{tpu_custom_call.1} parent=0 // pred_check_branch
    %149 = sbr.rel (0) target = $region145
  $region144: #{tpu_custom_call.1} parent=0 // pred_region
    _
  $region145: #{tpu_custom_call.1} parent=0 // pred_fallthru
    _
  %v150 = vld [vmem:[%s7] sm:$0xff]
  %v151 = vld [vmem:[%s7 + $0x8] sm:$0xff]
  %v152 = vld [vmem:[%s7 + $0x10] sm:$0xf]
  %v153 = vld [vmem:[%s7 + $0x14] sm:$0xff]
  %v154 = vld [vmem:[%s7 + $0x1c] sm:$0xff]
  %v155 = vld [vmem:[%s7 + $0x24] sm:$0xf]
  %v156 = vld [vmem:[%s7 + $0x28] sm:$0xff]
  %v157 = vld [vmem:[%s7 + $0x30] sm:$0xff]
  %v158 = vld [vmem:[%s7 + $0x38] sm:$0xf]
  %v159 = vld [vmem:[%s7 + $0x3c] sm:$0xff]
  %v160 = vld [vmem:[%s7 + $0x44] sm:$0xff]
  %v161 = vld [vmem:[%s7 + $0x4c] sm:$0xf]
  %v162 = vld [vmem:[%s7 + $0x50] sm:$0xff]
  %v163 = vld [vmem:[%s7 + $0x58] sm:$0xff]
  %v164 = vld [vmem:[%s7 + $0x60] sm:$0xf]
  %v165 = vld [vmem:[%s7 + $0x64] sm:$0xff]
  %v166 = vld [vmem:[%s7 + $0x6c] sm:$0xff]
  %v167 = vld [vmem:[%s7 + $0x74] sm:$0xf]
  %v168 = vld [vmem:[%s7 + $0x78] sm:$0xff]
  %v169 = vld [vmem:[%s7 + $0x80] sm:$0xff]
  %v170 = vld [vmem:[%s7 + $0x88] sm:$0xf]
  %v171 = vld [vmem:[%s7 + $0x8c] sm:$0xff]
  %v172 = vld [vmem:[%s7 + $0x94] sm:$0xff]
  %v173 = vld [vmem:[%s7 + $0x9c] sm:$0xf]
  %v174 = vunpack.c.l.bf16 %v150
  %v175 = vunpack.c.h.bf16 %v150
  %v176 = vunpack.c.l.bf16 %v151
  %v177 = vunpack.c.h.bf16 %v151
  %v178 = vunpack.c.l.bf16 %v152
  %v179 = vunpack.c.l.bf16 %v153
  %v180 = vunpack.c.h.bf16 %v153
  %v181 = vunpack.c.l.bf16 %v154
  %v182 = vunpack.c.h.bf16 %v154
  %v183 = vunpack.c.l.bf16 %v155
  %v184 = vunpack.c.l.bf16 %v156
  %v185 = vunpack.c.h.bf16 %v156
  %v186 = vunpack.c.l.bf16 %v157
  %v187 = vunpack.c.h.bf16 %v157
  %v188 = vunpack.c.l.bf16 %v158
  %v189 = vunpack.c.l.bf16 %v159
  %v190 = vunpack.c.h.bf16 %v159
  %v191 = vunpack.c.l.bf16 %v160
  %v192 = vunpack.c.h.bf16 %v160
  %v193 = vunpack.c.l.bf16 %v161
  %v194 = vunpack.c.l.bf16 %v162
  %v195 = vunpack.c.h.bf16 %v162
  %v196 = vunpack.c.l.bf16 %v163
  %v197 = vunpack.c.h.bf16 %v163
  %v198 = vunpack.c.l.bf16 %v164
  %v199 = vunpack.c.l.bf16 %v165
  %v200 = vunpack.c.h.bf16 %v165
  %v201 = vunpack.c.l.bf16 %v166
  %v202 = vunpack.c.h.bf16 %v166
  %v203 = vunpack.c.l.bf16 %v167
  %v204 = vunpack.c.l.bf16 %v168
  %v205 = vunpack.c.h.bf16 %v168
  %v206 = vunpack.c.l.bf16 %v169
  %v207 = vunpack.c.h.bf16 %v169
  %v208 = vunpack.c.l.bf16 %v170
  %v209 = vunpack.c.l.bf16 %v171
  %v210 = vunpack.c.h.bf16 %v171
  %v211 = vunpack.c.l.bf16 %v172
  %v212 = vunpack.c.h.bf16 %v172
  %v213 = vunpack.c.l.bf16 %v173
  %v214 = vld [vmem:[%s9] sm:$0xff]
  %v215 = vld [vmem:[%s9 + $0x8] sm:$0xff]
  %v216 = vld [vmem:[%s9 + $0x10] sm:$0xf]
  %v217 = vld [vmem:[%s9 + $0x14] sm:$0xff]
  %v218 = vld [vmem:[%s9 + $0x1c] sm:$0xff]
  %v219 = vld [vmem:[%s9 + $0x24] sm:$0xf]
  %v220 = vld [vmem:[%s9 + $0x28] sm:$0xff]
  %v221 = vld [vmem:[%s9 + $0x30] sm:$0xff]
  %v222 = vld [vmem:[%s9 + $0x38] sm:$0xf]
  %v223 = vld [vmem:[%s9 + $0x3c] sm:$0xff]
  %v224 = vld [vmem:[%s9 + $0x44] sm:$0xff]
  %v225 = vld [vmem:[%s9 + $0x4c] sm:$0xf]
  %v226 = vld [vmem:[%s9 + $0x50] sm:$0xff]
  %v227 = vld [vmem:[%s9 + $0x58] sm:$0xff]
  %v228 = vld [vmem:[%s9 + $0x60] sm:$0xf]
  %v229 = vld [vmem:[%s9 + $0x64] sm:$0xff]
  %v230 = vld [vmem:[%s9 + $0x6c] sm:$0xff]
  %v231 = vld [vmem:[%s9 + $0x74] sm:$0xf]
  %v232 = vld [vmem:[%s9 + $0x78] sm:$0xff]
  %v233 = vld [vmem:[%s9 + $0x80] sm:$0xff]
  %v234 = vld [vmem:[%s9 + $0x88] sm:$0xf]
  %v235 = vld [vmem:[%s9 + $0x8c] sm:$0xff]
  %v236 = vld [vmem:[%s9 + $0x94] sm:$0xff]
  %v237 = vld [vmem:[%s9 + $0x9c] sm:$0xf]
  %v238 = vunpack.c.l.bf16 %v214
  %v239 = vunpack.c.h.bf16 %v214
  %v240 = vunpack.c.l.bf16 %v215
  %v241 = vunpack.c.h.bf16 %v215
  %v242 = vunpack.c.l.bf16 %v216
  %v243 = vunpack.c.l.bf16 %v217
  %v244 = vunpack.c.h.bf16 %v217
  %v245 = vunpack.c.l.bf16 %v218
  %v246 = vunpack.c.h.bf16 %v218
  %v247 = vunpack.c.l.bf16 %v219
  %v248 = vunpack.c.l.bf16 %v220
  %v249 = vunpack.c.h.bf16 %v220
  %v250 = vunpack.c.l.bf16 %v221
  %v251 = vunpack.c.h.bf16 %v221
  %v252 = vunpack.c.l.bf16 %v222
  %v253 = vunpack.c.l.bf16 %v223
  %v254 = vunpack.c.h.bf16 %v223
  %v255 = vunpack.c.l.bf16 %v224
  %v256 = vunpack.c.h.bf16 %v224
  %v257 = vunpack.c.l.bf16 %v225
  %v258 = vunpack.c.l.bf16 %v226
  %v259 = vunpack.c.h.bf16 %v226
  %v260 = vunpack.c.l.bf16 %v227
  %v261 = vunpack.c.h.bf16 %v227
  %v262 = vunpack.c.l.bf16 %v228
  %v263 = vunpack.c.l.bf16 %v229
  %v264 = vunpack.c.h.bf16 %v229
  %v265 = vunpack.c.l.bf16 %v230
  %v266 = vunpack.c.h.bf16 %v230
  %v267 = vunpack.c.l.bf16 %v231
  %v268 = vunpack.c.l.bf16 %v232
  %v269 = vunpack.c.h.bf16 %v232
  %v270 = vunpack.c.l.bf16 %v233
  %v271 = vunpack.c.h.bf16 %v233
  %v272 = vunpack.c.l.bf16 %v234
  %v273 = vunpack.c.l.bf16 %v235
  %v274 = vunpack.c.h.bf16 %v235
  %v275 = vunpack.c.l.bf16 %v236
  %v276 = vunpack.c.h.bf16 %v236
  %v277 = vunpack.c.l.bf16 %v237
  %v278 = vld [vmem:[%s11] sm:$0xff]
  %v279 = vld [vmem:[%s11 + $0x8] sm:$0xff]
  %v280 = vunpack.c.l.bf16 %v278
  %v281 = vunpack.c.h.bf16 %v278
  %v282 = vunpack.c.l.bf16 %v279
  %v283 = vunpack.c.h.bf16 %v279
  %v284 = vld [vmem:[%s13] sm:$0x7]
  %v285 = vunpack.c.l.bf16 %v284
  %v286 = vld [vmem:[%s15] sm:$0xff]
  %v287 = vld [vmem:[%s15 + $0x8] sm:$0xff]
  %v288 = vunpack.c.l.bf16 %v286
  %v289 = vunpack.c.h.bf16 %v286
  %v290 = vunpack.c.l.bf16 %v287
  %v291 = vunpack.c.h.bf16 %v287
  %v292 = vld [vmem:[%s17] sm:$0xff]
  %v293 = vld [vmem:[%s17 + $0x8] sm:$0xff]
  %v294 = vunpack.c.l.bf16 %v292
  %v295 = vunpack.c.h.bf16 %v292
  %v296 = vunpack.c.l.bf16 %v293
  %v297 = vunpack.c.h.bf16 %v293
  %v298 = vld [vmem:[%s19] sm:$0xff]
  %v299 = vld [vmem:[%s19 + $0x8] sm:$0xff]
  %v300 = vld [vmem:[%s19 + $0x10] sm:$0xff]
  %v301 = vld [vmem:[%s19 + $0x18] sm:$0xff]
  %v302 = vld [vmem:[%s19 + $0x20] sm:$0xff]
  %v303 = vld [vmem:[%s19 + $0x28] sm:$0xff]
  %v304 = vld [vmem:[%s19 + $0x30] sm:$0xff]
  %v305 = vld [vmem:[%s19 + $0x38] sm:$0xff]
  %v306 = vld [vmem:[%s19 + $0x40] sm:$0xff]
  %v307 = vld [vmem:[%s19 + $0x48] sm:$0xff]
  %v308 = vld [vmem:[%s19 + $0x50] sm:$0xff]
  %v309 = vld [vmem:[%s19 + $0x58] sm:$0xff]
  %v310 = vld [vmem:[%s19 + $0x60] sm:$0xff]
  %v311 = vld [vmem:[%s19 + $0x68] sm:$0xff]
  %v312 = vld [vmem:[%s19 + $0x70] sm:$0xff]
  %v313 = vld [vmem:[%s19 + $0x78] sm:$0xff]
  %v314 = vld [vmem:[%s19 + $0x80] sm:$0xff]
  %v315 = vld [vmem:[%s19 + $0x88] sm:$0xff]
  %v316 = vld [vmem:[%s19 + $0x90] sm:$0xff]
  %v317 = vld [vmem:[%s19 + $0x98] sm:$0xff]
  %v318 = vld [vmem:[%s19 + $0xa0] sm:$0xff]
  %v319 = vld [vmem:[%s19 + $0xa8] sm:$0xff]
  %v320 = vld [vmem:[%s19 + $0xb0] sm:$0xff]
  %v321 = vld [vmem:[%s19 + $0xb8] sm:$0xff]
  %v322 = vld [vmem:[%s19 + $0xc0] sm:$0xff]
  %v323 = vld [vmem:[%s19 + $0xc8] sm:$0xff]
  %v324 = vld [vmem:[%s19 + $0xd0] sm:$0xff]
  %v325 = vld [vmem:[%s19 + $0xd8] sm:$0xff]
  %v326 = vld [vmem:[%s19 + $0xe0] sm:$0xff]
  %v327 = vld [vmem:[%s19 + $0xe8] sm:$0xff]
  %v328 = vld [vmem:[%s19 + $0xf0] sm:$0xff]
  %v329 = vld [vmem:[%s19 + $0xf8] sm:$0xff]
  %v330 = vld [vmem:[%s19 + $0x100] sm:$0xff]
  %v331 = vld [vmem:[%s19 + $0x108] sm:$0xff]
  %v332 = vld [vmem:[%s19 + $0x110] sm:$0xff]
  %v333 = vld [vmem:[%s19 + $0x118] sm:$0xff]
  %v334 = vld [vmem:[%s19 + $0x120] sm:$0xff]
  %v335 = vld [vmem:[%s19 + $0x128] sm:$0xff]
  %v336 = vld [vmem:[%s19 + $0x130] sm:$0xff]
  %v337 = vld [vmem:[%s19 + $0x138] sm:$0xff]
  %v338 = vld [vmem:[%s19 + $0x140] sm:$0xff]
  %v339 = vld [vmem:[%s19 + $0x148] sm:$0xff]
  %v340 = vld [vmem:[%s19 + $0x150] sm:$0xff]
  %v341 = vld [vmem:[%s19 + $0x158] sm:$0xff]
  %v342 = vld [vmem:[%s19 + $0x160] sm:$0xff]
  %v343 = vld [vmem:[%s19 + $0x168] sm:$0xff]
  %v344 = vld [vmem:[%s19 + $0x170] sm:$0xff]
  %v345 = vld [vmem:[%s19 + $0x178] sm:$0xff]
  %v346 = vld [vmem:[%s19 + $0x180] sm:$0xff]
  %v347 = vld [vmem:[%s19 + $0x188] sm:$0xff]
  %v348 = vld [vmem:[%s19 + $0x190] sm:$0xff]
  %v349 = vld [vmem:[%s19 + $0x198] sm:$0xff]
  %v350 = vld [vmem:[%s19 + $0x1a0] sm:$0xff]
  %v351 = vld [vmem:[%s19 + $0x1a8] sm:$0xff]
  %v352 = vld [vmem:[%s19 + $0x1b0] sm:$0xff]
  %v353 = vld [vmem:[%s19 + $0x1b8] sm:$0xff]
  %v354 = vld [vmem:[%s19 + $0x1c0] sm:$0xff]
  %v355 = vld [vmem:[%s19 + $0x1c8] sm:$0xff]
  %v356 = vld [vmem:[%s19 + $0x1d0] sm:$0xff]
  %v357 = vld [vmem:[%s19 + $0x1d8] sm:$0xff]
  %v358 = vld [vmem:[%s19 + $0x1e0] sm:$0xff]
  %v359 = vld [vmem:[%s19 + $0x1e8] sm:$0xff]
  %v360 = vld [vmem:[%s19 + $0x1f0] sm:$0xff]
  %v361 = vld [vmem:[%s19 + $0x1f8] sm:$0xff]
  %v362 = vld [vmem:[%s19 + $0x200] sm:$0xff]
  %v363 = vld [vmem:[%s19 + $0x208] sm:$0xff]
  %v364 = vld [vmem:[%s19 + $0x210] sm:$0xff]
  %v365 = vld [vmem:[%s19 + $0x218] sm:$0xff]
  %v366 = vld [vmem:[%s19 + $0x220] sm:$0xff]
  %v367 = vld [vmem:[%s19 + $0x228] sm:$0xff]
  %v368 = vld [vmem:[%s19 + $0x230] sm:$0xff]
  %v369 = vld [vmem:[%s19 + $0x238] sm:$0xff]
  %v370 = vunpack.c.l.bf16 %v298
  %v371 = vunpack.c.h.bf16 %v298
  %v372 = vunpack.c.l.bf16 %v299
  %v373 = vunpack.c.h.bf16 %v299
  %v374 = vunpack.c.l.bf16 %v300
  %v375 = vunpack.c.h.bf16 %v300
  %v376 = vunpack.c.l.bf16 %v301
  %v377 = vunpack.c.h.bf16 %v301
  %v378 = vunpack.c.l.bf16 %v302
  %v379 = vunpack.c.h.bf16 %v302
  %v380 = vunpack.c.l.bf16 %v303
  %v381 = vunpack.c.h.bf16 %v303
  %v382 = vunpack.c.l.bf16 %v304
  %v383 = vunpack.c.h.bf16 %v304
  %v384 = vunpack.c.l.bf16 %v305
  %v385 = vunpack.c.h.bf16 %v305
  %v386 = vunpack.c.l.bf16 %v306
  %v387 = vunpack.c.h.bf16 %v306
  %v388 = vunpack.c.l.bf16 %v307
  %v389 = vunpack.c.h.bf16 %v307
  %v390 = vunpack.c.l.bf16 %v308
  %v391 = vunpack.c.h.bf16 %v308
  %v392 = vunpack.c.l.bf16 %v309
  %v393 = vunpack.c.h.bf16 %v309
  %v394 = vunpack.c.l.bf16 %v310
  %v395 = vunpack.c.h.bf16 %v310
  %v396 = vunpack.c.l.bf16 %v311
  %v397 = vunpack.c.h.bf16 %v311
  %v398 = vunpack.c.l.bf16 %v312
  %v399 = vunpack.c.h.bf16 %v312
  %v400 = vunpack.c.l.bf16 %v313
  %v401 = vunpack.c.h.bf16 %v313
  %v402 = vunpack.c.l.bf16 %v314
  %v403 = vunpack.c.h.bf16 %v314
  %v404 = vunpack.c.l.bf16 %v315
  %v405 = vunpack.c.h.bf16 %v315
  %v406 = vunpack.c.l.bf16 %v316
  %v407 = vunpack.c.h.bf16 %v316
  %v408 = vunpack.c.l.bf16 %v317
  %v409 = vunpack.c.h.bf16 %v317
  %v410 = vunpack.c.l.bf16 %v318
  %v411 = vunpack.c.h.bf16 %v318
  %v412 = vunpack.c.l.bf16 %v319
  %v413 = vunpack.c.h.bf16 %v319
  %v414 = vunpack.c.l.bf16 %v320
  %v415 = vunpack.c.h.bf16 %v320
  %v416 = vunpack.c.l.bf16 %v321
  %v417 = vunpack.c.h.bf16 %v321
  %v418 = vunpack.c.l.bf16 %v322
  %v419 = vunpack.c.h.bf16 %v322
  %v420 = vunpack.c.l.bf16 %v323
  %v421 = vunpack.c.h.bf16 %v323
  %v422 = vunpack.c.l.bf16 %v324
  %v423 = vunpack.c.h.bf16 %v324
  %v424 = vunpack.c.l.bf16 %v325
  %v425 = vunpack.c.h.bf16 %v325
  %v426 = vunpack.c.l.bf16 %v326
  %v427 = vunpack.c.h.bf16 %v326
  %v428 = vunpack.c.l.bf16 %v327
  %v429 = vunpack.c.h.bf16 %v327
  %v430 = vunpack.c.l.bf16 %v328
  %v431 = vunpack.c.h.bf16 %v328
  %v432 = vunpack.c.l.bf16 %v329
  %v433 = vunpack.c.h.bf16 %v329
  %v434 = vunpack.c.l.bf16 %v330
  %v435 = vunpack.c.h.bf16 %v330
  %v436 = vunpack.c.l.bf16 %v331
  %v437 = vunpack.c.h.bf16 %v331
  %v438 = vunpack.c.l.bf16 %v332
  %v439 = vunpack.c.h.bf16 %v332
  %v440 = vunpack.c.l.bf16 %v333
  %v441 = vunpack.c.h.bf16 %v333
  %v442 = vunpack.c.l.bf16 %v334
  %v443 = vunpack.c.h.bf16 %v334
  %v444 = vunpack.c.l.bf16 %v335
  %v445 = vunpack.c.h.bf16 %v335
  %v446 = vunpack.c.l.bf16 %v336
  %v447 = vunpack.c.h.bf16 %v336
  %v448 = vunpack.c.l.bf16 %v337
  %v449 = vunpack.c.h.bf16 %v337
  %v450 = vunpack.c.l.bf16 %v338
  %v451 = vunpack.c.h.bf16 %v338
  %v452 = vunpack.c.l.bf16 %v339
  %v453 = vunpack.c.h.bf16 %v339
  %v454 = vunpack.c.l.bf16 %v340
  %v455 = vunpack.c.h.bf16 %v340
  %v456 = vunpack.c.l.bf16 %v341
  %v457 = vunpack.c.h.bf16 %v341
  %v458 = vunpack.c.l.bf16 %v342
  %v459 = vunpack.c.h.bf16 %v342
  %v460 = vunpack.c.l.bf16 %v343
  %v461 = vunpack.c.h.bf16 %v343
  %v462 = vunpack.c.l.bf16 %v344
  %v463 = vunpack.c.h.bf16 %v344
  %v464 = vunpack.c.l.bf16 %v345
  %v465 = vunpack.c.h.bf16 %v345
  %v466 = vunpack.c.l.bf16 %v346
  %v467 = vunpack.c.h.bf16 %v346
  %v468 = vunpack.c.l.bf16 %v347
  %v469 = vunpack.c.h.bf16 %v347
  %v470 = vunpack.c.l.bf16 %v348
  %v471 = vunpack.c.h.bf16 %v348
  %v472 = vunpack.c.l.bf16 %v349
  %v473 = vunpack.c.h.bf16 %v349
  %v474 = vunpack.c.l.bf16 %v350
  %v475 = vunpack.c.h.bf16 %v350
  %v476 = vunpack.c.l.bf16 %v351
  %v477 = vunpack.c.h.bf16 %v351
  %v478 = vunpack.c.l.bf16 %v352
  %v479 = vunpack.c.h.bf16 %v352
  %v480 = vunpack.c.l.bf16 %v353
  %v481 = vunpack.c.h.bf16 %v353
  %v482 = vunpack.c.l.bf16 %v354
  %v483 = vunpack.c.h.bf16 %v354
  %v484 = vunpack.c.l.bf16 %v355
  %v485 = vunpack.c.h.bf16 %v355
  %v486 = vunpack.c.l.bf16 %v356
  %v487 = vunpack.c.h.bf16 %v356
  %v488 = vunpack.c.l.bf16 %v357
  %v489 = vunpack.c.h.bf16 %v357
  %v490 = vunpack.c.l.bf16 %v358
  %v491 = vunpack.c.h.bf16 %v358
  %v492 = vunpack.c.l.bf16 %v359
  %v493 = vunpack.c.h.bf16 %v359
  %v494 = vunpack.c.l.bf16 %v360
  %v495 = vunpack.c.h.bf16 %v360
  %v496 = vunpack.c.l.bf16 %v361
  %v497 = vunpack.c.h.bf16 %v361
  %v498 = vunpack.c.l.bf16 %v362
  %v499 = vunpack.c.h.bf16 %v362
  %v500 = vunpack.c.l.bf16 %v363
  %v501 = vunpack.c.h.bf16 %v363
  %v502 = vunpack.c.l.bf16 %v364
  %v503 = vunpack.c.h.bf16 %v364
  %v504 = vunpack.c.l.bf16 %v365
  %v505 = vunpack.c.h.bf16 %v365
  %v506 = vunpack.c.l.bf16 %v366
  %v507 = vunpack.c.h.bf16 %v366
  %v508 = vunpack.c.l.bf16 %v367
  %v509 = vunpack.c.h.bf16 %v367
  %v510 = vunpack.c.l.bf16 %v368
  %v511 = vunpack.c.h.bf16 %v368
  %v512 = vunpack.c.l.bf16 %v369
  %v513 = vunpack.c.h.bf16 %v369
  %v514 = vld [vmem:[%s21] sm:$0xf]
  %v515 = vld [vmem:[%s21 + $0x4] sm:$0xf]
  %v516 = vld [vmem:[%s21 + $0x8] sm:$0xf]
  %v517 = vld [vmem:[%s21 + $0xc] sm:$0xf]
  %v518 = vld [vmem:[%s21 + $0x10] sm:$0xf]
  %v519 = vld [vmem:[%s21 + $0x14] sm:$0xf]
  %v520 = vld [vmem:[%s21 + $0x18] sm:$0xf]
  %v521 = vld [vmem:[%s21 + $0x1c] sm:$0xf]
  %v522 = vld [vmem:[%s21 + $0x20] sm:$0xf]
  %v523 = vld [vmem:[%s21 + $0x24] sm:$0xf]
  %v524 = vld [vmem:[%s21 + $0x28] sm:$0xf]
  %v525 = vld [vmem:[%s21 + $0x2c] sm:$0xf]
  %v526 = vld [vmem:[%s21 + $0x30] sm:$0xf]
  %v527 = vld [vmem:[%s21 + $0x34] sm:$0xf]
  %v528 = vld [vmem:[%s21 + $0x38] sm:$0xf]
  %v529 = vld [vmem:[%s21 + $0x3c] sm:$0xf]
  %v530 = vld [vmem:[%s21 + $0x40] sm:$0xf]
  %v531 = vld [vmem:[%s21 + $0x44] sm:$0xf]
  %v532 = vld [vmem:[%s21 + $0x48] sm:$0xf]
  %v533 = vld [vmem:[%s21 + $0x4c] sm:$0xf]
  %v534 = vld [vmem:[%s21 + $0x50] sm:$0xf]
  %v535 = vld [vmem:[%s21 + $0x54] sm:$0xf]
  %v536 = vld [vmem:[%s21 + $0x58] sm:$0xf]
  %v537 = vld [vmem:[%s21 + $0x5c] sm:$0xf]
  %v538 = vld [vmem:[%s21 + $0x60] sm:$0xf]
  %v539 = vld [vmem:[%s21 + $0x64] sm:$0xf]
  %v540 = vld [vmem:[%s21 + $0x68] sm:$0xf]
  %v541 = vld [vmem:[%s21 + $0x6c] sm:$0xf]
  %v542 = vld [vmem:[%s21 + $0x70] sm:$0xf]
  %v543 = vld [vmem:[%s21 + $0x74] sm:$0xf]
  %v544 = vld [vmem:[%s21 + $0x78] sm:$0xf]
  %v545 = vld [vmem:[%s21 + $0x7c] sm:$0xf]
  %v546 = vld [vmem:[%s21 + $0x80] sm:$0xf]
  %v547 = vld [vmem:[%s21 + $0x84] sm:$0xf]
  %v548 = vld [vmem:[%s21 + $0x88] sm:$0xf]
  %v549 = vld [vmem:[%s21 + $0x8c] sm:$0xf]
  %v550 = vld [vmem:[%s21 + $0x90] sm:$0xf]
  %v551 = vld [vmem:[%s21 + $0x94] sm:$0xf]
  %v552 = vld [vmem:[%s21 + $0x98] sm:$0xf]
  %v553 = vld [vmem:[%s21 + $0x9c] sm:$0xf]
  %v554 = vld [vmem:[%s21 + $0xa0] sm:$0xf]
  %v555 = vld [vmem:[%s21 + $0xa4] sm:$0xf]
  %v556 = vld [vmem:[%s21 + $0xa8] sm:$0xf]
  %v557 = vld [vmem:[%s21 + $0xac] sm:$0xf]
  %v558 = vld [vmem:[%s21 + $0xb0] sm:$0xf]
  %v559 = vld [vmem:[%s21 + $0xb4] sm:$0xf]
  %v560 = vld [vmem:[%s21 + $0xb8] sm:$0xf]
  %v561 = vld [vmem:[%s21 + $0xbc] sm:$0xf]
  %v562 = vld [vmem:[%s21 + $0xc0] sm:$0xf]
  %v563 = vld [vmem:[%s21 + $0xc4] sm:$0xf]
  %v564 = vld [vmem:[%s21 + $0xc8] sm:$0xf]
  %v565 = vld [vmem:[%s21 + $0xcc] sm:$0xf]
  %v566 = vld [vmem:[%s21 + $0xd0] sm:$0xf]
  %v567 = vld [vmem:[%s21 + $0xd4] sm:$0xf]
  %v568 = vld [vmem:[%s21 + $0xd8] sm:$0xf]
  %v569 = vld [vmem:[%s21 + $0xdc] sm:$0xf]
  %v570 = vld [vmem:[%s21 + $0xe0] sm:$0xf]
  %v571 = vld [vmem:[%s21 + $0xe4] sm:$0xf]
  %v572 = vld [vmem:[%s21 + $0xe8] sm:$0xf]
  %v573 = vld [vmem:[%s21 + $0xec] sm:$0xf]
  %v574 = vld [vmem:[%s21 + $0xf0] sm:$0xf]
  %v575 = vld [vmem:[%s21 + $0xf4] sm:$0xf]
  %v576 = vld [vmem:[%s21 + $0xf8] sm:$0xf]
  %v577 = vld [vmem:[%s21 + $0xfc] sm:$0xf]
  %v578 = vld [vmem:[%s21 + $0x100] sm:$0xf]
  %v579 = vld [vmem:[%s21 + $0x104] sm:$0xf]
  %v580 = vld [vmem:[%s21 + $0x108] sm:$0xf]
  %v581 = vld [vmem:[%s21 + $0x10c] sm:$0xf]
  %v582 = vld [vmem:[%s21 + $0x110] sm:$0xf]
  %v583 = vld [vmem:[%s21 + $0x114] sm:$0xf]
  %v584 = vld [vmem:[%s21 + $0x118] sm:$0xf]
  %v585 = vld [vmem:[%s21 + $0x11c] sm:$0xf]
  %v586 = vunpack.c.l.bf16 %v514
  %v587 = vunpack.c.l.bf16 %v515
  %v588 = vunpack.c.l.bf16 %v516
  %v589 = vunpack.c.l.bf16 %v517
  %v590 = vunpack.c.l.bf16 %v518
  %v591 = vunpack.c.l.bf16 %v519
  %v592 = vunpack.c.l.bf16 %v520
  %v593 = vunpack.c.l.bf16 %v521
  %v594 = vunpack.c.l.bf16 %v522
  %v595 = vunpack.c.l.bf16 %v523
  %v596 = vunpack.c.l.bf16 %v524
  %v597 = vunpack.c.l.bf16 %v525
  %v598 = vunpack.c.l.bf16 %v526
  %v599 = vunpack.c.l.bf16 %v527
  %v600 = vunpack.c.l.bf16 %v528
  %v601 = vunpack.c.l.bf16 %v529
  %v602 = vunpack.c.l.bf16 %v530
  %v603 = vunpack.c.l.bf16 %v531
  %v604 = vunpack.c.l.bf16 %v532
  %v605 = vunpack.c.l.bf16 %v533
  %v606 = vunpack.c.l.bf16 %v534
  %v607 = vunpack.c.l.bf16 %v535
  %v608 = vunpack.c.l.bf16 %v536
  %v609 = vunpack.c.l.bf16 %v537
  %v610 = vunpack.c.l.bf16 %v538
  %v611 = vunpack.c.l.bf16 %v539
  %v612 = vunpack.c.l.bf16 %v540
  %v613 = vunpack.c.l.bf16 %v541
  %v614 = vunpack.c.l.bf16 %v542
  %v615 = vunpack.c.l.bf16 %v543
  %v616 = vunpack.c.l.bf16 %v544
  %v617 = vunpack.c.l.bf16 %v545
  %v618 = vunpack.c.l.bf16 %v546
  %v619 = vunpack.c.l.bf16 %v547
  %v620 = vunpack.c.l.bf16 %v548
  %v621 = vunpack.c.l.bf16 %v549
  %v622 = vunpack.c.l.bf16 %v550
  %v623 = vunpack.c.l.bf16 %v551
  %v624 = vunpack.c.l.bf16 %v552
  %v625 = vunpack.c.l.bf16 %v553
  %v626 = vunpack.c.l.bf16 %v554
  %v627 = vunpack.c.l.bf16 %v555
  %v628 = vunpack.c.l.bf16 %v556
  %v629 = vunpack.c.l.bf16 %v557
  %v630 = vunpack.c.l.bf16 %v558
  %v631 = vunpack.c.l.bf16 %v559
  %v632 = vunpack.c.l.bf16 %v560
  %v633 = vunpack.c.l.bf16 %v561
  %v634 = vunpack.c.l.bf16 %v562
  %v635 = vunpack.c.l.bf16 %v563
  %v636 = vunpack.c.l.bf16 %v564
  %v637 = vunpack.c.l.bf16 %v565
  %v638 = vunpack.c.l.bf16 %v566
  %v639 = vunpack.c.l.bf16 %v567
  %v640 = vunpack.c.l.bf16 %v568
  %v641 = vunpack.c.l.bf16 %v569
  %v642 = vunpack.c.l.bf16 %v570
  %v643 = vunpack.c.l.bf16 %v571
  %v644 = vunpack.c.l.bf16 %v572
  %v645 = vunpack.c.l.bf16 %v573
  %v646 = vunpack.c.l.bf16 %v574
  %v647 = vunpack.c.l.bf16 %v575
  %v648 = vunpack.c.l.bf16 %v576
  %v649 = vunpack.c.l.bf16 %v577
  %v650 = vunpack.c.l.bf16 %v578
  %v651 = vunpack.c.l.bf16 %v579
  %v652 = vunpack.c.l.bf16 %v580
  %v653 = vunpack.c.l.bf16 %v581
  %v654 = vunpack.c.l.bf16 %v582
  %v655 = vunpack.c.l.bf16 %v583
  %v656 = vunpack.c.l.bf16 %v584
  %v657 = vunpack.c.l.bf16 %v585
  %v658 = vld [vmem:[%s23] sm:$0xff]
  %v659 = vld [vmem:[%s23 + $0x8] sm:$0xff]
  %v660 = vld [vmem:[%s23 + $0x10] sm:$0xff]
  %v661 = vld [vmem:[%s23 + $0x18] sm:$0xff]
  %v662 = vld [vmem:[%s23 + $0x20] sm:$0xff]
  %v663 = vld [vmem:[%s23 + $0x28] sm:$0xff]
  %v664 = vld [vmem:[%s23 + $0x30] sm:$0xff]
  %v665 = vld [vmem:[%s23 + $0x38] sm:$0xff]
  %v666 = vld [vmem:[%s23 + $0x40] sm:$0xff]
  %v667 = vld [vmem:[%s23 + $0x48] sm:$0xff]
  %v668 = vld [vmem:[%s23 + $0x50] sm:$0xff]
  %v669 = vld [vmem:[%s23 + $0x58] sm:$0xff]
  %v670 = vld [vmem:[%s23 + $0x60] sm:$0xff]
  %v671 = vld [vmem:[%s23 + $0x68] sm:$0xff]
  %v672 = vld [vmem:[%s23 + $0x70] sm:$0xff]
  %v673 = vld [vmem:[%s23 + $0x78] sm:$0xff]
  %v674 = vld [vmem:[%s23 + $0x80] sm:$0xff]
  %v675 = vld [vmem:[%s23 + $0x88] sm:$0xff]
  %v676 = vld [vmem:[%s23 + $0x90] sm:$0xff]
  %v677 = vld [vmem:[%s23 + $0x98] sm:$0xff]
  %v678 = vld [vmem:[%s23 + $0xa0] sm:$0xff]
  %v679 = vld [vmem:[%s23 + $0xa8] sm:$0xff]
  %v680 = vld [vmem:[%s23 + $0xb0] sm:$0xff]
  %v681 = vld [vmem:[%s23 + $0xb8] sm:$0xff]
  %v682 = vld [vmem:[%s23 + $0xc0] sm:$0xff]
  %v683 = vld [vmem:[%s23 + $0xc8] sm:$0xff]
  %v684 = vld [vmem:[%s23 + $0xd0] sm:$0xff]
  %v685 = vld [vmem:[%s23 + $0xd8] sm:$0xff]
  %v686 = vld [vmem:[%s23 + $0xe0] sm:$0xff]
  %v687 = vld [vmem:[%s23 + $0xe8] sm:$0xff]
  %v688 = vld [vmem:[%s23 + $0xf0] sm:$0xff]
  %v689 = vld [vmem:[%s23 + $0xf8] sm:$0xff]
  %v690 = vld [vmem:[%s23 + $0x100] sm:$0xff]
  %v691 = vld [vmem:[%s23 + $0x108] sm:$0xff]
  %v692 = vld [vmem:[%s23 + $0x110] sm:$0xff]
  %v693 = vld [vmem:[%s23 + $0x118] sm:$0xff]
  %v694 = vld [vmem:[%s23 + $0x120] sm:$0xff]
  %v695 = vld [vmem:[%s23 + $0x128] sm:$0xff]
  %v696 = vld [vmem:[%s23 + $0x130] sm:$0xff]
  %v697 = vld [vmem:[%s23 + $0x138] sm:$0xff]
  %v698 = vld [vmem:[%s23 + $0x140] sm:$0xff]
  %v699 = vld [vmem:[%s23 + $0x148] sm:$0xff]
  %v700 = vld [vmem:[%s23 + $0x150] sm:$0xff]
  %v701 = vld [vmem:[%s23 + $0x158] sm:$0xff]
  %v702 = vld [vmem:[%s23 + $0x160] sm:$0xff]
  %v703 = vld [vmem:[%s23 + $0x168] sm:$0xff]
  %v704 = vld [vmem:[%s23 + $0x170] sm:$0xff]
  %v705 = vld [vmem:[%s23 + $0x178] sm:$0xff]
  %v706 = vld [vmem:[%s23 + $0x180] sm:$0xff]
  %v707 = vld [vmem:[%s23 + $0x188] sm:$0xff]
  %v708 = vld [vmem:[%s23 + $0x190] sm:$0xff]
  %v709 = vld [vmem:[%s23 + $0x198] sm:$0xff]
  %v710 = vld [vmem:[%s23 + $0x1a0] sm:$0xff]
  %v711 = vld [vmem:[%s23 + $0x1a8] sm:$0xff]
  %v712 = vld [vmem:[%s23 + $0x1b0] sm:$0xff]
  %v713 = vld [vmem:[%s23 + $0x1b8] sm:$0xff]
  %v714 = vld [vmem:[%s23 + $0x1c0] sm:$0xff]
  %v715 = vld [vmem:[%s23 + $0x1c8] sm:$0xff]
  %v716 = vld [vmem:[%s23 + $0x1d0] sm:$0xff]
  %v717 = vld [vmem:[%s23 + $0x1d8] sm:$0xff]
  %v718 = vld [vmem:[%s23 + $0x1e0] sm:$0xff]
  %v719 = vld [vmem:[%s23 + $0x1e8] sm:$0xff]
  %v720 = vld [vmem:[%s23 + $0x1f0] sm:$0xff]
  %v721 = vld [vmem:[%s23 + $0x1f8] sm:$0xff]
  %v722 = vld [vmem:[%s23 + $0x200] sm:$0xff]
  %v723 = vld [vmem:[%s23 + $0x208] sm:$0xff]
  %v724 = vld [vmem:[%s23 + $0x210] sm:$0xff]
  %v725 = vld [vmem:[%s23 + $0x218] sm:$0xff]
  %v726 = vld [vmem:[%s23 + $0x220] sm:$0xff]
  %v727 = vld [vmem:[%s23 + $0x228] sm:$0xff]
  %v728 = vld [vmem:[%s23 + $0x230] sm:$0xff]
  %v729 = vld [vmem:[%s23 + $0x238] sm:$0xff]
  %v730 = vunpack.c.l.bf16 %v658
  %v731 = vunpack.c.h.bf16 %v658
  %v732 = vunpack.c.l.bf16 %v659
  %v733 = vunpack.c.h.bf16 %v659
  %v734 = vunpack.c.l.bf16 %v660
  %v735 = vunpack.c.h.bf16 %v660
  %v736 = vunpack.c.l.bf16 %v661
  %v737 = vunpack.c.h.bf16 %v661
  %v738 = vunpack.c.l.bf16 %v662
  %v739 = vunpack.c.h.bf16 %v662
  %v740 = vunpack.c.l.bf16 %v663
  %v741 = vunpack.c.h.bf16 %v663
  %v742 = vunpack.c.l.bf16 %v664
  %v743 = vunpack.c.h.bf16 %v664
  %v744 = vunpack.c.l.bf16 %v665
  %v745 = vunpack.c.h.bf16 %v665
  %v746 = vunpack.c.l.bf16 %v666
  %v747 = vunpack.c.h.bf16 %v666
  %v748 = vunpack.c.l.bf16 %v667
  %v749 = vunpack.c.h.bf16 %v667
  %v750 = vunpack.c.l.bf16 %v668
  %v751 = vunpack.c.h.bf16 %v668
  %v752 = vunpack.c.l.bf16 %v669
  %v753 = vunpack.c.h.bf16 %v669
  %v754 = vunpack.c.l.bf16 %v670
  %v755 = vunpack.c.h.bf16 %v670
  %v756 = vunpack.c.l.bf16 %v671
  %v757 = vunpack.c.h.bf16 %v671
  %v758 = vunpack.c.l.bf16 %v672
  %v759 = vunpack.c.h.bf16 %v672
  %v760 = vunpack.c.l.bf16 %v673
  %v761 = vunpack.c.h.bf16 %v673
  %v762 = vunpack.c.l.bf16 %v674
  %v763 = vunpack.c.h.bf16 %v674
  %v764 = vunpack.c.l.bf16 %v675
  %v765 = vunpack.c.h.bf16 %v675
  %v766 = vunpack.c.l.bf16 %v676
  %v767 = vunpack.c.h.bf16 %v676
  %v768 = vunpack.c.l.bf16 %v677
  %v769 = vunpack.c.h.bf16 %v677
  %v770 = vunpack.c.l.bf16 %v678
  %v771 = vunpack.c.h.bf16 %v678
  %v772 = vunpack.c.l.bf16 %v679
  %v773 = vunpack.c.h.bf16 %v679
  %v774 = vunpack.c.l.bf16 %v680
  %v775 = vunpack.c.h.bf16 %v680
  %v776 = vunpack.c.l.bf16 %v681
  %v777 = vunpack.c.h.bf16 %v681
  %v778 = vunpack.c.l.bf16 %v682
  %v779 = vunpack.c.h.bf16 %v682
  %v780 = vunpack.c.l.bf16 %v683
  %v781 = vunpack.c.h.bf16 %v683
  %v782 = vunpack.c.l.bf16 %v684
  %v783 = vunpack.c.h.bf16 %v684
  %v784 = vunpack.c.l.bf16 %v685
  %v785 = vunpack.c.h.bf16 %v685
  %v786 = vunpack.c.l.bf16 %v686
  %v787 = vunpack.c.h.bf16 %v686
  %v788 = vunpack.c.l.bf16 %v687
  %v789 = vunpack.c.h.bf16 %v687
  %v790 = vunpack.c.l.bf16 %v688
  %v791 = vunpack.c.h.bf16 %v688
  %v792 = vunpack.c.l.bf16 %v689
  %v793 = vunpack.c.h.bf16 %v689
  %v794 = vunpack.c.l.bf16 %v690
  %v795 = vunpack.c.h.bf16 %v690
  %v796 = vunpack.c.l.bf16 %v691
  %v797 = vunpack.c.h.bf16 %v691
  %v798 = vunpack.c.l.bf16 %v692
  %v799 = vunpack.c.h.bf16 %v692
  %v800 = vunpack.c.l.bf16 %v693
  %v801 = vunpack.c.h.bf16 %v693
  %v802 = vunpack.c.l.bf16 %v694
  %v803 = vunpack.c.h.bf16 %v694
  %v804 = vunpack.c.l.bf16 %v695
  %v805 = vunpack.c.h.bf16 %v695
  %v806 = vunpack.c.l.bf16 %v696
  %v807 = vunpack.c.h.bf16 %v696
  %v808 = vunpack.c.l.bf16 %v697
  %v809 = vunpack.c.h.bf16 %v697
  %v810 = vunpack.c.l.bf16 %v698
  %v811 = vunpack.c.h.bf16 %v698
  %v812 = vunpack.c.l.bf16 %v699
  %v813 = vunpack.c.h.bf16 %v699
  %v814 = vunpack.c.l.bf16 %v700
  %v815 = vunpack.c.h.bf16 %v700
  %v816 = vunpack.c.l.bf16 %v701
  %v817 = vunpack.c.h.bf16 %v701
  %v818 = vunpack.c.l.bf16 %v702
  %v819 = vunpack.c.h.bf16 %v702
  %v820 = vunpack.c.l.bf16 %v703
  %v821 = vunpack.c.h.bf16 %v703
  %v822 = vunpack.c.l.bf16 %v704
  %v823 = vunpack.c.h.bf16 %v704
  %v824 = vunpack.c.l.bf16 %v705
  %v825 = vunpack.c.h.bf16 %v705
  %v826 = vunpack.c.l.bf16 %v706
  %v827 = vunpack.c.h.bf16 %v706
  %v828 = vunpack.c.l.bf16 %v707
  %v829 = vunpack.c.h.bf16 %v707
  %v830 = vunpack.c.l.bf16 %v708
  %v831 = vunpack.c.h.bf16 %v708
  %v832 = vunpack.c.l.bf16 %v709
  %v833 = vunpack.c.h.bf16 %v709
  %v834 = vunpack.c.l.bf16 %v710
  %v835 = vunpack.c.h.bf16 %v710
  %v836 = vunpack.c.l.bf16 %v711
  %v837 = vunpack.c.h.bf16 %v711
  %v838 = vunpack.c.l.bf16 %v712
  %v839 = vunpack.c.h.bf16 %v712
  %v840 = vunpack.c.l.bf16 %v713
  %v841 = vunpack.c.h.bf16 %v713
  %v842 = vunpack.c.l.bf16 %v714
  %v843 = vunpack.c.h.bf16 %v714
  %v844 = vunpack.c.l.bf16 %v715
  %v845 = vunpack.c.h.bf16 %v715
  %v846 = vunpack.c.l.bf16 %v716
  %v847 = vunpack.c.h.bf16 %v716
  %v848 = vunpack.c.l.bf16 %v717
  %v849 = vunpack.c.h.bf16 %v717
  %v850 = vunpack.c.l.bf16 %v718
  %v851 = vunpack.c.h.bf16 %v718
  %v852 = vunpack.c.l.bf16 %v719
  %v853 = vunpack.c.h.bf16 %v719
  %v854 = vunpack.c.l.bf16 %v720
  %v855 = vunpack.c.h.bf16 %v720
  %v856 = vunpack.c.l.bf16 %v721
  %v857 = vunpack.c.h.bf16 %v721
  %v858 = vunpack.c.l.bf16 %v722
  %v859 = vunpack.c.h.bf16 %v722
  %v860 = vunpack.c.l.bf16 %v723
  %v861 = vunpack.c.h.bf16 %v723
  %v862 = vunpack.c.l.bf16 %v724
  %v863 = vunpack.c.h.bf16 %v724
  %v864 = vunpack.c.l.bf16 %v725
  %v865 = vunpack.c.h.bf16 %v725
  %v866 = vunpack.c.l.bf16 %v726
  %v867 = vunpack.c.h.bf16 %v726
  %v868 = vunpack.c.l.bf16 %v727
  %v869 = vunpack.c.h.bf16 %v727
  %v870 = vunpack.c.l.bf16 %v728
  %v871 = vunpack.c.h.bf16 %v728
  %v872 = vunpack.c.l.bf16 %v729
  %v873 = vunpack.c.h.bf16 %v729
  %v874 = vld [vmem:[%s25] sm:$0xff]
  %v875 = vld [vmem:[%s25 + $0x8] sm:$0xff]
  %v876 = vld [vmem:[%s25 + $0x10] sm:$0xff]
  %v877 = vld [vmem:[%s25 + $0x18] sm:$0xff]
  %v878 = vld [vmem:[%s25 + $0x20] sm:$0xff]
  %v879 = vld [vmem:[%s25 + $0x28] sm:$0xff]
  %v880 = vld [vmem:[%s25 + $0x30] sm:$0xff]
  %v881 = vld [vmem:[%s25 + $0x38] sm:$0xff]
  %v882 = vld [vmem:[%s25 + $0x40] sm:$0xff]
  %v883 = vld [vmem:[%s25 + $0x48] sm:$0xff]
  %v884 = vld [vmem:[%s25 + $0x50] sm:$0xff]
  %v885 = vld [vmem:[%s25 + $0x58] sm:$0xff]
  %v886 = vld [vmem:[%s25 + $0x60] sm:$0xff]
  %v887 = vld [vmem:[%s25 + $0x68] sm:$0xff]
  %v888 = vld [vmem:[%s25 + $0x70] sm:$0xff]
  %v889 = vld [vmem:[%s25 + $0x78] sm:$0xff]
  %v890 = vld [vmem:[%s25 + $0x80] sm:$0xff]
  %v891 = vld [vmem:[%s25 + $0x88] sm:$0xff]
  %v892 = vld [vmem:[%s25 + $0x90] sm:$0xff]
  %v893 = vld [vmem:[%s25 + $0x98] sm:$0xff]
  %v894 = vld [vmem:[%s25 + $0xa0] sm:$0xff]
  %v895 = vld [vmem:[%s25 + $0xa8] sm:$0xff]
  %v896 = vld [vmem:[%s25 + $0xb0] sm:$0xff]
  %v897 = vld [vmem:[%s25 + $0xb8] sm:$0xff]
  %v898 = vld [vmem:[%s25 + $0xc0] sm:$0xff]
  %v899 = vld [vmem:[%s25 + $0xc8] sm:$0xff]
  %v900 = vld [vmem:[%s25 + $0xd0] sm:$0xff]
  %v901 = vld [vmem:[%s25 + $0xd8] sm:$0xff]
  %v902 = vld [vmem:[%s25 + $0xe0] sm:$0xff]
  %v903 = vld [vmem:[%s25 + $0xe8] sm:$0xff]
  %v904 = vld [vmem:[%s25 + $0xf0] sm:$0xff]
  %v905 = vld [vmem:[%s25 + $0xf8] sm:$0xff]
  %v906 = vld [vmem:[%s25 + $0x100] sm:$0xff]
  %v907 = vld [vmem:[%s25 + $0x108] sm:$0xff]
  %v908 = vld [vmem:[%s25 + $0x110] sm:$0xff]
  %v909 = vld [vmem:[%s25 + $0x118] sm:$0xff]
  %v910 = vld [vmem:[%s25 + $0x120] sm:$0xff]
  %v911 = vld [vmem:[%s25 + $0x128] sm:$0xff]
  %v912 = vld [vmem:[%s25 + $0x130] sm:$0xff]
  %v913 = vld [vmem:[%s25 + $0x138] sm:$0xff]
  %v914 = vld [vmem:[%s25 + $0x140] sm:$0xff]
  %v915 = vld [vmem:[%s25 + $0x148] sm:$0xff]
  %v916 = vld [vmem:[%s25 + $0x150] sm:$0xff]
  %v917 = vld [vmem:[%s25 + $0x158] sm:$0xff]
  %v918 = vld [vmem:[%s25 + $0x160] sm:$0xff]
  %v919 = vld [vmem:[%s25 + $0x168] sm:$0xff]
  %v920 = vld [vmem:[%s25 + $0x170] sm:$0xff]
  %v921 = vld [vmem:[%s25 + $0x178] sm:$0xff]
  %v922 = vld [vmem:[%s25 + $0x180] sm:$0xff]
  %v923 = vld [vmem:[%s25 + $0x188] sm:$0xff]
  %v924 = vld [vmem:[%s25 + $0x190] sm:$0xff]
  %v925 = vld [vmem:[%s25 + $0x198] sm:$0xff]
  %v926 = vld [vmem:[%s25 + $0x1a0] sm:$0xff]
  %v927 = vld [vmem:[%s25 + $0x1a8] sm:$0xff]
  %v928 = vld [vmem:[%s25 + $0x1b0] sm:$0xff]
  %v929 = vld [vmem:[%s25 + $0x1b8] sm:$0xff]
  %v930 = vld [vmem:[%s25 + $0x1c0] sm:$0xff]
  %v931 = vld [vmem:[%s25 + $0x1c8] sm:$0xff]
  %v932 = vld [vmem:[%s25 + $0x1d0] sm:$0xff]
  %v933 = vld [vmem:[%s25 + $0x1d8] sm:$0xff]
  %v934 = vld [vmem:[%s25 + $0x1e0] sm:$0xff]
  %v935 = vld [vmem:[%s25 + $0x1e8] sm:$0xff]
  %v936 = vld [vmem:[%s25 + $0x1f0] sm:$0xff]
  %v937 = vld [vmem:[%s25 + $0x1f8] sm:$0xff]
  %v938 = vld [vmem:[%s25 + $0x200] sm:$0xff]
  %v939 = vld [vmem:[%s25 + $0x208] sm:$0xff]
  %v940 = vld [vmem:[%s25 + $0x210] sm:$0xff]
  %v941 = vld [vmem:[%s25 + $0x218] sm:$0xff]
  %v942 = vld [vmem:[%s25 + $0x220] sm:$0xff]
  %v943 = vld [vmem:[%s25 + $0x228] sm:$0xff]
  %v944 = vld [vmem:[%s25 + $0x230] sm:$0xff]
  %v945 = vld [vmem:[%s25 + $0x238] sm:$0xff]
  %v946 = vunpack.c.l.bf16 %v874
  %v947 = vunpack.c.h.bf16 %v874
  %v948 = vunpack.c.l.bf16 %v875
  %v949 = vunpack.c.h.bf16 %v875
  %v950 = vunpack.c.l.bf16 %v876
  %v951 = vunpack.c.h.bf16 %v876
  %v952 = vunpack.c.l.bf16 %v877
  %v953 = vunpack.c.h.bf16 %v877
  %v954 = vunpack.c.l.bf16 %v878
  %v955 = vunpack.c.h.bf16 %v878
  %v956 = vunpack.c.l.bf16 %v879
  %v957 = vunpack.c.h.bf16 %v879
  %v958 = vunpack.c.l.bf16 %v880
  %v959 = vunpack.c.h.bf16 %v880
  %v960 = vunpack.c.l.bf16 %v881
  %v961 = vunpack.c.h.bf16 %v881
  %v962 = vunpack.c.l.bf16 %v882
  %v963 = vunpack.c.h.bf16 %v882
  %v964 = vunpack.c.l.bf16 %v883
  %v965 = vunpack.c.h.bf16 %v883
  %v966 = vunpack.c.l.bf16 %v884
  %v967 = vunpack.c.h.bf16 %v884
  %v968 = vunpack.c.l.bf16 %v885
  %v969 = vunpack.c.h.bf16 %v885
  %v970 = vunpack.c.l.bf16 %v886
  %v971 = vunpack.c.h.bf16 %v886
  %v972 = vunpack.c.l.bf16 %v887
  %v973 = vunpack.c.h.bf16 %v887
  %v974 = vunpack.c.l.bf16 %v888
  %v975 = vunpack.c.h.bf16 %v888
  %v976 = vunpack.c.l.bf16 %v889
  %v977 = vunpack.c.h.bf16 %v889
  %v978 = vunpack.c.l.bf16 %v890
  %v979 = vunpack.c.h.bf16 %v890
  %v980 = vunpack.c.l.bf16 %v891
  %v981 = vunpack.c.h.bf16 %v891
  %v982 = vunpack.c.l.bf16 %v892
  %v983 = vunpack.c.h.bf16 %v892
  %v984 = vunpack.c.l.bf16 %v893
  %v985 = vunpack.c.h.bf16 %v893
  %v986 = vunpack.c.l.bf16 %v894
  %v987 = vunpack.c.h.bf16 %v894
  %v988 = vunpack.c.l.bf16 %v895
  %v989 = vunpack.c.h.bf16 %v895
  %v990 = vunpack.c.l.bf16 %v896
  %v991 = vunpack.c.h.bf16 %v896
  %v992 = vunpack.c.l.bf16 %v897
  %v993 = vunpack.c.h.bf16 %v897
  %v994 = vunpack.c.l.bf16 %v898
  %v995 = vunpack.c.h.bf16 %v898
  %v996 = vunpack.c.l.bf16 %v899
  %v997 = vunpack.c.h.bf16 %v899
  %v998 = vunpack.c.l.bf16 %v900
  %v999 = vunpack.c.h.bf16 %v900
  %v1000 = vunpack.c.l.bf16 %v901
  %v1001 = vunpack.c.h.bf16 %v901
  %v1002 = vunpack.c.l.bf16 %v902
  %v1003 = vunpack.c.h.bf16 %v902
  %v1004 = vunpack.c.l.bf16 %v903
  %v1005 = vunpack.c.h.bf16 %v903
  %v1006 = vunpack.c.l.bf16 %v904
  %v1007 = vunpack.c.h.bf16 %v904
  %v1008 = vunpack.c.l.bf16 %v905
  %v1009 = vunpack.c.h.bf16 %v905
  %v1010 = vunpack.c.l.bf16 %v906
  %v1011 = vunpack.c.h.bf16 %v906
  %v1012 = vunpack.c.l.bf16 %v907
  %v1013 = vunpack.c.h.bf16 %v907
  %v1014 = vunpack.c.l.bf16 %v908
  %v1015 = vunpack.c.h.bf16 %v908
  %v1016 = vunpack.c.l.bf16 %v909
  %v1017 = vunpack.c.h.bf16 %v909
  %v1018 = vunpack.c.l.bf16 %v910
  %v1019 = vunpack.c.h.bf16 %v910
  %v1020 = vunpack.c.l.bf16 %v911
  %v1021 = vunpack.c.h.bf16 %v911
  %v1022 = vunpack.c.l.bf16 %v912
  %v1023 = vunpack.c.h.bf16 %v912
  %v1024 = vunpack.c.l.bf16 %v913
  %v1025 = vunpack.c.h.bf16 %v913
  %v1026 = vunpack.c.l.bf16 %v914
  %v1027 = vunpack.c.h.bf16 %v914
  %v1028 = vunpack.c.l.bf16 %v915
  %v1029 = vunpack.c.h.bf16 %v915
  %v1030 = vunpack.c.l.bf16 %v916
  %v1031 = vunpack.c.h.bf16 %v916
  %v1032 = vunpack.c.l.bf16 %v917
  %v1033 = vunpack.c.h.bf16 %v917
  %v1034 = vunpack.c.l.bf16 %v918
  %v1035 = vunpack.c.h.bf16 %v918
  %v1036 = vunpack.c.l.bf16 %v919
  %v1037 = vunpack.c.h.bf16 %v919
  %v1038 = vunpack.c.l.bf16 %v920
  %v1039 = vunpack.c.h.bf16 %v920
  %v1040 = vunpack.c.l.bf16 %v921
  %v1041 = vunpack.c.h.bf16 %v921
  %v1042 = vunpack.c.l.bf16 %v922
  %v1043 = vunpack.c.h.bf16 %v922
  %v1044 = vunpack.c.l.bf16 %v923
  %v1045 = vunpack.c.h.bf16 %v923
  %v1046 = vunpack.c.l.bf16 %v924
  %v1047 = vunpack.c.h.bf16 %v924
  %v1048 = vunpack.c.l.bf16 %v925
  %v1049 = vunpack.c.h.bf16 %v925
  %v1050 = vunpack.c.l.bf16 %v926
  %v1051 = vunpack.c.h.bf16 %v926
  %v1052 = vunpack.c.l.bf16 %v927
  %v1053 = vunpack.c.h.bf16 %v927
  %v1054 = vunpack.c.l.bf16 %v928
  %v1055 = vunpack.c.h.bf16 %v928
  %v1056 = vunpack.c.l.bf16 %v929
  %v1057 = vunpack.c.h.bf16 %v929
  %v1058 = vunpack.c.l.bf16 %v930
  %v1059 = vunpack.c.h.bf16 %v930
  %v1060 = vunpack.c.l.bf16 %v931
  %v1061 = vunpack.c.h.bf16 %v931
  %v1062 = vunpack.c.l.bf16 %v932
  %v1063 = vunpack.c.h.bf16 %v932
  %v1064 = vunpack.c.l.bf16 %v933
  %v1065 = vunpack.c.h.bf16 %v933
  %v1066 = vunpack.c.l.bf16 %v934
  %v1067 = vunpack.c.h.bf16 %v934
  %v1068 = vunpack.c.l.bf16 %v935
  %v1069 = vunpack.c.h.bf16 %v935
  %v1070 = vunpack.c.l.bf16 %v936
  %v1071 = vunpack.c.h.bf16 %v936
  %v1072 = vunpack.c.l.bf16 %v937
  %v1073 = vunpack.c.h.bf16 %v937
  %v1074 = vunpack.c.l.bf16 %v938
  %v1075 = vunpack.c.h.bf16 %v938
  %v1076 = vunpack.c.l.bf16 %v939
  %v1077 = vunpack.c.h.bf16 %v939
  %v1078 = vunpack.c.l.bf16 %v940
  %v1079 = vunpack.c.h.bf16 %v940
  %v1080 = vunpack.c.l.bf16 %v941
  %v1081 = vunpack.c.h.bf16 %v941
  %v1082 = vunpack.c.l.bf16 %v942
  %v1083 = vunpack.c.h.bf16 %v942
  %v1084 = vunpack.c.l.bf16 %v943
  %v1085 = vunpack.c.h.bf16 %v943
  %v1086 = vunpack.c.l.bf16 %v944
  %v1087 = vunpack.c.h.bf16 %v944
  %v1088 = vunpack.c.l.bf16 %v945
  %v1089 = vunpack.c.h.bf16 %v945
  %v1090 = vld [vmem:[%s27] sm:$0xf]
  %v1091 = vld [vmem:[%s27 + $0x4] sm:$0xf]
  %v1092 = vld [vmem:[%s27 + $0x8] sm:$0xf]
  %v1093 = vld [vmem:[%s27 + $0xc] sm:$0xf]
  %v1094 = vld [vmem:[%s27 + $0x10] sm:$0xf]
  %v1095 = vld [vmem:[%s27 + $0x14] sm:$0xf]
  %v1096 = vld [vmem:[%s27 + $0x18] sm:$0xf]
  %v1097 = vld [vmem:[%s27 + $0x1c] sm:$0xf]
  %v1098 = vld [vmem:[%s27 + $0x20] sm:$0xf]
  %v1099 = vld [vmem:[%s27 + $0x24] sm:$0xf]
  %v1100 = vld [vmem:[%s27 + $0x28] sm:$0xf]
  %v1101 = vld [vmem:[%s27 + $0x2c] sm:$0xf]
  %v1102 = vld [vmem:[%s27 + $0x30] sm:$0xf]
  %v1103 = vld [vmem:[%s27 + $0x34] sm:$0xf]
  %v1104 = vld [vmem:[%s27 + $0x38] sm:$0xf]
  %v1105 = vld [vmem:[%s27 + $0x3c] sm:$0xf]
  %v1106 = vld [vmem:[%s27 + $0x40] sm:$0xf]
  %v1107 = vld [vmem:[%s27 + $0x44] sm:$0xf]
  %v1108 = vunpack.c.l.bf16 %v1090
  %v1109 = vunpack.c.l.bf16 %v1091
  %v1110 = vunpack.c.l.bf16 %v1092
  %v1111 = vunpack.c.l.bf16 %v1093
  %v1112 = vunpack.c.l.bf16 %v1094
  %v1113 = vunpack.c.l.bf16 %v1095
  %v1114 = vunpack.c.l.bf16 %v1096
  %v1115 = vunpack.c.l.bf16 %v1097
  %v1116 = vunpack.c.l.bf16 %v1098
  %v1117 = vunpack.c.l.bf16 %v1099
  %v1118 = vunpack.c.l.bf16 %v1100
  %v1119 = vunpack.c.l.bf16 %v1101
  %v1120 = vunpack.c.l.bf16 %v1102
  %v1121 = vunpack.c.l.bf16 %v1103
  %v1122 = vunpack.c.l.bf16 %v1104
  %v1123 = vunpack.c.l.bf16 %v1105
  %v1124 = vunpack.c.l.bf16 %v1106
  %v1125 = vunpack.c.l.bf16 %v1107
  %v1126 = vld [vmem:[%s29] sm:$0xf]
  %v1127 = vld [vmem:[%s29 + $0x4] sm:$0xf]
  %v1128 = vld [vmem:[%s29 + $0x8] sm:$0xf]
  %v1129 = vld [vmem:[%s29 + $0xc] sm:$0x3]
  %v1130 = vunpack.c.l.bf16 %v1126
  %v1131 = vunpack.c.l.bf16 %v1127
  %v1132 = vunpack.c.l.bf16 %v1128
  %v1133 = vunpack.c.l.bf16 %v1129
  %v1134 = vld [vmem:[%s31] sm:$0xf]
  %v1135 = vld [vmem:[%s31 + $0x4] sm:$0xf]
  %v1136 = vld [vmem:[%s31 + $0x8] sm:$0xf]
  %v1137 = vld [vmem:[%s31 + $0xc] sm:$0xf]
  %v1138 = vld [vmem:[%s31 + $0x10] sm:$0xf]
  %v1139 = vld [vmem:[%s31 + $0x14] sm:$0xf]
  %v1140 = vld [vmem:[%s31 + $0x18] sm:$0xf]
  %v1141 = vld [vmem:[%s31 + $0x1c] sm:$0xf]
  %v1142 = vld [vmem:[%s31 + $0x20] sm:$0xf]
  %v1143 = vld [vmem:[%s31 + $0x24] sm:$0xf]
  %v1144 = vld [vmem:[%s31 + $0x28] sm:$0xf]
  %v1145 = vld [vmem:[%s31 + $0x2c] sm:$0xf]
  %v1146 = vld [vmem:[%s31 + $0x30] sm:$0xf]
  %v1147 = vld [vmem:[%s31 + $0x34] sm:$0xf]
  %v1148 = vld [vmem:[%s31 + $0x38] sm:$0xf]
  %v1149 = vld [vmem:[%s31 + $0x3c] sm:$0xf]
  %v1150 = vld [vmem:[%s31 + $0x40] sm:$0xf]
  %v1151 = vld [vmem:[%s31 + $0x44] sm:$0xf]
  %v1152 = vunpack.c.l.bf16 %v1134
  %v1153 = vunpack.c.l.bf16 %v1135
  %v1154 = vunpack.c.l.bf16 %v1136
  %v1155 = vunpack.c.l.bf16 %v1137
  %v1156 = vunpack.c.l.bf16 %v1138
  %v1157 = vunpack.c.l.bf16 %v1139
  %v1158 = vunpack.c.l.bf16 %v1140
  %v1159 = vunpack.c.l.bf16 %v1141
  %v1160 = vunpack.c.l.bf16 %v1142
  %v1161 = vunpack.c.l.bf16 %v1143
  %v1162 = vunpack.c.l.bf16 %v1144
  %v1163 = vunpack.c.l.bf16 %v1145
  %v1164 = vunpack.c.l.bf16 %v1146
  %v1165 = vunpack.c.l.bf16 %v1147
  %v1166 = vunpack.c.l.bf16 %v1148
  %v1167 = vunpack.c.l.bf16 %v1149
  %v1168 = vunpack.c.l.bf16 %v1150
  %v1169 = vunpack.c.l.bf16 %v1151
  %v1170 = vld [vmem:[%s33] sm:$0xf]
  %v1171 = vld [vmem:[%s33 + $0x4] sm:$0xf]
  %v1172 = vld [vmem:[%s33 + $0x8] sm:$0xf]
  %v1173 = vld [vmem:[%s33 + $0xc] sm:$0xf]
  %v1174 = vld [vmem:[%s33 + $0x10] sm:$0xf]
  %v1175 = vld [vmem:[%s33 + $0x14] sm:$0xf]
  %v1176 = vld [vmem:[%s33 + $0x18] sm:$0x7]
  %v1177 = vunpack.c.l.bf16 %v1170
  %v1178 = vunpack.c.l.bf16 %v1171
  %v1179 = vunpack.c.l.bf16 %v1172
  %v1180 = vunpack.c.l.bf16 %v1173
  %v1181 = vunpack.c.l.bf16 %v1174
  %v1182 = vunpack.c.l.bf16 %v1175
  %v1183 = vunpack.c.l.bf16 %v1176
  %v1184 = vld [vmem:[%s35] sm:$0x7]
  %v1185 = vunpack.c.l.bf16 %v1184
  %v1186 = vld [vmem:[%s3] sm:$0xff]
  %v1187 = vld [vmem:[%s3 + $0x8] sm:$0xff]
  %v1188 = vld [vmem:[%s5] sm:$0xff]
  %v1189 = vld [vmem:[%s5 + $0x8] sm:$0xff]
  %v1190 = vld [vmem:[%s5 + $0x10] sm:$0xff]
  %v1191 = vld [vmem:[%s5 + $0x18] sm:$0xff]
  %v1192 = vld [vmem:[%s5 + $0x20] sm:$0xff]
  %v1193 = vld [vmem:[%s5 + $0x28] sm:$0xff]
  %v1194 = vld [vmem:[%s5 + $0x30] sm:$0x3f]
  %v1195 = vld [vmem:[%s1] sm:$0xff]
  %v1196 = vld [vmem:[%s1 + $0x8] sm:$0xff]
  %v1197 = vld [vmem:[%s1 + $0x10] sm:$0xff]
  %v1198 = vld [vmem:[%s1 + $0x18] sm:$0xff]
  %v1199 = vld [vmem:[%s1 + $0x20] sm:$0xff]
  %v1200 = vld [vmem:[%s1 + $0x28] sm:$0xff]
  %v1201 = vld [vmem:[%s1 + $0x30] sm:$0xff]
  %v1202 = vld [vmem:[%s1 + $0x38] sm:$0xff]
  %v1203 = vld [vmem:[%s37] sm:$0xff]
  %v1204 = vld [vmem:[%s37 + $0x8] sm:$0xff]
  %v1205 = vld [vmem:[%s41] sm:$0x1]
  %v1207 = vlaneseq
  %v1208 = vshrl.u32 %v1207, 7
  %v1209 = vsub.s32 0, %v1208
  %v1210 = vrot.slane %v1205, %v1209
  %vm1212 = vcmask 130048
  %v1214 = vsel %vm1212, %v1195, 0
  %v1217 = vsel %vm1212, %v1196, 0
  %v1220 = vsel %vm1212, %v1197, 0
  %v1223 = vsel %vm1212, %v1198, 0
  %v1226 = vsel %vm1212, %v1199, 0
  %v1229 = vsel %vm1212, %v1200, 0
  %v1232 = vsel %vm1212, %v1201, 0
  %v1235 = vsel %vm1212, %v1202, 0
  %1237 = vmatprep.subr.mxu0 0.0
  %1238 = vmatpush1.msra.mxu0 %v1203
  %1239 = vmatprep.subr.mxu0 0.0
  %1240 = vmatpush1.msra.mxu0 %v1204
  %1241 = vmatprep.subr.mxu0 0.0
  %1242 = vmatpush1.msra.mxu0 0.0
  %1243 = vmatprep.subr.mxu0 0.0
  %1244 = vmatpush1.msra.mxu0 0.0
  %1245 = vmatprep.subr.mxu0 0.0
  %1246 = vmatpush1.msra.mxu0 0.0
  %1247 = vmatprep.subr.mxu0 0.0
  %1248 = vmatpush1.msra.mxu0 0.0
  %1249 = vmatprep.subr.mxu0 0.0
  %1250 = vmatpush1.msra.mxu0 0.0
  %1251 = vmatprep.subr.mxu0 0.0
  %1252 = vmatpush1.msra.mxu0 0.0
  %1253 = vmatprep.subr.mxu0 0.0
  %1254 = vmatpush1.msra.mxu0 0.0
  %1255 = vmatprep.subr.mxu0 0.0
  %1256 = vmatpush1.msra.mxu0 0.0
  %1257 = vmatprep.subr.mxu0 0.0
  %1258 = vmatpush1.msra.mxu0 0.0
  %1259 = vmatprep.subr.mxu0 0.0
  %1260 = vmatpush1.msra.mxu0 0.0
  %1261 = vmatprep.subr.mxu0 0.0
  %1262 = vmatpush1.msra.mxu0 0.0
  %1263 = vmatprep.subr.mxu0 0.0
  %1264 = vmatpush1.msra.mxu0 0.0
  %1265 = vmatprep.subr.mxu0 0.0
  %1266 = vmatpush1.msra.mxu0 0.0
  %1267 = vmatprep.subr.mxu0 0.0
  %1268 = vmatpush1.msra.mxu0 0.0
  %1269 = vmatprep.subr.mxu0 0.0
  %1270 = vmatpush1.msra.mxu0 0.0
  %1271 = vmatprep.subr.mxu0 0.0
  %1272 = vmatpush1.msra.mxu0 0.0
  %1273 = vmatprep.subr.mxu0 0.0
  %1274 = vmatpush1.msra.mxu0 0.0
  %1275 = vmatprep.subr.mxu0 0.0
  %1276 = vmatpush1.msra.mxu0 0.0
  %1277 = vmatprep.subr.mxu0 0.0
  %1278 = vmatpush1.msra.mxu0 0.0
  %1279 = vmatprep.subr.mxu0 0.0
  %1280 = vmatpush1.msra.mxu0 0.0
  %1281 = vmatprep.subr.mxu0 0.0
  %1282 = vmatpush1.msra.mxu0 0.0
  %1283 = vmatprep.subr.mxu0 0.0
  %1284 = vmatpush1.msra.mxu0 0.0
  %1285 = vmatprep.subr.mxu0 0.0
  %1286 = vmatpush1.msra.mxu0 0.0
  %1287 = vmatprep.subr.mxu0 0.0
  %1288 = vmatpush1.msra.mxu0 0.0
  %1289 = vmatprep.subr.mxu0 0.0
  %1290 = vmatpush1.msra.mxu0 0.0
  %1291 = vmatprep.subr.mxu0 0.0
  %1292 = vmatpush1.msra.mxu0 0.0
  %1293 = vmatprep.subr.mxu0 0.0
  %1294 = vmatpush1.msra.mxu0 0.0
  %1295 = vmatprep.subr.mxu0 0.0
  %1296 = vmatpush1.msra.mxu0 0.0
  %1297 = vmatprep.subr.mxu0 0.0
  %1298 = vmatpush1.msra.mxu0 0.0
  %1299 = vmatprep.subr.mxu0 0.0
  %1300 = vmatpush1.msra.mxu0 0.0
  %1301 = vmatprep.mubr.f32.mxu0 0.0
  %1302 = vmatmul.mubr.f32.gmra.mrb[0].mxu0 %v1214
  %v1303 = vpop.f32.mrb[0].mxu0
  %v1304 = vadd.f32 %v1210, %v1303
  %v1305 = vpop.f32.mrb[0].mxu0
  %1306 = vmatprep.mubr.f32.mxu0 0.0
  %1307 = vmatmul.mubr.f32.gmra.mrb[0].mxu0 %v1217
  %v1308 = vpop.f32.mrb[0].mxu0
  %v1309 = vadd.f32 %v1210, %v1308
  %v1310 = vpop.f32.mrb[0].mxu0
  %1311 = vmatprep.mubr.f32.mxu0 0.0
  %1312 = vmatmul.mubr.f32.gmra.mrb[0].mxu0 %v1220
  %v1313 = vpop.f32.mrb[0].mxu0
  %v1314 = vadd.f32 %v1210, %v1313
  %v1315 = vpop.f32.mrb[0].mxu0
  %1316 = vmatprep.mubr.f32.mxu0 0.0
  %1317 = vmatmul.mubr.f32.gmra.mrb[0].mxu0 %v1223
  %v1318 = vpop.f32.mrb[0].mxu0
  %v1319 = vadd.f32 %v1210, %v1318
  %v1320 = vpop.f32.mrb[0].mxu0
  %1321 = vmatprep.mubr.f32.mxu0 0.0
  %1322 = vmatmul.mubr.f32.gmra.mrb[0].mxu0 %v1226
  %v1323 = vpop.f32.mrb[0].mxu0
  %v1324 = vadd.f32 %v1210, %v1323
  %v1325 = vpop.f32.mrb[0].mxu0
  %1326 = vmatprep.mubr.f32.mxu0 0.0
  %1327 = vmatmul.mubr.f32.gmra.mrb[0].mxu0 %v1229
  %v1328 = vpop.f32.mrb[0].mxu0
  %v1329 = vadd.f32 %v1210, %v1328
  %v1330 = vpop.f32.mrb[0].mxu0
  %1331 = vmatprep.mubr.f32.mxu0 0.0
  %1332 = vmatmul.mubr.f32.gmra.mrb[0].mxu0 %v1232
  %v1333 = vpop.f32.mrb[0].mxu0
  %v1334 = vadd.f32 %v1210, %v1333
  %v1335 = vpop.f32.mrb[0].mxu0
  %1336 = vmatprep.mubr.f32.mxu0 0.0
  %1337 = vmatmul.mubr.f32.gmra.mrb[0].mxu0 %v1235
  %v1338 = vpop.f32.mrb[0].mxu0
  %v1339 = vadd.f32 %v1210, %v1338
  %v1340 = vpop.f32.mrb[0].mxu0
  %1341 = vdwg.mxu0
  %v1342 = vld [vmem:[%s45] sm:$0x1]
  %v1343 = vld [vmem:[%s47] sm:$0x1]
  %v1344 = vsel %vm1212, %v1304, 0.0
  %1345 = vadd.xlane.f32.xlu0 %v1344
  %v1346 = vpop.xlane.xlu0 %1345
  %v1347 = vsel %vm1212, %v1309, 0.0
  %1348 = vadd.xlane.f32.xlu0 %v1347
  %v1349 = vpop.xlane.xlu0 %1348
  %v1350 = vsel %vm1212, %v1314, 0.0
  %1351 = vadd.xlane.f32.xlu0 %v1350
  %v1352 = vpop.xlane.xlu0 %1351
  %v1353 = vsel %vm1212, %v1319, 0.0
  %1354 = vadd.xlane.f32.xlu0 %v1353
  %v1355 = vpop.xlane.xlu0 %1354
  %v1356 = vsel %vm1212, %v1324, 0.0
  %1357 = vadd.xlane.f32.xlu0 %v1356
  %v1358 = vpop.xlane.xlu0 %1357
  %v1359 = vsel %vm1212, %v1329, 0.0
  %1360 = vadd.xlane.f32.xlu0 %v1359
  %v1361 = vpop.xlane.xlu0 %1360
  %v1362 = vsel %vm1212, %v1334, 0.0
  %1363 = vadd.xlane.f32.xlu0 %v1362
  %v1364 = vpop.xlane.xlu0 %1363
  %v1365 = vsel %vm1212, %v1339, 0.0
  %1366 = vadd.xlane.f32.xlu0 %v1365
  %v1367 = vpop.xlane.xlu0 %1366
  %v1368 = vrcp.pop 16.0
  %v1369 = vmul.f32 %v1346, %v1368
  %v1370 = vmul.f32 %v1349, %v1368
  %v1371 = vmul.f32 %v1352, %v1368
  %v1372 = vmul.f32 %v1355, %v1368
  %v1373 = vmul.f32 %v1358, %v1368
  %v1374 = vmul.f32 %v1361, %v1368
  %v1375 = vmul.f32 %v1364, %v1368
  %v1376 = vmul.f32 %v1367, %v1368
  %v1377 = vsub.f32 %v1304, %v1369
  %v1378 = vsub.f32 %v1309, %v1370
  %v1379 = vsub.f32 %v1314, %v1371
  %v1380 = vsub.f32 %v1319, %v1372
  %v1381 = vsub.f32 %v1324, %v1373
  %v1382 = vsub.f32 %v1329, %v1374
  %v1383 = vsub.f32 %v1334, %v1375
  %v1384 = vsub.f32 %v1339, %v1376
  %v1385 = vmul.f32 %v1377, %v1377
  %v1386 = vmul.f32 %v1378, %v1378
  %v1387 = vmul.f32 %v1379, %v1379
  %v1388 = vmul.f32 %v1380, %v1380
  %v1389 = vmul.f32 %v1381, %v1381
  %v1390 = vmul.f32 %v1382, %v1382
  %v1391 = vmul.f32 %v1383, %v1383
  %v1392 = vmul.f32 %v1384, %v1384
  %v1393 = vsel %vm1212, %v1385, 0.0
  %1394 = vadd.xlane.f32.xlu0 %v1393
  %v1395 = vpop.xlane.xlu0 %1394
  %v1396 = vsel %vm1212, %v1386, 0.0
  %1397 = vadd.xlane.f32.xlu0 %v1396
  %v1398 = vpop.xlane.xlu0 %1397
  %v1399 = vsel %vm1212, %v1387, 0.0
  %1400 = vadd.xlane.f32.xlu0 %v1399
  %v1401 = vpop.xlane.xlu0 %1400
  %v1402 = vsel %vm1212, %v1388, 0.0
  %1403 = vadd.xlane.f32.xlu0 %v1402
  %v1404 = vpop.xlane.xlu0 %1403
  %v1405 = vsel %vm1212, %v1389, 0.0
  %1406 = vadd.xlane.f32.xlu0 %v1405
  %v1407 = vpop.xlane.xlu0 %1406
  %v1408 = vsel %vm1212, %v1390, 0.0
  %1409 = vadd.xlane.f32.xlu0 %v1408
  %v1410 = vpop.xlane.xlu0 %1409
  %v1411 = vsel %vm1212, %v1391, 0.0
  %1412 = vadd.xlane.f32.xlu0 %v1411
  %v1413 = vpop.xlane.xlu0 %1412
  %v1414 = vsel %vm1212, %v1392, 0.0
  %1415 = vadd.xlane.f32.xlu0 %v1414
  %v1416 = vpop.xlane.xlu0 %1415
  %v1417 = vmul.f32 %v1395, %v1368
  %v1418 = vmul.f32 %v1398, %v1368
  %v1419 = vmul.f32 %v1401, %v1368
  %v1420 = vmul.f32 %v1404, %v1368
  %v1421 = vmul.f32 %v1407, %v1368
  %v1422 = vmul.f32 %v1410, %v1368
  %v1423 = vmul.f32 %v1413, %v1368
  %v1424 = vmul.f32 %v1416, %v1368
  %v1425 = vadd.f32 %v1417, 1e-05
  %v1426 = vadd.f32 %v1418, 1e-05
  %v1427 = vadd.f32 %v1419, 1e-05
  %v1428 = vadd.f32 %v1420, 1e-05
  %v1429 = vadd.f32 %v1421, 1e-05
  %v1430 = vadd.f32 %v1422, 1e-05
  %v1431 = vadd.f32 %v1423, 1e-05
  %v1432 = vadd.f32 %v1424, 1e-05
  %v1433 = vrsqrt.pop %v1425
  %v1434 = vrsqrt.pop %v1426
  %v1435 = vrsqrt.pop %v1427
  %v1436 = vrsqrt.pop %v1428
  %v1437 = vrsqrt.pop %v1429
  %v1438 = vrsqrt.pop %v1430
  %v1439 = vrsqrt.pop %v1431
  %v1440 = vrsqrt.pop %v1432
  %v1441 = vmul.f32 %v1377, %v1433
  %v1442 = vmul.f32 %v1378, %v1434
  %v1443 = vmul.f32 %v1379, %v1435
  %v1444 = vmul.f32 %v1380, %v1436
  %v1445 = vmul.f32 %v1381, %v1437
  %v1446 = vmul.f32 %v1382, %v1438
  %v1447 = vmul.f32 %v1383, %v1439
  %v1448 = vmul.f32 %v1384, %v1440
  %v1450 = vlaneseq
  %v1451 = vshrl.u32 %v1450, 7
  %v1452 = vsub.s32 0, %v1451
  %v1453 = vrot.slane %v1342, %v1452
  %v1455 = vmul.f32 %v1441, %v1453
  %v1456 = vmul.f32 %v1442, %v1453
  %v1457 = vmul.f32 %v1443, %v1453
  %v1458 = vmul.f32 %v1444, %v1453
  %v1459 = vmul.f32 %v1445, %v1453
  %v1460 = vmul.f32 %v1446, %v1453
  %v1461 = vmul.f32 %v1447, %v1453
  %v1462 = vmul.f32 %v1448, %v1453
  %v1464 = vlaneseq
  %v1465 = vshrl.u32 %v1464, 7
  %v1466 = vsub.s32 0, %v1465
  %v1467 = vrot.slane %v1343, %v1466
  %v1469 = vadd.f32 %v1455, %v1467
  %v1470 = vadd.f32 %v1456, %v1467
  %v1471 = vadd.f32 %v1457, %v1467
  %v1472 = vadd.f32 %v1458, %v1467
  %v1473 = vadd.f32 %v1459, %v1467
  %v1474 = vadd.f32 %v1460, %v1467
  %v1475 = vadd.f32 %v1461, %v1467
  %v1476 = vadd.f32 %v1462, %v1467
  %v1477 = vld [vmem:[%s39] sm:$0xff]
  %v1478 = vld [vmem:[%s39 + $0x8] sm:$0xff]
  %v1479 = vld [vmem:[%s43] sm:$0xff]
  %v1480 = vld [vmem:[%s43 + $0x8] sm:$0xff]
  %1482 = vset.pattern.permute.xlu0 0
  %1483 = vperm.xlu0 %1482, %v1479
  %v1484 = vpop.permute.xlu0 %1483
  %1487 = vset.pattern.permute.xlu0 0
  %1488 = vperm.xlu0 %1487, %v1480
  %v1489 = vpop.permute.xlu0 %1488
  %v1492 = vsel %vm1212, %v1477, 0
  %v1495 = vsel %vm1212, %v1478, 0
  %1497 = vmatprep.subr.mxu0 0.0
  %1498 = vmatpush1.msra.mxu0 %v1186
  %1499 = vmatprep.subr.mxu0 0.0
  %1500 = vmatpush1.msra.mxu0 %v1187
  %1501 = vmatprep.subr.mxu0 0.0
  %1502 = vmatpush1.msra.mxu0 0.0
  %1503 = vmatprep.subr.mxu0 0.0
  %1504 = vmatpush1.msra.mxu0 0.0
  %1505 = vmatprep.subr.mxu0 0.0
  %1506 = vmatpush1.msra.mxu0 0.0
  %1507 = vmatprep.subr.mxu0 0.0
  %1508 = vmatpush1.msra.mxu0 0.0
  %1509 = vmatprep.subr.mxu0 0.0
  %1510 = vmatpush1.msra.mxu0 0.0
  %1511 = vmatprep.subr.mxu0 0.0
  %1512 = vmatpush1.msra.mxu0 0.0
  %1513 = vmatprep.subr.mxu0 0.0
  %1514 = vmatpush1.msra.mxu0 0.0
  %1515 = vmatprep.subr.mxu0 0.0
  %1516 = vmatpush1.msra.mxu0 0.0
  %1517 = vmatprep.subr.mxu0 0.0
  %1518 = vmatpush1.msra.mxu0 0.0
  %1519 = vmatprep.subr.mxu0 0.0
  %1520 = vmatpush1.msra.mxu0 0.0
  %1521 = vmatprep.subr.mxu0 0.0
  %1522 = vmatpush1.msra.mxu0 0.0
  %1523 = vmatprep.subr.mxu0 0.0
  %1524 = vmatpush1.msra.mxu0 0.0
  %1525 = vmatprep.subr.mxu0 0.0
  %1526 = vmatpush1.msra.mxu0 0.0
  %1527 = vmatprep.subr.mxu0 0.0
  %1528 = vmatpush1.msra.mxu0 0.0
  %1529 = vmatprep.subr.mxu0 0.0
  %1530 = vmatpush1.msra.mxu0 0.0
  %1531 = vmatprep.subr.mxu0 0.0
  %1532 = vmatpush1.msra.mxu0 0.0
  %1533 = vmatprep.subr.mxu0 0.0
  %1534 = vmatpush1.msra.mxu0 0.0
  %1535 = vmatprep.subr.mxu0 0.0
  %1536 = vmatpush1.msra.mxu0 0.0
  %1537 = vmatprep.subr.mxu0 0.0
  %1538 = vmatpush1.msra.mxu0 0.0
  %1539 = vmatprep.subr.mxu0 0.0
  %1540 = vmatpush1.msra.mxu0 0.0
  %1541 = vmatprep.subr.mxu0 0.0
  %1542 = vmatpush1.msra.mxu0 0.0
  %1543 = vmatprep.subr.mxu0 0.0
  %1544 = vmatpush1.msra.mxu0 0.0
  %1545 = vmatprep.subr.mxu0 0.0
  %1546 = vmatpush1.msra.mxu0 0.0
  %1547 = vmatprep.subr.mxu0 0.0
  %1548 = vmatpush1.msra.mxu0 0.0
  %1549 = vmatprep.subr.mxu0 0.0
  %1550 = vmatpush1.msra.mxu0 0.0
  %1551 = vmatprep.subr.mxu0 0.0
  %1552 = vmatpush1.msra.mxu0 0.0
  %1553 = vmatprep.subr.mxu0 0.0
  %1554 = vmatpush1.msra.mxu0 0.0
  %1555 = vmatprep.subr.mxu0 0.0
  %1556 = vmatpush1.msra.mxu0 0.0
  %1557 = vmatprep.subr.mxu0 0.0
  %1558 = vmatpush1.msra.mxu0 0.0
  %1559 = vmatprep.subr.mxu0 0.0
  %1560 = vmatpush1.msra.mxu0 0.0
  %1561 = vmatprep.mubr.f32.mxu0 0.0
  %1562 = vmatmul.mubr.f32.gmra.mrb[0].mxu0 %v1492
  %v1563 = vpop.f32.mrb[0].mxu0
  %v1564 = vadd.f32 %v1484, %v1563
  %v1565 = vpop.f32.mrb[0].mxu0
  %1566 = vmatprep.mubr.f32.mxu0 0.0
  %1567 = vmatmul.mubr.f32.gmra.mrb[0].mxu0 %v1495
  %v1568 = vpop.f32.mrb[0].mxu0
  %v1569 = vadd.f32 %v1489, %v1568
  %v1570 = vpop.f32.mrb[0].mxu0
  %1571 = vdwg.mxu0
  %vm1572 = vcmask 220160
  %v1573 = vsel %vm1572, %v1564, 0.0
  %v1574 = vsel %vm1572, %v1569, 0.0
  %v1575 = vadd.f32 %v1573, %v1574
  %v1576 = vrot.slane %v1575, 4
  %v1577 = vadd.f32 %v1575, %v1576
  %v1578 = vrot.slane %v1577, 2
  %v1579 = vadd.f32 %v1577, %v1578
  %v1580 = vrot.slane %v1579, 1
  %v1581 = vadd.f32 %v1579, %v1580
  %v1582 = vmul.f32 %v1581, %v1368
  %v1583 = vsub.f32 %v1564, %v1582
  %v1584 = vsub.f32 %v1569, %v1582
  %v1585 = vmul.f32 %v1583, %v1583
  %v1586 = vmul.f32 %v1584, %v1584
  %v1587 = vsel %vm1572, %v1585, 0.0
  %v1588 = vsel %vm1572, %v1586, 0.0
  %v1589 = vadd.f32 %v1587, %v1588
  %v1590 = vrot.slane %v1589, 4
  %v1591 = vadd.f32 %v1589, %v1590
  %v1592 = vrot.slane %v1591, 2
  %v1593 = vadd.f32 %v1591, %v1592
  %v1594 = vrot.slane %v1593, 1
  %v1595 = vadd.f32 %v1593, %v1594
  %v1596 = vmul.f32 %v1595, %v1368
  %v1597 = vadd.f32 %v1596, 1e-05
  %v1598 = vrsqrt.pop %v1597
  %v1599 = vmul.f32 %v1583, %v1598
  %v1600 = vmul.f32 %v1584, %v1598
  %v1601 = vld [vmem:[%s49] sm:$0xff]
  %v1602 = vld [vmem:[%s49 + $0x8] sm:$0xff]
  %1604 = vset.pattern.permute.xlu0 0
  %1605 = vperm.xlu0 %1604, %v1601
  %v1606 = vpop.permute.xlu0 %1605
  %1609 = vset.pattern.permute.xlu0 0
  %1610 = vperm.xlu0 %1609, %v1602
  %v1611 = vpop.permute.xlu0 %1610
  %v1613 = vmul.f32 %v1599, %v1606
  %v1614 = vmul.f32 %v1600, %v1611
  %v1615 = vld [vmem:[%s51] sm:$0xff]
  %v1616 = vld [vmem:[%s51 + $0x8] sm:$0xff]
  %1618 = vset.pattern.permute.xlu0 0
  %1619 = vperm.xlu0 %1618, %v1615
  %v1620 = vpop.permute.xlu0 %1619
  %1623 = vset.pattern.permute.xlu0 0
  %1624 = vperm.xlu0 %1623, %v1616
  %v1625 = vpop.permute.xlu0 %1624
  %v1627 = vadd.f32 %v1613, %v1620
  %v1628 = vadd.f32 %v1614, %v1625
  %v1629 = vmul.f32 %v1627, %v1108
  %v1630 = vmul.f32 %v1628, %v1109
  %v1631 = vmul.f32 %v1627, %v1110
  %v1632 = vmul.f32 %v1628, %v1111
  %v1633 = vmul.f32 %v1627, %v1112
  %v1634 = vmul.f32 %v1628, %v1113
  %v1635 = vmul.f32 %v1627, %v1114
  %v1636 = vmul.f32 %v1628, %v1115
  %v1637 = vmul.f32 %v1627, %v1116
  %v1638 = vmul.f32 %v1628, %v1117
  %v1639 = vmul.f32 %v1627, %v1118
  %v1640 = vmul.f32 %v1628, %v1119
  %v1641 = vmul.f32 %v1627, %v1120
  %v1642 = vmul.f32 %v1628, %v1121
  %v1643 = vmul.f32 %v1627, %v1122
  %v1644 = vmul.f32 %v1628, %v1123
  %v1645 = vmul.f32 %v1627, %v1124
  %v1646 = vmul.f32 %v1628, %v1125
  %v1648 = vsel %vm1572, %v1629, 0
  %v1651 = vsel %vm1572, %v1630, 0
  %v1654 = vsel %vm1572, %v1631, 0
  %v1657 = vsel %vm1572, %v1632, 0
  %v1660 = vsel %vm1572, %v1633, 0
  %v1663 = vsel %vm1572, %v1634, 0
  %v1666 = vsel %vm1572, %v1635, 0
  %v1669 = vsel %vm1572, %v1636, 0
  %v1672 = vsel %vm1572, %v1637, 0
  %v1675 = vsel %vm1572, %v1638, 0
  %v1678 = vsel %vm1572, %v1639, 0
  %v1681 = vsel %vm1572, %v1640, 0
  %v1684 = vsel %vm1572, %v1641, 0
  %v1687 = vsel %vm1572, %v1642, 0
  %v1690 = vsel %vm1572, %v1643, 0
  %v1693 = vsel %vm1572, %v1644, 0
  %v1696 = vsel %vm1572, %v1645, 0
  %v1699 = vsel %vm1572, %v1646, 0
  %vm1701 = vcmask 1042432
  %v1703 = vsel %vm1701, %v1133, 0
  %1705 = vmatprep.subr.mxu0 0.0
  %1706 = vmatpush1.msra.mxu0 %v1130
  %1707 = vmatprep.subr.mxu0 0.0
  %1708 = vmatpush1.msra.mxu0 %v1131
  %1709 = vmatprep.subr.mxu0 0.0
  %1710 = vmatpush1.msra.mxu0 %v1132
  %1711 = vmatprep.subr.mxu0 0.0
  %1712 = vmatpush1.msra.mxu0 %v1703
  %1713 = vmatprep.subr.mxu0 0.0
  %1714 = vmatpush1.msra.mxu0 0.0
  %1715 = vmatprep.subr.mxu0 0.0
  %1716 = vmatpush1.msra.mxu0 0.0
  %1717 = vmatprep.subr.mxu0 0.0
  %1718 = vmatpush1.msra.mxu0 0.0
  %1719 = vmatprep.subr.mxu0 0.0
  %1720 = vmatpush1.msra.mxu0 0.0
  %1721 = vmatprep.subr.mxu0 0.0
  %1722 = vmatpush1.msra.mxu0 0.0
  %1723 = vmatprep.subr.mxu0 0.0
  %1724 = vmatpush1.msra.mxu0 0.0
  %1725 = vmatprep.subr.mxu0 0.0
  %1726 = vmatpush1.msra.mxu0 0.0
  %1727 = vmatprep.subr.mxu0 0.0
  %1728 = vmatpush1.msra.mxu0 0.0
  %1729 = vmatprep.subr.mxu0 0.0
  %1730 = vmatpush1.msra.mxu0 0.0
  %1731 = vmatprep.subr.mxu0 0.0
  %1732 = vmatpush1.msra.mxu0 0.0
  %1733 = vmatprep.subr.mxu0 0.0
  %1734 = vmatpush1.msra.mxu0 0.0
  %1735 = vmatprep.subr.mxu0 0.0
  %1736 = vmatpush1.msra.mxu0 0.0
  %1737 = vmatprep.subr.mxu0 0.0
  %1738 = vmatpush1.msra.mxu0 0.0
  %1739 = vmatprep.subr.mxu0 0.0
  %1740 = vmatpush1.msra.mxu0 0.0
  %1741 = vmatprep.subr.mxu0 0.0
  %1742 = vmatpush1.msra.mxu0 0.0
  %1743 = vmatprep.subr.mxu0 0.0
  %1744 = vmatpush1.msra.mxu0 0.0
  %1745 = vmatprep.subr.mxu0 0.0
  %1746 = vmatpush1.msra.mxu0 0.0
  %1747 = vmatprep.subr.mxu0 0.0
  %1748 = vmatpush1.msra.mxu0 0.0
  %1749 = vmatprep.subr.mxu0 0.0
  %1750 = vmatpush1.msra.mxu0 0.0
  %1751 = vmatprep.subr.mxu0 0.0
  %1752 = vmatpush1.msra.mxu0 0.0
  %1753 = vmatprep.subr.mxu0 0.0
  %1754 = vmatpush1.msra.mxu0 0.0
  %1755 = vmatprep.subr.mxu0 0.0
  %1756 = vmatpush1.msra.mxu0 0.0
  %1757 = vmatprep.subr.mxu0 0.0
  %1758 = vmatpush1.msra.mxu0 0.0
  %1759 = vmatprep.subr.mxu0 0.0
  %1760 = vmatpush1.msra.mxu0 0.0
  %1761 = vmatprep.subr.mxu0 0.0
  %1762 = vmatpush1.msra.mxu0 0.0
  %1763 = vmatprep.subr.mxu0 0.0
  %1764 = vmatpush1.msra.mxu0 0.0
  %1765 = vmatprep.subr.mxu0 0.0
  %1766 = vmatpush1.msra.mxu0 0.0
  %1767 = vmatprep.subr.mxu0 0.0
  %1768 = vmatpush1.msra.mxu0 0.0
  %1769 = vmatprep.mubr.f32.mxu0 0.0
  %1770 = vmatmul.mubr.f32.gmra.mrb[0].mxu0 %v1648
  %v1771 = vpop.f32.mrb[0].mxu0
  %v1772 = vadd.f32 0.0, %v1771
  %v1773 = vpop.f32.mrb[0].mxu0
  %1774 = vmatprep.mubr.f32.mxu0 0.0
  %1775 = vmatmul.mubr.f32.gmra.mrb[0].mxu0 %v1651
  %v1776 = vpop.f32.mrb[0].mxu0
  %v1777 = vadd.f32 0.0, %v1776
  %v1778 = vpop.f32.mrb[0].mxu0
  %1779 = vmatprep.mubr.f32.mxu0 0.0
  %1780 = vmatmul.mubr.f32.gmra.mrb[0].mxu0 %v1654
  %v1781 = vpop.f32.mrb[0].mxu0
  %v1782 = vadd.f32 0.0, %v1781
  %v1783 = vpop.f32.mrb[0].mxu0
  %1784 = vmatprep.mubr.f32.mxu0 0.0
  %1785 = vmatmul.mubr.f32.gmra.mrb[0].mxu0 %v1657
  %v1786 = vpop.f32.mrb[0].mxu0
  %v1787 = vadd.f32 0.0, %v1786
  %v1788 = vpop.f32.mrb[0].mxu0
  %1789 = vmatprep.mubr.f32.mxu0 0.0
  %1790 = vmatmul.mubr.f32.gmra.mrb[0].mxu0 %v1660
  %v1791 = vpop.f32.mrb[0].mxu0
  %v1792 = vadd.f32 0.0, %v1791
  %v1793 = vpop.f32.mrb[0].mxu0
  %1794 = vmatprep.mubr.f32.mxu0 0.0
  %1795 = vmatmul.mubr.f32.gmra.mrb[0].mxu0 %v1663
  %v1796 = vpop.f32.mrb[0].mxu0
  %v1797 = vadd.f32 0.0, %v1796
  %v1798 = vpop.f32.mrb[0].mxu0
  %1799 = vmatprep.mubr.f32.mxu0 0.0
  %1800 = vmatmul.mubr.f32.gmra.mrb[0].mxu0 %v1666
  %v1801 = vpop.f32.mrb[0].mxu0
  %v1802 = vadd.f32 0.0, %v1801
  %v1803 = vpop.f32.mrb[0].mxu0
  %1804 = vmatprep.mubr.f32.mxu0 0.0
  %1805 = vmatmul.mubr.f32.gmra.mrb[0].mxu0 %v1669
  %v1806 = vpop.f32.mrb[0].mxu0
  %v1807 = vadd.f32 0.0, %v1806
  %v1808 = vpop.f32.mrb[0].mxu0
  %1809 = vmatprep.mubr.f32.mxu0 0.0
  %1810 = vmatmul.mubr.f32.gmra.mrb[0].mxu0 %v1672
  %v1811 = vpop.f32.mrb[0].mxu0
  %v1812 = vadd.f32 0.0, %v1811
  %v1813 = vpop.f32.mrb[0].mxu0
  %1814 = vmatprep.mubr.f32.mxu0 0.0
  %1815 = vmatmul.mubr.f32.gmra.mrb[0].mxu0 %v1675
  %v1816 = vpop.f32.mrb[0].mxu0
  %v1817 = vadd.f32 0.0, %v1816
  %v1818 = vpop.f32.mrb[0].mxu0
  %1819 = vmatprep.mubr.f32.mxu0 0.0
  %1820 = vmatmul.mubr.f32.gmra.mrb[0].mxu0 %v1678
  %v1821 = vpop.f32.mrb[0].mxu0
  %v1822 = vadd.f32 0.0, %v1821
  %v1823 = vpop.f32.mrb[0].mxu0
  %1824 = vmatprep.mubr.f32.mxu0 0.0
  %1825 = vmatmul.mubr.f32.gmra.mrb[0].mxu0 %v1681
  %v1826 = vpop.f32.mrb[0].mxu0
  %v1827 = vadd.f32 0.0, %v1826
  %v1828 = vpop.f32.mrb[0].mxu0
  %1829 = vmatprep.mubr.f32.mxu0 0.0
  %1830 = vmatmul.mubr.f32.gmra.mrb[0].mxu0 %v1684
  %v1831 = vpop.f32.mrb[0].mxu0
  %v1832 = vadd.f32 0.0, %v1831
  %v1833 = vpop.f32.mrb[0].mxu0
  %1834 = vmatprep.mubr.f32.mxu0 0.0
  %1835 = vmatmul.mubr.f32.gmra.mrb[0].mxu0 %v1687
  %v1836 = vpop.f32.mrb[0].mxu0
  %v1837 = vadd.f32 0.0, %v1836
  %v1838 = vpop.f32.mrb[0].mxu0
  %1839 = vmatprep.mubr.f32.mxu0 0.0
  %1840 = vmatmul.mubr.f32.gmra.mrb[0].mxu0 %v1690
  %v1841 = vpop.f32.mrb[0].mxu0
  %v1842 = vadd.f32 0.0, %v1841
  %v1843 = vpop.f32.mrb[0].mxu0
  %1844 = vmatprep.mubr.f32.mxu0 0.0
  %1845 = vmatmul.mubr.f32.gmra.mrb[0].mxu0 %v1693
  %v1846 = vpop.f32.mrb[0].mxu0
  %v1847 = vadd.f32 0.0, %v1846
  %v1848 = vpop.f32.mrb[0].mxu0
  %1849 = vmatprep.mubr.f32.mxu0 0.0
  %1850 = vmatmul.mubr.f32.gmra.mrb[0].mxu0 %v1696
  %v1851 = vpop.f32.mrb[0].mxu0
  %v1852 = vadd.f32 0.0, %v1851
  %v1853 = vpop.f32.mrb[0].mxu0
  %1854 = vmatprep.mubr.f32.mxu0 0.0
  %1855 = vmatmul.mubr.f32.gmra.mrb[0].mxu0 %v1699
  %v1856 = vpop.f32.mrb[0].mxu0
  %v1857 = vadd.f32 0.0, %v1856
  %v1858 = vpop.f32.mrb[0].mxu0
  %1859 = vdwg.mxu0
  %v1860 = vmul.f32 %v1772, %v1152
  %v1861 = vmul.f32 %v1777, %v1153
  %v1862 = vmul.f32 %v1782, %v1154
  %v1863 = vmul.f32 %v1787, %v1155
  %v1864 = vmul.f32 %v1792, %v1156
  %v1865 = vmul.f32 %v1797, %v1157
  %v1866 = vmul.f32 %v1802, %v1158
  %v1867 = vmul.f32 %v1807, %v1159
  %v1868 = vmul.f32 %v1812, %v1160
  %v1869 = vmul.f32 %v1817, %v1161
  %v1870 = vmul.f32 %v1822, %v1162
  %v1871 = vmul.f32 %v1827, %v1163
  %v1872 = vmul.f32 %v1832, %v1164
  %v1873 = vmul.f32 %v1837, %v1165
  %v1874 = vmul.f32 %v1842, %v1166
  %v1875 = vmul.f32 %v1847, %v1167
  %v1876 = vmul.f32 %v1852, %v1168
  %v1877 = vmul.f32 %v1857, %v1169
  %v1879 = vsel %vm1212, %v1188, 0
  %v1882 = vsel %vm1212, %v1189, 0
  %v1885 = vsel %vm1212, %v1190, 0
  %v1888 = vsel %vm1212, %v1191, 0
  %v1891 = vsel %vm1212, %v1192, 0
  %v1894 = vsel %vm1212, %v1193, 0
  %v1897 = vsel %vm1212, %v1194, 0
  %1899 = vmatprep.subr.mxu0 0.0
  %1900 = vmatpush1.msra.mxu0 %v1203
  %1901 = vmatprep.subr.mxu0 0.0
  %1902 = vmatpush1.msra.mxu0 %v1204
  %1903 = vmatprep.subr.mxu0 0.0
  %1904 = vmatpush1.msra.mxu0 0.0
  %1905 = vmatprep.subr.mxu0 0.0
  %1906 = vmatpush1.msra.mxu0 0.0
  %1907 = vmatprep.subr.mxu0 0.0
  %1908 = vmatpush1.msra.mxu0 0.0
  %1909 = vmatprep.subr.mxu0 0.0
  %1910 = vmatpush1.msra.mxu0 0.0
  %1911 = vmatprep.subr.mxu0 0.0
  %1912 = vmatpush1.msra.mxu0 0.0
  %1913 = vmatprep.subr.mxu0 0.0
  %1914 = vmatpush1.msra.mxu0 0.0
  %1915 = vmatprep.subr.mxu0 0.0
  %1916 = vmatpush1.msra.mxu0 0.0
  %1917 = vmatprep.subr.mxu0 0.0
  %1918 = vmatpush1.msra.mxu0 0.0
  %1919 = vmatprep.subr.mxu0 0.0
  %1920 = vmatpush1.msra.mxu0 0.0
  %1921 = vmatprep.subr.mxu0 0.0
  %1922 = vmatpush1.msra.mxu0 0.0
  %1923 = vmatprep.subr.mxu0 0.0
  %1924 = vmatpush1.msra.mxu0 0.0
  %1925 = vmatprep.subr.mxu0 0.0
  %1926 = vmatpush1.msra.mxu0 0.0
  %1927 = vmatprep.subr.mxu0 0.0
  %1928 = vmatpush1.msra.mxu0 0.0
  %1929 = vmatprep.subr.mxu0 0.0
  %1930 = vmatpush1.msra.mxu0 0.0
  %1931 = vmatprep.subr.mxu0 0.0
  %1932 = vmatpush1.msra.mxu0 0.0
  %1933 = vmatprep.subr.mxu0 0.0
  %1934 = vmatpush1.msra.mxu0 0.0
  %1935 = vmatprep.subr.mxu0 0.0
  %1936 = vmatpush1.msra.mxu0 0.0
  %1937 = vmatprep.subr.mxu0 0.0
  %1938 = vmatpush1.msra.mxu0 0.0
  %1939 = vmatprep.subr.mxu0 0.0
  %1940 = vmatpush1.msra.mxu0 0.0
  %1941 = vmatprep.subr.mxu0 0.0
  %1942 = vmatpush1.msra.mxu0 0.0
  %1943 = vmatprep.subr.mxu0 0.0
  %1944 = vmatpush1.msra.mxu0 0.0
  %1945 = vmatprep.subr.mxu0 0.0
  %1946 = vmatpush1.msra.mxu0 0.0
  %1947 = vmatprep.subr.mxu0 0.0
  %1948 = vmatpush1.msra.mxu0 0.0
  %1949 = vmatprep.subr.mxu0 0.0
  %1950 = vmatpush1.msra.mxu0 0.0
  %1951 = vmatprep.subr.mxu0 0.0
  %1952 = vmatpush1.msra.mxu0 0.0
  %1953 = vmatprep.subr.mxu0 0.0
  %1954 = vmatpush1.msra.mxu0 0.0
  %1955 = vmatprep.subr.mxu0 0.0
  %1956 = vmatpush1.msra.mxu0 0.0
  %1957 = vmatprep.subr.mxu0 0.0
  %1958 = vmatpush1.msra.mxu0 0.0
  %1959 = vmatprep.subr.mxu0 0.0
  %1960 = vmatpush1.msra.mxu0 0.0
  %1961 = vmatprep.subr.mxu0 0.0
  %1962 = vmatpush1.msra.mxu0 0.0
  %1963 = vmatprep.mubr.f32.mxu0 0.0
  %1964 = vmatmul.mubr.f32.gmra.mrb[0].mxu0 %v1879
  %v1965 = vpop.f32.mrb[0].mxu0
  %v1966 = vadd.f32 %v1210, %v1965
  %v1967 = vpop.f32.mrb[0].mxu0
  %1968 = vmatprep.mubr.f32.mxu0 0.0
  %1969 = vmatmul.mubr.f32.gmra.mrb[0].mxu0 %v1882
  %v1970 = vpop.f32.mrb[0].mxu0
  %v1971 = vadd.f32 %v1210, %v1970
  %v1972 = vpop.f32.mrb[0].mxu0
  %1973 = vmatprep.mubr.f32.mxu0 0.0
  %1974 = vmatmul.mubr.f32.gmra.mrb[0].mxu0 %v1885
  %v1975 = vpop.f32.mrb[0].mxu0
  %v1976 = vadd.f32 %v1210, %v1975
  %v1977 = vpop.f32.mrb[0].mxu0
  %1978 = vmatprep.mubr.f32.mxu0 0.0
  %1979 = vmatmul.mubr.f32.gmra.mrb[0].mxu0 %v1888
  %v1980 = vpop.f32.mrb[0].mxu0
  %v1981 = vadd.f32 %v1210, %v1980
  %v1982 = vpop.f32.mrb[0].mxu0
  %1983 = vmatprep.mubr.f32.mxu0 0.0
  %1984 = vmatmul.mubr.f32.gmra.mrb[0].mxu0 %v1891
  %v1985 = vpop.f32.mrb[0].mxu0
  %v1986 = vadd.f32 %v1210, %v1985
  %v1987 = vpop.f32.mrb[0].mxu0
  %1988 = vmatprep.mubr.f32.mxu0 0.0
  %1989 = vmatmul.mubr.f32.gmra.mrb[0].mxu0 %v1894
  %v1990 = vpop.f32.mrb[0].mxu0
  %v1991 = vadd.f32 %v1210, %v1990
  %v1992 = vpop.f32.mrb[0].mxu0
  %1993 = vmatprep.mubr.f32.mxu0 0.0
  %1994 = vmatmul.mubr.f32.gmra.mrb[0].mxu0 %v1897
  %v1995 = vpop.f32.mrb[0].mxu0
  %v1996 = vadd.f32 %v1210, %v1995
  %v1997 = vpop.f32.mrb[0].mxu0
  %1998 = vdwg.mxu0
  %v1999 = vmul.f32 %v1966, %v1177
  %v2000 = vmul.f32 %v1971, %v1178
  %v2001 = vmul.f32 %v1976, %v1179
  %v2002 = vmul.f32 %v1981, %v1180
  %v2003 = vmul.f32 %v1986, %v1181
  %v2004 = vmul.f32 %v1991, %v1182
  %v2005 = vmul.f32 %v1996, %v1183
  %v2007 = vsel %vm1212, %v1469, 0
  %v2010 = vsel %vm1212, %v1470, 0
  %v2013 = vsel %vm1212, %v1471, 0
  %v2016 = vsel %vm1212, %v1472, 0
  %v2019 = vsel %vm1212, %v1473, 0
  %v2022 = vsel %vm1212, %v1474, 0
  %v2025 = vsel %vm1212, %v1475, 0
  %v2028 = vsel %vm1212, %v1476, 0
  %2030 = vmatprep.subr.mxu0 %v281
  %2031 = vmatpush1.msra.mxu0 %v280
  %2032 = vmatprep.subr.mxu0 %v283
  %2033 = vmatpush1.msra.mxu0 %v282
  %2034 = vmatprep.subr.mxu0 0.0
  %2035 = vmatpush1.msra.mxu0 0.0
  %2036 = vmatprep.subr.mxu0 0.0
  %2037 = vmatpush1.msra.mxu0 0.0
  %2038 = vmatprep.subr.mxu0 0.0
  %2039 = vmatpush1.msra.mxu0 0.0
  %2040 = vmatprep.subr.mxu0 0.0
  %2041 = vmatpush1.msra.mxu0 0.0
  %2042 = vmatprep.subr.mxu0 0.0
  %2043 = vmatpush1.msra.mxu0 0.0
  %2044 = vmatprep.subr.mxu0 0.0
  %2045 = vmatpush1.msra.mxu0 0.0
  %2046 = vmatprep.subr.mxu0 0.0
  %2047 = vmatpush1.msra.mxu0 0.0
  %2048 = vmatprep.subr.mxu0 0.0
  %2049 = vmatpush1.msra.mxu0 0.0
  %2050 = vmatprep.subr.mxu0 0.0
  %2051 = vmatpush1.msra.mxu0 0.0
  %2052 = vmatprep.subr.mxu0 0.0
  %2053 = vmatpush1.msra.mxu0 0.0
  %2054 = vmatprep.subr.mxu0 0.0
  %2055 = vmatpush1.msra.mxu0 0.0
  %2056 = vmatprep.subr.mxu0 0.0
  %2057 = vmatpush1.msra.mxu0 0.0
  %2058 = vmatprep.subr.mxu0 0.0
  %2059 = vmatpush1.msra.mxu0 0.0
  %2060 = vmatprep.subr.mxu0 0.0
  %2061 = vmatpush1.msra.mxu0 0.0
  %2062 = vmatprep.subr.mxu0 0.0
  %2063 = vmatpush1.msra.mxu0 0.0
  %2064 = vmatprep.subr.mxu0 0.0
  %2065 = vmatpush1.msra.mxu0 0.0
  %2066 = vmatprep.subr.mxu0 0.0
  %2067 = vmatpush1.msra.mxu0 0.0
  %2068 = vmatprep.subr.mxu0 0.0
  %2069 = vmatpush1.msra.mxu0 0.0
  %2070 = vmatprep.subr.mxu0 0.0
  %2071 = vmatpush1.msra.mxu0 0.0
  %2072 = vmatprep.subr.mxu0 0.0
  %2073 = vmatpush1.msra.mxu0 0.0
  %2074 = vmatprep.subr.mxu0 0.0
  %2075 = vmatpush1.msra.mxu0 0.0
  %2076 = vmatprep.subr.mxu0 0.0
  %2077 = vmatpush1.msra.mxu0 0.0
  %2078 = vmatprep.subr.mxu0 0.0
  %2079 = vmatpush1.msra.mxu0 0.0
  %2080 = vmatprep.subr.mxu0 0.0
  %2081 = vmatpush1.msra.mxu0 0.0
  %2082 = vmatprep.subr.mxu0 0.0
  %2083 = vmatpush1.msra.mxu0 0.0
  %2084 = vmatprep.subr.mxu0 0.0
  %2085 = vmatpush1.msra.mxu0 0.0
  %2086 = vmatprep.subr.mxu0 0.0
  %2087 = vmatpush1.msra.mxu0 0.0
  %2088 = vmatprep.subr.mxu0 0.0
  %2089 = vmatpush1.msra.mxu0 0.0
  %2090 = vmatprep.subr.mxu0 0.0
  %2091 = vmatpush1.msra.mxu0 0.0
  %2092 = vmatprep.subr.mxu0 0.0
  %2093 = vmatpush1.msra.mxu0 0.0
  %2094 = vmatprep.mubr.f32.mxu0 0.0
  %2095 = vmatmul.mubr.f32.gmra.mrb[0].mxu0 %v2007
  %v2096 = vpop.f32.mrb[0].mxu0
  %v2097 = vadd.f32 0.0, %v2096
  %v2098 = vpop.f32.mrb[0].mxu0
  %v2099 = vadd.f32 0.0, %v2098
  %2100 = vmatprep.mubr.f32.mxu0 0.0
  %2101 = vmatmul.mubr.f32.gmra.mrb[0].mxu0 %v2010
  %v2102 = vpop.f32.mrb[0].mxu0
  %v2103 = vadd.f32 0.0, %v2102
  %v2104 = vpop.f32.mrb[0].mxu0
  %v2105 = vadd.f32 0.0, %v2104
  %2106 = vmatprep.mubr.f32.mxu0 0.0
  %2107 = vmatmul.mubr.f32.gmra.mrb[0].mxu0 %v2013
  %v2108 = vpop.f32.mrb[0].mxu0
  %v2109 = vadd.f32 0.0, %v2108
  %v2110 = vpop.f32.mrb[0].mxu0
  %v2111 = vadd.f32 0.0, %v2110
  %2112 = vmatprep.mubr.f32.mxu0 0.0
  %2113 = vmatmul.mubr.f32.gmra.mrb[0].mxu0 %v2016
  %v2114 = vpop.f32.mrb[0].mxu0
  %v2115 = vadd.f32 0.0, %v2114
  %v2116 = vpop.f32.mrb[0].mxu0
  %v2117 = vadd.f32 0.0, %v2116
  %2118 = vmatprep.mubr.f32.mxu0 0.0
  %2119 = vmatmul.mubr.f32.gmra.mrb[0].mxu0 %v2019
  %v2120 = vpop.f32.mrb[0].mxu0
  %v2121 = vadd.f32 0.0, %v2120
  %v2122 = vpop.f32.mrb[0].mxu0
  %v2123 = vadd.f32 0.0, %v2122
  %2124 = vmatprep.mubr.f32.mxu0 0.0
  %2125 = vmatmul.mubr.f32.gmra.mrb[0].mxu0 %v2022
  %v2126 = vpop.f32.mrb[0].mxu0
  %v2127 = vadd.f32 0.0, %v2126
  %v2128 = vpop.f32.mrb[0].mxu0
  %v2129 = vadd.f32 0.0, %v2128
  %2130 = vmatprep.mubr.f32.mxu0 0.0
  %2131 = vmatmul.mubr.f32.gmra.mrb[0].mxu0 %v2025
  %v2132 = vpop.f32.mrb[0].mxu0
  %v2133 = vadd.f32 0.0, %v2132
  %v2134 = vpop.f32.mrb[0].mxu0
  %v2135 = vadd.f32 0.0, %v2134
  %2136 = vmatprep.mubr.f32.mxu0 0.0
  %2137 = vmatmul.mubr.f32.gmra.mrb[0].mxu0 %v2028
  %v2138 = vpop.f32.mrb[0].mxu0
  %v2139 = vadd.f32 0.0, %v2138
  %v2140 = vpop.f32.mrb[0].mxu0
  %v2141 = vadd.f32 0.0, %v2140
  %2142 = vdwg.mxu0
  %v2143 = vmul.f32 %v2097, %v370
  %v2144 = vmul.f32 %v2099, %v371
  %v2145 = vmul.f32 %v2103, %v372
  %v2146 = vmul.f32 %v2105, %v373
  %v2147 = vmul.f32 %v2109, %v374
  %v2148 = vmul.f32 %v2111, %v375
  %v2149 = vmul.f32 %v2115, %v376
  %v2150 = vmul.f32 %v2117, %v377
  %v2151 = vmul.f32 %v2121, %v378
  %v2152 = vmul.f32 %v2123, %v379
  %v2153 = vmul.f32 %v2127, %v380
  %v2154 = vmul.f32 %v2129, %v381
  %v2155 = vmul.f32 %v2133, %v382
  %v2156 = vmul.f32 %v2135, %v383
  %v2157 = vmul.f32 %v2139, %v384
  %v2158 = vmul.f32 %v2141, %v385
  %v2159 = vmul.f32 %v2097, %v386
  %v2160 = vmul.f32 %v2099, %v387
  %v2161 = vmul.f32 %v2103, %v388
  %v2162 = vmul.f32 %v2105, %v389
  %v2163 = vmul.f32 %v2109, %v390
  %v2164 = vmul.f32 %v2111, %v391
  %v2165 = vmul.f32 %v2115, %v392
  %v2166 = vmul.f32 %v2117, %v393
  %v2167 = vmul.f32 %v2121, %v394
  %v2168 = vmul.f32 %v2123, %v395
  %v2169 = vmul.f32 %v2127, %v396
  %v2170 = vmul.f32 %v2129, %v397
  %v2171 = vmul.f32 %v2133, %v398
  %v2172 = vmul.f32 %v2135, %v399
  %v2173 = vmul.f32 %v2139, %v400
  %v2174 = vmul.f32 %v2141, %v401
  %v2175 = vmul.f32 %v2097, %v402
  %v2176 = vmul.f32 %v2099, %v403
  %v2177 = vmul.f32 %v2103, %v404
  %v2178 = vmul.f32 %v2105, %v405
  %v2179 = vmul.f32 %v2109, %v406
  %v2180 = vmul.f32 %v2111, %v407
  %v2181 = vmul.f32 %v2115, %v408
  %v2182 = vmul.f32 %v2117, %v409
  %v2183 = vmul.f32 %v2121, %v410
  %v2184 = vmul.f32 %v2123, %v411
  %v2185 = vmul.f32 %v2127, %v412
  %v2186 = vmul.f32 %v2129, %v413
  %v2187 = vmul.f32 %v2133, %v414
  %v2188 = vmul.f32 %v2135, %v415
  %v2189 = vmul.f32 %v2139, %v416
  %v2190 = vmul.f32 %v2141, %v417
  %v2191 = vmul.f32 %v2097, %v418
  %v2192 = vmul.f32 %v2099, %v419
  %v2193 = vmul.f32 %v2103, %v420
  %v2194 = vmul.f32 %v2105, %v421
  %v2195 = vmul.f32 %v2109, %v422
  %v2196 = vmul.f32 %v2111, %v423
  %v2197 = vmul.f32 %v2115, %v424
  %v2198 = vmul.f32 %v2117, %v425
  %v2199 = vmul.f32 %v2121, %v426
  %v2200 = vmul.f32 %v2123, %v427
  %v2201 = vmul.f32 %v2127, %v428
  %v2202 = vmul.f32 %v2129, %v429
  %v2203 = vmul.f32 %v2133, %v430
  %v2204 = vmul.f32 %v2135, %v431
  %v2205 = vmul.f32 %v2139, %v432
  %v2206 = vmul.f32 %v2141, %v433
  %v2207 = vmul.f32 %v2097, %v434
  %v2208 = vmul.f32 %v2099, %v435
  %v2209 = vmul.f32 %v2103, %v436
  %v2210 = vmul.f32 %v2105, %v437
  %v2211 = vmul.f32 %v2109, %v438
  %v2212 = vmul.f32 %v2111, %v439
  %v2213 = vmul.f32 %v2115, %v440
  %v2214 = vmul.f32 %v2117, %v441
  %v2215 = vmul.f32 %v2121, %v442
  %v2216 = vmul.f32 %v2123, %v443
  %v2217 = vmul.f32 %v2127, %v444
  %v2218 = vmul.f32 %v2129, %v445
  %v2219 = vmul.f32 %v2133, %v446
  %v2220 = vmul.f32 %v2135, %v447
  %v2221 = vmul.f32 %v2139, %v448
  %v2222 = vmul.f32 %v2141, %v449
  %v2223 = vmul.f32 %v2097, %v450
  %v2224 = vmul.f32 %v2099, %v451
  %v2225 = vmul.f32 %v2103, %v452
  %v2226 = vmul.f32 %v2105, %v453
  %v2227 = vmul.f32 %v2109, %v454
  %v2228 = vmul.f32 %v2111, %v455
  %v2229 = vmul.f32 %v2115, %v456
  %v2230 = vmul.f32 %v2117, %v457
  %v2231 = vmul.f32 %v2121, %v458
  %v2232 = vmul.f32 %v2123, %v459
  %v2233 = vmul.f32 %v2127, %v460
  %v2234 = vmul.f32 %v2129, %v461
  %v2235 = vmul.f32 %v2133, %v462
  %v2236 = vmul.f32 %v2135, %v463
  %v2237 = vmul.f32 %v2139, %v464
  %v2238 = vmul.f32 %v2141, %v465
  %v2239 = vmul.f32 %v2097, %v466
  %v2240 = vmul.f32 %v2099, %v467
  %v2241 = vmul.f32 %v2103, %v468
  %v2242 = vmul.f32 %v2105, %v469
  %v2243 = vmul.f32 %v2109, %v470
  %v2244 = vmul.f32 %v2111, %v471
  %v2245 = vmul.f32 %v2115, %v472
  %v2246 = vmul.f32 %v2117, %v473
  %v2247 = vmul.f32 %v2121, %v474
  %v2248 = vmul.f32 %v2123, %v475
  %v2249 = vmul.f32 %v2127, %v476
  %v2250 = vmul.f32 %v2129, %v477
  %v2251 = vmul.f32 %v2133, %v478
  %v2252 = vmul.f32 %v2135, %v479
  %v2253 = vmul.f32 %v2139, %v480
  %v2254 = vmul.f32 %v2141, %v481
  %v2255 = vmul.f32 %v2097, %v482
  %v2256 = vmul.f32 %v2099, %v483
  %v2257 = vmul.f32 %v2103, %v484
  %v2258 = vmul.f32 %v2105, %v485
  %v2259 = vmul.f32 %v2109, %v486
  %v2260 = vmul.f32 %v2111, %v487
  %v2261 = vmul.f32 %v2115, %v488
  %v2262 = vmul.f32 %v2117, %v489
  %v2263 = vmul.f32 %v2121, %v490
  %v2264 = vmul.f32 %v2123, %v491
  %v2265 = vmul.f32 %v2127, %v492
  %v2266 = vmul.f32 %v2129, %v493
  %v2267 = vmul.f32 %v2133, %v494
  %v2268 = vmul.f32 %v2135, %v495
  %v2269 = vmul.f32 %v2139, %v496
  %v2270 = vmul.f32 %v2141, %v497
  %v2271 = vmul.f32 %v2097, %v498
  %v2272 = vmul.f32 %v2099, %v499
  %v2273 = vmul.f32 %v2103, %v500
  %v2274 = vmul.f32 %v2105, %v501
  %v2275 = vmul.f32 %v2109, %v502
  %v2276 = vmul.f32 %v2111, %v503
  %v2277 = vmul.f32 %v2115, %v504
  %v2278 = vmul.f32 %v2117, %v505
  %v2279 = vmul.f32 %v2121, %v506
  %v2280 = vmul.f32 %v2123, %v507
  %v2281 = vmul.f32 %v2127, %v508
  %v2282 = vmul.f32 %v2129, %v509
  %v2283 = vmul.f32 %v2133, %v510
  %v2284 = vmul.f32 %v2135, %v511
  %v2285 = vmul.f32 %v2139, %v512
  %v2286 = vmul.f32 %v2141, %v513
  %vm2287 = vcmask 523264
  %v2289 = vsel %vm2287, %v178, 0
  %v2292 = vsel %vm2287, %v183, 0
  %v2295 = vsel %vm2287, %v188, 0
  %v2298 = vsel %vm2287, %v193, 0
  %v2301 = vsel %vm2287, %v198, 0
  %v2304 = vsel %vm2287, %v203, 0
  %v2307 = vsel %vm2287, %v208, 0
  %v2310 = vsel %vm2287, %v213, 0
  %2312 = vmatprep.subr.mxu0 %v2144
  %2313 = vmatpush1.msra.mxu0 %v2143
  %2314 = vmatprep.subr.mxu0 %v2146
  %2315 = vmatpush1.msra.mxu0 %v2145
  %2316 = vmatprep.subr.mxu0 %v2148
  %2317 = vmatpush1.msra.mxu0 %v2147
  %2318 = vmatprep.subr.mxu0 %v2150
  %2319 = vmatpush1.msra.mxu0 %v2149
  %2320 = vmatprep.subr.mxu0 %v2152
  %2321 = vmatpush1.msra.mxu0 %v2151
  %2322 = vmatprep.subr.mxu0 %v2154
  %2323 = vmatpush1.msra.mxu0 %v2153
  %2324 = vmatprep.subr.mxu0 %v2156
  %2325 = vmatpush1.msra.mxu0 %v2155
  %2326 = vmatprep.subr.mxu0 %v2158
  %2327 = vmatpush1.msra.mxu0 %v2157
  %2328 = vmatprep.subr.mxu0 %v2160
  %2329 = vmatpush1.msra.mxu0 %v2159
  %2330 = vmatprep.subr.mxu0 %v2162
  %2331 = vmatpush1.msra.mxu0 %v2161
  %2332 = vmatprep.subr.mxu0 %v2164
  %2333 = vmatpush1.msra.mxu0 %v2163
  %2334 = vmatprep.subr.mxu0 %v2166
  %2335 = vmatpush1.msra.mxu0 %v2165
  %2336 = vmatprep.subr.mxu0 %v2168
  %2337 = vmatpush1.msra.mxu0 %v2167
  %2338 = vmatprep.subr.mxu0 %v2170
  %2339 = vmatpush1.msra.mxu0 %v2169
  %2340 = vmatprep.subr.mxu0 %v2172
  %2341 = vmatpush1.msra.mxu0 %v2171
  %2342 = vmatprep.subr.mxu0 %v2174
  %2343 = vmatpush1.msra.mxu0 %v2173
  %2344 = vmatprep.subr.mxu0 %v2176
  %2345 = vmatpush1.msra.mxu0 %v2175
  %2346 = vmatprep.subr.mxu0 %v2178
  %2347 = vmatpush1.msra.mxu0 %v2177
  %2348 = vmatprep.subr.mxu0 %v2180
  %2349 = vmatpush1.msra.mxu0 %v2179
  %2350 = vmatprep.subr.mxu0 %v2182
  %2351 = vmatpush1.msra.mxu0 %v2181
  %2352 = vmatprep.subr.mxu0 %v2184
  %2353 = vmatpush1.msra.mxu0 %v2183
  %2354 = vmatprep.subr.mxu0 %v2186
  %2355 = vmatpush1.msra.mxu0 %v2185
  %2356 = vmatprep.subr.mxu0 %v2188
  %2357 = vmatpush1.msra.mxu0 %v2187
  %2358 = vmatprep.subr.mxu0 %v2190
  %2359 = vmatpush1.msra.mxu0 %v2189
  %2360 = vmatprep.subr.mxu0 %v2192
  %2361 = vmatpush1.msra.mxu0 %v2191
  %2362 = vmatprep.subr.mxu0 %v2194
  %2363 = vmatpush1.msra.mxu0 %v2193
  %2364 = vmatprep.subr.mxu0 %v2196
  %2365 = vmatpush1.msra.mxu0 %v2195
  %2366 = vmatprep.subr.mxu0 %v2198
  %2367 = vmatpush1.msra.mxu0 %v2197
  %2368 = vmatprep.subr.mxu0 %v2200
  %2369 = vmatpush1.msra.mxu0 %v2199
  %2370 = vmatprep.subr.mxu0 %v2202
  %2371 = vmatpush1.msra.mxu0 %v2201
  %2372 = vmatprep.subr.mxu0 %v2204
  %2373 = vmatpush1.msra.mxu0 %v2203
  %2374 = vmatprep.subr.mxu0 %v2206
  %2375 = vmatpush1.msra.mxu0 %v2205
  %2376 = vmatprep.mubr.f32.mxu0 %v175
  %2377 = vmatmul.mubr.f32.gmra.mrb[0].mxu0 %v174
  %v2378 = vpop.f32.mrb[0].mxu0
  %v2379 = vadd.f32 0.0, %v2378
  %v2380 = vpop.f32.mrb[0].mxu0
  %v2381 = vadd.f32 0.0, %v2380
  %2382 = vmatprep.mubr.f32.mxu0 %v180
  %2383 = vmatmul.mubr.f32.gmra.mrb[0].mxu0 %v179
  %v2384 = vpop.f32.mrb[0].mxu0
  %v2385 = vadd.f32 0.0, %v2384
  %v2386 = vpop.f32.mrb[0].mxu0
  %v2387 = vadd.f32 0.0, %v2386
  %2388 = vmatprep.mubr.f32.mxu0 %v185
  %2389 = vmatmul.mubr.f32.gmra.mrb[0].mxu0 %v184
  %v2390 = vpop.f32.mrb[0].mxu0
  %v2391 = vadd.f32 0.0, %v2390
  %v2392 = vpop.f32.mrb[0].mxu0
  %v2393 = vadd.f32 0.0, %v2392
  %2394 = vmatprep.mubr.f32.mxu0 %v190
  %2395 = vmatmul.mubr.f32.gmra.mrb[0].mxu0 %v189
  %v2396 = vpop.f32.mrb[0].mxu0
  %v2397 = vadd.f32 0.0, %v2396
  %v2398 = vpop.f32.mrb[0].mxu0
  %v2399 = vadd.f32 0.0, %v2398
  %2400 = vmatprep.mubr.f32.mxu0 %v195
  %2401 = vmatmul.mubr.f32.gmra.mrb[0].mxu0 %v194
  %v2402 = vpop.f32.mrb[0].mxu0
  %v2403 = vadd.f32 0.0, %v2402
  %v2404 = vpop.f32.mrb[0].mxu0
  %v2405 = vadd.f32 0.0, %v2404
  %2406 = vmatprep.mubr.f32.mxu0 %v200
  %2407 = vmatmul.mubr.f32.gmra.mrb[0].mxu0 %v199
  %v2408 = vpop.f32.mrb[0].mxu0
  %v2409 = vadd.f32 0.0, %v2408
  %v2410 = vpop.f32.mrb[0].mxu0
  %v2411 = vadd.f32 0.0, %v2410
  %2412 = vmatprep.mubr.f32.mxu0 %v205
  %2413 = vmatmul.mubr.f32.gmra.mrb[0].mxu0 %v204
  %v2414 = vpop.f32.mrb[0].mxu0
  %v2415 = vadd.f32 0.0, %v2414
  %v2416 = vpop.f32.mrb[0].mxu0
  %v2417 = vadd.f32 0.0, %v2416
  %2418 = vmatprep.mubr.f32.mxu0 %v210
  %2419 = vmatmul.mubr.f32.gmra.mrb[0].mxu0 %v209
  %v2420 = vpop.f32.mrb[0].mxu0
  %v2421 = vadd.f32 0.0, %v2420
  %v2422 = vpop.f32.mrb[0].mxu0
  %v2423 = vadd.f32 0.0, %v2422
  %2424 = vdwg.mxu0
  %2425 = vmatprep.subr.mxu0 %v2208
  %2426 = vmatpush1.msra.mxu0 %v2207
  %2427 = vmatprep.subr.mxu0 %v2210
  %2428 = vmatpush1.msra.mxu0 %v2209
  %2429 = vmatprep.subr.mxu0 %v2212
  %2430 = vmatpush1.msra.mxu0 %v2211
  %2431 = vmatprep.subr.mxu0 %v2214
  %2432 = vmatpush1.msra.mxu0 %v2213
  %2433 = vmatprep.subr.mxu0 %v2216
  %2434 = vmatpush1.msra.mxu0 %v2215
  %2435 = vmatprep.subr.mxu0 %v2218
  %2436 = vmatpush1.msra.mxu0 %v2217
  %2437 = vmatprep.subr.mxu0 %v2220
  %2438 = vmatpush1.msra.mxu0 %v2219
  %2439 = vmatprep.subr.mxu0 %v2222
  %2440 = vmatpush1.msra.mxu0 %v2221
  %2441 = vmatprep.subr.mxu0 %v2224
  %2442 = vmatpush1.msra.mxu0 %v2223
  %2443 = vmatprep.subr.mxu0 %v2226
  %2444 = vmatpush1.msra.mxu0 %v2225
  %2445 = vmatprep.subr.mxu0 %v2228
  %2446 = vmatpush1.msra.mxu0 %v2227
  %2447 = vmatprep.subr.mxu0 %v2230
  %2448 = vmatpush1.msra.mxu0 %v2229
  %2449 = vmatprep.subr.mxu0 %v2232
  %2450 = vmatpush1.msra.mxu0 %v2231
  %2451 = vmatprep.subr.mxu0 %v2234
  %2452 = vmatpush1.msra.mxu0 %v2233
  %2453 = vmatprep.subr.mxu0 %v2236
  %2454 = vmatpush1.msra.mxu0 %v2235
  %2455 = vmatprep.subr.mxu0 %v2238
  %2456 = vmatpush1.msra.mxu0 %v2237
  %2457 = vmatprep.subr.mxu0 %v2240
  %2458 = vmatpush1.msra.mxu0 %v2239
  %2459 = vmatprep.subr.mxu0 %v2242
  %2460 = vmatpush1.msra.mxu0 %v2241
  %2461 = vmatprep.subr.mxu0 %v2244
  %2462 = vmatpush1.msra.mxu0 %v2243
  %2463 = vmatprep.subr.mxu0 %v2246
  %2464 = vmatpush1.msra.mxu0 %v2245
  %2465 = vmatprep.subr.mxu0 %v2248
  %2466 = vmatpush1.msra.mxu0 %v2247
  %2467 = vmatprep.subr.mxu0 %v2250
  %2468 = vmatpush1.msra.mxu0 %v2249
  %2469 = vmatprep.subr.mxu0 %v2252
  %2470 = vmatpush1.msra.mxu0 %v2251
  %2471 = vmatprep.subr.mxu0 %v2254
  %2472 = vmatpush1.msra.mxu0 %v2253
  %2473 = vmatprep.subr.mxu0 %v2256
  %2474 = vmatpush1.msra.mxu0 %v2255
  %2475 = vmatprep.subr.mxu0 %v2258
  %2476 = vmatpush1.msra.mxu0 %v2257
  %2477 = vmatprep.subr.mxu0 %v2260
  %2478 = vmatpush1.msra.mxu0 %v2259
  %2479 = vmatprep.subr.mxu0 %v2262
  %2480 = vmatpush1.msra.mxu0 %v2261
  %2481 = vmatprep.subr.mxu0 %v2264
  %2482 = vmatpush1.msra.mxu0 %v2263
  %2483 = vmatprep.subr.mxu0 %v2266
  %2484 = vmatpush1.msra.mxu0 %v2265
  %2485 = vmatprep.subr.mxu0 %v2268
  %2486 = vmatpush1.msra.mxu0 %v2267
  %2487 = vmatprep.subr.mxu0 %v2270
  %2488 = vmatpush1.msra.mxu0 %v2269
  %2489 = vmatprep.mubr.f32.mxu0 %v177
  %2490 = vmatmul.mubr.f32.gmra.mrb[0].mxu0 %v176
  %v2491 = vpop.f32.mrb[0].mxu0
  %v2492 = vadd.f32 %v2379, %v2491
  %v2493 = vpop.f32.mrb[0].mxu0
  %v2494 = vadd.f32 %v2381, %v2493
  %2495 = vmatprep.mubr.f32.mxu0 %v182
  %2496 = vmatmul.mubr.f32.gmra.mrb[0].mxu0 %v181
  %v2497 = vpop.f32.mrb[0].mxu0
  %v2498 = vadd.f32 %v2385, %v2497
  %v2499 = vpop.f32.mrb[0].mxu0
  %v2500 = vadd.f32 %v2387, %v2499
  %2501 = vmatprep.mubr.f32.mxu0 %v187
  %2502 = vmatmul.mubr.f32.gmra.mrb[0].mxu0 %v186
  %v2503 = vpop.f32.mrb[0].mxu0
  %v2504 = vadd.f32 %v2391, %v2503
  %v2505 = vpop.f32.mrb[0].mxu0
  %v2506 = vadd.f32 %v2393, %v2505
  %2507 = vmatprep.mubr.f32.mxu0 %v192
  %2508 = vmatmul.mubr.f32.gmra.mrb[0].mxu0 %v191
  %v2509 = vpop.f32.mrb[0].mxu0
  %v2510 = vadd.f32 %v2397, %v2509
  %v2511 = vpop.f32.mrb[0].mxu0
  %v2512 = vadd.f32 %v2399, %v2511
  %2513 = vmatprep.mubr.f32.mxu0 %v197
  %2514 = vmatmul.mubr.f32.gmra.mrb[0].mxu0 %v196
  %v2515 = vpop.f32.mrb[0].mxu0
  %v2516 = vadd.f32 %v2403, %v2515
  %v2517 = vpop.f32.mrb[0].mxu0
  %v2518 = vadd.f32 %v2405, %v2517
  %2519 = vmatprep.mubr.f32.mxu0 %v202
  %2520 = vmatmul.mubr.f32.gmra.mrb[0].mxu0 %v201
  %v2521 = vpop.f32.mrb[0].mxu0
  %v2522 = vadd.f32 %v2409, %v2521
  %v2523 = vpop.f32.mrb[0].mxu0
  %v2524 = vadd.f32 %v2411, %v2523
  %2525 = vmatprep.mubr.f32.mxu0 %v207
  %2526 = vmatmul.mubr.f32.gmra.mrb[0].mxu0 %v206
  %v2527 = vpop.f32.mrb[0].mxu0
  %v2528 = vadd.f32 %v2415, %v2527
  %v2529 = vpop.f32.mrb[0].mxu0
  %v2530 = vadd.f32 %v2417, %v2529
  %2531 = vmatprep.mubr.f32.mxu0 %v212
  %2532 = vmatmul.mubr.f32.gmra.mrb[0].mxu0 %v211
  %v2533 = vpop.f32.mrb[0].mxu0
  %v2534 = vadd.f32 %v2421, %v2533
  %v2535 = vpop.f32.mrb[0].mxu0
  %v2536 = vadd.f32 %v2423, %v2535
  %2537 = vdwg.mxu0
  %2538 = vmatprep.subr.mxu0 %v2272
  %2539 = vmatpush1.msra.mxu0 %v2271
  %2540 = vmatprep.subr.mxu0 %v2274
  %2541 = vmatpush1.msra.mxu0 %v2273
  %2542 = vmatprep.subr.mxu0 %v2276
  %2543 = vmatpush1.msra.mxu0 %v2275
  %2544 = vmatprep.subr.mxu0 %v2278
  %2545 = vmatpush1.msra.mxu0 %v2277
  %2546 = vmatprep.subr.mxu0 %v2280
  %2547 = vmatpush1.msra.mxu0 %v2279
  %2548 = vmatprep.subr.mxu0 %v2282
  %2549 = vmatpush1.msra.mxu0 %v2281
  %2550 = vmatprep.subr.mxu0 %v2284
  %2551 = vmatpush1.msra.mxu0 %v2283
  %2552 = vmatprep.subr.mxu0 %v2286
  %2553 = vmatpush1.msra.mxu0 %v2285
  %2554 = vmatprep.subr.mxu0 0.0
  %2555 = vmatpush1.msra.mxu0 0.0
  %2556 = vmatprep.subr.mxu0 0.0
  %2557 = vmatpush1.msra.mxu0 0.0
  %2558 = vmatprep.subr.mxu0 0.0
  %2559 = vmatpush1.msra.mxu0 0.0
  %2560 = vmatprep.subr.mxu0 0.0
  %2561 = vmatpush1.msra.mxu0 0.0
  %2562 = vmatprep.subr.mxu0 0.0
  %2563 = vmatpush1.msra.mxu0 0.0
  %2564 = vmatprep.subr.mxu0 0.0
  %2565 = vmatpush1.msra.mxu0 0.0
  %2566 = vmatprep.subr.mxu0 0.0
  %2567 = vmatpush1.msra.mxu0 0.0
  %2568 = vmatprep.subr.mxu0 0.0
  %2569 = vmatpush1.msra.mxu0 0.0
  %2570 = vmatprep.subr.mxu0 0.0
  %2571 = vmatpush1.msra.mxu0 0.0
  %2572 = vmatprep.subr.mxu0 0.0
  %2573 = vmatpush1.msra.mxu0 0.0
  %2574 = vmatprep.subr.mxu0 0.0
  %2575 = vmatpush1.msra.mxu0 0.0
  %2576 = vmatprep.subr.mxu0 0.0
  %2577 = vmatpush1.msra.mxu0 0.0
  %2578 = vmatprep.subr.mxu0 0.0
  %2579 = vmatpush1.msra.mxu0 0.0
  %2580 = vmatprep.subr.mxu0 0.0
  %2581 = vmatpush1.msra.mxu0 0.0
  %2582 = vmatprep.subr.mxu0 0.0
  %2583 = vmatpush1.msra.mxu0 0.0
  %2584 = vmatprep.subr.mxu0 0.0
  %2585 = vmatpush1.msra.mxu0 0.0
  %2586 = vmatprep.subr.mxu0 0.0
  %2587 = vmatpush1.msra.mxu0 0.0
  %2588 = vmatprep.subr.mxu0 0.0
  %2589 = vmatpush1.msra.mxu0 0.0
  %2590 = vmatprep.subr.mxu0 0.0
  %2591 = vmatpush1.msra.mxu0 0.0
  %2592 = vmatprep.subr.mxu0 0.0
  %2593 = vmatpush1.msra.mxu0 0.0
  %2594 = vmatprep.subr.mxu0 0.0
  %2595 = vmatpush1.msra.mxu0 0.0
  %2596 = vmatprep.subr.mxu0 0.0
  %2597 = vmatpush1.msra.mxu0 0.0
  %2598 = vmatprep.subr.mxu0 0.0
  %2599 = vmatpush1.msra.mxu0 0.0
  %2600 = vmatprep.subr.mxu0 0.0
  %2601 = vmatpush1.msra.mxu0 0.0
  %2602 = vmatprep.mubr.f32.mxu0 0.0
  %2603 = vmatmul.mubr.f32.gmra.mrb[0].mxu0 %v2289
  %v2604 = vpop.f32.mrb[0].mxu0
  %v2605 = vadd.f32 %v2492, %v2604
  %v2606 = vpop.f32.mrb[0].mxu0
  %v2607 = vadd.f32 %v2494, %v2606
  %2608 = vmatprep.mubr.f32.mxu0 0.0
  %2609 = vmatmul.mubr.f32.gmra.mrb[0].mxu0 %v2292
  %v2610 = vpop.f32.mrb[0].mxu0
  %v2611 = vadd.f32 %v2498, %v2610
  %v2612 = vpop.f32.mrb[0].mxu0
  %v2613 = vadd.f32 %v2500, %v2612
  %2614 = vmatprep.mubr.f32.mxu0 0.0
  %2615 = vmatmul.mubr.f32.gmra.mrb[0].mxu0 %v2295
  %v2616 = vpop.f32.mrb[0].mxu0
  %v2617 = vadd.f32 %v2504, %v2616
  %v2618 = vpop.f32.mrb[0].mxu0
  %v2619 = vadd.f32 %v2506, %v2618
  %2620 = vmatprep.mubr.f32.mxu0 0.0
  %2621 = vmatmul.mubr.f32.gmra.mrb[0].mxu0 %v2298
  %v2622 = vpop.f32.mrb[0].mxu0
  %v2623 = vadd.f32 %v2510, %v2622
  %v2624 = vpop.f32.mrb[0].mxu0
  %v2625 = vadd.f32 %v2512, %v2624
  %2626 = vmatprep.mubr.f32.mxu0 0.0
  %2627 = vmatmul.mubr.f32.gmra.mrb[0].mxu0 %v2301
  %v2628 = vpop.f32.mrb[0].mxu0
  %v2629 = vadd.f32 %v2516, %v2628
  %v2630 = vpop.f32.mrb[0].mxu0
  %v2631 = vadd.f32 %v2518, %v2630
  %2632 = vmatprep.mubr.f32.mxu0 0.0
  %2633 = vmatmul.mubr.f32.gmra.mrb[0].mxu0 %v2304
  %v2634 = vpop.f32.mrb[0].mxu0
  %v2635 = vadd.f32 %v2522, %v2634
  %v2636 = vpop.f32.mrb[0].mxu0
  %v2637 = vadd.f32 %v2524, %v2636
  %2638 = vmatprep.mubr.f32.mxu0 0.0
  %2639 = vmatmul.mubr.f32.gmra.mrb[0].mxu0 %v2307
  %v2640 = vpop.f32.mrb[0].mxu0
  %v2641 = vadd.f32 %v2528, %v2640
  %v2642 = vpop.f32.mrb[0].mxu0
  %v2643 = vadd.f32 %v2530, %v2642
  %2644 = vmatprep.mubr.f32.mxu0 0.0
  %2645 = vmatmul.mubr.f32.gmra.mrb[0].mxu0 %v2310
  %v2646 = vpop.f32.mrb[0].mxu0
  %v2647 = vadd.f32 %v2534, %v2646
  %v2648 = vpop.f32.mrb[0].mxu0
  %v2649 = vadd.f32 %v2536, %v2648
  %2650 = vdwg.mxu0
  %v2652 = vsel %vm1212, %v2607, 0
  %v2655 = vsel %vm1212, %v2613, 0
  %v2658 = vsel %vm1212, %v2619, 0
  %v2661 = vsel %vm1212, %v2625, 0
  %v2664 = vsel %vm1212, %v2631, 0
  %v2667 = vsel %vm1212, %v2637, 0
  %v2670 = vsel %vm1212, %v2643, 0
  %v2673 = vsel %vm1212, %v2649, 0
  %2675 = vmatprep.subr.mxu0 0.0
  %2676 = vmatpush1.msra.mxu0 %v1860
  %2677 = vmatprep.subr.mxu0 0.0
  %2678 = vmatpush1.msra.mxu0 %v1861
  %2679 = vmatprep.subr.mxu0 0.0
  %2680 = vmatpush1.msra.mxu0 %v1862
  %2681 = vmatprep.subr.mxu0 0.0
  %2682 = vmatpush1.msra.mxu0 %v1863
  %2683 = vmatprep.subr.mxu0 0.0
  %2684 = vmatpush1.msra.mxu0 %v1864
  %2685 = vmatprep.subr.mxu0 0.0
  %2686 = vmatpush1.msra.mxu0 %v1865
  %2687 = vmatprep.subr.mxu0 0.0
  %2688 = vmatpush1.msra.mxu0 %v1866
  %2689 = vmatprep.subr.mxu0 0.0
  %2690 = vmatpush1.msra.mxu0 %v1867
  %2691 = vmatprep.subr.mxu0 0.0
  %2692 = vmatpush1.msra.mxu0 %v1868
  %2693 = vmatprep.subr.mxu0 0.0
  %2694 = vmatpush1.msra.mxu0 %v1869
  %2695 = vmatprep.subr.mxu0 0.0
  %2696 = vmatpush1.msra.mxu0 %v1870
  %2697 = vmatprep.subr.mxu0 0.0
  %2698 = vmatpush1.msra.mxu0 %v1871
  %2699 = vmatprep.subr.mxu0 0.0
  %2700 = vmatpush1.msra.mxu0 %v1872
  %2701 = vmatprep.subr.mxu0 0.0
  %2702 = vmatpush1.msra.mxu0 %v1873
  %2703 = vmatprep.subr.mxu0 0.0
  %2704 = vmatpush1.msra.mxu0 %v1874
  %2705 = vmatprep.subr.mxu0 0.0
  %2706 = vmatpush1.msra.mxu0 %v1875
  %2707 = vmatprep.subr.mxu0 0.0
  %2708 = vmatpush1.msra.mxu0 %v1876
  %2709 = vmatprep.subr.mxu0 0.0
  %2710 = vmatpush1.msra.mxu0 %v1877
  %2711 = vmatprep.subr.mxu0 0.0
  %2712 = vmatpush1.msra.mxu0 0.0
  %2713 = vmatprep.subr.mxu0 0.0
  %2714 = vmatpush1.msra.mxu0 0.0
  %2715 = vmatprep.subr.mxu0 0.0
  %2716 = vmatpush1.msra.mxu0 0.0
  %2717 = vmatprep.subr.mxu0 0.0
  %2718 = vmatpush1.msra.mxu0 0.0
  %2719 = vmatprep.subr.mxu0 0.0
  %2720 = vmatpush1.msra.mxu0 0.0
  %2721 = vmatprep.subr.mxu0 0.0
  %2722 = vmatpush1.msra.mxu0 0.0
  %2723 = vmatprep.subr.mxu0 0.0
  %2724 = vmatpush1.msra.mxu0 0.0
  %2725 = vmatprep.subr.mxu0 0.0
  %2726 = vmatpush1.msra.mxu0 0.0
  %2727 = vmatprep.subr.mxu0 0.0
  %2728 = vmatpush1.msra.mxu0 0.0
  %2729 = vmatprep.subr.mxu0 0.0
  %2730 = vmatpush1.msra.mxu0 0.0
  %2731 = vmatprep.subr.mxu0 0.0
  %2732 = vmatpush1.msra.mxu0 0.0
  %2733 = vmatprep.subr.mxu0 0.0
  %2734 = vmatpush1.msra.mxu0 0.0
  %2735 = vmatprep.subr.mxu0 0.0
  %2736 = vmatpush1.msra.mxu0 0.0
  %2737 = vmatprep.subr.mxu0 0.0
  %2738 = vmatpush1.msra.mxu0 0.0
  %2739 = vmatprep.mubr.f32.mxu0 %v2652
  %2740 = vmatmul.mubr.f32.gmra.mrb[0].mxu0 %v2605
  %v2741 = vpop.f32.mrb[0].mxu0
  %v2742 = vadd.f32 0.0, %v2741
  %v2743 = vpop.f32.mrb[0].mxu0
  %2744 = vmatprep.mubr.f32.mxu0 %v2655
  %2745 = vmatmul.mubr.f32.gmra.mrb[0].mxu0 %v2611
  %v2746 = vpop.f32.mrb[0].mxu0
  %v2747 = vadd.f32 0.0, %v2746
  %v2748 = vpop.f32.mrb[0].mxu0
  %2749 = vmatprep.mubr.f32.mxu0 %v2658
  %2750 = vmatmul.mubr.f32.gmra.mrb[0].mxu0 %v2617
  %v2751 = vpop.f32.mrb[0].mxu0
  %v2752 = vadd.f32 0.0, %v2751
  %v2753 = vpop.f32.mrb[0].mxu0
  %2754 = vmatprep.mubr.f32.mxu0 %v2661
  %2755 = vmatmul.mubr.f32.gmra.mrb[0].mxu0 %v2623
  %v2756 = vpop.f32.mrb[0].mxu0
  %v2757 = vadd.f32 0.0, %v2756
  %v2758 = vpop.f32.mrb[0].mxu0
  %2759 = vmatprep.mubr.f32.mxu0 %v2664
  %2760 = vmatmul.mubr.f32.gmra.mrb[0].mxu0 %v2629
  %v2761 = vpop.f32.mrb[0].mxu0
  %v2762 = vadd.f32 0.0, %v2761
  %v2763 = vpop.f32.mrb[0].mxu0
  %2764 = vmatprep.mubr.f32.mxu0 %v2667
  %2765 = vmatmul.mubr.f32.gmra.mrb[0].mxu0 %v2635
  %v2766 = vpop.f32.mrb[0].mxu0
  %v2767 = vadd.f32 0.0, %v2766
  %v2768 = vpop.f32.mrb[0].mxu0
  %2769 = vmatprep.mubr.f32.mxu0 %v2670
  %2770 = vmatmul.mubr.f32.gmra.mrb[0].mxu0 %v2641
  %v2771 = vpop.f32.mrb[0].mxu0
  %v2772 = vadd.f32 0.0, %v2771
  %v2773 = vpop.f32.mrb[0].mxu0
  %2774 = vmatprep.mubr.f32.mxu0 %v2673
  %2775 = vmatmul.mubr.f32.gmra.mrb[0].mxu0 %v2647
  %v2776 = vpop.f32.mrb[0].mxu0
  %v2777 = vadd.f32 0.0, %v2776
  %v2778 = vpop.f32.mrb[0].mxu0
  %2779 = vdwg.mxu0
  %v2780 = vmul.f32 %v2742, 0.083333336
  %v2781 = vmul.f32 %v2747, 0.083333336
  %v2782 = vmul.f32 %v2752, 0.083333336
  %v2783 = vmul.f32 %v2757, 0.083333336
  %v2784 = vmul.f32 %v2762, 0.083333336
  %v2785 = vmul.f32 %v2767, 0.083333336
  %v2786 = vmul.f32 %v2772, 0.083333336
  %v2787 = vmul.f32 %v2777, 0.083333336
  %vm2788 = vcmask 48128
  %v2789 = vsel %vm2788, %v2780, -inf
  %v2790 = vsel %vm2788, %v2781, -inf
  %v2791 = vsel %vm2788, %v2782, -inf
  %v2792 = vsel %vm2788, %v2783, -inf
  %v2793 = vsel %vm2788, %v2784, -inf
  %v2794 = vmax.f32 %v2789, %v2793
  %v2795 = vsel %vm2788, %v2785, -inf
  %v2796 = vmax.f32 %v2790, %v2795
  %v2797 = vsel %vm2788, %v2786, -inf
  %v2798 = vmax.f32 %v2791, %v2797
  %v2799 = vsel %vm2788, %v2787, -inf
  %v2800 = vmax.f32 %v2792, %v2799
  %v2801 = vmax.f32 %v2794, %v2796
  %v2802 = vmax.f32 %v2798, %v2800
  %v2803 = vmax.f32 %v2801, %v2802
  %v2804 = vrot.slane %v2803, 4
  %v2805 = vmax.f32 %v2803, %v2804
  %v2806 = vrot.slane %v2805, 2
  %v2807 = vmax.f32 %v2805, %v2806
  %v2808 = vrot.slane %v2807, 1
  %v2809 = vmax.f32 %v2807, %v2808
  %v2810 = vsub.f32 %v2780, %v2809
  %v2811 = vsub.f32 %v2781, %v2809
  %v2812 = vsub.f32 %v2782, %v2809
  %v2813 = vsub.f32 %v2783, %v2809
  %v2814 = vsub.f32 %v2784, %v2809
  %v2815 = vsub.f32 %v2785, %v2809
  %v2816 = vsub.f32 %v2786, %v2809
  %v2817 = vsub.f32 %v2787, %v2809
  %v2818 = vmul.f32 %v2810, 1.442695
  %v2819 = vpow.pop %v2818
  %v2820 = vmul.f32 %v2811, 1.442695
  %v2821 = vpow.pop %v2820
  %v2822 = vmul.f32 %v2812, 1.442695
  %v2823 = vpow.pop %v2822
  %v2824 = vmul.f32 %v2813, 1.442695
  %v2825 = vpow.pop %v2824
  %v2826 = vmul.f32 %v2814, 1.442695
  %v2827 = vpow.pop %v2826
  %v2828 = vmul.f32 %v2815, 1.442695
  %v2829 = vpow.pop %v2828
  %v2830 = vmul.f32 %v2816, 1.442695
  %v2831 = vpow.pop %v2830
  %v2832 = vmul.f32 %v2817, 1.442695
  %v2833 = vpow.pop %v2832
  %2834 = vmax.xlane.f32.xlu0 %v2789
  %v2835 = vpop.xlane.xlu0 %2834
  %2836 = vmax.xlane.f32.xlu0 %v2790
  %v2837 = vpop.xlane.xlu0 %2836
  %2838 = vmax.xlane.f32.xlu0 %v2791
  %v2839 = vpop.xlane.xlu0 %2838
  %2840 = vmax.xlane.f32.xlu0 %v2792
  %v2841 = vpop.xlane.xlu0 %2840
  %2842 = vmax.xlane.f32.xlu0 %v2793
  %v2843 = vpop.xlane.xlu0 %2842
  %2844 = vmax.xlane.f32.xlu0 %v2795
  %v2845 = vpop.xlane.xlu0 %2844
  %2846 = vmax.xlane.f32.xlu0 %v2797
  %v2847 = vpop.xlane.xlu0 %2846
  %2848 = vmax.xlane.f32.xlu0 %v2799
  %v2849 = vpop.xlane.xlu0 %2848
  %v2850 = vsub.f32 %v2780, %v2835
  %v2851 = vsub.f32 %v2781, %v2837
  %v2852 = vsub.f32 %v2782, %v2839
  %v2853 = vsub.f32 %v2783, %v2841
  %v2854 = vsub.f32 %v2784, %v2843
  %v2855 = vsub.f32 %v2785, %v2845
  %v2856 = vsub.f32 %v2786, %v2847
  %v2857 = vsub.f32 %v2787, %v2849
  %v2858 = vmul.f32 %v2850, 1.442695
  %v2859 = vpow.pop %v2858
  %v2860 = vmul.f32 %v2851, 1.442695
  %v2861 = vpow.pop %v2860
  %v2862 = vmul.f32 %v2852, 1.442695
  %v2863 = vpow.pop %v2862
  %v2864 = vmul.f32 %v2853, 1.442695
  %v2865 = vpow.pop %v2864
  %v2866 = vmul.f32 %v2854, 1.442695
  %v2867 = vpow.pop %v2866
  %v2868 = vmul.f32 %v2855, 1.442695
  %v2869 = vpow.pop %v2868
  %v2870 = vmul.f32 %v2856, 1.442695
  %v2871 = vpow.pop %v2870
  %v2872 = vmul.f32 %v2857, 1.442695
  %v2873 = vpow.pop %v2872
  %v2875 = vsel %vm2788, %v2859, 0
  %v2878 = vsel %vm2788, %v2861, 0
  %v2881 = vsel %vm2788, %v2863, 0
  %v2884 = vsel %vm2788, %v2865, 0
  %v2887 = vsel %vm2788, %v2867, 0
  %v2890 = vsel %vm2788, %v2869, 0
  %v2893 = vsel %vm2788, %v2871, 0
  %v2896 = vsel %vm2788, %v2873, 0
  %vm2898 = vcmask 1045504
  %v2900 = vsel %vm2898, %v1185, 0
  %2902 = vmatprep.subr.mxu0 0.0
  %2903 = vmatpush1.msra.mxu0 %v2900
  %2904 = vmatprep.subr.mxu0 0.0
  %2905 = vmatpush1.msra.mxu0 0.0
  %2906 = vmatprep.subr.mxu0 0.0
  %2907 = vmatpush1.msra.mxu0 0.0
  %2908 = vmatprep.subr.mxu0 0.0
  %2909 = vmatpush1.msra.mxu0 0.0
  %2910 = vmatprep.subr.mxu0 0.0
  %2911 = vmatpush1.msra.mxu0 0.0
  %2912 = vmatprep.subr.mxu0 0.0
  %2913 = vmatpush1.msra.mxu0 0.0
  %2914 = vmatprep.subr.mxu0 0.0
  %2915 = vmatpush1.msra.mxu0 0.0
  %2916 = vmatprep.subr.mxu0 0.0
  %2917 = vmatpush1.msra.mxu0 0.0
  %2918 = vmatprep.subr.mxu0 0.0
  %2919 = vmatpush1.msra.mxu0 0.0
  %2920 = vmatprep.subr.mxu0 0.0
  %2921 = vmatpush1.msra.mxu0 0.0
  %2922 = vmatprep.subr.mxu0 0.0
  %2923 = vmatpush1.msra.mxu0 0.0
  %2924 = vmatprep.subr.mxu0 0.0
  %2925 = vmatpush1.msra.mxu0 0.0
  %2926 = vmatprep.subr.mxu0 0.0
  %2927 = vmatpush1.msra.mxu0 0.0
  %2928 = vmatprep.subr.mxu0 0.0
  %2929 = vmatpush1.msra.mxu0 0.0
  %2930 = vmatprep.subr.mxu0 0.0
  %2931 = vmatpush1.msra.mxu0 0.0
  %2932 = vmatprep.subr.mxu0 0.0
  %2933 = vmatpush1.msra.mxu0 0.0
  %2934 = vmatprep.subr.mxu0 0.0
  %2935 = vmatpush1.msra.mxu0 0.0
  %2936 = vmatprep.subr.mxu0 0.0
  %2937 = vmatpush1.msra.mxu0 0.0
  %2938 = vmatprep.subr.mxu0 0.0
  %2939 = vmatpush1.msra.mxu0 0.0
  %2940 = vmatprep.subr.mxu0 0.0
  %2941 = vmatpush1.msra.mxu0 0.0
  %2942 = vmatprep.subr.mxu0 0.0
  %2943 = vmatpush1.msra.mxu0 0.0
  %2944 = vmatprep.subr.mxu0 0.0
  %2945 = vmatpush1.msra.mxu0 0.0
  %2946 = vmatprep.subr.mxu0 0.0
  %2947 = vmatpush1.msra.mxu0 0.0
  %2948 = vmatprep.subr.mxu0 0.0
  %2949 = vmatpush1.msra.mxu0 0.0
  %2950 = vmatprep.subr.mxu0 0.0
  %2951 = vmatpush1.msra.mxu0 0.0
  %2952 = vmatprep.subr.mxu0 0.0
  %2953 = vmatpush1.msra.mxu0 0.0
  %2954 = vmatprep.subr.mxu0 0.0
  %2955 = vmatpush1.msra.mxu0 0.0
  %2956 = vmatprep.subr.mxu0 0.0
  %2957 = vmatpush1.msra.mxu0 0.0
  %2958 = vmatprep.subr.mxu0 0.0
  %2959 = vmatpush1.msra.mxu0 0.0
  %2960 = vmatprep.subr.mxu0 0.0
  %2961 = vmatpush1.msra.mxu0 0.0
  %2962 = vmatprep.subr.mxu0 0.0
  %2963 = vmatpush1.msra.mxu0 0.0
  %2964 = vmatprep.subr.mxu0 0.0
  %2965 = vmatpush1.msra.mxu0 0.0
  %2966 = vmatprep.mubr.f32.mxu0 0.0
  %2967 = vmatmul.mubr.f32.gmra.mrb[0].mxu0 %v2875
  %v2968 = vpop.f32.mrb[0].mxu0
  %v2969 = vadd.f32 0.0, %v2968
  %v2970 = vpop.f32.mrb[0].mxu0
  %2971 = vmatprep.mubr.f32.mxu0 0.0
  %2972 = vmatmul.mubr.f32.gmra.mrb[0].mxu0 %v2878
  %v2973 = vpop.f32.mrb[0].mxu0
  %v2974 = vadd.f32 0.0, %v2973
  %v2975 = vpop.f32.mrb[0].mxu0
  %2976 = vmatprep.mubr.f32.mxu0 0.0
  %2977 = vmatmul.mubr.f32.gmra.mrb[0].mxu0 %v2881
  %v2978 = vpop.f32.mrb[0].mxu0
  %v2979 = vadd.f32 0.0, %v2978
  %v2980 = vpop.f32.mrb[0].mxu0
  %2981 = vmatprep.mubr.f32.mxu0 0.0
  %2982 = vmatmul.mubr.f32.gmra.mrb[0].mxu0 %v2884
  %v2983 = vpop.f32.mrb[0].mxu0
  %v2984 = vadd.f32 0.0, %v2983
  %v2985 = vpop.f32.mrb[0].mxu0
  %2986 = vmatprep.mubr.f32.mxu0 0.0
  %2987 = vmatmul.mubr.f32.gmra.mrb[0].mxu0 %v2887
  %v2988 = vpop.f32.mrb[0].mxu0
  %v2989 = vadd.f32 0.0, %v2988
  %v2990 = vpop.f32.mrb[0].mxu0
  %2991 = vmatprep.mubr.f32.mxu0 0.0
  %2992 = vmatmul.mubr.f32.gmra.mrb[0].mxu0 %v2890
  %v2993 = vpop.f32.mrb[0].mxu0
  %v2994 = vadd.f32 0.0, %v2993
  %v2995 = vpop.f32.mrb[0].mxu0
  %2996 = vmatprep.mubr.f32.mxu0 0.0
  %2997 = vmatmul.mubr.f32.gmra.mrb[0].mxu0 %v2893
  %v2998 = vpop.f32.mrb[0].mxu0
  %v2999 = vadd.f32 0.0, %v2998
  %v3000 = vpop.f32.mrb[0].mxu0
  %3001 = vmatprep.mubr.f32.mxu0 0.0
  %3002 = vmatmul.mubr.f32.gmra.mrb[0].mxu0 %v2896
  %v3003 = vpop.f32.mrb[0].mxu0
  %v3004 = vadd.f32 0.0, %v3003
  %v3005 = vpop.f32.mrb[0].mxu0
  %3006 = vdwg.mxu0
  %v3007 = vrcp.pop %v2969
  %v3008 = vmul.f32 %v2859, %v3007
  %v3009 = vrcp.pop %v2974
  %v3010 = vmul.f32 %v2861, %v3009
  %v3011 = vrcp.pop %v2979
  %v3012 = vmul.f32 %v2863, %v3011
  %v3013 = vrcp.pop %v2984
  %v3014 = vmul.f32 %v2865, %v3013
  %v3015 = vrcp.pop %v2989
  %v3016 = vmul.f32 %v2867, %v3015
  %v3017 = vrcp.pop %v2994
  %v3018 = vmul.f32 %v2869, %v3017
  %v3019 = vrcp.pop %v2999
  %v3020 = vmul.f32 %v2871, %v3019
  %v3021 = vrcp.pop %v3004
  %v3022 = vmul.f32 %v2873, %v3021
  %v3023 = vmul.f32 %v2819, %v3008
  %v3024 = vmul.f32 %v2821, %v3010
  %v3025 = vmul.f32 %v2823, %v3012
  %v3026 = vmul.f32 %v2825, %v3014
  %v3027 = vmul.f32 %v2827, %v3016
  %v3028 = vmul.f32 %v2829, %v3018
  %v3029 = vmul.f32 %v2831, %v3020
  %v3030 = vmul.f32 %v2833, %v3022
  %v3032 = vsel %vm2788, %v3023, 0
  %v3035 = vsel %vm2788, %v3024, 0
  %v3038 = vsel %vm2788, %v3025, 0
  %v3041 = vsel %vm2788, %v3026, 0
  %v3044 = vsel %vm2788, %v3027, 0
  %v3047 = vsel %vm2788, %v3028, 0
  %v3050 = vsel %vm2788, %v3029, 0
  %v3053 = vsel %vm2788, %v3030, 0
  %v3056 = vsel %vm2898, %v285, 0
  %3058 = vmatprep.subr.mxu0 0.0
  %3059 = vmatpush1.msra.mxu0 %v3056
  %3060 = vmatprep.subr.mxu0 0.0
  %3061 = vmatpush1.msra.mxu0 0.0
  %3062 = vmatprep.subr.mxu0 0.0
  %3063 = vmatpush1.msra.mxu0 0.0
  %3064 = vmatprep.subr.mxu0 0.0
  %3065 = vmatpush1.msra.mxu0 0.0
  %3066 = vmatprep.subr.mxu0 0.0
  %3067 = vmatpush1.msra.mxu0 0.0
  %3068 = vmatprep.subr.mxu0 0.0
  %3069 = vmatpush1.msra.mxu0 0.0
  %3070 = vmatprep.subr.mxu0 0.0
  %3071 = vmatpush1.msra.mxu0 0.0
  %3072 = vmatprep.subr.mxu0 0.0
  %3073 = vmatpush1.msra.mxu0 0.0
  %3074 = vmatprep.subr.mxu0 0.0
  %3075 = vmatpush1.msra.mxu0 0.0
  %3076 = vmatprep.subr.mxu0 0.0
  %3077 = vmatpush1.msra.mxu0 0.0
  %3078 = vmatprep.subr.mxu0 0.0
  %3079 = vmatpush1.msra.mxu0 0.0
  %3080 = vmatprep.subr.mxu0 0.0
  %3081 = vmatpush1.msra.mxu0 0.0
  %3082 = vmatprep.subr.mxu0 0.0
  %3083 = vmatpush1.msra.mxu0 0.0
  %3084 = vmatprep.subr.mxu0 0.0
  %3085 = vmatpush1.msra.mxu0 0.0
  %3086 = vmatprep.subr.mxu0 0.0
  %3087 = vmatpush1.msra.mxu0 0.0
  %3088 = vmatprep.subr.mxu0 0.0
  %3089 = vmatpush1.msra.mxu0 0.0
  %3090 = vmatprep.subr.mxu0 0.0
  %3091 = vmatpush1.msra.mxu0 0.0
  %3092 = vmatprep.subr.mxu0 0.0
  %3093 = vmatpush1.msra.mxu0 0.0
  %3094 = vmatprep.subr.mxu0 0.0
  %3095 = vmatpush1.msra.mxu0 0.0
  %3096 = vmatprep.subr.mxu0 0.0
  %3097 = vmatpush1.msra.mxu0 0.0
  %3098 = vmatprep.subr.mxu0 0.0
  %3099 = vmatpush1.msra.mxu0 0.0
  %3100 = vmatprep.subr.mxu0 0.0
  %3101 = vmatpush1.msra.mxu0 0.0
  %3102 = vmatprep.subr.mxu0 0.0
  %3103 = vmatpush1.msra.mxu0 0.0
  %3104 = vmatprep.subr.mxu0 0.0
  %3105 = vmatpush1.msra.mxu0 0.0
  %3106 = vmatprep.subr.mxu0 0.0
  %3107 = vmatpush1.msra.mxu0 0.0
  %3108 = vmatprep.subr.mxu0 0.0
  %3109 = vmatpush1.msra.mxu0 0.0
  %3110 = vmatprep.subr.mxu0 0.0
  %3111 = vmatpush1.msra.mxu0 0.0
  %3112 = vmatprep.subr.mxu0 0.0
  %3113 = vmatpush1.msra.mxu0 0.0
  %3114 = vmatprep.subr.mxu0 0.0
  %3115 = vmatpush1.msra.mxu0 0.0
  %3116 = vmatprep.subr.mxu0 0.0
  %3117 = vmatpush1.msra.mxu0 0.0
  %3118 = vmatprep.subr.mxu0 0.0
  %3119 = vmatpush1.msra.mxu0 0.0
  %3120 = vmatprep.subr.mxu0 0.0
  %3121 = vmatpush1.msra.mxu0 0.0
  %3122 = vmatprep.mubr.f32.mxu0 0.0
  %3123 = vmatmul.mubr.f32.gmra.mrb[0].mxu0 %v3032
  %v3124 = vpop.f32.mrb[0].mxu0
  %v3125 = vadd.f32 0.0, %v3124
  %v3126 = vpop.f32.mrb[0].mxu0
  %3127 = vmatprep.mubr.f32.mxu0 0.0
  %3128 = vmatmul.mubr.f32.gmra.mrb[0].mxu0 %v3035
  %v3129 = vpop.f32.mrb[0].mxu0
  %v3130 = vadd.f32 0.0, %v3129
  %v3131 = vpop.f32.mrb[0].mxu0
  %3132 = vmatprep.mubr.f32.mxu0 0.0
  %3133 = vmatmul.mubr.f32.gmra.mrb[0].mxu0 %v3038
  %v3134 = vpop.f32.mrb[0].mxu0
  %v3135 = vadd.f32 0.0, %v3134
  %v3136 = vpop.f32.mrb[0].mxu0
  %3137 = vmatprep.mubr.f32.mxu0 0.0
  %3138 = vmatmul.mubr.f32.gmra.mrb[0].mxu0 %v3041
  %v3139 = vpop.f32.mrb[0].mxu0
  %v3140 = vadd.f32 0.0, %v3139
  %v3141 = vpop.f32.mrb[0].mxu0
  %3142 = vmatprep.mubr.f32.mxu0 0.0
  %3143 = vmatmul.mubr.f32.gmra.mrb[0].mxu0 %v3044
  %v3144 = vpop.f32.mrb[0].mxu0
  %v3145 = vadd.f32 0.0, %v3144
  %v3146 = vpop.f32.mrb[0].mxu0
  %3147 = vmatprep.mubr.f32.mxu0 0.0
  %3148 = vmatmul.mubr.f32.gmra.mrb[0].mxu0 %v3047
  %v3149 = vpop.f32.mrb[0].mxu0
  %v3150 = vadd.f32 0.0, %v3149
  %v3151 = vpop.f32.mrb[0].mxu0
  %3152 = vmatprep.mubr.f32.mxu0 0.0
  %3153 = vmatmul.mubr.f32.gmra.mrb[0].mxu0 %v3050
  %v3154 = vpop.f32.mrb[0].mxu0
  %v3155 = vadd.f32 0.0, %v3154
  %v3156 = vpop.f32.mrb[0].mxu0
  %3157 = vmatprep.mubr.f32.mxu0 0.0
  %3158 = vmatmul.mubr.f32.gmra.mrb[0].mxu0 %v3053
  %v3159 = vpop.f32.mrb[0].mxu0
  %v3160 = vadd.f32 0.0, %v3159
  %v3161 = vpop.f32.mrb[0].mxu0
  %3162 = vdwg.mxu0
  %v3163 = vmul.f32 %v3125, %v586
  %v3164 = vmul.f32 %v3130, %v587
  %v3165 = vmul.f32 %v3135, %v588
  %v3166 = vmul.f32 %v3140, %v589
  %v3167 = vmul.f32 %v3145, %v590
  %v3168 = vmul.f32 %v3150, %v591
  %v3169 = vmul.f32 %v3155, %v592
  %v3170 = vmul.f32 %v3160, %v593
  %v3171 = vmul.f32 %v3125, %v594
  %v3172 = vmul.f32 %v3130, %v595
  %v3173 = vmul.f32 %v3135, %v596
  %v3174 = vmul.f32 %v3140, %v597
  %v3175 = vmul.f32 %v3145, %v598
  %v3176 = vmul.f32 %v3150, %v599
  %v3177 = vmul.f32 %v3155, %v600
  %v3178 = vmul.f32 %v3160, %v601
  %v3179 = vmul.f32 %v3125, %v602
  %v3180 = vmul.f32 %v3130, %v603
  %v3181 = vmul.f32 %v3135, %v604
  %v3182 = vmul.f32 %v3140, %v605
  %v3183 = vmul.f32 %v3145, %v606
  %v3184 = vmul.f32 %v3150, %v607
  %v3185 = vmul.f32 %v3155, %v608
  %v3186 = vmul.f32 %v3160, %v609
  %v3187 = vmul.f32 %v3125, %v610
  %v3188 = vmul.f32 %v3130, %v611
  %v3189 = vmul.f32 %v3135, %v612
  %v3190 = vmul.f32 %v3140, %v613
  %v3191 = vmul.f32 %v3145, %v614
  %v3192 = vmul.f32 %v3150, %v615
  %v3193 = vmul.f32 %v3155, %v616
  %v3194 = vmul.f32 %v3160, %v617
  %v3195 = vmul.f32 %v3125, %v618
  %v3196 = vmul.f32 %v3130, %v619
  %v3197 = vmul.f32 %v3135, %v620
  %v3198 = vmul.f32 %v3140, %v621
  %v3199 = vmul.f32 %v3145, %v622
  %v3200 = vmul.f32 %v3150, %v623
  %v3201 = vmul.f32 %v3155, %v624
  %v3202 = vmul.f32 %v3160, %v625
  %v3203 = vmul.f32 %v3125, %v626
  %v3204 = vmul.f32 %v3130, %v627
  %v3205 = vmul.f32 %v3135, %v628
  %v3206 = vmul.f32 %v3140, %v629
  %v3207 = vmul.f32 %v3145, %v630
  %v3208 = vmul.f32 %v3150, %v631
  %v3209 = vmul.f32 %v3155, %v632
  %v3210 = vmul.f32 %v3160, %v633
  %v3211 = vmul.f32 %v3125, %v634
  %v3212 = vmul.f32 %v3130, %v635
  %v3213 = vmul.f32 %v3135, %v636
  %v3214 = vmul.f32 %v3140, %v637
  %v3215 = vmul.f32 %v3145, %v638
  %v3216 = vmul.f32 %v3150, %v639
  %v3217 = vmul.f32 %v3155, %v640
  %v3218 = vmul.f32 %v3160, %v641
  %v3219 = vmul.f32 %v3125, %v642
  %v3220 = vmul.f32 %v3130, %v643
  %v3221 = vmul.f32 %v3135, %v644
  %v3222 = vmul.f32 %v3140, %v645
  %v3223 = vmul.f32 %v3145, %v646
  %v3224 = vmul.f32 %v3150, %v647
  %v3225 = vmul.f32 %v3155, %v648
  %v3226 = vmul.f32 %v3160, %v649
  %v3227 = vmul.f32 %v3125, %v650
  %v3228 = vmul.f32 %v3130, %v651
  %v3229 = vmul.f32 %v3135, %v652
  %v3230 = vmul.f32 %v3140, %v653
  %v3231 = vmul.f32 %v3145, %v654
  %v3232 = vmul.f32 %v3150, %v655
  %v3233 = vmul.f32 %v3155, %v656
  %v3234 = vmul.f32 %v3160, %v657
  %3235 = vmatprep.subr.mxu0 0.0
  %3236 = vmatpush1.msra.mxu0 %v3163
  %3237 = vmatprep.subr.mxu0 0.0
  %3238 = vmatpush1.msra.mxu0 %v3164
  %3239 = vmatprep.subr.mxu0 0.0
  %3240 = vmatpush1.msra.mxu0 %v3165
  %3241 = vmatprep.subr.mxu0 0.0
  %3242 = vmatpush1.msra.mxu0 %v3166
  %3243 = vmatprep.subr.mxu0 0.0
  %3244 = vmatpush1.msra.mxu0 %v3167
  %3245 = vmatprep.subr.mxu0 0.0
  %3246 = vmatpush1.msra.mxu0 %v3168
  %3247 = vmatprep.subr.mxu0 0.0
  %3248 = vmatpush1.msra.mxu0 %v3169
  %3249 = vmatprep.subr.mxu0 0.0
  %3250 = vmatpush1.msra.mxu0 %v3170
  %3251 = vmatprep.subr.mxu0 0.0
  %3252 = vmatpush1.msra.mxu0 %v3171
  %3253 = vmatprep.subr.mxu0 0.0
  %3254 = vmatpush1.msra.mxu0 %v3172
  %3255 = vmatprep.subr.mxu0 0.0
  %3256 = vmatpush1.msra.mxu0 %v3173
  %3257 = vmatprep.subr.mxu0 0.0
  %3258 = vmatpush1.msra.mxu0 %v3174
  %3259 = vmatprep.subr.mxu0 0.0
  %3260 = vmatpush1.msra.mxu0 %v3175
  %3261 = vmatprep.subr.mxu0 0.0
  %3262 = vmatpush1.msra.mxu0 %v3176
  %3263 = vmatprep.subr.mxu0 0.0
  %3264 = vmatpush1.msra.mxu0 %v3177
  %3265 = vmatprep.subr.mxu0 0.0
  %3266 = vmatpush1.msra.mxu0 %v3178
  %3267 = vmatprep.subr.mxu0 0.0
  %3268 = vmatpush1.msra.mxu0 %v3179
  %3269 = vmatprep.subr.mxu0 0.0
  %3270 = vmatpush1.msra.mxu0 %v3180
  %3271 = vmatprep.subr.mxu0 0.0
  %3272 = vmatpush1.msra.mxu0 %v3181
  %3273 = vmatprep.subr.mxu0 0.0
  %3274 = vmatpush1.msra.mxu0 %v3182
  %3275 = vmatprep.subr.mxu0 0.0
  %3276 = vmatpush1.msra.mxu0 %v3183
  %3277 = vmatprep.subr.mxu0 0.0
  %3278 = vmatpush1.msra.mxu0 %v3184
  %3279 = vmatprep.subr.mxu0 0.0
  %3280 = vmatpush1.msra.mxu0 %v3185
  %3281 = vmatprep.subr.mxu0 0.0
  %3282 = vmatpush1.msra.mxu0 %v3186
  %3283 = vmatprep.subr.mxu0 0.0
  %3284 = vmatpush1.msra.mxu0 %v3187
  %3285 = vmatprep.subr.mxu0 0.0
  %3286 = vmatpush1.msra.mxu0 %v3188
  %3287 = vmatprep.subr.mxu0 0.0
  %3288 = vmatpush1.msra.mxu0 %v3189
  %3289 = vmatprep.subr.mxu0 0.0
  %3290 = vmatpush1.msra.mxu0 %v3190
  %3291 = vmatprep.subr.mxu0 0.0
  %3292 = vmatpush1.msra.mxu0 %v3191
  %3293 = vmatprep.subr.mxu0 0.0
  %3294 = vmatpush1.msra.mxu0 %v3192
  %3295 = vmatprep.subr.mxu0 0.0
  %3296 = vmatpush1.msra.mxu0 %v3193
  %3297 = vmatprep.subr.mxu0 0.0
  %3298 = vmatpush1.msra.mxu0 %v3194
  %3299 = vmatprep.mubr.f32.mxu0 %v175
  %3300 = vmatmul.mubr.f32.gmra.mrb[0].mxu0 %v174
  %v3301 = vpop.f32.mrb[0].mxu0
  %v3302 = vadd.f32 0.0, %v3301
  %v3303 = vpop.f32.mrb[0].mxu0
  %3304 = vmatprep.mubr.f32.mxu0 %v180
  %3305 = vmatmul.mubr.f32.gmra.mrb[0].mxu0 %v179
  %v3306 = vpop.f32.mrb[0].mxu0
  %v3307 = vadd.f32 0.0, %v3306
  %v3308 = vpop.f32.mrb[0].mxu0
  %3309 = vmatprep.mubr.f32.mxu0 %v185
  %3310 = vmatmul.mubr.f32.gmra.mrb[0].mxu0 %v184
  %v3311 = vpop.f32.mrb[0].mxu0
  %v3312 = vadd.f32 0.0, %v3311
  %v3313 = vpop.f32.mrb[0].mxu0
  %3314 = vmatprep.mubr.f32.mxu0 %v190
  %3315 = vmatmul.mubr.f32.gmra.mrb[0].mxu0 %v189
  %v3316 = vpop.f32.mrb[0].mxu0
  %v3317 = vadd.f32 0.0, %v3316
  %v3318 = vpop.f32.mrb[0].mxu0
  %3319 = vmatprep.mubr.f32.mxu0 %v195
  %3320 = vmatmul.mubr.f32.gmra.mrb[0].mxu0 %v194
  %v3321 = vpop.f32.mrb[0].mxu0
  %v3322 = vadd.f32 0.0, %v3321
  %v3323 = vpop.f32.mrb[0].mxu0
  %3324 = vmatprep.mubr.f32.mxu0 %v200
  %3325 = vmatmul.mubr.f32.gmra.mrb[0].mxu0 %v199
  %v3326 = vpop.f32.mrb[0].mxu0
  %v3327 = vadd.f32 0.0, %v3326
  %v3328 = vpop.f32.mrb[0].mxu0
  %3329 = vmatprep.mubr.f32.mxu0 %v205
  %3330 = vmatmul.mubr.f32.gmra.mrb[0].mxu0 %v204
  %v3331 = vpop.f32.mrb[0].mxu0
  %v3332 = vadd.f32 0.0, %v3331
  %v3333 = vpop.f32.mrb[0].mxu0
  %3334 = vmatprep.mubr.f32.mxu0 %v210
  %3335 = vmatmul.mubr.f32.gmra.mrb[0].mxu0 %v209
  %v3336 = vpop.f32.mrb[0].mxu0
  %v3337 = vadd.f32 0.0, %v3336
  %v3338 = vpop.f32.mrb[0].mxu0
  %3339 = vdwg.mxu0
  %3340 = vmatprep.subr.mxu0 0.0
  %3341 = vmatpush1.msra.mxu0 %v3195
  %3342 = vmatprep.subr.mxu0 0.0
  %3343 = vmatpush1.msra.mxu0 %v3196
  %3344 = vmatprep.subr.mxu0 0.0
  %3345 = vmatpush1.msra.mxu0 %v3197
  %3346 = vmatprep.subr.mxu0 0.0
  %3347 = vmatpush1.msra.mxu0 %v3198
  %3348 = vmatprep.subr.mxu0 0.0
  %3349 = vmatpush1.msra.mxu0 %v3199
  %3350 = vmatprep.subr.mxu0 0.0
  %3351 = vmatpush1.msra.mxu0 %v3200
  %3352 = vmatprep.subr.mxu0 0.0
  %3353 = vmatpush1.msra.mxu0 %v3201
  %3354 = vmatprep.subr.mxu0 0.0
  %3355 = vmatpush1.msra.mxu0 %v3202
  %3356 = vmatprep.subr.mxu0 0.0
  %3357 = vmatpush1.msra.mxu0 %v3203
  %3358 = vmatprep.subr.mxu0 0.0
  %3359 = vmatpush1.msra.mxu0 %v3204
  %3360 = vmatprep.subr.mxu0 0.0
  %3361 = vmatpush1.msra.mxu0 %v3205
  %3362 = vmatprep.subr.mxu0 0.0
  %3363 = vmatpush1.msra.mxu0 %v3206
  %3364 = vmatprep.subr.mxu0 0.0
  %3365 = vmatpush1.msra.mxu0 %v3207
  %3366 = vmatprep.subr.mxu0 0.0
  %3367 = vmatpush1.msra.mxu0 %v3208
  %3368 = vmatprep.subr.mxu0 0.0
  %3369 = vmatpush1.msra.mxu0 %v3209
  %3370 = vmatprep.subr.mxu0 0.0
  %3371 = vmatpush1.msra.mxu0 %v3210
  %3372 = vmatprep.subr.mxu0 0.0
  %3373 = vmatpush1.msra.mxu0 %v3211
  %3374 = vmatprep.subr.mxu0 0.0
  %3375 = vmatpush1.msra.mxu0 %v3212
  %3376 = vmatprep.subr.mxu0 0.0
  %3377 = vmatpush1.msra.mxu0 %v3213
  %3378 = vmatprep.subr.mxu0 0.0
  %3379 = vmatpush1.msra.mxu0 %v3214
  %3380 = vmatprep.subr.mxu0 0.0
  %3381 = vmatpush1.msra.mxu0 %v3215
  %3382 = vmatprep.subr.mxu0 0.0
  %3383 = vmatpush1.msra.mxu0 %v3216
  %3384 = vmatprep.subr.mxu0 0.0
  %3385 = vmatpush1.msra.mxu0 %v3217
  %3386 = vmatprep.subr.mxu0 0.0
  %3387 = vmatpush1.msra.mxu0 %v3218
  %3388 = vmatprep.subr.mxu0 0.0
  %3389 = vmatpush1.msra.mxu0 %v3219
  %3390 = vmatprep.subr.mxu0 0.0
  %3391 = vmatpush1.msra.mxu0 %v3220
  %3392 = vmatprep.subr.mxu0 0.0
  %3393 = vmatpush1.msra.mxu0 %v3221
  %3394 = vmatprep.subr.mxu0 0.0
  %3395 = vmatpush1.msra.mxu0 %v3222
  %3396 = vmatprep.subr.mxu0 0.0
  %3397 = vmatpush1.msra.mxu0 %v3223
  %3398 = vmatprep.subr.mxu0 0.0
  %3399 = vmatpush1.msra.mxu0 %v3224
  %3400 = vmatprep.subr.mxu0 0.0
  %3401 = vmatpush1.msra.mxu0 %v3225
  %3402 = vmatprep.subr.mxu0 0.0
  %3403 = vmatpush1.msra.mxu0 %v3226
  %3404 = vmatprep.mubr.f32.mxu0 %v177
  %3405 = vmatmul.mubr.f32.gmra.mrb[0].mxu0 %v176
  %v3406 = vpop.f32.mrb[0].mxu0
  %v3407 = vadd.f32 %v3302, %v3406
  %v3408 = vpop.f32.mrb[0].mxu0
  %3409 = vmatprep.mubr.f32.mxu0 %v182
  %3410 = vmatmul.mubr.f32.gmra.mrb[0].mxu0 %v181
  %v3411 = vpop.f32.mrb[0].mxu0
  %v3412 = vadd.f32 %v3307, %v3411
  %v3413 = vpop.f32.mrb[0].mxu0
  %3414 = vmatprep.mubr.f32.mxu0 %v187
  %3415 = vmatmul.mubr.f32.gmra.mrb[0].mxu0 %v186
  %v3416 = vpop.f32.mrb[0].mxu0
  %v3417 = vadd.f32 %v3312, %v3416
  %v3418 = vpop.f32.mrb[0].mxu0
  %3419 = vmatprep.mubr.f32.mxu0 %v192
  %3420 = vmatmul.mubr.f32.gmra.mrb[0].mxu0 %v191
  %v3421 = vpop.f32.mrb[0].mxu0
  %v3422 = vadd.f32 %v3317, %v3421
  %v3423 = vpop.f32.mrb[0].mxu0
  %3424 = vmatprep.mubr.f32.mxu0 %v197
  %3425 = vmatmul.mubr.f32.gmra.mrb[0].mxu0 %v196
  %v3426 = vpop.f32.mrb[0].mxu0
  %v3427 = vadd.f32 %v3322, %v3426
  %v3428 = vpop.f32.mrb[0].mxu0
  %3429 = vmatprep.mubr.f32.mxu0 %v202
  %3430 = vmatmul.mubr.f32.gmra.mrb[0].mxu0 %v201
  %v3431 = vpop.f32.mrb[0].mxu0
  %v3432 = vadd.f32 %v3327, %v3431
  %v3433 = vpop.f32.mrb[0].mxu0
  %3434 = vmatprep.mubr.f32.mxu0 %v207
  %3435 = vmatmul.mubr.f32.gmra.mrb[0].mxu0 %v206
  %v3436 = vpop.f32.mrb[0].mxu0
  %v3437 = vadd.f32 %v3332, %v3436
  %v3438 = vpop.f32.mrb[0].mxu0
  %3439 = vmatprep.mubr.f32.mxu0 %v212
  %3440 = vmatmul.mubr.f32.gmra.mrb[0].mxu0 %v211
  %v3441 = vpop.f32.mrb[0].mxu0
  %v3442 = vadd.f32 %v3337, %v3441
  %v3443 = vpop.f32.mrb[0].mxu0
  %3444 = vdwg.mxu0
  %3445 = vmatprep.subr.mxu0 0.0
  %3446 = vmatpush1.msra.mxu0 %v3227
  %3447 = vmatprep.subr.mxu0 0.0
  %3448 = vmatpush1.msra.mxu0 %v3228
  %3449 = vmatprep.subr.mxu0 0.0
  %3450 = vmatpush1.msra.mxu0 %v3229
  %3451 = vmatprep.subr.mxu0 0.0
  %3452 = vmatpush1.msra.mxu0 %v3230
  %3453 = vmatprep.subr.mxu0 0.0
  %3454 = vmatpush1.msra.mxu0 %v3231
  %3455 = vmatprep.subr.mxu0 0.0
  %3456 = vmatpush1.msra.mxu0 %v3232
  %3457 = vmatprep.subr.mxu0 0.0
  %3458 = vmatpush1.msra.mxu0 %v3233
  %3459 = vmatprep.subr.mxu0 0.0
  %3460 = vmatpush1.msra.mxu0 %v3234
  %3461 = vmatprep.subr.mxu0 0.0
  %3462 = vmatpush1.msra.mxu0 0.0
  %3463 = vmatprep.subr.mxu0 0.0
  %3464 = vmatpush1.msra.mxu0 0.0
  %3465 = vmatprep.subr.mxu0 0.0
  %3466 = vmatpush1.msra.mxu0 0.0
  %3467 = vmatprep.subr.mxu0 0.0
  %3468 = vmatpush1.msra.mxu0 0.0
  %3469 = vmatprep.subr.mxu0 0.0
  %3470 = vmatpush1.msra.mxu0 0.0
  %3471 = vmatprep.subr.mxu0 0.0
  %3472 = vmatpush1.msra.mxu0 0.0
  %3473 = vmatprep.subr.mxu0 0.0
  %3474 = vmatpush1.msra.mxu0 0.0
  %3475 = vmatprep.subr.mxu0 0.0
  %3476 = vmatpush1.msra.mxu0 0.0
  %3477 = vmatprep.subr.mxu0 0.0
  %3478 = vmatpush1.msra.mxu0 0.0
  %3479 = vmatprep.subr.mxu0 0.0
  %3480 = vmatpush1.msra.mxu0 0.0
  %3481 = vmatprep.subr.mxu0 0.0
  %3482 = vmatpush1.msra.mxu0 0.0
  %3483 = vmatprep.subr.mxu0 0.0
  %3484 = vmatpush1.msra.mxu0 0.0
  %3485 = vmatprep.subr.mxu0 0.0
  %3486 = vmatpush1.msra.mxu0 0.0
  %3487 = vmatprep.subr.mxu0 0.0
  %3488 = vmatpush1.msra.mxu0 0.0
  %3489 = vmatprep.subr.mxu0 0.0
  %3490 = vmatpush1.msra.mxu0 0.0
  %3491 = vmatprep.subr.mxu0 0.0
  %3492 = vmatpush1.msra.mxu0 0.0
  %3493 = vmatprep.subr.mxu0 0.0
  %3494 = vmatpush1.msra.mxu0 0.0
  %3495 = vmatprep.subr.mxu0 0.0
  %3496 = vmatpush1.msra.mxu0 0.0
  %3497 = vmatprep.subr.mxu0 0.0
  %3498 = vmatpush1.msra.mxu0 0.0
  %3499 = vmatprep.subr.mxu0 0.0
  %3500 = vmatpush1.msra.mxu0 0.0
  %3501 = vmatprep.subr.mxu0 0.0
  %3502 = vmatpush1.msra.mxu0 0.0
  %3503 = vmatprep.subr.mxu0 0.0
  %3504 = vmatpush1.msra.mxu0 0.0
  %3505 = vmatprep.subr.mxu0 0.0
  %3506 = vmatpush1.msra.mxu0 0.0
  %3507 = vmatprep.subr.mxu0 0.0
  %3508 = vmatpush1.msra.mxu0 0.0
  %3509 = vmatprep.mubr.f32.mxu0 0.0
  %3510 = vmatmul.mubr.f32.gmra.mrb[0].mxu0 %v2289
  %v3511 = vpop.f32.mrb[0].mxu0
  %v3512 = vadd.f32 %v3407, %v3511
  %v3513 = vpop.f32.mrb[0].mxu0
  %3514 = vmatprep.mubr.f32.mxu0 0.0
  %3515 = vmatmul.mubr.f32.gmra.mrb[0].mxu0 %v2292
  %v3516 = vpop.f32.mrb[0].mxu0
  %v3517 = vadd.f32 %v3412, %v3516
  %v3518 = vpop.f32.mrb[0].mxu0
  %3519 = vmatprep.mubr.f32.mxu0 0.0
  %3520 = vmatmul.mubr.f32.gmra.mrb[0].mxu0 %v2295
  %v3521 = vpop.f32.mrb[0].mxu0
  %v3522 = vadd.f32 %v3417, %v3521
  %v3523 = vpop.f32.mrb[0].mxu0
  %3524 = vmatprep.mubr.f32.mxu0 0.0
  %3525 = vmatmul.mubr.f32.gmra.mrb[0].mxu0 %v2298
  %v3526 = vpop.f32.mrb[0].mxu0
  %v3527 = vadd.f32 %v3422, %v3526
  %v3528 = vpop.f32.mrb[0].mxu0
  %3529 = vmatprep.mubr.f32.mxu0 0.0
  %3530 = vmatmul.mubr.f32.gmra.mrb[0].mxu0 %v2301
  %v3531 = vpop.f32.mrb[0].mxu0
  %v3532 = vadd.f32 %v3427, %v3531
  %v3533 = vpop.f32.mrb[0].mxu0
  %3534 = vmatprep.mubr.f32.mxu0 0.0
  %3535 = vmatmul.mubr.f32.gmra.mrb[0].mxu0 %v2304
  %v3536 = vpop.f32.mrb[0].mxu0
  %v3537 = vadd.f32 %v3432, %v3536
  %v3538 = vpop.f32.mrb[0].mxu0
  %3539 = vmatprep.mubr.f32.mxu0 0.0
  %3540 = vmatmul.mubr.f32.gmra.mrb[0].mxu0 %v2307
  %v3541 = vpop.f32.mrb[0].mxu0
  %v3542 = vadd.f32 %v3437, %v3541
  %v3543 = vpop.f32.mrb[0].mxu0
  %3544 = vmatprep.mubr.f32.mxu0 0.0
  %3545 = vmatmul.mubr.f32.gmra.mrb[0].mxu0 %v2310
  %v3546 = vpop.f32.mrb[0].mxu0
  %v3547 = vadd.f32 %v3442, %v3546
  %v3548 = vpop.f32.mrb[0].mxu0
  %3549 = vdwg.mxu0
  %vm3550 = vcmask 441344
  %v3552 = vsel %vm3550, %v3512, 0
  %v3555 = vsel %vm3550, %v3517, 0
  %v3558 = vsel %vm3550, %v3522, 0
  %v3561 = vsel %vm3550, %v3527, 0
  %v3564 = vsel %vm3550, %v3532, 0
  %v3567 = vsel %vm3550, %v3537, 0
  %v3570 = vsel %vm3550, %v3542, 0
  %v3573 = vsel %vm3550, %v3547, 0
  %v3576 = vsel %vm2898, %v2005, 0
  %3578 = vmatprep.subr.mxu0 0.0
  %3579 = vmatpush1.msra.mxu0 %v1999
  %3580 = vmatprep.subr.mxu0 0.0
  %3581 = vmatpush1.msra.mxu0 %v2000
  %3582 = vmatprep.subr.mxu0 0.0
  %3583 = vmatpush1.msra.mxu0 %v2001
  %3584 = vmatprep.subr.mxu0 0.0
  %3585 = vmatpush1.msra.mxu0 %v2002
  %3586 = vmatprep.subr.mxu0 0.0
  %3587 = vmatpush1.msra.mxu0 %v2003
  %3588 = vmatprep.subr.mxu0 0.0
  %3589 = vmatpush1.msra.mxu0 %v2004
  %3590 = vmatprep.subr.mxu0 0.0
  %3591 = vmatpush1.msra.mxu0 %v3576
  %3592 = vmatprep.subr.mxu0 0.0
  %3593 = vmatpush1.msra.mxu0 0.0
  %3594 = vmatprep.subr.mxu0 0.0
  %3595 = vmatpush1.msra.mxu0 0.0
  %3596 = vmatprep.subr.mxu0 0.0
  %3597 = vmatpush1.msra.mxu0 0.0
  %3598 = vmatprep.subr.mxu0 0.0
  %3599 = vmatpush1.msra.mxu0 0.0
  %3600 = vmatprep.subr.mxu0 0.0
  %3601 = vmatpush1.msra.mxu0 0.0
  %3602 = vmatprep.subr.mxu0 0.0
  %3603 = vmatpush1.msra.mxu0 0.0
  %3604 = vmatprep.subr.mxu0 0.0
  %3605 = vmatpush1.msra.mxu0 0.0
  %3606 = vmatprep.subr.mxu0 0.0
  %3607 = vmatpush1.msra.mxu0 0.0
  %3608 = vmatprep.subr.mxu0 0.0
  %3609 = vmatpush1.msra.mxu0 0.0
  %3610 = vmatprep.subr.mxu0 0.0
  %3611 = vmatpush1.msra.mxu0 0.0
  %3612 = vmatprep.subr.mxu0 0.0
  %3613 = vmatpush1.msra.mxu0 0.0
  %3614 = vmatprep.subr.mxu0 0.0
  %3615 = vmatpush1.msra.mxu0 0.0
  %3616 = vmatprep.subr.mxu0 0.0
  %3617 = vmatpush1.msra.mxu0 0.0
  %3618 = vmatprep.subr.mxu0 0.0
  %3619 = vmatpush1.msra.mxu0 0.0
  %3620 = vmatprep.subr.mxu0 0.0
  %3621 = vmatpush1.msra.mxu0 0.0
  %3622 = vmatprep.subr.mxu0 0.0
  %3623 = vmatpush1.msra.mxu0 0.0
  %3624 = vmatprep.subr.mxu0 0.0
  %3625 = vmatpush1.msra.mxu0 0.0
  %3626 = vmatprep.subr.mxu0 0.0
  %3627 = vmatpush1.msra.mxu0 0.0
  %3628 = vmatprep.subr.mxu0 0.0
  %3629 = vmatpush1.msra.mxu0 0.0
  %3630 = vmatprep.subr.mxu0 0.0
  %3631 = vmatpush1.msra.mxu0 0.0
  %3632 = vmatprep.subr.mxu0 0.0
  %3633 = vmatpush1.msra.mxu0 0.0
  %3634 = vmatprep.subr.mxu0 0.0
  %3635 = vmatpush1.msra.mxu0 0.0
  %3636 = vmatprep.subr.mxu0 0.0
  %3637 = vmatpush1.msra.mxu0 0.0
  %3638 = vmatprep.subr.mxu0 0.0
  %3639 = vmatpush1.msra.mxu0 0.0
  %3640 = vmatprep.subr.mxu0 0.0
  %3641 = vmatpush1.msra.mxu0 0.0
  %3642 = vmatprep.mubr.f32.mxu0 0.0
  %3643 = vmatmul.mubr.f32.gmra.mrb[0].mxu0 %v3552
  %v3644 = vpop.f32.mrb[0].mxu0
  %v3645 = vadd.f32 0.0, %v3644
  %v3646 = vpop.f32.mrb[0].mxu0
  %3647 = vmatprep.mubr.f32.mxu0 0.0
  %3648 = vmatmul.mubr.f32.gmra.mrb[0].mxu0 %v3555
  %v3649 = vpop.f32.mrb[0].mxu0
  %v3650 = vadd.f32 0.0, %v3649
  %v3651 = vpop.f32.mrb[0].mxu0
  %3652 = vmatprep.mubr.f32.mxu0 0.0
  %3653 = vmatmul.mubr.f32.gmra.mrb[0].mxu0 %v3558
  %v3654 = vpop.f32.mrb[0].mxu0
  %v3655 = vadd.f32 0.0, %v3654
  %v3656 = vpop.f32.mrb[0].mxu0
  %3657 = vmatprep.mubr.f32.mxu0 0.0
  %3658 = vmatmul.mubr.f32.gmra.mrb[0].mxu0 %v3561
  %v3659 = vpop.f32.mrb[0].mxu0
  %v3660 = vadd.f32 0.0, %v3659
  %v3661 = vpop.f32.mrb[0].mxu0
  %3662 = vmatprep.mubr.f32.mxu0 0.0
  %3663 = vmatmul.mubr.f32.gmra.mrb[0].mxu0 %v3564
  %v3664 = vpop.f32.mrb[0].mxu0
  %v3665 = vadd.f32 0.0, %v3664
  %v3666 = vpop.f32.mrb[0].mxu0
  %3667 = vmatprep.mubr.f32.mxu0 0.0
  %3668 = vmatmul.mubr.f32.gmra.mrb[0].mxu0 %v3567
  %v3669 = vpop.f32.mrb[0].mxu0
  %v3670 = vadd.f32 0.0, %v3669
  %v3671 = vpop.f32.mrb[0].mxu0
  %3672 = vmatprep.mubr.f32.mxu0 0.0
  %3673 = vmatmul.mubr.f32.gmra.mrb[0].mxu0 %v3570
  %v3674 = vpop.f32.mrb[0].mxu0
  %v3675 = vadd.f32 0.0, %v3674
  %v3676 = vpop.f32.mrb[0].mxu0
  %3677 = vmatprep.mubr.f32.mxu0 0.0
  %3678 = vmatmul.mubr.f32.gmra.mrb[0].mxu0 %v3573
  %v3679 = vpop.f32.mrb[0].mxu0
  %v3680 = vadd.f32 0.0, %v3679
  %v3681 = vpop.f32.mrb[0].mxu0
  %3682 = vdwg.mxu0
  %v3683 = vld [vmem:[%s53] sm:$0xff]
  %v3684 = vld [vmem:[%s53 + $0x8] sm:$0xff]
  %v3685 = vld [vmem:[%s55] sm:$0x1]
  %v3687 = vlaneseq
  %v3688 = vshrl.u32 %v3687, 7
  %v3689 = vsub.s32 0, %v3688
  %v3690 = vrot.slane %v3685, %v3689
  %v3693 = vsel %vm1212, %v3645, 0
  %v3696 = vsel %vm1212, %v3650, 0
  %v3699 = vsel %vm1212, %v3655, 0
  %v3702 = vsel %vm1212, %v3660, 0
  %v3705 = vsel %vm1212, %v3665, 0
  %v3708 = vsel %vm1212, %v3670, 0
  %v3711 = vsel %vm1212, %v3675, 0
  %v3714 = vsel %vm1212, %v3680, 0
  %3716 = vmatprep.subr.mxu0 0.0
  %3717 = vmatpush1.msra.mxu0 %v3683
  %3718 = vmatprep.subr.mxu0 0.0
  %3719 = vmatpush1.msra.mxu0 %v3684
  %3720 = vmatprep.subr.mxu0 0.0
  %3721 = vmatpush1.msra.mxu0 0.0
  %3722 = vmatprep.subr.mxu0 0.0
  %3723 = vmatpush1.msra.mxu0 0.0
  %3724 = vmatprep.subr.mxu0 0.0
  %3725 = vmatpush1.msra.mxu0 0.0
  %3726 = vmatprep.subr.mxu0 0.0
  %3727 = vmatpush1.msra.mxu0 0.0
  %3728 = vmatprep.subr.mxu0 0.0
  %3729 = vmatpush1.msra.mxu0 0.0
  %3730 = vmatprep.subr.mxu0 0.0
  %3731 = vmatpush1.msra.mxu0 0.0
  %3732 = vmatprep.subr.mxu0 0.0
  %3733 = vmatpush1.msra.mxu0 0.0
  %3734 = vmatprep.subr.mxu0 0.0
  %3735 = vmatpush1.msra.mxu0 0.0
  %3736 = vmatprep.subr.mxu0 0.0
  %3737 = vmatpush1.msra.mxu0 0.0
  %3738 = vmatprep.subr.mxu0 0.0
  %3739 = vmatpush1.msra.mxu0 0.0
  %3740 = vmatprep.subr.mxu0 0.0
  %3741 = vmatpush1.msra.mxu0 0.0
  %3742 = vmatprep.subr.mxu0 0.0
  %3743 = vmatpush1.msra.mxu0 0.0
  %3744 = vmatprep.subr.mxu0 0.0
  %3745 = vmatpush1.msra.mxu0 0.0
  %3746 = vmatprep.subr.mxu0 0.0
  %3747 = vmatpush1.msra.mxu0 0.0
  %3748 = vmatprep.subr.mxu0 0.0
  %3749 = vmatpush1.msra.mxu0 0.0
  %3750 = vmatprep.subr.mxu0 0.0
  %3751 = vmatpush1.msra.mxu0 0.0
  %3752 = vmatprep.subr.mxu0 0.0
  %3753 = vmatpush1.msra.mxu0 0.0
  %3754 = vmatprep.subr.mxu0 0.0
  %3755 = vmatpush1.msra.mxu0 0.0
  %3756 = vmatprep.subr.mxu0 0.0
  %3757 = vmatpush1.msra.mxu0 0.0
  %3758 = vmatprep.subr.mxu0 0.0
  %3759 = vmatpush1.msra.mxu0 0.0
  %3760 = vmatprep.subr.mxu0 0.0
  %3761 = vmatpush1.msra.mxu0 0.0
  %3762 = vmatprep.subr.mxu0 0.0
  %3763 = vmatpush1.msra.mxu0 0.0
  %3764 = vmatprep.subr.mxu0 0.0
  %3765 = vmatpush1.msra.mxu0 0.0
  %3766 = vmatprep.subr.mxu0 0.0
  %3767 = vmatpush1.msra.mxu0 0.0
  %3768 = vmatprep.subr.mxu0 0.0
  %3769 = vmatpush1.msra.mxu0 0.0
  %3770 = vmatprep.subr.mxu0 0.0
  %3771 = vmatpush1.msra.mxu0 0.0
  %3772 = vmatprep.subr.mxu0 0.0
  %3773 = vmatpush1.msra.mxu0 0.0
  %3774 = vmatprep.subr.mxu0 0.0
  %3775 = vmatpush1.msra.mxu0 0.0
  %3776 = vmatprep.subr.mxu0 0.0
  %3777 = vmatpush1.msra.mxu0 0.0
  %3778 = vmatprep.subr.mxu0 0.0
  %3779 = vmatpush1.msra.mxu0 0.0
  %3780 = vmatprep.mubr.f32.mxu0 0.0
  %3781 = vmatmul.mubr.f32.gmra.mrb[0].mxu0 %v3693
  %v3782 = vpop.f32.mrb[0].mxu0
  %v3783 = vadd.f32 %v3690, %v3782
  %v3784 = vpop.f32.mrb[0].mxu0
  %3785 = vmatprep.mubr.f32.mxu0 0.0
  %3786 = vmatmul.mubr.f32.gmra.mrb[0].mxu0 %v3696
  %v3787 = vpop.f32.mrb[0].mxu0
  %v3788 = vadd.f32 %v3690, %v3787
  %v3789 = vpop.f32.mrb[0].mxu0
  %3790 = vmatprep.mubr.f32.mxu0 0.0
  %3791 = vmatmul.mubr.f32.gmra.mrb[0].mxu0 %v3699
  %v3792 = vpop.f32.mrb[0].mxu0
  %v3793 = vadd.f32 %v3690, %v3792
  %v3794 = vpop.f32.mrb[0].mxu0
  %3795 = vmatprep.mubr.f32.mxu0 0.0
  %3796 = vmatmul.mubr.f32.gmra.mrb[0].mxu0 %v3702
  %v3797 = vpop.f32.mrb[0].mxu0
  %v3798 = vadd.f32 %v3690, %v3797
  %v3799 = vpop.f32.mrb[0].mxu0
  %3800 = vmatprep.mubr.f32.mxu0 0.0
  %3801 = vmatmul.mubr.f32.gmra.mrb[0].mxu0 %v3705
  %v3802 = vpop.f32.mrb[0].mxu0
  %v3803 = vadd.f32 %v3690, %v3802
  %v3804 = vpop.f32.mrb[0].mxu0
  %3805 = vmatprep.mubr.f32.mxu0 0.0
  %3806 = vmatmul.mubr.f32.gmra.mrb[0].mxu0 %v3708
  %v3807 = vpop.f32.mrb[0].mxu0
  %v3808 = vadd.f32 %v3690, %v3807
  %v3809 = vpop.f32.mrb[0].mxu0
  %3810 = vmatprep.mubr.f32.mxu0 0.0
  %3811 = vmatmul.mubr.f32.gmra.mrb[0].mxu0 %v3711
  %v3812 = vpop.f32.mrb[0].mxu0
  %v3813 = vadd.f32 %v3690, %v3812
  %v3814 = vpop.f32.mrb[0].mxu0
  %3815 = vmatprep.mubr.f32.mxu0 0.0
  %3816 = vmatmul.mubr.f32.gmra.mrb[0].mxu0 %v3714
  %v3817 = vpop.f32.mrb[0].mxu0
  %v3818 = vadd.f32 %v3690, %v3817
  %v3819 = vpop.f32.mrb[0].mxu0
  %3820 = vdwg.mxu0
  %v3821 = vadd.f32 %v1195, %v3783
  %v3822 = vadd.f32 %v1196, %v3788
  %v3823 = vadd.f32 %v1197, %v3793
  %v3824 = vadd.f32 %v1198, %v3798
  %v3825 = vadd.f32 %v1199, %v3803
  %v3826 = vadd.f32 %v1200, %v3808
  %v3827 = vadd.f32 %v1201, %v3813
  %v3828 = vadd.f32 %v1202, %v3818
  %v3829 = vld [vmem:[%s65] sm:$0x1]
  %v3830 = vld [vmem:[%s67] sm:$0x1]
  %v3831 = vsel %vm1212, %v3821, 0.0
  %3832 = vadd.xlane.f32.xlu0 %v3831
  %v3833 = vpop.xlane.xlu0 %3832
  %v3834 = vsel %vm1212, %v3822, 0.0
  %3835 = vadd.xlane.f32.xlu0 %v3834
  %v3836 = vpop.xlane.xlu0 %3835
  %v3837 = vsel %vm1212, %v3823, 0.0
  %3838 = vadd.xlane.f32.xlu0 %v3837
  %v3839 = vpop.xlane.xlu0 %3838
  %v3840 = vsel %vm1212, %v3824, 0.0
  %3841 = vadd.xlane.f32.xlu0 %v3840
  %v3842 = vpop.xlane.xlu0 %3841
  %v3843 = vsel %vm1212, %v3825, 0.0
  %3844 = vadd.xlane.f32.xlu0 %v3843
  %v3845 = vpop.xlane.xlu0 %3844
  %v3846 = vsel %vm1212, %v3826, 0.0
  %3847 = vadd.xlane.f32.xlu0 %v3846
  %v3848 = vpop.xlane.xlu0 %3847
  %v3849 = vsel %vm1212, %v3827, 0.0
  %3850 = vadd.xlane.f32.xlu0 %v3849
  %v3851 = vpop.xlane.xlu0 %3850
  %v3852 = vsel %vm1212, %v3828, 0.0
  %3853 = vadd.xlane.f32.xlu0 %v3852
  %v3854 = vpop.xlane.xlu0 %3853
  %v3855 = vmul.f32 %v3833, %v1368
  %v3856 = vmul.f32 %v3836, %v1368
  %v3857 = vmul.f32 %v3839, %v1368
  %v3858 = vmul.f32 %v3842, %v1368
  %v3859 = vmul.f32 %v3845, %v1368
  %v3860 = vmul.f32 %v3848, %v1368
  %v3861 = vmul.f32 %v3851, %v1368
  %v3862 = vmul.f32 %v3854, %v1368
  %v3863 = vsub.f32 %v3821, %v3855
  %v3864 = vsub.f32 %v3822, %v3856
  %v3865 = vsub.f32 %v3823, %v3857
  %v3866 = vsub.f32 %v3824, %v3858
  %v3867 = vsub.f32 %v3825, %v3859
  %v3868 = vsub.f32 %v3826, %v3860
  %v3869 = vsub.f32 %v3827, %v3861
  %v3870 = vsub.f32 %v3828, %v3862
  %v3871 = vmul.f32 %v3863, %v3863
  %v3872 = vmul.f32 %v3864, %v3864
  %v3873 = vmul.f32 %v3865, %v3865
  %v3874 = vmul.f32 %v3866, %v3866
  %v3875 = vmul.f32 %v3867, %v3867
  %v3876 = vmul.f32 %v3868, %v3868
  %v3877 = vmul.f32 %v3869, %v3869
  %v3878 = vmul.f32 %v3870, %v3870
  %v3879 = vsel %vm1212, %v3871, 0.0
  %3880 = vadd.xlane.f32.xlu0 %v3879
  %v3881 = vpop.xlane.xlu0 %3880
  %v3882 = vsel %vm1212, %v3872, 0.0
  %3883 = vadd.xlane.f32.xlu0 %v3882
  %v3884 = vpop.xlane.xlu0 %3883
  %v3885 = vsel %vm1212, %v3873, 0.0
  %3886 = vadd.xlane.f32.xlu0 %v3885
  %v3887 = vpop.xlane.xlu0 %3886
  %v3888 = vsel %vm1212, %v3874, 0.0
  %3889 = vadd.xlane.f32.xlu0 %v3888
  %v3890 = vpop.xlane.xlu0 %3889
  %v3891 = vsel %vm1212, %v3875, 0.0
  %3892 = vadd.xlane.f32.xlu0 %v3891
  %v3893 = vpop.xlane.xlu0 %3892
  %v3894 = vsel %vm1212, %v3876, 0.0
  %3895 = vadd.xlane.f32.xlu0 %v3894
  %v3896 = vpop.xlane.xlu0 %3895
  %v3897 = vsel %vm1212, %v3877, 0.0
  %3898 = vadd.xlane.f32.xlu0 %v3897
  %v3899 = vpop.xlane.xlu0 %3898
  %v3900 = vsel %vm1212, %v3878, 0.0
  %3901 = vadd.xlane.f32.xlu0 %v3900
  %v3902 = vpop.xlane.xlu0 %3901
  %v3903 = vmul.f32 %v3881, %v1368
  %v3904 = vmul.f32 %v3884, %v1368
  %v3905 = vmul.f32 %v3887, %v1368
  %v3906 = vmul.f32 %v3890, %v1368
  %v3907 = vmul.f32 %v3893, %v1368
  %v3908 = vmul.f32 %v3896, %v1368
  %v3909 = vmul.f32 %v3899, %v1368
  %v3910 = vmul.f32 %v3902, %v1368
  %v3911 = vadd.f32 %v3903, 1e-05
  %v3912 = vadd.f32 %v3904, 1e-05
  %v3913 = vadd.f32 %v3905, 1e-05
  %v3914 = vadd.f32 %v3906, 1e-05
  %v3915 = vadd.f32 %v3907, 1e-05
  %v3916 = vadd.f32 %v3908, 1e-05
  %v3917 = vadd.f32 %v3909, 1e-05
  %v3918 = vadd.f32 %v3910, 1e-05
  %v3919 = vrsqrt.pop %v3911
  %v3920 = vrsqrt.pop %v3912
  %v3921 = vrsqrt.pop %v3913
  %v3922 = vrsqrt.pop %v3914
  %v3923 = vrsqrt.pop %v3915
  %v3924 = vrsqrt.pop %v3916
  %v3925 = vrsqrt.pop %v3917
  %v3926 = vrsqrt.pop %v3918
  %v3927 = vmul.f32 %v3863, %v3919
  %v3928 = vmul.f32 %v3864, %v3920
  %v3929 = vmul.f32 %v3865, %v3921
  %v3930 = vmul.f32 %v3866, %v3922
  %v3931 = vmul.f32 %v3867, %v3923
  %v3932 = vmul.f32 %v3868, %v3924
  %v3933 = vmul.f32 %v3869, %v3925
  %v3934 = vmul.f32 %v3870, %v3926
  %v3936 = vlaneseq
  %v3937 = vshrl.u32 %v3936, 7
  %v3938 = vsub.s32 0, %v3937
  %v3939 = vrot.slane %v3829, %v3938
  %v3941 = vmul.f32 %v3927, %v3939
  %v3942 = vmul.f32 %v3928, %v3939
  %v3943 = vmul.f32 %v3929, %v3939
  %v3944 = vmul.f32 %v3930, %v3939
  %v3945 = vmul.f32 %v3931, %v3939
  %v3946 = vmul.f32 %v3932, %v3939
  %v3947 = vmul.f32 %v3933, %v3939
  %v3948 = vmul.f32 %v3934, %v3939
  %v3950 = vlaneseq
  %v3951 = vshrl.u32 %v3950, 7
  %v3952 = vsub.s32 0, %v3951
  %v3953 = vrot.slane %v3830, %v3952
  %v3955 = vadd.f32 %v3941, %v3953
  %v3956 = vadd.f32 %v3942, %v3953
  %v3957 = vadd.f32 %v3943, %v3953
  %v3958 = vadd.f32 %v3944, %v3953
  %v3959 = vadd.f32 %v3945, %v3953
  %v3960 = vadd.f32 %v3946, %v3953
  %v3961 = vadd.f32 %v3947, %v3953
  %v3962 = vadd.f32 %v3948, %v3953
  %v3964 = vsel %vm1212, %v3955, 0
  %v3967 = vsel %vm1212, %v3956, 0
  %v3970 = vsel %vm1212, %v3957, 0
  %v3973 = vsel %vm1212, %v3958, 0
  %v3976 = vsel %vm1212, %v3959, 0
  %v3979 = vsel %vm1212, %v3960, 0
  %v3982 = vsel %vm1212, %v3961, 0
  %v3985 = vsel %vm1212, %v3962, 0
  %3987 = vmatprep.subr.mxu0 %v289
  %3988 = vmatpush1.msra.mxu0 %v288
  %3989 = vmatprep.subr.mxu0 %v291
  %3990 = vmatpush1.msra.mxu0 %v290
  %3991 = vmatprep.subr.mxu0 0.0
  %3992 = vmatpush1.msra.mxu0 0.0
  %3993 = vmatprep.subr.mxu0 0.0
  %3994 = vmatpush1.msra.mxu0 0.0
  %3995 = vmatprep.subr.mxu0 0.0
  %3996 = vmatpush1.msra.mxu0 0.0
  %3997 = vmatprep.subr.mxu0 0.0
  %3998 = vmatpush1.msra.mxu0 0.0
  %3999 = vmatprep.subr.mxu0 0.0
  %4000 = vmatpush1.msra.mxu0 0.0
  %4001 = vmatprep.subr.mxu0 0.0
  %4002 = vmatpush1.msra.mxu0 0.0
  %4003 = vmatprep.subr.mxu0 0.0
  %4004 = vmatpush1.msra.mxu0 0.0
  %4005 = vmatprep.subr.mxu0 0.0
  %4006 = vmatpush1.msra.mxu0 0.0
  %4007 = vmatprep.subr.mxu0 0.0
  %4008 = vmatpush1.msra.mxu0 0.0
  %4009 = vmatprep.subr.mxu0 0.0
  %4010 = vmatpush1.msra.mxu0 0.0
  %4011 = vmatprep.subr.mxu0 0.0
  %4012 = vmatpush1.msra.mxu0 0.0
  %4013 = vmatprep.subr.mxu0 0.0
  %4014 = vmatpush1.msra.mxu0 0.0
  %4015 = vmatprep.subr.mxu0 0.0
  %4016 = vmatpush1.msra.mxu0 0.0
  %4017 = vmatprep.subr.mxu0 0.0
  %4018 = vmatpush1.msra.mxu0 0.0
  %4019 = vmatprep.subr.mxu0 0.0
  %4020 = vmatpush1.msra.mxu0 0.0
  %4021 = vmatprep.subr.mxu0 0.0
  %4022 = vmatpush1.msra.mxu0 0.0
  %4023 = vmatprep.subr.mxu0 0.0
  %4024 = vmatpush1.msra.mxu0 0.0
  %4025 = vmatprep.subr.mxu0 0.0
  %4026 = vmatpush1.msra.mxu0 0.0
  %4027 = vmatprep.subr.mxu0 0.0
  %4028 = vmatpush1.msra.mxu0 0.0
  %4029 = vmatprep.subr.mxu0 0.0
  %4030 = vmatpush1.msra.mxu0 0.0
  %4031 = vmatprep.subr.mxu0 0.0
  %4032 = vmatpush1.msra.mxu0 0.0
  %4033 = vmatprep.subr.mxu0 0.0
  %4034 = vmatpush1.msra.mxu0 0.0
  %4035 = vmatprep.subr.mxu0 0.0
  %4036 = vmatpush1.msra.mxu0 0.0
  %4037 = vmatprep.subr.mxu0 0.0
  %4038 = vmatpush1.msra.mxu0 0.0
  %4039 = vmatprep.subr.mxu0 0.0
  %4040 = vmatpush1.msra.mxu0 0.0
  %4041 = vmatprep.subr.mxu0 0.0
  %4042 = vmatpush1.msra.mxu0 0.0
  %4043 = vmatprep.subr.mxu0 0.0
  %4044 = vmatpush1.msra.mxu0 0.0
  %4045 = vmatprep.subr.mxu0 0.0
  %4046 = vmatpush1.msra.mxu0 0.0
  %4047 = vmatprep.subr.mxu0 0.0
  %4048 = vmatpush1.msra.mxu0 0.0
  %4049 = vmatprep.subr.mxu0 0.0
  %4050 = vmatpush1.msra.mxu0 0.0
  %4051 = vmatprep.mubr.f32.mxu0 0.0
  %4052 = vmatmul.mubr.f32.gmra.mrb[0].mxu0 %v3964
  %v4053 = vpop.f32.mrb[0].mxu0
  %v4054 = vadd.f32 0.0, %v4053
  %v4055 = vpop.f32.mrb[0].mxu0
  %v4056 = vadd.f32 0.0, %v4055
  %4057 = vmatprep.mubr.f32.mxu0 0.0
  %4058 = vmatmul.mubr.f32.gmra.mrb[0].mxu0 %v3967
  %v4059 = vpop.f32.mrb[0].mxu0
  %v4060 = vadd.f32 0.0, %v4059
  %v4061 = vpop.f32.mrb[0].mxu0
  %v4062 = vadd.f32 0.0, %v4061
  %4063 = vmatprep.mubr.f32.mxu0 0.0
  %4064 = vmatmul.mubr.f32.gmra.mrb[0].mxu0 %v3970
  %v4065 = vpop.f32.mrb[0].mxu0
  %v4066 = vadd.f32 0.0, %v4065
  %v4067 = vpop.f32.mrb[0].mxu0
  %v4068 = vadd.f32 0.0, %v4067
  %4069 = vmatprep.mubr.f32.mxu0 0.0
  %4070 = vmatmul.mubr.f32.gmra.mrb[0].mxu0 %v3973
  %v4071 = vpop.f32.mrb[0].mxu0
  %v4072 = vadd.f32 0.0, %v4071
  %v4073 = vpop.f32.mrb[0].mxu0
  %v4074 = vadd.f32 0.0, %v4073
  %4075 = vmatprep.mubr.f32.mxu0 0.0
  %4076 = vmatmul.mubr.f32.gmra.mrb[0].mxu0 %v3976
  %v4077 = vpop.f32.mrb[0].mxu0
  %v4078 = vadd.f32 0.0, %v4077
  %v4079 = vpop.f32.mrb[0].mxu0
  %v4080 = vadd.f32 0.0, %v4079
  %4081 = vmatprep.mubr.f32.mxu0 0.0
  %4082 = vmatmul.mubr.f32.gmra.mrb[0].mxu0 %v3979
  %v4083 = vpop.f32.mrb[0].mxu0
  %v4084 = vadd.f32 0.0, %v4083
  %v4085 = vpop.f32.mrb[0].mxu0
  %v4086 = vadd.f32 0.0, %v4085
  %4087 = vmatprep.mubr.f32.mxu0 0.0
  %4088 = vmatmul.mubr.f32.gmra.mrb[0].mxu0 %v3982
  %v4089 = vpop.f32.mrb[0].mxu0
  %v4090 = vadd.f32 0.0, %v4089
  %v4091 = vpop.f32.mrb[0].mxu0
  %v4092 = vadd.f32 0.0, %v4091
  %4093 = vmatprep.mubr.f32.mxu0 0.0
  %4094 = vmatmul.mubr.f32.gmra.mrb[0].mxu0 %v3985
  %v4095 = vpop.f32.mrb[0].mxu0
  %v4096 = vadd.f32 0.0, %v4095
  %v4097 = vpop.f32.mrb[0].mxu0
  %v4098 = vadd.f32 0.0, %v4097
  %4099 = vdwg.mxu0
  %v4100 = vmul.f32 %v4054, %v730
  %v4101 = vmul.f32 %v4056, %v731
  %v4102 = vmul.f32 %v4060, %v732
  %v4103 = vmul.f32 %v4062, %v733
  %v4104 = vmul.f32 %v4066, %v734
  %v4105 = vmul.f32 %v4068, %v735
  %v4106 = vmul.f32 %v4072, %v736
  %v4107 = vmul.f32 %v4074, %v737
  %v4108 = vmul.f32 %v4078, %v738
  %v4109 = vmul.f32 %v4080, %v739
  %v4110 = vmul.f32 %v4084, %v740
  %v4111 = vmul.f32 %v4086, %v741
  %v4112 = vmul.f32 %v4090, %v742
  %v4113 = vmul.f32 %v4092, %v743
  %v4114 = vmul.f32 %v4096, %v744
  %v4115 = vmul.f32 %v4098, %v745
  %v4116 = vmul.f32 %v4054, %v746
  %v4117 = vmul.f32 %v4056, %v747
  %v4118 = vmul.f32 %v4060, %v748
  %v4119 = vmul.f32 %v4062, %v749
  %v4120 = vmul.f32 %v4066, %v750
  %v4121 = vmul.f32 %v4068, %v751
  %v4122 = vmul.f32 %v4072, %v752
  %v4123 = vmul.f32 %v4074, %v753
  %v4124 = vmul.f32 %v4078, %v754
  %v4125 = vmul.f32 %v4080, %v755
  %v4126 = vmul.f32 %v4084, %v756
  %v4127 = vmul.f32 %v4086, %v757
  %v4128 = vmul.f32 %v4090, %v758
  %v4129 = vmul.f32 %v4092, %v759
  %v4130 = vmul.f32 %v4096, %v760
  %v4131 = vmul.f32 %v4098, %v761
  %v4132 = vmul.f32 %v4054, %v762
  %v4133 = vmul.f32 %v4056, %v763
  %v4134 = vmul.f32 %v4060, %v764
  %v4135 = vmul.f32 %v4062, %v765
  %v4136 = vmul.f32 %v4066, %v766
  %v4137 = vmul.f32 %v4068, %v767
  %v4138 = vmul.f32 %v4072, %v768
  %v4139 = vmul.f32 %v4074, %v769
  %v4140 = vmul.f32 %v4078, %v770
  %v4141 = vmul.f32 %v4080, %v771
  %v4142 = vmul.f32 %v4084, %v772
  %v4143 = vmul.f32 %v4086, %v773
  %v4144 = vmul.f32 %v4090, %v774
  %v4145 = vmul.f32 %v4092, %v775
  %v4146 = vmul.f32 %v4096, %v776
  %v4147 = vmul.f32 %v4098, %v777
  %v4148 = vmul.f32 %v4054, %v778
  %v4149 = vmul.f32 %v4056, %v779
  %v4150 = vmul.f32 %v4060, %v780
  %v4151 = vmul.f32 %v4062, %v781
  %v4152 = vmul.f32 %v4066, %v782
  %v4153 = vmul.f32 %v4068, %v783
  %v4154 = vmul.f32 %v4072, %v784
  %v4155 = vmul.f32 %v4074, %v785
  %v4156 = vmul.f32 %v4078, %v786
  %v4157 = vmul.f32 %v4080, %v787
  %v4158 = vmul.f32 %v4084, %v788
  %v4159 = vmul.f32 %v4086, %v789
  %v4160 = vmul.f32 %v4090, %v790
  %v4161 = vmul.f32 %v4092, %v791
  %v4162 = vmul.f32 %v4096, %v792
  %v4163 = vmul.f32 %v4098, %v793
  %v4164 = vmul.f32 %v4054, %v794
  %v4165 = vmul.f32 %v4056, %v795
  %v4166 = vmul.f32 %v4060, %v796
  %v4167 = vmul.f32 %v4062, %v797
  %v4168 = vmul.f32 %v4066, %v798
  %v4169 = vmul.f32 %v4068, %v799
  %v4170 = vmul.f32 %v4072, %v800
  %v4171 = vmul.f32 %v4074, %v801
  %v4172 = vmul.f32 %v4078, %v802
  %v4173 = vmul.f32 %v4080, %v803
  %v4174 = vmul.f32 %v4084, %v804
  %v4175 = vmul.f32 %v4086, %v805
  %v4176 = vmul.f32 %v4090, %v806
  %v4177 = vmul.f32 %v4092, %v807
  %v4178 = vmul.f32 %v4096, %v808
  %v4179 = vmul.f32 %v4098, %v809
  %v4180 = vmul.f32 %v4054, %v810
  %v4181 = vmul.f32 %v4056, %v811
  %v4182 = vmul.f32 %v4060, %v812
  %v4183 = vmul.f32 %v4062, %v813
  %v4184 = vmul.f32 %v4066, %v814
  %v4185 = vmul.f32 %v4068, %v815
  %v4186 = vmul.f32 %v4072, %v816
  %v4187 = vmul.f32 %v4074, %v817
  %v4188 = vmul.f32 %v4078, %v818
  %v4189 = vmul.f32 %v4080, %v819
  %v4190 = vmul.f32 %v4084, %v820
  %v4191 = vmul.f32 %v4086, %v821
  %v4192 = vmul.f32 %v4090, %v822
  %v4193 = vmul.f32 %v4092, %v823
  %v4194 = vmul.f32 %v4096, %v824
  %v4195 = vmul.f32 %v4098, %v825
  %v4196 = vmul.f32 %v4054, %v826
  %v4197 = vmul.f32 %v4056, %v827
  %v4198 = vmul.f32 %v4060, %v828
  %v4199 = vmul.f32 %v4062, %v829
  %v4200 = vmul.f32 %v4066, %v830
  %v4201 = vmul.f32 %v4068, %v831
  %v4202 = vmul.f32 %v4072, %v832
  %v4203 = vmul.f32 %v4074, %v833
  %v4204 = vmul.f32 %v4078, %v834
  %v4205 = vmul.f32 %v4080, %v835
  %v4206 = vmul.f32 %v4084, %v836
  %v4207 = vmul.f32 %v4086, %v837
  %v4208 = vmul.f32 %v4090, %v838
  %v4209 = vmul.f32 %v4092, %v839
  %v4210 = vmul.f32 %v4096, %v840
  %v4211 = vmul.f32 %v4098, %v841
  %v4212 = vmul.f32 %v4054, %v842
  %v4213 = vmul.f32 %v4056, %v843
  %v4214 = vmul.f32 %v4060, %v844
  %v4215 = vmul.f32 %v4062, %v845
  %v4216 = vmul.f32 %v4066, %v846
  %v4217 = vmul.f32 %v4068, %v847
  %v4218 = vmul.f32 %v4072, %v848
  %v4219 = vmul.f32 %v4074, %v849
  %v4220 = vmul.f32 %v4078, %v850
  %v4221 = vmul.f32 %v4080, %v851
  %v4222 = vmul.f32 %v4084, %v852
  %v4223 = vmul.f32 %v4086, %v853
  %v4224 = vmul.f32 %v4090, %v854
  %v4225 = vmul.f32 %v4092, %v855
  %v4226 = vmul.f32 %v4096, %v856
  %v4227 = vmul.f32 %v4098, %v857
  %v4228 = vmul.f32 %v4054, %v858
  %v4229 = vmul.f32 %v4056, %v859
  %v4230 = vmul.f32 %v4060, %v860
  %v4231 = vmul.f32 %v4062, %v861
  %v4232 = vmul.f32 %v4066, %v862
  %v4233 = vmul.f32 %v4068, %v863
  %v4234 = vmul.f32 %v4072, %v864
  %v4235 = vmul.f32 %v4074, %v865
  %v4236 = vmul.f32 %v4078, %v866
  %v4237 = vmul.f32 %v4080, %v867
  %v4238 = vmul.f32 %v4084, %v868
  %v4239 = vmul.f32 %v4086, %v869
  %v4240 = vmul.f32 %v4090, %v870
  %v4241 = vmul.f32 %v4092, %v871
  %v4242 = vmul.f32 %v4096, %v872
  %v4243 = vmul.f32 %v4098, %v873
  %v4245 = vsel %vm2287, %v242, 0
  %v4248 = vsel %vm2287, %v247, 0
  %v4251 = vsel %vm2287, %v252, 0
  %v4254 = vsel %vm2287, %v257, 0
  %v4257 = vsel %vm2287, %v262, 0
  %v4260 = vsel %vm2287, %v267, 0
  %v4263 = vsel %vm2287, %v272, 0
  %v4266 = vsel %vm2287, %v277, 0
  %4268 = vmatprep.subr.mxu0 %v4101
  %4269 = vmatpush1.msra.mxu0 %v4100
  %4270 = vmatprep.subr.mxu0 %v4103
  %4271 = vmatpush1.msra.mxu0 %v4102
  %4272 = vmatprep.subr.mxu0 %v4105
  %4273 = vmatpush1.msra.mxu0 %v4104
  %4274 = vmatprep.subr.mxu0 %v4107
  %4275 = vmatpush1.msra.mxu0 %v4106
  %4276 = vmatprep.subr.mxu0 %v4109
  %4277 = vmatpush1.msra.mxu0 %v4108
  %4278 = vmatprep.subr.mxu0 %v4111
  %4279 = vmatpush1.msra.mxu0 %v4110
  %4280 = vmatprep.subr.mxu0 %v4113
  %4281 = vmatpush1.msra.mxu0 %v4112
  %4282 = vmatprep.subr.mxu0 %v4115
  %4283 = vmatpush1.msra.mxu0 %v4114
  %4284 = vmatprep.subr.mxu0 %v4117
  %4285 = vmatpush1.msra.mxu0 %v4116
  %4286 = vmatprep.subr.mxu0 %v4119
  %4287 = vmatpush1.msra.mxu0 %v4118
  %4288 = vmatprep.subr.mxu0 %v4121
  %4289 = vmatpush1.msra.mxu0 %v4120
  %4290 = vmatprep.subr.mxu0 %v4123
  %4291 = vmatpush1.msra.mxu0 %v4122
  %4292 = vmatprep.subr.mxu0 %v4125
  %4293 = vmatpush1.msra.mxu0 %v4124
  %4294 = vmatprep.subr.mxu0 %v4127
  %4295 = vmatpush1.msra.mxu0 %v4126
  %4296 = vmatprep.subr.mxu0 %v4129
  %4297 = vmatpush1.msra.mxu0 %v4128
  %4298 = vmatprep.subr.mxu0 %v4131
  %4299 = vmatpush1.msra.mxu0 %v4130
  %4300 = vmatprep.subr.mxu0 %v4133
  %4301 = vmatpush1.msra.mxu0 %v4132
  %4302 = vmatprep.subr.mxu0 %v4135
  %4303 = vmatpush1.msra.mxu0 %v4134
  %4304 = vmatprep.subr.mxu0 %v4137
  %4305 = vmatpush1.msra.mxu0 %v4136
  %4306 = vmatprep.subr.mxu0 %v4139
  %4307 = vmatpush1.msra.mxu0 %v4138
  %4308 = vmatprep.subr.mxu0 %v4141
  %4309 = vmatpush1.msra.mxu0 %v4140
  %4310 = vmatprep.subr.mxu0 %v4143
  %4311 = vmatpush1.msra.mxu0 %v4142
  %4312 = vmatprep.subr.mxu0 %v4145
  %4313 = vmatpush1.msra.mxu0 %v4144
  %4314 = vmatprep.subr.mxu0 %v4147
  %4315 = vmatpush1.msra.mxu0 %v4146
  %4316 = vmatprep.subr.mxu0 %v4149
  %4317 = vmatpush1.msra.mxu0 %v4148
  %4318 = vmatprep.subr.mxu0 %v4151
  %4319 = vmatpush1.msra.mxu0 %v4150
  %4320 = vmatprep.subr.mxu0 %v4153
  %4321 = vmatpush1.msra.mxu0 %v4152
  %4322 = vmatprep.subr.mxu0 %v4155
  %4323 = vmatpush1.msra.mxu0 %v4154
  %4324 = vmatprep.subr.mxu0 %v4157
  %4325 = vmatpush1.msra.mxu0 %v4156
  %4326 = vmatprep.subr.mxu0 %v4159
  %4327 = vmatpush1.msra.mxu0 %v4158
  %4328 = vmatprep.subr.mxu0 %v4161
  %4329 = vmatpush1.msra.mxu0 %v4160
  %4330 = vmatprep.subr.mxu0 %v4163
  %4331 = vmatpush1.msra.mxu0 %v4162
  %4332 = vmatprep.mubr.f32.mxu0 %v239
  %4333 = vmatmul.mubr.f32.gmra.mrb[0].mxu0 %v238
  %v4334 = vpop.f32.mrb[0].mxu0
  %v4335 = vadd.f32 0.0, %v4334
  %v4336 = vpop.f32.mrb[0].mxu0
  %v4337 = vadd.f32 0.0, %v4336
  %4338 = vmatprep.mubr.f32.mxu0 %v244
  %4339 = vmatmul.mubr.f32.gmra.mrb[0].mxu0 %v243
  %v4340 = vpop.f32.mrb[0].mxu0
  %v4341 = vadd.f32 0.0, %v4340
  %v4342 = vpop.f32.mrb[0].mxu0
  %v4343 = vadd.f32 0.0, %v4342
  %4344 = vmatprep.mubr.f32.mxu0 %v249
  %4345 = vmatmul.mubr.f32.gmra.mrb[0].mxu0 %v248
  %v4346 = vpop.f32.mrb[0].mxu0
  %v4347 = vadd.f32 0.0, %v4346
  %v4348 = vpop.f32.mrb[0].mxu0
  %v4349 = vadd.f32 0.0, %v4348
  %4350 = vmatprep.mubr.f32.mxu0 %v254
  %4351 = vmatmul.mubr.f32.gmra.mrb[0].mxu0 %v253
  %v4352 = vpop.f32.mrb[0].mxu0
  %v4353 = vadd.f32 0.0, %v4352
  %v4354 = vpop.f32.mrb[0].mxu0
  %v4355 = vadd.f32 0.0, %v4354
  %4356 = vmatprep.mubr.f32.mxu0 %v259
  %4357 = vmatmul.mubr.f32.gmra.mrb[0].mxu0 %v258
  %v4358 = vpop.f32.mrb[0].mxu0
  %v4359 = vadd.f32 0.0, %v4358
  %v4360 = vpop.f32.mrb[0].mxu0
  %v4361 = vadd.f32 0.0, %v4360
  %4362 = vmatprep.mubr.f32.mxu0 %v264
  %4363 = vmatmul.mubr.f32.gmra.mrb[0].mxu0 %v263
  %v4364 = vpop.f32.mrb[0].mxu0
  %v4365 = vadd.f32 0.0, %v4364
  %v4366 = vpop.f32.mrb[0].mxu0
  %v4367 = vadd.f32 0.0, %v4366
  %4368 = vmatprep.mubr.f32.mxu0 %v269
  %4369 = vmatmul.mubr.f32.gmra.mrb[0].mxu0 %v268
  %v4370 = vpop.f32.mrb[0].mxu0
  %v4371 = vadd.f32 0.0, %v4370
  %v4372 = vpop.f32.mrb[0].mxu0
  %v4373 = vadd.f32 0.0, %v4372
  %4374 = vmatprep.mubr.f32.mxu0 %v274
  %4375 = vmatmul.mubr.f32.gmra.mrb[0].mxu0 %v273
  %v4376 = vpop.f32.mrb[0].mxu0
  %v4377 = vadd.f32 0.0, %v4376
  %v4378 = vpop.f32.mrb[0].mxu0
  %v4379 = vadd.f32 0.0, %v4378
  %4380 = vdwg.mxu0
  %4381 = vmatprep.subr.mxu0 %v4165
  %4382 = vmatpush1.msra.mxu0 %v4164
  %4383 = vmatprep.subr.mxu0 %v4167
  %4384 = vmatpush1.msra.mxu0 %v4166
  %4385 = vmatprep.subr.mxu0 %v4169
  %4386 = vmatpush1.msra.mxu0 %v4168
  %4387 = vmatprep.subr.mxu0 %v4171
  %4388 = vmatpush1.msra.mxu0 %v4170
  %4389 = vmatprep.subr.mxu0 %v4173
  %4390 = vmatpush1.msra.mxu0 %v4172
  %4391 = vmatprep.subr.mxu0 %v4175
  %4392 = vmatpush1.msra.mxu0 %v4174
  %4393 = vmatprep.subr.mxu0 %v4177
  %4394 = vmatpush1.msra.mxu0 %v4176
  %4395 = vmatprep.subr.mxu0 %v4179
  %4396 = vmatpush1.msra.mxu0 %v4178
  %4397 = vmatprep.subr.mxu0 %v4181
  %4398 = vmatpush1.msra.mxu0 %v4180
  %4399 = vmatprep.subr.mxu0 %v4183
  %4400 = vmatpush1.msra.mxu0 %v4182
  %4401 = vmatprep.subr.mxu0 %v4185
  %4402 = vmatpush1.msra.mxu0 %v4184
  %4403 = vmatprep.subr.mxu0 %v4187
  %4404 = vmatpush1.msra.mxu0 %v4186
  %4405 = vmatprep.subr.mxu0 %v4189
  %4406 = vmatpush1.msra.mxu0 %v4188
  %4407 = vmatprep.subr.mxu0 %v4191
  %4408 = vmatpush1.msra.mxu0 %v4190
  %4409 = vmatprep.subr.mxu0 %v4193
  %4410 = vmatpush1.msra.mxu0 %v4192
  %4411 = vmatprep.subr.mxu0 %v4195
  %4412 = vmatpush1.msra.mxu0 %v4194
  %4413 = vmatprep.subr.mxu0 %v4197
  %4414 = vmatpush1.msra.mxu0 %v4196
  %4415 = vmatprep.subr.mxu0 %v4199
  %4416 = vmatpush1.msra.mxu0 %v4198
  %4417 = vmatprep.subr.mxu0 %v4201
  %4418 = vmatpush1.msra.mxu0 %v4200
  %4419 = vmatprep.subr.mxu0 %v4203
  %4420 = vmatpush1.msra.mxu0 %v4202
  %4421 = vmatprep.subr.mxu0 %v4205
  %4422 = vmatpush1.msra.mxu0 %v4204
  %4423 = vmatprep.subr.mxu0 %v4207
  %4424 = vmatpush1.msra.mxu0 %v4206
  %4425 = vmatprep.subr.mxu0 %v4209
  %4426 = vmatpush1.msra.mxu0 %v4208
  %4427 = vmatprep.subr.mxu0 %v4211
  %4428 = vmatpush1.msra.mxu0 %v4210
  %4429 = vmatprep.subr.mxu0 %v4213
  %4430 = vmatpush1.msra.mxu0 %v4212
  %4431 = vmatprep.subr.mxu0 %v4215
  %4432 = vmatpush1.msra.mxu0 %v4214
  %4433 = vmatprep.subr.mxu0 %v4217
  %4434 = vmatpush1.msra.mxu0 %v4216
  %4435 = vmatprep.subr.mxu0 %v4219
  %4436 = vmatpush1.msra.mxu0 %v4218
  %4437 = vmatprep.subr.mxu0 %v4221
  %4438 = vmatpush1.msra.mxu0 %v4220
  %4439 = vmatprep.subr.mxu0 %v4223
  %4440 = vmatpush1.msra.mxu0 %v4222
  %4441 = vmatprep.subr.mxu0 %v4225
  %4442 = vmatpush1.msra.mxu0 %v4224
  %4443 = vmatprep.subr.mxu0 %v4227
  %4444 = vmatpush1.msra.mxu0 %v4226
  %4445 = vmatprep.mubr.f32.mxu0 %v241
  %4446 = vmatmul.mubr.f32.gmra.mrb[0].mxu0 %v240
  %v4447 = vpop.f32.mrb[0].mxu0
  %v4448 = vadd.f32 %v4335, %v4447
  %v4449 = vpop.f32.mrb[0].mxu0
  %v4450 = vadd.f32 %v4337, %v4449
  %4451 = vmatprep.mubr.f32.mxu0 %v246
  %4452 = vmatmul.mubr.f32.gmra.mrb[0].mxu0 %v245
  %v4453 = vpop.f32.mrb[0].mxu0
  %v4454 = vadd.f32 %v4341, %v4453
  %v4455 = vpop.f32.mrb[0].mxu0
  %v4456 = vadd.f32 %v4343, %v4455
  %4457 = vmatprep.mubr.f32.mxu0 %v251
  %4458 = vmatmul.mubr.f32.gmra.mrb[0].mxu0 %v250
  %v4459 = vpop.f32.mrb[0].mxu0
  %v4460 = vadd.f32 %v4347, %v4459
  %v4461 = vpop.f32.mrb[0].mxu0
  %v4462 = vadd.f32 %v4349, %v4461
  %4463 = vmatprep.mubr.f32.mxu0 %v256
  %4464 = vmatmul.mubr.f32.gmra.mrb[0].mxu0 %v255
  %v4465 = vpop.f32.mrb[0].mxu0
  %v4466 = vadd.f32 %v4353, %v4465
  %v4467 = vpop.f32.mrb[0].mxu0
  %v4468 = vadd.f32 %v4355, %v4467
  %4469 = vmatprep.mubr.f32.mxu0 %v261
  %4470 = vmatmul.mubr.f32.gmra.mrb[0].mxu0 %v260
  %v4471 = vpop.f32.mrb[0].mxu0
  %v4472 = vadd.f32 %v4359, %v4471
  %v4473 = vpop.f32.mrb[0].mxu0
  %v4474 = vadd.f32 %v4361, %v4473
  %4475 = vmatprep.mubr.f32.mxu0 %v266
  %4476 = vmatmul.mubr.f32.gmra.mrb[0].mxu0 %v265
  %v4477 = vpop.f32.mrb[0].mxu0
  %v4478 = vadd.f32 %v4365, %v4477
  %v4479 = vpop.f32.mrb[0].mxu0
  %v4480 = vadd.f32 %v4367, %v4479
  %4481 = vmatprep.mubr.f32.mxu0 %v271
  %4482 = vmatmul.mubr.f32.gmra.mrb[0].mxu0 %v270
  %v4483 = vpop.f32.mrb[0].mxu0
  %v4484 = vadd.f32 %v4371, %v4483
  %v4485 = vpop.f32.mrb[0].mxu0
  %v4486 = vadd.f32 %v4373, %v4485
  %4487 = vmatprep.mubr.f32.mxu0 %v276
  %4488 = vmatmul.mubr.f32.gmra.mrb[0].mxu0 %v275
  %v4489 = vpop.f32.mrb[0].mxu0
  %v4490 = vadd.f32 %v4377, %v4489
  %v4491 = vpop.f32.mrb[0].mxu0
  %v4492 = vadd.f32 %v4379, %v4491
  %4493 = vdwg.mxu0
  %4494 = vmatprep.subr.mxu0 %v4229
  %4495 = vmatpush1.msra.mxu0 %v4228
  %4496 = vmatprep.subr.mxu0 %v4231
  %4497 = vmatpush1.msra.mxu0 %v4230
  %4498 = vmatprep.subr.mxu0 %v4233
  %4499 = vmatpush1.msra.mxu0 %v4232
  %4500 = vmatprep.subr.mxu0 %v4235
  %4501 = vmatpush1.msra.mxu0 %v4234
  %4502 = vmatprep.subr.mxu0 %v4237
  %4503 = vmatpush1.msra.mxu0 %v4236
  %4504 = vmatprep.subr.mxu0 %v4239
  %4505 = vmatpush1.msra.mxu0 %v4238
  %4506 = vmatprep.subr.mxu0 %v4241
  %4507 = vmatpush1.msra.mxu0 %v4240
  %4508 = vmatprep.subr.mxu0 %v4243
  %4509 = vmatpush1.msra.mxu0 %v4242
  %4510 = vmatprep.subr.mxu0 0.0
  %4511 = vmatpush1.msra.mxu0 0.0
  %4512 = vmatprep.subr.mxu0 0.0
  %4513 = vmatpush1.msra.mxu0 0.0
  %4514 = vmatprep.subr.mxu0 0.0
  %4515 = vmatpush1.msra.mxu0 0.0
  %4516 = vmatprep.subr.mxu0 0.0
  %4517 = vmatpush1.msra.mxu0 0.0
  %4518 = vmatprep.subr.mxu0 0.0
  %4519 = vmatpush1.msra.mxu0 0.0
  %4520 = vmatprep.subr.mxu0 0.0
  %4521 = vmatpush1.msra.mxu0 0.0
  %4522 = vmatprep.subr.mxu0 0.0
  %4523 = vmatpush1.msra.mxu0 0.0
  %4524 = vmatprep.subr.mxu0 0.0
  %4525 = vmatpush1.msra.mxu0 0.0
  %4526 = vmatprep.subr.mxu0 0.0
  %4527 = vmatpush1.msra.mxu0 0.0
  %4528 = vmatprep.subr.mxu0 0.0
  %4529 = vmatpush1.msra.mxu0 0.0
  %4530 = vmatprep.subr.mxu0 0.0
  %4531 = vmatpush1.msra.mxu0 0.0
  %4532 = vmatprep.subr.mxu0 0.0
  %4533 = vmatpush1.msra.mxu0 0.0
  %4534 = vmatprep.subr.mxu0 0.0
  %4535 = vmatpush1.msra.mxu0 0.0
  %4536 = vmatprep.subr.mxu0 0.0
  %4537 = vmatpush1.msra.mxu0 0.0
  %4538 = vmatprep.subr.mxu0 0.0
  %4539 = vmatpush1.msra.mxu0 0.0
  %4540 = vmatprep.subr.mxu0 0.0
  %4541 = vmatpush1.msra.mxu0 0.0
  %4542 = vmatprep.subr.mxu0 0.0
  %4543 = vmatpush1.msra.mxu0 0.0
  %4544 = vmatprep.subr.mxu0 0.0
  %4545 = vmatpush1.msra.mxu0 0.0
  %4546 = vmatprep.subr.mxu0 0.0
  %4547 = vmatpush1.msra.mxu0 0.0
  %4548 = vmatprep.subr.mxu0 0.0
  %4549 = vmatpush1.msra.mxu0 0.0
  %4550 = vmatprep.subr.mxu0 0.0
  %4551 = vmatpush1.msra.mxu0 0.0
  %4552 = vmatprep.subr.mxu0 0.0
  %4553 = vmatpush1.msra.mxu0 0.0
  %4554 = vmatprep.subr.mxu0 0.0
  %4555 = vmatpush1.msra.mxu0 0.0
  %4556 = vmatprep.subr.mxu0 0.0
  %4557 = vmatpush1.msra.mxu0 0.0
  %4558 = vmatprep.mubr.f32.mxu0 0.0
  %4559 = vmatmul.mubr.f32.gmra.mrb[0].mxu0 %v4245
  %v4560 = vpop.f32.mrb[0].mxu0
  %v4561 = vadd.f32 %v4448, %v4560
  %v4562 = vpop.f32.mrb[0].mxu0
  %v4563 = vadd.f32 %v4450, %v4562
  %4564 = vmatprep.mubr.f32.mxu0 0.0
  %4565 = vmatmul.mubr.f32.gmra.mrb[0].mxu0 %v4248
  %v4566 = vpop.f32.mrb[0].mxu0
  %v4567 = vadd.f32 %v4454, %v4566
  %v4568 = vpop.f32.mrb[0].mxu0
  %v4569 = vadd.f32 %v4456, %v4568
  %4570 = vmatprep.mubr.f32.mxu0 0.0
  %4571 = vmatmul.mubr.f32.gmra.mrb[0].mxu0 %v4251
  %v4572 = vpop.f32.mrb[0].mxu0
  %v4573 = vadd.f32 %v4460, %v4572
  %v4574 = vpop.f32.mrb[0].mxu0
  %v4575 = vadd.f32 %v4462, %v4574
  %4576 = vmatprep.mubr.f32.mxu0 0.0
  %4577 = vmatmul.mubr.f32.gmra.mrb[0].mxu0 %v4254
  %v4578 = vpop.f32.mrb[0].mxu0
  %v4579 = vadd.f32 %v4466, %v4578
  %v4580 = vpop.f32.mrb[0].mxu0
  %v4581 = vadd.f32 %v4468, %v4580
  %4582 = vmatprep.mubr.f32.mxu0 0.0
  %4583 = vmatmul.mubr.f32.gmra.mrb[0].mxu0 %v4257
  %v4584 = vpop.f32.mrb[0].mxu0
  %v4585 = vadd.f32 %v4472, %v4584
  %v4586 = vpop.f32.mrb[0].mxu0
  %v4587 = vadd.f32 %v4474, %v4586
  %4588 = vmatprep.mubr.f32.mxu0 0.0
  %4589 = vmatmul.mubr.f32.gmra.mrb[0].mxu0 %v4260
  %v4590 = vpop.f32.mrb[0].mxu0
  %v4591 = vadd.f32 %v4478, %v4590
  %v4592 = vpop.f32.mrb[0].mxu0
  %v4593 = vadd.f32 %v4480, %v4592
  %4594 = vmatprep.mubr.f32.mxu0 0.0
  %4595 = vmatmul.mubr.f32.gmra.mrb[0].mxu0 %v4263
  %v4596 = vpop.f32.mrb[0].mxu0
  %v4597 = vadd.f32 %v4484, %v4596
  %v4598 = vpop.f32.mrb[0].mxu0
  %v4599 = vadd.f32 %v4486, %v4598
  %4600 = vmatprep.mubr.f32.mxu0 0.0
  %4601 = vmatmul.mubr.f32.gmra.mrb[0].mxu0 %v4266
  %v4602 = vpop.f32.mrb[0].mxu0
  %v4603 = vadd.f32 %v4490, %v4602
  %v4604 = vpop.f32.mrb[0].mxu0
  %v4605 = vadd.f32 %v4492, %v4604
  %4606 = vdwg.mxu0
  %v4607 = vld [vmem:[%s57] sm:$0xff]
  %v4608 = vld [vmem:[%s57 + $0x8] sm:$0xff]
  %v4609 = vld [vmem:[%s57 + $0x10] sm:$0xff]
  %v4610 = vld [vmem:[%s57 + $0x18] sm:$0xff]
  %v4611 = vld [vmem:[%s57 + $0x20] sm:$0xff]
  %v4612 = vld [vmem:[%s57 + $0x28] sm:$0xff]
  %v4613 = vld [vmem:[%s57 + $0x30] sm:$0xff]
  %v4614 = vld [vmem:[%s57 + $0x38] sm:$0xff]
  %v4615 = vld [vmem:[%s57 + $0x40] sm:$0xff]
  %v4616 = vld [vmem:[%s57 + $0x48] sm:$0xff]
  %v4617 = vld [vmem:[%s57 + $0x50] sm:$0xff]
  %v4618 = vld [vmem:[%s57 + $0x58] sm:$0xff]
  %v4619 = vld [vmem:[%s57 + $0x60] sm:$0xff]
  %v4620 = vld [vmem:[%s57 + $0x68] sm:$0xff]
  %v4621 = vld [vmem:[%s57 + $0x70] sm:$0xff]
  %v4622 = vld [vmem:[%s57 + $0x78] sm:$0xff]
  %v4623 = vld [vmem:[%s57 + $0x80] sm:$0xff]
  %v4624 = vld [vmem:[%s57 + $0x88] sm:$0xff]
  %v4625 = vld [vmem:[%s59] sm:$0x1]
  %v4627 = vlaneseq
  %v4628 = vshrl.u32 %v4627, 7
  %v4629 = vsub.s32 0, %v4628
  %v4630 = vrot.slane %v4625, %v4629
  %v4633 = vsel %vm1212, %v4563, 0
  %v4636 = vsel %vm1212, %v4569, 0
  %v4639 = vsel %vm1212, %v4575, 0
  %v4642 = vsel %vm1212, %v4581, 0
  %v4645 = vsel %vm1212, %v4587, 0
  %v4648 = vsel %vm1212, %v4593, 0
  %v4651 = vsel %vm1212, %v4599, 0
  %v4654 = vsel %vm1212, %v4605, 0
  %4656 = vmatprep.subr.mxu0 0.0
  %4657 = vmatpush1.msra.mxu0 %v4607
  %4658 = vmatprep.subr.mxu0 0.0
  %4659 = vmatpush1.msra.mxu0 %v4608
  %4660 = vmatprep.subr.mxu0 0.0
  %4661 = vmatpush1.msra.mxu0 %v4609
  %4662 = vmatprep.subr.mxu0 0.0
  %4663 = vmatpush1.msra.mxu0 %v4610
  %4664 = vmatprep.subr.mxu0 0.0
  %4665 = vmatpush1.msra.mxu0 %v4611
  %4666 = vmatprep.subr.mxu0 0.0
  %4667 = vmatpush1.msra.mxu0 %v4612
  %4668 = vmatprep.subr.mxu0 0.0
  %4669 = vmatpush1.msra.mxu0 %v4613
  %4670 = vmatprep.subr.mxu0 0.0
  %4671 = vmatpush1.msra.mxu0 %v4614
  %4672 = vmatprep.subr.mxu0 0.0
  %4673 = vmatpush1.msra.mxu0 %v4615
  %4674 = vmatprep.subr.mxu0 0.0
  %4675 = vmatpush1.msra.mxu0 %v4616
  %4676 = vmatprep.subr.mxu0 0.0
  %4677 = vmatpush1.msra.mxu0 %v4617
  %4678 = vmatprep.subr.mxu0 0.0
  %4679 = vmatpush1.msra.mxu0 %v4618
  %4680 = vmatprep.subr.mxu0 0.0
  %4681 = vmatpush1.msra.mxu0 %v4619
  %4682 = vmatprep.subr.mxu0 0.0
  %4683 = vmatpush1.msra.mxu0 %v4620
  %4684 = vmatprep.subr.mxu0 0.0
  %4685 = vmatpush1.msra.mxu0 %v4621
  %4686 = vmatprep.subr.mxu0 0.0
  %4687 = vmatpush1.msra.mxu0 %v4622
  %4688 = vmatprep.subr.mxu0 0.0
  %4689 = vmatpush1.msra.mxu0 %v4623
  %4690 = vmatprep.subr.mxu0 0.0
  %4691 = vmatpush1.msra.mxu0 %v4624
  %4692 = vmatprep.subr.mxu0 0.0
  %4693 = vmatpush1.msra.mxu0 0.0
  %4694 = vmatprep.subr.mxu0 0.0
  %4695 = vmatpush1.msra.mxu0 0.0
  %4696 = vmatprep.subr.mxu0 0.0
  %4697 = vmatpush1.msra.mxu0 0.0
  %4698 = vmatprep.subr.mxu0 0.0
  %4699 = vmatpush1.msra.mxu0 0.0
  %4700 = vmatprep.subr.mxu0 0.0
  %4701 = vmatpush1.msra.mxu0 0.0
  %4702 = vmatprep.subr.mxu0 0.0
  %4703 = vmatpush1.msra.mxu0 0.0
  %4704 = vmatprep.subr.mxu0 0.0
  %4705 = vmatpush1.msra.mxu0 0.0
  %4706 = vmatprep.subr.mxu0 0.0
  %4707 = vmatpush1.msra.mxu0 0.0
  %4708 = vmatprep.subr.mxu0 0.0
  %4709 = vmatpush1.msra.mxu0 0.0
  %4710 = vmatprep.subr.mxu0 0.0
  %4711 = vmatpush1.msra.mxu0 0.0
  %4712 = vmatprep.subr.mxu0 0.0
  %4713 = vmatpush1.msra.mxu0 0.0
  %4714 = vmatprep.subr.mxu0 0.0
  %4715 = vmatpush1.msra.mxu0 0.0
  %4716 = vmatprep.subr.mxu0 0.0
  %4717 = vmatpush1.msra.mxu0 0.0
  %4718 = vmatprep.subr.mxu0 0.0
  %4719 = vmatpush1.msra.mxu0 0.0
  %4720 = vmatprep.mubr.f32.mxu0 %v4633
  %4721 = vmatmul.mubr.f32.gmra.mrb[0].mxu0 %v4561
  %v4722 = vpop.f32.mrb[0].mxu0
  %v4723 = vadd.f32 %v4630, %v4722
  %v4724 = vpop.f32.mrb[0].mxu0
  %4725 = vmatprep.mubr.f32.mxu0 %v4636
  %4726 = vmatmul.mubr.f32.gmra.mrb[0].mxu0 %v4567
  %v4727 = vpop.f32.mrb[0].mxu0
  %v4728 = vadd.f32 %v4630, %v4727
  %v4729 = vpop.f32.mrb[0].mxu0
  %4730 = vmatprep.mubr.f32.mxu0 %v4639
  %4731 = vmatmul.mubr.f32.gmra.mrb[0].mxu0 %v4573
  %v4732 = vpop.f32.mrb[0].mxu0
  %v4733 = vadd.f32 %v4630, %v4732
  %v4734 = vpop.f32.mrb[0].mxu0
  %4735 = vmatprep.mubr.f32.mxu0 %v4642
  %4736 = vmatmul.mubr.f32.gmra.mrb[0].mxu0 %v4579
  %v4737 = vpop.f32.mrb[0].mxu0
  %v4738 = vadd.f32 %v4630, %v4737
  %v4739 = vpop.f32.mrb[0].mxu0
  %4740 = vmatprep.mubr.f32.mxu0 %v4645
  %4741 = vmatmul.mubr.f32.gmra.mrb[0].mxu0 %v4585
  %v4742 = vpop.f32.mrb[0].mxu0
  %v4743 = vadd.f32 %v4630, %v4742
  %v4744 = vpop.f32.mrb[0].mxu0
  %4745 = vmatprep.mubr.f32.mxu0 %v4648
  %4746 = vmatmul.mubr.f32.gmra.mrb[0].mxu0 %v4591
  %v4747 = vpop.f32.mrb[0].mxu0
  %v4748 = vadd.f32 %v4630, %v4747
  %v4749 = vpop.f32.mrb[0].mxu0
  %4750 = vmatprep.mubr.f32.mxu0 %v4651
  %4751 = vmatmul.mubr.f32.gmra.mrb[0].mxu0 %v4597
  %v4752 = vpop.f32.mrb[0].mxu0
  %v4753 = vadd.f32 %v4630, %v4752
  %v4754 = vpop.f32.mrb[0].mxu0
  %4755 = vmatprep.mubr.f32.mxu0 %v4654
  %4756 = vmatmul.mubr.f32.gmra.mrb[0].mxu0 %v4603
  %v4757 = vpop.f32.mrb[0].mxu0
  %v4758 = vadd.f32 %v4630, %v4757
  %v4759 = vpop.f32.mrb[0].mxu0
  %4760 = vdwg.mxu0
  %v4761 = vmax.f32 %v4723, 0.0
  %v4762 = vmax.f32 %v4728, 0.0
  %v4763 = vmax.f32 %v4733, 0.0
  %v4764 = vmax.f32 %v4738, 0.0
  %v4765 = vmax.f32 %v4743, 0.0
  %v4766 = vmax.f32 %v4748, 0.0
  %v4767 = vmax.f32 %v4753, 0.0
  %v4768 = vmax.f32 %v4758, 0.0
  %v4770 = vsel %vm1212, %v4761, 0
  %v4773 = vsel %vm1212, %v4762, 0
  %v4776 = vsel %vm1212, %v4763, 0
  %v4779 = vsel %vm1212, %v4764, 0
  %v4782 = vsel %vm1212, %v4765, 0
  %v4785 = vsel %vm1212, %v4766, 0
  %v4788 = vsel %vm1212, %v4767, 0
  %v4791 = vsel %vm1212, %v4768, 0
  %4793 = vmatprep.subr.mxu0 %v295
  %4794 = vmatpush1.msra.mxu0 %v294
  %4795 = vmatprep.subr.mxu0 %v297
  %4796 = vmatpush1.msra.mxu0 %v296
  %4797 = vmatprep.subr.mxu0 0.0
  %4798 = vmatpush1.msra.mxu0 0.0
  %4799 = vmatprep.subr.mxu0 0.0
  %4800 = vmatpush1.msra.mxu0 0.0
  %4801 = vmatprep.subr.mxu0 0.0
  %4802 = vmatpush1.msra.mxu0 0.0
  %4803 = vmatprep.subr.mxu0 0.0
  %4804 = vmatpush1.msra.mxu0 0.0
  %4805 = vmatprep.subr.mxu0 0.0
  %4806 = vmatpush1.msra.mxu0 0.0
  %4807 = vmatprep.subr.mxu0 0.0
  %4808 = vmatpush1.msra.mxu0 0.0
  %4809 = vmatprep.subr.mxu0 0.0
  %4810 = vmatpush1.msra.mxu0 0.0
  %4811 = vmatprep.subr.mxu0 0.0
  %4812 = vmatpush1.msra.mxu0 0.0
  %4813 = vmatprep.subr.mxu0 0.0
  %4814 = vmatpush1.msra.mxu0 0.0
  %4815 = vmatprep.subr.mxu0 0.0
  %4816 = vmatpush1.msra.mxu0 0.0
  %4817 = vmatprep.subr.mxu0 0.0
  %4818 = vmatpush1.msra.mxu0 0.0
  %4819 = vmatprep.subr.mxu0 0.0
  %4820 = vmatpush1.msra.mxu0 0.0
  %4821 = vmatprep.subr.mxu0 0.0
  %4822 = vmatpush1.msra.mxu0 0.0
  %4823 = vmatprep.subr.mxu0 0.0
  %4824 = vmatpush1.msra.mxu0 0.0
  %4825 = vmatprep.subr.mxu0 0.0
  %4826 = vmatpush1.msra.mxu0 0.0
  %4827 = vmatprep.subr.mxu0 0.0
  %4828 = vmatpush1.msra.mxu0 0.0
  %4829 = vmatprep.subr.mxu0 0.0
  %4830 = vmatpush1.msra.mxu0 0.0
  %4831 = vmatprep.subr.mxu0 0.0
  %4832 = vmatpush1.msra.mxu0 0.0
  %4833 = vmatprep.subr.mxu0 0.0
  %4834 = vmatpush1.msra.mxu0 0.0
  %4835 = vmatprep.subr.mxu0 0.0
  %4836 = vmatpush1.msra.mxu0 0.0
  %4837 = vmatprep.subr.mxu0 0.0
  %4838 = vmatpush1.msra.mxu0 0.0
  %4839 = vmatprep.subr.mxu0 0.0
  %4840 = vmatpush1.msra.mxu0 0.0
  %4841 = vmatprep.subr.mxu0 0.0
  %4842 = vmatpush1.msra.mxu0 0.0
  %4843 = vmatprep.subr.mxu0 0.0
  %4844 = vmatpush1.msra.mxu0 0.0
  %4845 = vmatprep.subr.mxu0 0.0
  %4846 = vmatpush1.msra.mxu0 0.0
  %4847 = vmatprep.subr.mxu0 0.0
  %4848 = vmatpush1.msra.mxu0 0.0
  %4849 = vmatprep.subr.mxu0 0.0
  %4850 = vmatpush1.msra.mxu0 0.0
  %4851 = vmatprep.subr.mxu0 0.0
  %4852 = vmatpush1.msra.mxu0 0.0
  %4853 = vmatprep.subr.mxu0 0.0
  %4854 = vmatpush1.msra.mxu0 0.0
  %4855 = vmatprep.subr.mxu0 0.0
  %4856 = vmatpush1.msra.mxu0 0.0
  %4857 = vmatprep.mubr.f32.mxu0 0.0
  %4858 = vmatmul.mubr.f32.gmra.mrb[0].mxu0 %v4770
  %v4859 = vpop.f32.mrb[0].mxu0
  %v4860 = vadd.f32 0.0, %v4859
  %v4861 = vpop.f32.mrb[0].mxu0
  %v4862 = vadd.f32 0.0, %v4861
  %4863 = vmatprep.mubr.f32.mxu0 0.0
  %4864 = vmatmul.mubr.f32.gmra.mrb[0].mxu0 %v4773
  %v4865 = vpop.f32.mrb[0].mxu0
  %v4866 = vadd.f32 0.0, %v4865
  %v4867 = vpop.f32.mrb[0].mxu0
  %v4868 = vadd.f32 0.0, %v4867
  %4869 = vmatprep.mubr.f32.mxu0 0.0
  %4870 = vmatmul.mubr.f32.gmra.mrb[0].mxu0 %v4776
  %v4871 = vpop.f32.mrb[0].mxu0
  %v4872 = vadd.f32 0.0, %v4871
  %v4873 = vpop.f32.mrb[0].mxu0
  %v4874 = vadd.f32 0.0, %v4873
  %4875 = vmatprep.mubr.f32.mxu0 0.0
  %4876 = vmatmul.mubr.f32.gmra.mrb[0].mxu0 %v4779
  %v4877 = vpop.f32.mrb[0].mxu0
  %v4878 = vadd.f32 0.0, %v4877
  %v4879 = vpop.f32.mrb[0].mxu0
  %v4880 = vadd.f32 0.0, %v4879
  %4881 = vmatprep.mubr.f32.mxu0 0.0
  %4882 = vmatmul.mubr.f32.gmra.mrb[0].mxu0 %v4782
  %v4883 = vpop.f32.mrb[0].mxu0
  %v4884 = vadd.f32 0.0, %v4883
  %v4885 = vpop.f32.mrb[0].mxu0
  %v4886 = vadd.f32 0.0, %v4885
  %4887 = vmatprep.mubr.f32.mxu0 0.0
  %4888 = vmatmul.mubr.f32.gmra.mrb[0].mxu0 %v4785
  %v4889 = vpop.f32.mrb[0].mxu0
  %v4890 = vadd.f32 0.0, %v4889
  %v4891 = vpop.f32.mrb[0].mxu0
  %v4892 = vadd.f32 0.0, %v4891
  %4893 = vmatprep.mubr.f32.mxu0 0.0
  %4894 = vmatmul.mubr.f32.gmra.mrb[0].mxu0 %v4788
  %v4895 = vpop.f32.mrb[0].mxu0
  %v4896 = vadd.f32 0.0, %v4895
  %v4897 = vpop.f32.mrb[0].mxu0
  %v4898 = vadd.f32 0.0, %v4897
  %4899 = vmatprep.mubr.f32.mxu0 0.0
  %4900 = vmatmul.mubr.f32.gmra.mrb[0].mxu0 %v4791
  %v4901 = vpop.f32.mrb[0].mxu0
  %v4902 = vadd.f32 0.0, %v4901
  %v4903 = vpop.f32.mrb[0].mxu0
  %v4904 = vadd.f32 0.0, %v4903
  %4905 = vdwg.mxu0
  %v4906 = vmul.f32 %v4860, %v946
  %v4907 = vmul.f32 %v4862, %v947
  %v4908 = vmul.f32 %v4866, %v948
  %v4909 = vmul.f32 %v4868, %v949
  %v4910 = vmul.f32 %v4872, %v950
  %v4911 = vmul.f32 %v4874, %v951
  %v4912 = vmul.f32 %v4878, %v952
  %v4913 = vmul.f32 %v4880, %v953
  %v4914 = vmul.f32 %v4884, %v954
  %v4915 = vmul.f32 %v4886, %v955
  %v4916 = vmul.f32 %v4890, %v956
  %v4917 = vmul.f32 %v4892, %v957
  %v4918 = vmul.f32 %v4896, %v958
  %v4919 = vmul.f32 %v4898, %v959
  %v4920 = vmul.f32 %v4902, %v960
  %v4921 = vmul.f32 %v4904, %v961
  %v4922 = vmul.f32 %v4860, %v962
  %v4923 = vmul.f32 %v4862, %v963
  %v4924 = vmul.f32 %v4866, %v964
  %v4925 = vmul.f32 %v4868, %v965
  %v4926 = vmul.f32 %v4872, %v966
  %v4927 = vmul.f32 %v4874, %v967
  %v4928 = vmul.f32 %v4878, %v968
  %v4929 = vmul.f32 %v4880, %v969
  %v4930 = vmul.f32 %v4884, %v970
  %v4931 = vmul.f32 %v4886, %v971
  %v4932 = vmul.f32 %v4890, %v972
  %v4933 = vmul.f32 %v4892, %v973
  %v4934 = vmul.f32 %v4896, %v974
  %v4935 = vmul.f32 %v4898, %v975
  %v4936 = vmul.f32 %v4902, %v976
  %v4937 = vmul.f32 %v4904, %v977
  %v4938 = vmul.f32 %v4860, %v978
  %v4939 = vmul.f32 %v4862, %v979
  %v4940 = vmul.f32 %v4866, %v980
  %v4941 = vmul.f32 %v4868, %v981
  %v4942 = vmul.f32 %v4872, %v982
  %v4943 = vmul.f32 %v4874, %v983
  %v4944 = vmul.f32 %v4878, %v984
  %v4945 = vmul.f32 %v4880, %v985
  %v4946 = vmul.f32 %v4884, %v986
  %v4947 = vmul.f32 %v4886, %v987
  %v4948 = vmul.f32 %v4890, %v988
  %v4949 = vmul.f32 %v4892, %v989
  %v4950 = vmul.f32 %v4896, %v990
  %v4951 = vmul.f32 %v4898, %v991
  %v4952 = vmul.f32 %v4902, %v992
  %v4953 = vmul.f32 %v4904, %v993
  %v4954 = vmul.f32 %v4860, %v994
  %v4955 = vmul.f32 %v4862, %v995
  %v4956 = vmul.f32 %v4866, %v996
  %v4957 = vmul.f32 %v4868, %v997
  %v4958 = vmul.f32 %v4872, %v998
  %v4959 = vmul.f32 %v4874, %v999
  %v4960 = vmul.f32 %v4878, %v1000
  %v4961 = vmul.f32 %v4880, %v1001
  %v4962 = vmul.f32 %v4884, %v1002
  %v4963 = vmul.f32 %v4886, %v1003
  %v4964 = vmul.f32 %v4890, %v1004
  %v4965 = vmul.f32 %v4892, %v1005
  %v4966 = vmul.f32 %v4896, %v1006
  %v4967 = vmul.f32 %v4898, %v1007
  %v4968 = vmul.f32 %v4902, %v1008
  %v4969 = vmul.f32 %v4904, %v1009
  %v4970 = vmul.f32 %v4860, %v1010
  %v4971 = vmul.f32 %v4862, %v1011
  %v4972 = vmul.f32 %v4866, %v1012
  %v4973 = vmul.f32 %v4868, %v1013
  %v4974 = vmul.f32 %v4872, %v1014
  %v4975 = vmul.f32 %v4874, %v1015
  %v4976 = vmul.f32 %v4878, %v1016
  %v4977 = vmul.f32 %v4880, %v1017
  %v4978 = vmul.f32 %v4884, %v1018
  %v4979 = vmul.f32 %v4886, %v1019
  %v4980 = vmul.f32 %v4890, %v1020
  %v4981 = vmul.f32 %v4892, %v1021
  %v4982 = vmul.f32 %v4896, %v1022
  %v4983 = vmul.f32 %v4898, %v1023
  %v4984 = vmul.f32 %v4902, %v1024
  %v4985 = vmul.f32 %v4904, %v1025
  %v4986 = vmul.f32 %v4860, %v1026
  %v4987 = vmul.f32 %v4862, %v1027
  %v4988 = vmul.f32 %v4866, %v1028
  %v4989 = vmul.f32 %v4868, %v1029
  %v4990 = vmul.f32 %v4872, %v1030
  %v4991 = vmul.f32 %v4874, %v1031
  %v4992 = vmul.f32 %v4878, %v1032
  %v4993 = vmul.f32 %v4880, %v1033
  %v4994 = vmul.f32 %v4884, %v1034
  %v4995 = vmul.f32 %v4886, %v1035
  %v4996 = vmul.f32 %v4890, %v1036
  %v4997 = vmul.f32 %v4892, %v1037
  %v4998 = vmul.f32 %v4896, %v1038
  %v4999 = vmul.f32 %v4898, %v1039
  %v5000 = vmul.f32 %v4902, %v1040
  %v5001 = vmul.f32 %v4904, %v1041
  %v5002 = vmul.f32 %v4860, %v1042
  %v5003 = vmul.f32 %v4862, %v1043
  %v5004 = vmul.f32 %v4866, %v1044
  %v5005 = vmul.f32 %v4868, %v1045
  %v5006 = vmul.f32 %v4872, %v1046
  %v5007 = vmul.f32 %v4874, %v1047
  %v5008 = vmul.f32 %v4878, %v1048
  %v5009 = vmul.f32 %v4880, %v1049
  %v5010 = vmul.f32 %v4884, %v1050
  %v5011 = vmul.f32 %v4886, %v1051
  %v5012 = vmul.f32 %v4890, %v1052
  %v5013 = vmul.f32 %v4892, %v1053
  %v5014 = vmul.f32 %v4896, %v1054
  %v5015 = vmul.f32 %v4898, %v1055
  %v5016 = vmul.f32 %v4902, %v1056
  %v5017 = vmul.f32 %v4904, %v1057
  %v5018 = vmul.f32 %v4860, %v1058
  %v5019 = vmul.f32 %v4862, %v1059
  %v5020 = vmul.f32 %v4866, %v1060
  %v5021 = vmul.f32 %v4868, %v1061
  %v5022 = vmul.f32 %v4872, %v1062
  %v5023 = vmul.f32 %v4874, %v1063
  %v5024 = vmul.f32 %v4878, %v1064
  %v5025 = vmul.f32 %v4880, %v1065
  %v5026 = vmul.f32 %v4884, %v1066
  %v5027 = vmul.f32 %v4886, %v1067
  %v5028 = vmul.f32 %v4890, %v1068
  %v5029 = vmul.f32 %v4892, %v1069
  %v5030 = vmul.f32 %v4896, %v1070
  %v5031 = vmul.f32 %v4898, %v1071
  %v5032 = vmul.f32 %v4902, %v1072
  %v5033 = vmul.f32 %v4904, %v1073
  %v5034 = vmul.f32 %v4860, %v1074
  %v5035 = vmul.f32 %v4862, %v1075
  %v5036 = vmul.f32 %v4866, %v1076
  %v5037 = vmul.f32 %v4868, %v1077
  %v5038 = vmul.f32 %v4872, %v1078
  %v5039 = vmul.f32 %v4874, %v1079
  %v5040 = vmul.f32 %v4878, %v1080
  %v5041 = vmul.f32 %v4880, %v1081
  %v5042 = vmul.f32 %v4884, %v1082
  %v5043 = vmul.f32 %v4886, %v1083
  %v5044 = vmul.f32 %v4890, %v1084
  %v5045 = vmul.f32 %v4892, %v1085
  %v5046 = vmul.f32 %v4896, %v1086
  %v5047 = vmul.f32 %v4898, %v1087
  %v5048 = vmul.f32 %v4902, %v1088
  %v5049 = vmul.f32 %v4904, %v1089
  %5050 = vmatprep.subr.mxu0 %v4907
  %5051 = vmatpush1.msra.mxu0 %v4906
  %5052 = vmatprep.subr.mxu0 %v4909
  %5053 = vmatpush1.msra.mxu0 %v4908
  %5054 = vmatprep.subr.mxu0 %v4911
  %5055 = vmatpush1.msra.mxu0 %v4910
  %5056 = vmatprep.subr.mxu0 %v4913
  %5057 = vmatpush1.msra.mxu0 %v4912
  %5058 = vmatprep.subr.mxu0 %v4915
  %5059 = vmatpush1.msra.mxu0 %v4914
  %5060 = vmatprep.subr.mxu0 %v4917
  %5061 = vmatpush1.msra.mxu0 %v4916
  %5062 = vmatprep.subr.mxu0 %v4919
  %5063 = vmatpush1.msra.mxu0 %v4918
  %5064 = vmatprep.subr.mxu0 %v4921
  %5065 = vmatpush1.msra.mxu0 %v4920
  %5066 = vmatprep.subr.mxu0 %v4923
  %5067 = vmatpush1.msra.mxu0 %v4922
  %5068 = vmatprep.subr.mxu0 %v4925
  %5069 = vmatpush1.msra.mxu0 %v4924
  %5070 = vmatprep.subr.mxu0 %v4927
  %5071 = vmatpush1.msra.mxu0 %v4926
  %5072 = vmatprep.subr.mxu0 %v4929
  %5073 = vmatpush1.msra.mxu0 %v4928
  %5074 = vmatprep.subr.mxu0 %v4931
  %5075 = vmatpush1.msra.mxu0 %v4930
  %5076 = vmatprep.subr.mxu0 %v4933
  %5077 = vmatpush1.msra.mxu0 %v4932
  %5078 = vmatprep.subr.mxu0 %v4935
  %5079 = vmatpush1.msra.mxu0 %v4934
  %5080 = vmatprep.subr.mxu0 %v4937
  %5081 = vmatpush1.msra.mxu0 %v4936
  %5082 = vmatprep.subr.mxu0 %v4939
  %5083 = vmatpush1.msra.mxu0 %v4938
  %5084 = vmatprep.subr.mxu0 %v4941
  %5085 = vmatpush1.msra.mxu0 %v4940
  %5086 = vmatprep.subr.mxu0 %v4943
  %5087 = vmatpush1.msra.mxu0 %v4942
  %5088 = vmatprep.subr.mxu0 %v4945
  %5089 = vmatpush1.msra.mxu0 %v4944
  %5090 = vmatprep.subr.mxu0 %v4947
  %5091 = vmatpush1.msra.mxu0 %v4946
  %5092 = vmatprep.subr.mxu0 %v4949
  %5093 = vmatpush1.msra.mxu0 %v4948
  %5094 = vmatprep.subr.mxu0 %v4951
  %5095 = vmatpush1.msra.mxu0 %v4950
  %5096 = vmatprep.subr.mxu0 %v4953
  %5097 = vmatpush1.msra.mxu0 %v4952
  %5098 = vmatprep.subr.mxu0 %v4955
  %5099 = vmatpush1.msra.mxu0 %v4954
  %5100 = vmatprep.subr.mxu0 %v4957
  %5101 = vmatpush1.msra.mxu0 %v4956
  %5102 = vmatprep.subr.mxu0 %v4959
  %5103 = vmatpush1.msra.mxu0 %v4958
  %5104 = vmatprep.subr.mxu0 %v4961
  %5105 = vmatpush1.msra.mxu0 %v4960
  %5106 = vmatprep.subr.mxu0 %v4963
  %5107 = vmatpush1.msra.mxu0 %v4962
  %5108 = vmatprep.subr.mxu0 %v4965
  %5109 = vmatpush1.msra.mxu0 %v4964
  %5110 = vmatprep.subr.mxu0 %v4967
  %5111 = vmatpush1.msra.mxu0 %v4966
  %5112 = vmatprep.subr.mxu0 %v4969
  %5113 = vmatpush1.msra.mxu0 %v4968
  %5114 = vmatprep.mubr.f32.mxu0 %v239
  %5115 = vmatmul.mubr.f32.gmra.mrb[0].mxu0 %v238
  %v5116 = vpop.f32.mrb[0].mxu0
  %v5117 = vadd.f32 0.0, %v5116
  %v5118 = vpop.f32.mrb[0].mxu0
  %v5119 = vadd.f32 0.0, %v5118
  %5120 = vmatprep.mubr.f32.mxu0 %v244
  %5121 = vmatmul.mubr.f32.gmra.mrb[0].mxu0 %v243
  %v5122 = vpop.f32.mrb[0].mxu0
  %v5123 = vadd.f32 0.0, %v5122
  %v5124 = vpop.f32.mrb[0].mxu0
  %v5125 = vadd.f32 0.0, %v5124
  %5126 = vmatprep.mubr.f32.mxu0 %v249
  %5127 = vmatmul.mubr.f32.gmra.mrb[0].mxu0 %v248
  %v5128 = vpop.f32.mrb[0].mxu0
  %v5129 = vadd.f32 0.0, %v5128
  %v5130 = vpop.f32.mrb[0].mxu0
  %v5131 = vadd.f32 0.0, %v5130
  %5132 = vmatprep.mubr.f32.mxu0 %v254
  %5133 = vmatmul.mubr.f32.gmra.mrb[0].mxu0 %v253
  %v5134 = vpop.f32.mrb[0].mxu0
  %v5135 = vadd.f32 0.0, %v5134
  %v5136 = vpop.f32.mrb[0].mxu0
  %v5137 = vadd.f32 0.0, %v5136
  %5138 = vmatprep.mubr.f32.mxu0 %v259
  %5139 = vmatmul.mubr.f32.gmra.mrb[0].mxu0 %v258
  %v5140 = vpop.f32.mrb[0].mxu0
  %v5141 = vadd.f32 0.0, %v5140
  %v5142 = vpop.f32.mrb[0].mxu0
  %v5143 = vadd.f32 0.0, %v5142
  %5144 = vmatprep.mubr.f32.mxu0 %v264
  %5145 = vmatmul.mubr.f32.gmra.mrb[0].mxu0 %v263
  %v5146 = vpop.f32.mrb[0].mxu0
  %v5147 = vadd.f32 0.0, %v5146
  %v5148 = vpop.f32.mrb[0].mxu0
  %v5149 = vadd.f32 0.0, %v5148
  %5150 = vmatprep.mubr.f32.mxu0 %v269
  %5151 = vmatmul.mubr.f32.gmra.mrb[0].mxu0 %v268
  %v5152 = vpop.f32.mrb[0].mxu0
  %v5153 = vadd.f32 0.0, %v5152
  %v5154 = vpop.f32.mrb[0].mxu0
  %v5155 = vadd.f32 0.0, %v5154
  %5156 = vmatprep.mubr.f32.mxu0 %v274
  %5157 = vmatmul.mubr.f32.gmra.mrb[0].mxu0 %v273
  %v5158 = vpop.f32.mrb[0].mxu0
  %v5159 = vadd.f32 0.0, %v5158
  %v5160 = vpop.f32.mrb[0].mxu0
  %v5161 = vadd.f32 0.0, %v5160
  %5162 = vdwg.mxu0
  %5163 = vmatprep.subr.mxu0 %v4971
  %5164 = vmatpush1.msra.mxu0 %v4970
  %5165 = vmatprep.subr.mxu0 %v4973
  %5166 = vmatpush1.msra.mxu0 %v4972
  %5167 = vmatprep.subr.mxu0 %v4975
  %5168 = vmatpush1.msra.mxu0 %v4974
  %5169 = vmatprep.subr.mxu0 %v4977
  %5170 = vmatpush1.msra.mxu0 %v4976
  %5171 = vmatprep.subr.mxu0 %v4979
  %5172 = vmatpush1.msra.mxu0 %v4978
  %5173 = vmatprep.subr.mxu0 %v4981
  %5174 = vmatpush1.msra.mxu0 %v4980
  %5175 = vmatprep.subr.mxu0 %v4983
  %5176 = vmatpush1.msra.mxu0 %v4982
  %5177 = vmatprep.subr.mxu0 %v4985
  %5178 = vmatpush1.msra.mxu0 %v4984
  %5179 = vmatprep.subr.mxu0 %v4987
  %5180 = vmatpush1.msra.mxu0 %v4986
  %5181 = vmatprep.subr.mxu0 %v4989
  %5182 = vmatpush1.msra.mxu0 %v4988
  %5183 = vmatprep.subr.mxu0 %v4991
  %5184 = vmatpush1.msra.mxu0 %v4990
  %5185 = vmatprep.subr.mxu0 %v4993
  %5186 = vmatpush1.msra.mxu0 %v4992
  %5187 = vmatprep.subr.mxu0 %v4995
  %5188 = vmatpush1.msra.mxu0 %v4994
  %5189 = vmatprep.subr.mxu0 %v4997
  %5190 = vmatpush1.msra.mxu0 %v4996
  %5191 = vmatprep.subr.mxu0 %v4999
  %5192 = vmatpush1.msra.mxu0 %v4998
  %5193 = vmatprep.subr.mxu0 %v5001
  %5194 = vmatpush1.msra.mxu0 %v5000
  %5195 = vmatprep.subr.mxu0 %v5003
  %5196 = vmatpush1.msra.mxu0 %v5002
  %5197 = vmatprep.subr.mxu0 %v5005
  %5198 = vmatpush1.msra.mxu0 %v5004
  %5199 = vmatprep.subr.mxu0 %v5007
  %5200 = vmatpush1.msra.mxu0 %v5006
  %5201 = vmatprep.subr.mxu0 %v5009
  %5202 = vmatpush1.msra.mxu0 %v5008
  %5203 = vmatprep.subr.mxu0 %v5011
  %5204 = vmatpush1.msra.mxu0 %v5010
  %5205 = vmatprep.subr.mxu0 %v5013
  %5206 = vmatpush1.msra.mxu0 %v5012
  %5207 = vmatprep.subr.mxu0 %v5015
  %5208 = vmatpush1.msra.mxu0 %v5014
  %5209 = vmatprep.subr.mxu0 %v5017
  %5210 = vmatpush1.msra.mxu0 %v5016
  %5211 = vmatprep.subr.mxu0 %v5019
  %5212 = vmatpush1.msra.mxu0 %v5018
  %5213 = vmatprep.subr.mxu0 %v5021
  %5214 = vmatpush1.msra.mxu0 %v5020
  %5215 = vmatprep.subr.mxu0 %v5023
  %5216 = vmatpush1.msra.mxu0 %v5022
  %5217 = vmatprep.subr.mxu0 %v5025
  %5218 = vmatpush1.msra.mxu0 %v5024
  %5219 = vmatprep.subr.mxu0 %v5027
  %5220 = vmatpush1.msra.mxu0 %v5026
  %5221 = vmatprep.subr.mxu0 %v5029
  %5222 = vmatpush1.msra.mxu0 %v5028
  %5223 = vmatprep.subr.mxu0 %v5031
  %5224 = vmatpush1.msra.mxu0 %v5030
  %5225 = vmatprep.subr.mxu0 %v5033
  %5226 = vmatpush1.msra.mxu0 %v5032
  %5227 = vmatprep.mubr.f32.mxu0 %v241
  %5228 = vmatmul.mubr.f32.gmra.mrb[0].mxu0 %v240
  %v5229 = vpop.f32.mrb[0].mxu0
  %v5230 = vadd.f32 %v5117, %v5229
  %v5231 = vpop.f32.mrb[0].mxu0
  %v5232 = vadd.f32 %v5119, %v5231
  %5233 = vmatprep.mubr.f32.mxu0 %v246
  %5234 = vmatmul.mubr.f32.gmra.mrb[0].mxu0 %v245
  %v5235 = vpop.f32.mrb[0].mxu0
  %v5236 = vadd.f32 %v5123, %v5235
  %v5237 = vpop.f32.mrb[0].mxu0
  %v5238 = vadd.f32 %v5125, %v5237
  %5239 = vmatprep.mubr.f32.mxu0 %v251
  %5240 = vmatmul.mubr.f32.gmra.mrb[0].mxu0 %v250
  %v5241 = vpop.f32.mrb[0].mxu0
  %v5242 = vadd.f32 %v5129, %v5241
  %v5243 = vpop.f32.mrb[0].mxu0
  %v5244 = vadd.f32 %v5131, %v5243
  %5245 = vmatprep.mubr.f32.mxu0 %v256
  %5246 = vmatmul.mubr.f32.gmra.mrb[0].mxu0 %v255
  %v5247 = vpop.f32.mrb[0].mxu0
  %v5248 = vadd.f32 %v5135, %v5247
  %v5249 = vpop.f32.mrb[0].mxu0
  %v5250 = vadd.f32 %v5137, %v5249
  %5251 = vmatprep.mubr.f32.mxu0 %v261
  %5252 = vmatmul.mubr.f32.gmra.mrb[0].mxu0 %v260
  %v5253 = vpop.f32.mrb[0].mxu0
  %v5254 = vadd.f32 %v5141, %v5253
  %v5255 = vpop.f32.mrb[0].mxu0
  %v5256 = vadd.f32 %v5143, %v5255
  %5257 = vmatprep.mubr.f32.mxu0 %v266
  %5258 = vmatmul.mubr.f32.gmra.mrb[0].mxu0 %v265
  %v5259 = vpop.f32.mrb[0].mxu0
  %v5260 = vadd.f32 %v5147, %v5259
  %v5261 = vpop.f32.mrb[0].mxu0
  %v5262 = vadd.f32 %v5149, %v5261
  %5263 = vmatprep.mubr.f32.mxu0 %v271
  %5264 = vmatmul.mubr.f32.gmra.mrb[0].mxu0 %v270
  %v5265 = vpop.f32.mrb[0].mxu0
  %v5266 = vadd.f32 %v5153, %v5265
  %v5267 = vpop.f32.mrb[0].mxu0
  %v5268 = vadd.f32 %v5155, %v5267
  %5269 = vmatprep.mubr.f32.mxu0 %v276
  %5270 = vmatmul.mubr.f32.gmra.mrb[0].mxu0 %v275
  %v5271 = vpop.f32.mrb[0].mxu0
  %v5272 = vadd.f32 %v5159, %v5271
  %v5273 = vpop.f32.mrb[0].mxu0
  %v5274 = vadd.f32 %v5161, %v5273
  %5275 = vdwg.mxu0
  %5276 = vmatprep.subr.mxu0 %v5035
  %5277 = vmatpush1.msra.mxu0 %v5034
  %5278 = vmatprep.subr.mxu0 %v5037
  %5279 = vmatpush1.msra.mxu0 %v5036
  %5280 = vmatprep.subr.mxu0 %v5039
  %5281 = vmatpush1.msra.mxu0 %v5038
  %5282 = vmatprep.subr.mxu0 %v5041
  %5283 = vmatpush1.msra.mxu0 %v5040
  %5284 = vmatprep.subr.mxu0 %v5043
  %5285 = vmatpush1.msra.mxu0 %v5042
  %5286 = vmatprep.subr.mxu0 %v5045
  %5287 = vmatpush1.msra.mxu0 %v5044
  %5288 = vmatprep.subr.mxu0 %v5047
  %5289 = vmatpush1.msra.mxu0 %v5046
  %5290 = vmatprep.subr.mxu0 %v5049
  %5291 = vmatpush1.msra.mxu0 %v5048
  %5292 = vmatprep.subr.mxu0 0.0
  %5293 = vmatpush1.msra.mxu0 0.0
  %5294 = vmatprep.subr.mxu0 0.0
  %5295 = vmatpush1.msra.mxu0 0.0
  %5296 = vmatprep.subr.mxu0 0.0
  %5297 = vmatpush1.msra.mxu0 0.0
  %5298 = vmatprep.subr.mxu0 0.0
  %5299 = vmatpush1.msra.mxu0 0.0
  %5300 = vmatprep.subr.mxu0 0.0
  %5301 = vmatpush1.msra.mxu0 0.0
  %5302 = vmatprep.subr.mxu0 0.0
  %5303 = vmatpush1.msra.mxu0 0.0
  %5304 = vmatprep.subr.mxu0 0.0
  %5305 = vmatpush1.msra.mxu0 0.0
  %5306 = vmatprep.subr.mxu0 0.0
  %5307 = vmatpush1.msra.mxu0 0.0
  %5308 = vmatprep.subr.mxu0 0.0
  %5309 = vmatpush1.msra.mxu0 0.0
  %5310 = vmatprep.subr.mxu0 0.0
  %5311 = vmatpush1.msra.mxu0 0.0
  %5312 = vmatprep.subr.mxu0 0.0
  %5313 = vmatpush1.msra.mxu0 0.0
  %5314 = vmatprep.subr.mxu0 0.0
  %5315 = vmatpush1.msra.mxu0 0.0
  %5316 = vmatprep.subr.mxu0 0.0
  %5317 = vmatpush1.msra.mxu0 0.0
  %5318 = vmatprep.subr.mxu0 0.0
  %5319 = vmatpush1.msra.mxu0 0.0
  %5320 = vmatprep.subr.mxu0 0.0
  %5321 = vmatpush1.msra.mxu0 0.0
  %5322 = vmatprep.subr.mxu0 0.0
  %5323 = vmatpush1.msra.mxu0 0.0
  %5324 = vmatprep.subr.mxu0 0.0
  %5325 = vmatpush1.msra.mxu0 0.0
  %5326 = vmatprep.subr.mxu0 0.0
  %5327 = vmatpush1.msra.mxu0 0.0
  %5328 = vmatprep.subr.mxu0 0.0
  %5329 = vmatpush1.msra.mxu0 0.0
  %5330 = vmatprep.subr.mxu0 0.0
  %5331 = vmatpush1.msra.mxu0 0.0
  %5332 = vmatprep.subr.mxu0 0.0
  %5333 = vmatpush1.msra.mxu0 0.0
  %5334 = vmatprep.subr.mxu0 0.0
  %5335 = vmatpush1.msra.mxu0 0.0
  %5336 = vmatprep.subr.mxu0 0.0
  %5337 = vmatpush1.msra.mxu0 0.0
  %5338 = vmatprep.subr.mxu0 0.0
  %5339 = vmatpush1.msra.mxu0 0.0
  %5340 = vmatprep.mubr.f32.mxu0 0.0
  %5341 = vmatmul.mubr.f32.gmra.mrb[0].mxu0 %v4245
  %v5342 = vpop.f32.mrb[0].mxu0
  %v5343 = vadd.f32 %v5230, %v5342
  %v5344 = vpop.f32.mrb[0].mxu0
  %v5345 = vadd.f32 %v5232, %v5344
  %5346 = vmatprep.mubr.f32.mxu0 0.0
  %5347 = vmatmul.mubr.f32.gmra.mrb[0].mxu0 %v4248
  %v5348 = vpop.f32.mrb[0].mxu0
  %v5349 = vadd.f32 %v5236, %v5348
  %v5350 = vpop.f32.mrb[0].mxu0
  %v5351 = vadd.f32 %v5238, %v5350
  %5352 = vmatprep.mubr.f32.mxu0 0.0
  %5353 = vmatmul.mubr.f32.gmra.mrb[0].mxu0 %v4251
  %v5354 = vpop.f32.mrb[0].mxu0
  %v5355 = vadd.f32 %v5242, %v5354
  %v5356 = vpop.f32.mrb[0].mxu0
  %v5357 = vadd.f32 %v5244, %v5356
  %5358 = vmatprep.mubr.f32.mxu0 0.0
  %5359 = vmatmul.mubr.f32.gmra.mrb[0].mxu0 %v4254
  %v5360 = vpop.f32.mrb[0].mxu0
  %v5361 = vadd.f32 %v5248, %v5360
  %v5362 = vpop.f32.mrb[0].mxu0
  %v5363 = vadd.f32 %v5250, %v5362
  %5364 = vmatprep.mubr.f32.mxu0 0.0
  %5365 = vmatmul.mubr.f32.gmra.mrb[0].mxu0 %v4257
  %v5366 = vpop.f32.mrb[0].mxu0
  %v5367 = vadd.f32 %v5254, %v5366
  %v5368 = vpop.f32.mrb[0].mxu0
  %v5369 = vadd.f32 %v5256, %v5368
  %5370 = vmatprep.mubr.f32.mxu0 0.0
  %5371 = vmatmul.mubr.f32.gmra.mrb[0].mxu0 %v4260
  %v5372 = vpop.f32.mrb[0].mxu0
  %v5373 = vadd.f32 %v5260, %v5372
  %v5374 = vpop.f32.mrb[0].mxu0
  %v5375 = vadd.f32 %v5262, %v5374
  %5376 = vmatprep.mubr.f32.mxu0 0.0
  %5377 = vmatmul.mubr.f32.gmra.mrb[0].mxu0 %v4263
  %v5378 = vpop.f32.mrb[0].mxu0
  %v5379 = vadd.f32 %v5266, %v5378
  %v5380 = vpop.f32.mrb[0].mxu0
  %v5381 = vadd.f32 %v5268, %v5380
  %5382 = vmatprep.mubr.f32.mxu0 0.0
  %5383 = vmatmul.mubr.f32.gmra.mrb[0].mxu0 %v4266
  %v5384 = vpop.f32.mrb[0].mxu0
  %v5385 = vadd.f32 %v5272, %v5384
  %v5386 = vpop.f32.mrb[0].mxu0
  %v5387 = vadd.f32 %v5274, %v5386
  %5388 = vdwg.mxu0
  %v5389 = vld [vmem:[%s61] sm:$0xff]
  %v5390 = vld [vmem:[%s61 + $0x8] sm:$0xff]
  %v5391 = vld [vmem:[%s61 + $0x10] sm:$0xff]
  %v5392 = vld [vmem:[%s61 + $0x18] sm:$0xff]
  %v5393 = vld [vmem:[%s61 + $0x20] sm:$0xff]
  %v5394 = vld [vmem:[%s61 + $0x28] sm:$0xff]
  %v5395 = vld [vmem:[%s61 + $0x30] sm:$0xff]
  %v5396 = vld [vmem:[%s61 + $0x38] sm:$0xff]
  %v5397 = vld [vmem:[%s61 + $0x40] sm:$0xff]
  %v5398 = vld [vmem:[%s61 + $0x48] sm:$0xff]
  %v5399 = vld [vmem:[%s61 + $0x50] sm:$0xff]
  %v5400 = vld [vmem:[%s61 + $0x58] sm:$0xff]
  %v5401 = vld [vmem:[%s61 + $0x60] sm:$0xff]
  %v5402 = vld [vmem:[%s61 + $0x68] sm:$0xff]
  %v5403 = vld [vmem:[%s61 + $0x70] sm:$0xff]
  %v5404 = vld [vmem:[%s61 + $0x78] sm:$0xff]
  %v5405 = vld [vmem:[%s61 + $0x80] sm:$0xff]
  %v5406 = vld [vmem:[%s61 + $0x88] sm:$0xff]
  %v5407 = vld [vmem:[%s63] sm:$0x1]
  %v5409 = vlaneseq
  %v5410 = vshrl.u32 %v5409, 7
  %v5411 = vsub.s32 0, %v5410
  %v5412 = vrot.slane %v5407, %v5411
  %v5415 = vsel %vm1212, %v5345, 0
  %v5418 = vsel %vm1212, %v5351, 0
  %v5421 = vsel %vm1212, %v5357, 0
  %v5424 = vsel %vm1212, %v5363, 0
  %v5427 = vsel %vm1212, %v5369, 0
  %v5430 = vsel %vm1212, %v5375, 0
  %v5433 = vsel %vm1212, %v5381, 0
  %v5436 = vsel %vm1212, %v5387, 0
  %5438 = vmatprep.subr.mxu0 0.0
  %5439 = vmatpush1.msra.mxu0 %v5389
  %5440 = vmatprep.subr.mxu0 0.0
  %5441 = vmatpush1.msra.mxu0 %v5390
  %5442 = vmatprep.subr.mxu0 0.0
  %5443 = vmatpush1.msra.mxu0 %v5391
  %5444 = vmatprep.subr.mxu0 0.0
  %5445 = vmatpush1.msra.mxu0 %v5392
  %5446 = vmatprep.subr.mxu0 0.0
  %5447 = vmatpush1.msra.mxu0 %v5393
  %5448 = vmatprep.subr.mxu0 0.0
  %5449 = vmatpush1.msra.mxu0 %v5394
  %5450 = vmatprep.subr.mxu0 0.0
  %5451 = vmatpush1.msra.mxu0 %v5395
  %5452 = vmatprep.subr.mxu0 0.0
  %5453 = vmatpush1.msra.mxu0 %v5396
  %5454 = vmatprep.subr.mxu0 0.0
  %5455 = vmatpush1.msra.mxu0 %v5397
  %5456 = vmatprep.subr.mxu0 0.0
  %5457 = vmatpush1.msra.mxu0 %v5398
  %5458 = vmatprep.subr.mxu0 0.0
  %5459 = vmatpush1.msra.mxu0 %v5399
  %5460 = vmatprep.subr.mxu0 0.0
  %5461 = vmatpush1.msra.mxu0 %v5400
  %5462 = vmatprep.subr.mxu0 0.0
  %5463 = vmatpush1.msra.mxu0 %v5401
  %5464 = vmatprep.subr.mxu0 0.0
  %5465 = vmatpush1.msra.mxu0 %v5402
  %5466 = vmatprep.subr.mxu0 0.0
  %5467 = vmatpush1.msra.mxu0 %v5403
  %5468 = vmatprep.subr.mxu0 0.0
  %5469 = vmatpush1.msra.mxu0 %v5404
  %5470 = vmatprep.subr.mxu0 0.0
  %5471 = vmatpush1.msra.mxu0 %v5405
  %5472 = vmatprep.subr.mxu0 0.0
  %5473 = vmatpush1.msra.mxu0 %v5406
  %5474 = vmatprep.subr.mxu0 0.0
  %5475 = vmatpush1.msra.mxu0 0.0
  %5476 = vmatprep.subr.mxu0 0.0
  %5477 = vmatpush1.msra.mxu0 0.0
  %5478 = vmatprep.subr.mxu0 0.0
  %5479 = vmatpush1.msra.mxu0 0.0
  %5480 = vmatprep.subr.mxu0 0.0
  %5481 = vmatpush1.msra.mxu0 0.0
  %5482 = vmatprep.subr.mxu0 0.0
  %5483 = vmatpush1.msra.mxu0 0.0
  %5484 = vmatprep.subr.mxu0 0.0
  %5485 = vmatpush1.msra.mxu0 0.0
  %5486 = vmatprep.subr.mxu0 0.0
  %5487 = vmatpush1.msra.mxu0 0.0
  %5488 = vmatprep.subr.mxu0 0.0
  %5489 = vmatpush1.msra.mxu0 0.0
  %5490 = vmatprep.subr.mxu0 0.0
  %5491 = vmatpush1.msra.mxu0 0.0
  %5492 = vmatprep.subr.mxu0 0.0
  %5493 = vmatpush1.msra.mxu0 0.0
  %5494 = vmatprep.subr.mxu0 0.0
  %5495 = vmatpush1.msra.mxu0 0.0
  %5496 = vmatprep.subr.mxu0 0.0
  %5497 = vmatpush1.msra.mxu0 0.0
  %5498 = vmatprep.subr.mxu0 0.0
  %5499 = vmatpush1.msra.mxu0 0.0
  %5500 = vmatprep.subr.mxu0 0.0
  %5501 = vmatpush1.msra.mxu0 0.0
  %5502 = vmatprep.mubr.f32.mxu0 %v5415
  %5503 = vmatmul.mubr.f32.gmra.mrb[0].mxu0 %v5343
  %v5504 = vpop.f32.mrb[0].mxu0
  %v5505 = vadd.f32 %v5412, %v5504
  %v5506 = vpop.f32.mrb[0].mxu0
  %5507 = vmatprep.mubr.f32.mxu0 %v5418
  %5508 = vmatmul.mubr.f32.gmra.mrb[0].mxu0 %v5349
  %v5509 = vpop.f32.mrb[0].mxu0
  %v5510 = vadd.f32 %v5412, %v5509
  %v5511 = vpop.f32.mrb[0].mxu0
  %5512 = vmatprep.mubr.f32.mxu0 %v5421
  %5513 = vmatmul.mubr.f32.gmra.mrb[0].mxu0 %v5355
  %v5514 = vpop.f32.mrb[0].mxu0
  %v5515 = vadd.f32 %v5412, %v5514
  %v5516 = vpop.f32.mrb[0].mxu0
  %5517 = vmatprep.mubr.f32.mxu0 %v5424
  %5518 = vmatmul.mubr.f32.gmra.mrb[0].mxu0 %v5361
  %v5519 = vpop.f32.mrb[0].mxu0
  %v5520 = vadd.f32 %v5412, %v5519
  %v5521 = vpop.f32.mrb[0].mxu0
  %5522 = vmatprep.mubr.f32.mxu0 %v5427
  %5523 = vmatmul.mubr.f32.gmra.mrb[0].mxu0 %v5367
  %v5524 = vpop.f32.mrb[0].mxu0
  %v5525 = vadd.f32 %v5412, %v5524
  %v5526 = vpop.f32.mrb[0].mxu0
  %5527 = vmatprep.mubr.f32.mxu0 %v5430
  %5528 = vmatmul.mubr.f32.gmra.mrb[0].mxu0 %v5373
  %v5529 = vpop.f32.mrb[0].mxu0
  %v5530 = vadd.f32 %v5412, %v5529
  %v5531 = vpop.f32.mrb[0].mxu0
  %5532 = vmatprep.mubr.f32.mxu0 %v5433
  %5533 = vmatmul.mubr.f32.gmra.mrb[0].mxu0 %v5379
  %v5534 = vpop.f32.mrb[0].mxu0
  %v5535 = vadd.f32 %v5412, %v5534
  %v5536 = vpop.f32.mrb[0].mxu0
  %5537 = vmatprep.mubr.f32.mxu0 %v5436
  %5538 = vmatmul.mubr.f32.gmra.mrb[0].mxu0 %v5385
  %v5539 = vpop.f32.mrb[0].mxu0
  %v5540 = vadd.f32 %v5412, %v5539
  %v5541 = vpop.f32.mrb[0].mxu0
  %5542 = vdwg.mxu0
  %v5543 = vadd.f32 %v3955, %v5505
  %v5544 = vadd.f32 %v3956, %v5510
  %v5545 = vadd.f32 %v3957, %v5515
  %v5546 = vadd.f32 %v3958, %v5520
  %v5547 = vadd.f32 %v3959, %v5525
  %v5548 = vadd.f32 %v3960, %v5530
  %v5549 = vadd.f32 %v3961, %v5535
  %v5550 = vadd.f32 %v3962, %v5540
  %v5551 = vld [vmem:[%s69] sm:$0x1]
  %v5552 = vld [vmem:[%s71] sm:$0x1]
  %v5553 = vsel %vm1212, %v5543, 0.0
  %5554 = vadd.xlane.f32.xlu0 %v5553
  %v5555 = vpop.xlane.xlu0 %5554
  %v5556 = vsel %vm1212, %v5544, 0.0
  %5557 = vadd.xlane.f32.xlu0 %v5556
  %v5558 = vpop.xlane.xlu0 %5557
  %v5559 = vsel %vm1212, %v5545, 0.0
  %5560 = vadd.xlane.f32.xlu0 %v5559
  %v5561 = vpop.xlane.xlu0 %5560
  %v5562 = vsel %vm1212, %v5546, 0.0
  %5563 = vadd.xlane.f32.xlu0 %v5562
  %v5564 = vpop.xlane.xlu0 %5563
  %v5565 = vsel %vm1212, %v5547, 0.0
  %5566 = vadd.xlane.f32.xlu0 %v5565
  %v5567 = vpop.xlane.xlu0 %5566
  %v5568 = vsel %vm1212, %v5548, 0.0
  %5569 = vadd.xlane.f32.xlu0 %v5568
  %v5570 = vpop.xlane.xlu0 %5569
  %v5571 = vsel %vm1212, %v5549, 0.0
  %5572 = vadd.xlane.f32.xlu0 %v5571
  %v5573 = vpop.xlane.xlu0 %5572
  %v5574 = vsel %vm1212, %v5550, 0.0
  %5575 = vadd.xlane.f32.xlu0 %v5574
  %v5576 = vpop.xlane.xlu0 %5575
  %v5577 = vmul.f32 %v5555, %v1368
  %v5578 = vmul.f32 %v5558, %v1368
  %v5579 = vmul.f32 %v5561, %v1368
  %v5580 = vmul.f32 %v5564, %v1368
  %v5581 = vmul.f32 %v5567, %v1368
  %v5582 = vmul.f32 %v5570, %v1368
  %v5583 = vmul.f32 %v5573, %v1368
  %v5584 = vmul.f32 %v5576, %v1368
  %v5585 = vsub.f32 %v5543, %v5577
  %v5586 = vsub.f32 %v5544, %v5578
  %v5587 = vsub.f32 %v5545, %v5579
  %v5588 = vsub.f32 %v5546, %v5580
  %v5589 = vsub.f32 %v5547, %v5581
  %v5590 = vsub.f32 %v5548, %v5582
  %v5591 = vsub.f32 %v5549, %v5583
  %v5592 = vsub.f32 %v5550, %v5584
  %v5593 = vmul.f32 %v5585, %v5585
  %v5594 = vmul.f32 %v5586, %v5586
  %v5595 = vmul.f32 %v5587, %v5587
  %v5596 = vmul.f32 %v5588, %v5588
  %v5597 = vmul.f32 %v5589, %v5589
  %v5598 = vmul.f32 %v5590, %v5590
  %v5599 = vmul.f32 %v5591, %v5591
  %v5600 = vmul.f32 %v5592, %v5592
  %v5601 = vsel %vm1212, %v5593, 0.0
  %5602 = vadd.xlane.f32.xlu0 %v5601
  %v5603 = vpop.xlane.xlu0 %5602
  %v5604 = vsel %vm1212, %v5594, 0.0
  %5605 = vadd.xlane.f32.xlu0 %v5604
  %v5606 = vpop.xlane.xlu0 %5605
  %v5607 = vsel %vm1212, %v5595, 0.0
  %5608 = vadd.xlane.f32.xlu0 %v5607
  %v5609 = vpop.xlane.xlu0 %5608
  %v5610 = vsel %vm1212, %v5596, 0.0
  %5611 = vadd.xlane.f32.xlu0 %v5610
  %v5612 = vpop.xlane.xlu0 %5611
  %v5613 = vsel %vm1212, %v5597, 0.0
  %5614 = vadd.xlane.f32.xlu0 %v5613
  %v5615 = vpop.xlane.xlu0 %5614
  %v5616 = vsel %vm1212, %v5598, 0.0
  %5617 = vadd.xlane.f32.xlu0 %v5616
  %v5618 = vpop.xlane.xlu0 %5617
  %v5619 = vsel %vm1212, %v5599, 0.0
  %5620 = vadd.xlane.f32.xlu0 %v5619
  %v5621 = vpop.xlane.xlu0 %5620
  %v5622 = vsel %vm1212, %v5600, 0.0
  %5623 = vadd.xlane.f32.xlu0 %v5622
  %v5624 = vpop.xlane.xlu0 %5623
  %v5625 = vmul.f32 %v5603, %v1368
  %v5626 = vmul.f32 %v5606, %v1368
  %v5627 = vmul.f32 %v5609, %v1368
  %v5628 = vmul.f32 %v5612, %v1368
  %v5629 = vmul.f32 %v5615, %v1368
  %v5630 = vmul.f32 %v5618, %v1368
  %v5631 = vmul.f32 %v5621, %v1368
  %v5632 = vmul.f32 %v5624, %v1368
  %v5633 = vadd.f32 %v5625, 1e-05
  %v5634 = vadd.f32 %v5626, 1e-05
  %v5635 = vadd.f32 %v5627, 1e-05
  %v5636 = vadd.f32 %v5628, 1e-05
  %v5637 = vadd.f32 %v5629, 1e-05
  %v5638 = vadd.f32 %v5630, 1e-05
  %v5639 = vadd.f32 %v5631, 1e-05
  %v5640 = vadd.f32 %v5632, 1e-05
  %v5641 = vrsqrt.pop %v5633
  %v5642 = vrsqrt.pop %v5634
  %v5643 = vrsqrt.pop %v5635
  %v5644 = vrsqrt.pop %v5636
  %v5645 = vrsqrt.pop %v5637
  %v5646 = vrsqrt.pop %v5638
  %v5647 = vrsqrt.pop %v5639
  %v5648 = vrsqrt.pop %v5640
  %v5649 = vmul.f32 %v5585, %v5641
  %v5650 = vmul.f32 %v5586, %v5642
  %v5651 = vmul.f32 %v5587, %v5643
  %v5652 = vmul.f32 %v5588, %v5644
  %v5653 = vmul.f32 %v5589, %v5645
  %v5654 = vmul.f32 %v5590, %v5646
  %v5655 = vmul.f32 %v5591, %v5647
  %v5656 = vmul.f32 %v5592, %v5648
  %v5658 = vlaneseq
  %v5659 = vshrl.u32 %v5658, 7
  %v5660 = vsub.s32 0, %v5659
  %v5661 = vrot.slane %v5551, %v5660
  %v5663 = vmul.f32 %v5649, %v5661
  %v5664 = vmul.f32 %v5650, %v5661
  %v5665 = vmul.f32 %v5651, %v5661
  %v5666 = vmul.f32 %v5652, %v5661
  %v5667 = vmul.f32 %v5653, %v5661
  %v5668 = vmul.f32 %v5654, %v5661
  %v5669 = vmul.f32 %v5655, %v5661
  %v5670 = vmul.f32 %v5656, %v5661
  %v5672 = vlaneseq
  %v5673 = vshrl.u32 %v5672, 7
  %v5674 = vsub.s32 0, %v5673
  %v5675 = vrot.slane %v5552, %v5674
  %v5677 = vadd.f32 %v5663, %v5675
  %v5678 = vadd.f32 %v5664, %v5675
  %v5679 = vadd.f32 %v5665, %v5675
  %v5680 = vadd.f32 %v5666, %v5675
  %v5681 = vadd.f32 %v5667, %v5675
  %v5682 = vadd.f32 %v5668, %v5675
  %v5683 = vadd.f32 %v5669, %v5675
  %v5684 = vadd.f32 %v5670, %v5675
  %s5685 = scalar_lea.vmem %s37, 16
  %v5686 = vld [vmem:[%s5685] sm:$0xff]
  %v5687 = vld [vmem:[%s5685 + $0x8] sm:$0xff]
  %s5688 = scalar_lea.vmem %s41, 1
  %v5689 = vld [vmem:[%s5688] sm:$0x1]
  %v5691 = vlaneseq
  %v5692 = vshrl.u32 %v5691, 7
  %v5693 = vsub.s32 0, %v5692
  %v5694 = vrot.slane %v5689, %v5693
  %v5697 = vsel %vm1212, %v5677, 0
  %v5700 = vsel %vm1212, %v5678, 0
  %v5703 = vsel %vm1212, %v5679, 0
  %v5706 = vsel %vm1212, %v5680, 0
  %v5709 = vsel %vm1212, %v5681, 0
  %v5712 = vsel %vm1212, %v5682, 0
  %v5715 = vsel %vm1212, %v5683, 0
  %v5718 = vsel %vm1212, %v5684, 0
  %5720 = vmatprep.subr.mxu0 0.0
  %5721 = vmatpush1.msra.mxu0 %v5686
  %5722 = vmatprep.subr.mxu0 0.0
  %5723 = vmatpush1.msra.mxu0 %v5687
  %5724 = vmatprep.subr.mxu0 0.0
  %5725 = vmatpush1.msra.mxu0 0.0
  %5726 = vmatprep.subr.mxu0 0.0
  %5727 = vmatpush1.msra.mxu0 0.0
  %5728 = vmatprep.subr.mxu0 0.0
  %5729 = vmatpush1.msra.mxu0 0.0
  %5730 = vmatprep.subr.mxu0 0.0
  %5731 = vmatpush1.msra.mxu0 0.0
  %5732 = vmatprep.subr.mxu0 0.0
  %5733 = vmatpush1.msra.mxu0 0.0
  %5734 = vmatprep.subr.mxu0 0.0
  %5735 = vmatpush1.msra.mxu0 0.0
  %5736 = vmatprep.subr.mxu0 0.0
  %5737 = vmatpush1.msra.mxu0 0.0
  %5738 = vmatprep.subr.mxu0 0.0
  %5739 = vmatpush1.msra.mxu0 0.0
  %5740 = vmatprep.subr.mxu0 0.0
  %5741 = vmatpush1.msra.mxu0 0.0
  %5742 = vmatprep.subr.mxu0 0.0
  %5743 = vmatpush1.msra.mxu0 0.0
  %5744 = vmatprep.subr.mxu0 0.0
  %5745 = vmatpush1.msra.mxu0 0.0
  %5746 = vmatprep.subr.mxu0 0.0
  %5747 = vmatpush1.msra.mxu0 0.0
  %5748 = vmatprep.subr.mxu0 0.0
  %5749 = vmatpush1.msra.mxu0 0.0
  %5750 = vmatprep.subr.mxu0 0.0
  %5751 = vmatpush1.msra.mxu0 0.0
  %5752 = vmatprep.subr.mxu0 0.0
  %5753 = vmatpush1.msra.mxu0 0.0
  %5754 = vmatprep.subr.mxu0 0.0
  %5755 = vmatpush1.msra.mxu0 0.0
  %5756 = vmatprep.subr.mxu0 0.0
  %5757 = vmatpush1.msra.mxu0 0.0
  %5758 = vmatprep.subr.mxu0 0.0
  %5759 = vmatpush1.msra.mxu0 0.0
  %5760 = vmatprep.subr.mxu0 0.0
  %5761 = vmatpush1.msra.mxu0 0.0
  %5762 = vmatprep.subr.mxu0 0.0
  %5763 = vmatpush1.msra.mxu0 0.0
  %5764 = vmatprep.subr.mxu0 0.0
  %5765 = vmatpush1.msra.mxu0 0.0
  %5766 = vmatprep.subr.mxu0 0.0
  %5767 = vmatpush1.msra.mxu0 0.0
  %5768 = vmatprep.subr.mxu0 0.0
  %5769 = vmatpush1.msra.mxu0 0.0
  %5770 = vmatprep.subr.mxu0 0.0
  %5771 = vmatpush1.msra.mxu0 0.0
  %5772 = vmatprep.subr.mxu0 0.0
  %5773 = vmatpush1.msra.mxu0 0.0
  %5774 = vmatprep.subr.mxu0 0.0
  %5775 = vmatpush1.msra.mxu0 0.0
  %5776 = vmatprep.subr.mxu0 0.0
  %5777 = vmatpush1.msra.mxu0 0.0
  %5778 = vmatprep.subr.mxu0 0.0
  %5779 = vmatpush1.msra.mxu0 0.0
  %5780 = vmatprep.subr.mxu0 0.0
  %5781 = vmatpush1.msra.mxu0 0.0
  %5782 = vmatprep.subr.mxu0 0.0
  %5783 = vmatpush1.msra.mxu0 0.0
  %5784 = vmatprep.mubr.f32.mxu0 0.0
  %5785 = vmatmul.mubr.f32.gmra.mrb[0].mxu0 %v5697
  %v5786 = vpop.f32.mrb[0].mxu0
  %v5787 = vadd.f32 %v5694, %v5786
  %v5788 = vpop.f32.mrb[0].mxu0
  %5789 = vmatprep.mubr.f32.mxu0 0.0
  %5790 = vmatmul.mubr.f32.gmra.mrb[0].mxu0 %v5700
  %v5791 = vpop.f32.mrb[0].mxu0
  %v5792 = vadd.f32 %v5694, %v5791
  %v5793 = vpop.f32.mrb[0].mxu0
  %5794 = vmatprep.mubr.f32.mxu0 0.0
  %5795 = vmatmul.mubr.f32.gmra.mrb[0].mxu0 %v5703
  %v5796 = vpop.f32.mrb[0].mxu0
  %v5797 = vadd.f32 %v5694, %v5796
  %v5798 = vpop.f32.mrb[0].mxu0
  %5799 = vmatprep.mubr.f32.mxu0 0.0
  %5800 = vmatmul.mubr.f32.gmra.mrb[0].mxu0 %v5706
  %v5801 = vpop.f32.mrb[0].mxu0
  %v5802 = vadd.f32 %v5694, %v5801
  %v5803 = vpop.f32.mrb[0].mxu0
  %5804 = vmatprep.mubr.f32.mxu0 0.0
  %5805 = vmatmul.mubr.f32.gmra.mrb[0].mxu0 %v5709
  %v5806 = vpop.f32.mrb[0].mxu0
  %v5807 = vadd.f32 %v5694, %v5806
  %v5808 = vpop.f32.mrb[0].mxu0
  %5809 = vmatprep.mubr.f32.mxu0 0.0
  %5810 = vmatmul.mubr.f32.gmra.mrb[0].mxu0 %v5712
  %v5811 = vpop.f32.mrb[0].mxu0
  %v5812 = vadd.f32 %v5694, %v5811
  %v5813 = vpop.f32.mrb[0].mxu0
  %5814 = vmatprep.mubr.f32.mxu0 0.0
  %5815 = vmatmul.mubr.f32.gmra.mrb[0].mxu0 %v5715
  %v5816 = vpop.f32.mrb[0].mxu0
  %v5817 = vadd.f32 %v5694, %v5816
  %v5818 = vpop.f32.mrb[0].mxu0
  %5819 = vmatprep.mubr.f32.mxu0 0.0
  %5820 = vmatmul.mubr.f32.gmra.mrb[0].mxu0 %v5718
  %v5821 = vpop.f32.mrb[0].mxu0
  %v5822 = vadd.f32 %v5694, %v5821
  %v5823 = vpop.f32.mrb[0].mxu0
  %5824 = vdwg.mxu0
  %s5825 = scalar_lea.vmem %s45, 1
  %v5826 = vld [vmem:[%s5825] sm:$0x1]
  %s5827 = scalar_lea.vmem %s47, 1
  %v5828 = vld [vmem:[%s5827] sm:$0x1]
  %v5829 = vsel %vm1212, %v5787, 0.0
  %5830 = vadd.xlane.f32.xlu0 %v5829
  %v5831 = vpop.xlane.xlu0 %5830
  %v5832 = vsel %vm1212, %v5792, 0.0
  %5833 = vadd.xlane.f32.xlu0 %v5832
  %v5834 = vpop.xlane.xlu0 %5833
  %v5835 = vsel %vm1212, %v5797, 0.0
  %5836 = vadd.xlane.f32.xlu0 %v5835
  %v5837 = vpop.xlane.xlu0 %5836
  %v5838 = vsel %vm1212, %v5802, 0.0
  %5839 = vadd.xlane.f32.xlu0 %v5838
  %v5840 = vpop.xlane.xlu0 %5839
  %v5841 = vsel %vm1212, %v5807, 0.0
  %5842 = vadd.xlane.f32.xlu0 %v5841
  %v5843 = vpop.xlane.xlu0 %5842
  %v5844 = vsel %vm1212, %v5812, 0.0
  %5845 = vadd.xlane.f32.xlu0 %v5844
  %v5846 = vpop.xlane.xlu0 %5845
  %v5847 = vsel %vm1212, %v5817, 0.0
  %5848 = vadd.xlane.f32.xlu0 %v5847
  %v5849 = vpop.xlane.xlu0 %5848
  %v5850 = vsel %vm1212, %v5822, 0.0
  %5851 = vadd.xlane.f32.xlu0 %v5850
  %v5852 = vpop.xlane.xlu0 %5851
  %v5853 = vmul.f32 %v5831, %v1368
  %v5854 = vmul.f32 %v5834, %v1368
  %v5855 = vmul.f32 %v5837, %v1368
  %v5856 = vmul.f32 %v5840, %v1368
  %v5857 = vmul.f32 %v5843, %v1368
  %v5858 = vmul.f32 %v5846, %v1368
  %v5859 = vmul.f32 %v5849, %v1368
  %v5860 = vmul.f32 %v5852, %v1368
  %v5861 = vsub.f32 %v5787, %v5853
  %v5862 = vsub.f32 %v5792, %v5854
  %v5863 = vsub.f32 %v5797, %v5855
  %v5864 = vsub.f32 %v5802, %v5856
  %v5865 = vsub.f32 %v5807, %v5857
  %v5866 = vsub.f32 %v5812, %v5858
  %v5867 = vsub.f32 %v5817, %v5859
  %v5868 = vsub.f32 %v5822, %v5860
  %v5869 = vmul.f32 %v5861, %v5861
  %v5870 = vmul.f32 %v5862, %v5862
  %v5871 = vmul.f32 %v5863, %v5863
  %v5872 = vmul.f32 %v5864, %v5864
  %v5873 = vmul.f32 %v5865, %v5865
  %v5874 = vmul.f32 %v5866, %v5866
  %v5875 = vmul.f32 %v5867, %v5867
  %v5876 = vmul.f32 %v5868, %v5868
  %v5877 = vsel %vm1212, %v5869, 0.0
  %5878 = vadd.xlane.f32.xlu0 %v5877
  %v5879 = vpop.xlane.xlu0 %5878
  %v5880 = vsel %vm1212, %v5870, 0.0
  %5881 = vadd.xlane.f32.xlu0 %v5880
  %v5882 = vpop.xlane.xlu0 %5881
  %v5883 = vsel %vm1212, %v5871, 0.0
  %5884 = vadd.xlane.f32.xlu0 %v5883
  %v5885 = vpop.xlane.xlu0 %5884
  %v5886 = vsel %vm1212, %v5872, 0.0
  %5887 = vadd.xlane.f32.xlu0 %v5886
  %v5888 = vpop.xlane.xlu0 %5887
  %v5889 = vsel %vm1212, %v5873, 0.0
  %5890 = vadd.xlane.f32.xlu0 %v5889
  %v5891 = vpop.xlane.xlu0 %5890
  %v5892 = vsel %vm1212, %v5874, 0.0
  %5893 = vadd.xlane.f32.xlu0 %v5892
  %v5894 = vpop.xlane.xlu0 %5893
  %v5895 = vsel %vm1212, %v5875, 0.0
  %5896 = vadd.xlane.f32.xlu0 %v5895
  %v5897 = vpop.xlane.xlu0 %5896
  %v5898 = vsel %vm1212, %v5876, 0.0
  %5899 = vadd.xlane.f32.xlu0 %v5898
  %v5900 = vpop.xlane.xlu0 %5899
  %v5901 = vmul.f32 %v5879, %v1368
  %v5902 = vmul.f32 %v5882, %v1368
  %v5903 = vmul.f32 %v5885, %v1368
  %v5904 = vmul.f32 %v5888, %v1368
  %v5905 = vmul.f32 %v5891, %v1368
  %v5906 = vmul.f32 %v5894, %v1368
  %v5907 = vmul.f32 %v5897, %v1368
  %v5908 = vmul.f32 %v5900, %v1368
  %v5909 = vadd.f32 %v5901, 1e-05
  %v5910 = vadd.f32 %v5902, 1e-05
  %v5911 = vadd.f32 %v5903, 1e-05
  %v5912 = vadd.f32 %v5904, 1e-05
  %v5913 = vadd.f32 %v5905, 1e-05
  %v5914 = vadd.f32 %v5906, 1e-05
  %v5915 = vadd.f32 %v5907, 1e-05
  %v5916 = vadd.f32 %v5908, 1e-05
  %v5917 = vrsqrt.pop %v5909
  %v5918 = vrsqrt.pop %v5910
  %v5919 = vrsqrt.pop %v5911
  %v5920 = vrsqrt.pop %v5912
  %v5921 = vrsqrt.pop %v5913
  %v5922 = vrsqrt.pop %v5914
  %v5923 = vrsqrt.pop %v5915
  %v5924 = vrsqrt.pop %v5916
  %v5925 = vmul.f32 %v5861, %v5917
  %v5926 = vmul.f32 %v5862, %v5918
  %v5927 = vmul.f32 %v5863, %v5919
  %v5928 = vmul.f32 %v5864, %v5920
  %v5929 = vmul.f32 %v5865, %v5921
  %v5930 = vmul.f32 %v5866, %v5922
  %v5931 = vmul.f32 %v5867, %v5923
  %v5932 = vmul.f32 %v5868, %v5924
  %v5934 = vlaneseq
  %v5935 = vshrl.u32 %v5934, 7
  %v5936 = vsub.s32 0, %v5935
  %v5937 = vrot.slane %v5826, %v5936
  %v5939 = vmul.f32 %v5925, %v5937
  %v5940 = vmul.f32 %v5926, %v5937
  %v5941 = vmul.f32 %v5927, %v5937
  %v5942 = vmul.f32 %v5928, %v5937
  %v5943 = vmul.f32 %v5929, %v5937
  %v5944 = vmul.f32 %v5930, %v5937
  %v5945 = vmul.f32 %v5931, %v5937
  %v5946 = vmul.f32 %v5932, %v5937
  %v5948 = vlaneseq
  %v5949 = vshrl.u32 %v5948, 7
  %v5950 = vsub.s32 0, %v5949
  %v5951 = vrot.slane %v5828, %v5950
  %v5953 = vadd.f32 %v5939, %v5951
  %v5954 = vadd.f32 %v5940, %v5951
  %v5955 = vadd.f32 %v5941, %v5951
  %v5956 = vadd.f32 %v5942, %v5951
  %v5957 = vadd.f32 %v5943, %v5951
  %v5958 = vadd.f32 %v5944, %v5951
  %v5959 = vadd.f32 %v5945, %v5951
  %v5960 = vadd.f32 %v5946, %v5951
  %s5961 = scalar_lea.vmem %s39, 16
  %v5962 = vld [vmem:[%s5961] sm:$0xff]
  %v5963 = vld [vmem:[%s5961 + $0x8] sm:$0xff]
  %s5964 = scalar_lea.vmem %s43, 16
  %v5965 = vld [vmem:[%s5964] sm:$0xff]
  %v5966 = vld [vmem:[%s5964 + $0x8] sm:$0xff]
  %5968 = vset.pattern.permute.xlu0 0
  %5969 = vperm.xlu0 %5968, %v5965
  %v5970 = vpop.permute.xlu0 %5969
  %5973 = vset.pattern.permute.xlu0 0
  %5974 = vperm.xlu0 %5973, %v5966
  %v5975 = vpop.permute.xlu0 %5974
  %v5978 = vsel %vm1212, %v5962, 0
  %v5981 = vsel %vm1212, %v5963, 0
  %5983 = vmatprep.subr.mxu0 0.0
  %5984 = vmatpush1.msra.mxu0 %v1186
  %5985 = vmatprep.subr.mxu0 0.0
  %5986 = vmatpush1.msra.mxu0 %v1187
  %5987 = vmatprep.subr.mxu0 0.0
  %5988 = vmatpush1.msra.mxu0 0.0
  %5989 = vmatprep.subr.mxu0 0.0
  %5990 = vmatpush1.msra.mxu0 0.0
  %5991 = vmatprep.subr.mxu0 0.0
  %5992 = vmatpush1.msra.mxu0 0.0
  %5993 = vmatprep.subr.mxu0 0.0
  %5994 = vmatpush1.msra.mxu0 0.0
  %5995 = vmatprep.subr.mxu0 0.0
  %5996 = vmatpush1.msra.mxu0 0.0
  %5997 = vmatprep.subr.mxu0 0.0
  %5998 = vmatpush1.msra.mxu0 0.0
  %5999 = vmatprep.subr.mxu0 0.0
  %6000 = vmatpush1.msra.mxu0 0.0
  %6001 = vmatprep.subr.mxu0 0.0
  %6002 = vmatpush1.msra.mxu0 0.0
  %6003 = vmatprep.subr.mxu0 0.0
  %6004 = vmatpush1.msra.mxu0 0.0
  %6005 = vmatprep.subr.mxu0 0.0
  %6006 = vmatpush1.msra.mxu0 0.0
  %6007 = vmatprep.subr.mxu0 0.0
  %6008 = vmatpush1.msra.mxu0 0.0
  %6009 = vmatprep.subr.mxu0 0.0
  %6010 = vmatpush1.msra.mxu0 0.0
  %6011 = vmatprep.subr.mxu0 0.0
  %6012 = vmatpush1.msra.mxu0 0.0
  %6013 = vmatprep.subr.mxu0 0.0
  %6014 = vmatpush1.msra.mxu0 0.0
  %6015 = vmatprep.subr.mxu0 0.0
  %6016 = vmatpush1.msra.mxu0 0.0
  %6017 = vmatprep.subr.mxu0 0.0
  %6018 = vmatpush1.msra.mxu0 0.0
  %6019 = vmatprep.subr.mxu0 0.0
  %6020 = vmatpush1.msra.mxu0 0.0
  %6021 = vmatprep.subr.mxu0 0.0
  %6022 = vmatpush1.msra.mxu0 0.0
  %6023 = vmatprep.subr.mxu0 0.0
  %6024 = vmatpush1.msra.mxu0 0.0
  %6025 = vmatprep.subr.mxu0 0.0
  %6026 = vmatpush1.msra.mxu0 0.0
  %6027 = vmatprep.subr.mxu0 0.0
  %6028 = vmatpush1.msra.mxu0 0.0
  %6029 = vmatprep.subr.mxu0 0.0
  %6030 = vmatpush1.msra.mxu0 0.0
  %6031 = vmatprep.subr.mxu0 0.0
  %6032 = vmatpush1.msra.mxu0 0.0
  %6033 = vmatprep.subr.mxu0 0.0
  %6034 = vmatpush1.msra.mxu0 0.0
  %6035 = vmatprep.subr.mxu0 0.0
  %6036 = vmatpush1.msra.mxu0 0.0
  %6037 = vmatprep.subr.mxu0 0.0
  %6038 = vmatpush1.msra.mxu0 0.0
  %6039 = vmatprep.subr.mxu0 0.0
  %6040 = vmatpush1.msra.mxu0 0.0
  %6041 = vmatprep.subr.mxu0 0.0
  %6042 = vmatpush1.msra.mxu0 0.0
  %6043 = vmatprep.subr.mxu0 0.0
  %6044 = vmatpush1.msra.mxu0 0.0
  %6045 = vmatprep.subr.mxu0 0.0
  %6046 = vmatpush1.msra.mxu0 0.0
  %6047 = vmatprep.mubr.f32.mxu0 0.0
  %6048 = vmatmul.mubr.f32.gmra.mrb[0].mxu0 %v5978
  %v6049 = vpop.f32.mrb[0].mxu0
  %v6050 = vadd.f32 %v5970, %v6049
  %v6051 = vpop.f32.mrb[0].mxu0
  %6052 = vmatprep.mubr.f32.mxu0 0.0
  %6053 = vmatmul.mubr.f32.gmra.mrb[0].mxu0 %v5981
  %v6054 = vpop.f32.mrb[0].mxu0
  %v6055 = vadd.f32 %v5975, %v6054
  %v6056 = vpop.f32.mrb[0].mxu0
  %6057 = vdwg.mxu0
  %v6058 = vsel %vm1572, %v6050, 0.0
  %v6059 = vsel %vm1572, %v6055, 0.0
  %v6060 = vadd.f32 %v6058, %v6059
  %v6061 = vrot.slane %v6060, 4
  %v6062 = vadd.f32 %v6060, %v6061
  %v6063 = vrot.slane %v6062, 2
  %v6064 = vadd.f32 %v6062, %v6063
  %v6065 = vrot.slane %v6064, 1
  %v6066 = vadd.f32 %v6064, %v6065
  %v6067 = vmul.f32 %v6066, %v1368
  %v6068 = vsub.f32 %v6050, %v6067
  %v6069 = vsub.f32 %v6055, %v6067
  %v6070 = vmul.f32 %v6068, %v6068
  %v6071 = vmul.f32 %v6069, %v6069
  %v6072 = vsel %vm1572, %v6070, 0.0
  %v6073 = vsel %vm1572, %v6071, 0.0
  %v6074 = vadd.f32 %v6072, %v6073
  %v6075 = vrot.slane %v6074, 4
  %v6076 = vadd.f32 %v6074, %v6075
  %v6077 = vrot.slane %v6076, 2
  %v6078 = vadd.f32 %v6076, %v6077
  %v6079 = vrot.slane %v6078, 1
  %v6080 = vadd.f32 %v6078, %v6079
  %v6081 = vmul.f32 %v6080, %v1368
  %v6082 = vadd.f32 %v6081, 1e-05
  %v6083 = vrsqrt.pop %v6082
  %v6084 = vmul.f32 %v6068, %v6083
  %v6085 = vmul.f32 %v6069, %v6083
  %s6086 = scalar_lea.vmem %s49, 16
  %v6087 = vld [vmem:[%s6086] sm:$0xff]
  %v6088 = vld [vmem:[%s6086 + $0x8] sm:$0xff]
  %6090 = vset.pattern.permute.xlu0 0
  %6091 = vperm.xlu0 %6090, %v6087
  %v6092 = vpop.permute.xlu0 %6091
  %6095 = vset.pattern.permute.xlu0 0
  %6096 = vperm.xlu0 %6095, %v6088
  %v6097 = vpop.permute.xlu0 %6096
  %v6099 = vmul.f32 %v6084, %v6092
  %v6100 = vmul.f32 %v6085, %v6097
  %s6101 = scalar_lea.vmem %s51, 16
  %v6102 = vld [vmem:[%s6101] sm:$0xff]
  %v6103 = vld [vmem:[%s6101 + $0x8] sm:$0xff]
  %6105 = vset.pattern.permute.xlu0 0
  %6106 = vperm.xlu0 %6105, %v6102
  %v6107 = vpop.permute.xlu0 %6106
  %6110 = vset.pattern.permute.xlu0 0
  %6111 = vperm.xlu0 %6110, %v6103
  %v6112 = vpop.permute.xlu0 %6111
  %v6114 = vadd.f32 %v6099, %v6107
  %v6115 = vadd.f32 %v6100, %v6112
  %v6116 = vmul.f32 %v6114, %v1108
  %v6117 = vmul.f32 %v6115, %v1109
  %v6118 = vmul.f32 %v6114, %v1110
  %v6119 = vmul.f32 %v6115, %v1111
  %v6120 = vmul.f32 %v6114, %v1112
  %v6121 = vmul.f32 %v6115, %v1113
  %v6122 = vmul.f32 %v6114, %v1114
  %v6123 = vmul.f32 %v6115, %v1115
  %v6124 = vmul.f32 %v6114, %v1116
  %v6125 = vmul.f32 %v6115, %v1117
  %v6126 = vmul.f32 %v6114, %v1118
  %v6127 = vmul.f32 %v6115, %v1119
  %v6128 = vmul.f32 %v6114, %v1120
  %v6129 = vmul.f32 %v6115, %v1121
  %v6130 = vmul.f32 %v6114, %v1122
  %v6131 = vmul.f32 %v6115, %v1123
  %v6132 = vmul.f32 %v6114, %v1124
  %v6133 = vmul.f32 %v6115, %v1125
  %v6135 = vsel %vm1572, %v6116, 0
  %v6138 = vsel %vm1572, %v6117, 0
  %v6141 = vsel %vm1572, %v6118, 0
  %v6144 = vsel %vm1572, %v6119, 0
  %v6147 = vsel %vm1572, %v6120, 0
  %v6150 = vsel %vm1572, %v6121, 0
  %v6153 = vsel %vm1572, %v6122, 0
  %v6156 = vsel %vm1572, %v6123, 0
  %v6159 = vsel %vm1572, %v6124, 0
  %v6162 = vsel %vm1572, %v6125, 0
  %v6165 = vsel %vm1572, %v6126, 0
  %v6168 = vsel %vm1572, %v6127, 0
  %v6171 = vsel %vm1572, %v6128, 0
  %v6174 = vsel %vm1572, %v6129, 0
  %v6177 = vsel %vm1572, %v6130, 0
  %v6180 = vsel %vm1572, %v6131, 0
  %v6183 = vsel %vm1572, %v6132, 0
  %v6186 = vsel %vm1572, %v6133, 0
  %6188 = vmatprep.subr.mxu0 0.0
  %6189 = vmatpush1.msra.mxu0 %v1130
  %6190 = vmatprep.subr.mxu0 0.0
  %6191 = vmatpush1.msra.mxu0 %v1131
  %6192 = vmatprep.subr.mxu0 0.0
  %6193 = vmatpush1.msra.mxu0 %v1132
  %6194 = vmatprep.subr.mxu0 0.0
  %6195 = vmatpush1.msra.mxu0 %v1703
  %6196 = vmatprep.subr.mxu0 0.0
  %6197 = vmatpush1.msra.mxu0 0.0
  %6198 = vmatprep.subr.mxu0 0.0
  %6199 = vmatpush1.msra.mxu0 0.0
  %6200 = vmatprep.subr.mxu0 0.0
  %6201 = vmatpush1.msra.mxu0 0.0
  %6202 = vmatprep.subr.mxu0 0.0
  %6203 = vmatpush1.msra.mxu0 0.0
  %6204 = vmatprep.subr.mxu0 0.0
  %6205 = vmatpush1.msra.mxu0 0.0
  %6206 = vmatprep.subr.mxu0 0.0
  %6207 = vmatpush1.msra.mxu0 0.0
  %6208 = vmatprep.subr.mxu0 0.0
  %6209 = vmatpush1.msra.mxu0 0.0
  %6210 = vmatprep.subr.mxu0 0.0
  %6211 = vmatpush1.msra.mxu0 0.0
  %6212 = vmatprep.subr.mxu0 0.0
  %6213 = vmatpush1.msra.mxu0 0.0
  %6214 = vmatprep.subr.mxu0 0.0
  %6215 = vmatpush1.msra.mxu0 0.0
  %6216 = vmatprep.subr.mxu0 0.0
  %6217 = vmatpush1.msra.mxu0 0.0
  %6218 = vmatprep.subr.mxu0 0.0
  %6219 = vmatpush1.msra.mxu0 0.0
  %6220 = vmatprep.subr.mxu0 0.0
  %6221 = vmatpush1.msra.mxu0 0.0
  %6222 = vmatprep.subr.mxu0 0.0
  %6223 = vmatpush1.msra.mxu0 0.0
  %6224 = vmatprep.subr.mxu0 0.0
  %6225 = vmatpush1.msra.mxu0 0.0
  %6226 = vmatprep.subr.mxu0 0.0
  %6227 = vmatpush1.msra.mxu0 0.0
  %6228 = vmatprep.subr.mxu0 0.0
  %6229 = vmatpush1.msra.mxu0 0.0
  %6230 = vmatprep.subr.mxu0 0.0
  %6231 = vmatpush1.msra.mxu0 0.0
  %6232 = vmatprep.subr.mxu0 0.0
  %6233 = vmatpush1.msra.mxu0 0.0
  %6234 = vmatprep.subr.mxu0 0.0
  %6235 = vmatpush1.msra.mxu0 0.0
  %6236 = vmatprep.subr.mxu0 0.0
  %6237 = vmatpush1.msra.mxu0 0.0
  %6238 = vmatprep.subr.mxu0 0.0
  %6239 = vmatpush1.msra.mxu0 0.0
  %6240 = vmatprep.subr.mxu0 0.0
  %6241 = vmatpush1.msra.mxu0 0.0
  %6242 = vmatprep.subr.mxu0 0.0
  %6243 = vmatpush1.msra.mxu0 0.0
  %6244 = vmatprep.subr.mxu0 0.0
  %6245 = vmatpush1.msra.mxu0 0.0
  %6246 = vmatprep.subr.mxu0 0.0
  %6247 = vmatpush1.msra.mxu0 0.0
  %6248 = vmatprep.subr.mxu0 0.0
  %6249 = vmatpush1.msra.mxu0 0.0
  %6250 = vmatprep.subr.mxu0 0.0
  %6251 = vmatpush1.msra.mxu0 0.0
  %6252 = vmatprep.mubr.f32.mxu0 0.0
  %6253 = vmatmul.mubr.f32.gmra.mrb[0].mxu0 %v6135
  %v6254 = vpop.f32.mrb[0].mxu0
  %v6255 = vadd.f32 0.0, %v6254
  %v6256 = vpop.f32.mrb[0].mxu0
  %6257 = vmatprep.mubr.f32.mxu0 0.0
  %6258 = vmatmul.mubr.f32.gmra.mrb[0].mxu0 %v6138
  %v6259 = vpop.f32.mrb[0].mxu0
  %v6260 = vadd.f32 0.0, %v6259
  %v6261 = vpop.f32.mrb[0].mxu0
  %6262 = vmatprep.mubr.f32.mxu0 0.0
  %6263 = vmatmul.mubr.f32.gmra.mrb[0].mxu0 %v6141
  %v6264 = vpop.f32.mrb[0].mxu0
  %v6265 = vadd.f32 0.0, %v6264
  %v6266 = vpop.f32.mrb[0].mxu0
  %6267 = vmatprep.mubr.f32.mxu0 0.0
  %6268 = vmatmul.mubr.f32.gmra.mrb[0].mxu0 %v6144
  %v6269 = vpop.f32.mrb[0].mxu0
  %v6270 = vadd.f32 0.0, %v6269
  %v6271 = vpop.f32.mrb[0].mxu0
  %6272 = vmatprep.mubr.f32.mxu0 0.0
  %6273 = vmatmul.mubr.f32.gmra.mrb[0].mxu0 %v6147
  %v6274 = vpop.f32.mrb[0].mxu0
  %v6275 = vadd.f32 0.0, %v6274
  %v6276 = vpop.f32.mrb[0].mxu0
  %6277 = vmatprep.mubr.f32.mxu0 0.0
  %6278 = vmatmul.mubr.f32.gmra.mrb[0].mxu0 %v6150
  %v6279 = vpop.f32.mrb[0].mxu0
  %v6280 = vadd.f32 0.0, %v6279
  %v6281 = vpop.f32.mrb[0].mxu0
  %6282 = vmatprep.mubr.f32.mxu0 0.0
  %6283 = vmatmul.mubr.f32.gmra.mrb[0].mxu0 %v6153
  %v6284 = vpop.f32.mrb[0].mxu0
  %v6285 = vadd.f32 0.0, %v6284
  %v6286 = vpop.f32.mrb[0].mxu0
  %6287 = vmatprep.mubr.f32.mxu0 0.0
  %6288 = vmatmul.mubr.f32.gmra.mrb[0].mxu0 %v6156
  %v6289 = vpop.f32.mrb[0].mxu0
  %v6290 = vadd.f32 0.0, %v6289
  %v6291 = vpop.f32.mrb[0].mxu0
  %6292 = vmatprep.mubr.f32.mxu0 0.0
  %6293 = vmatmul.mubr.f32.gmra.mrb[0].mxu0 %v6159
  %v6294 = vpop.f32.mrb[0].mxu0
  %v6295 = vadd.f32 0.0, %v6294
  %v6296 = vpop.f32.mrb[0].mxu0
  %6297 = vmatprep.mubr.f32.mxu0 0.0
  %6298 = vmatmul.mubr.f32.gmra.mrb[0].mxu0 %v6162
  %v6299 = vpop.f32.mrb[0].mxu0
  %v6300 = vadd.f32 0.0, %v6299
  %v6301 = vpop.f32.mrb[0].mxu0
  %6302 = vmatprep.mubr.f32.mxu0 0.0
  %6303 = vmatmul.mubr.f32.gmra.mrb[0].mxu0 %v6165
  %v6304 = vpop.f32.mrb[0].mxu0
  %v6305 = vadd.f32 0.0, %v6304
  %v6306 = vpop.f32.mrb[0].mxu0
  %6307 = vmatprep.mubr.f32.mxu0 0.0
  %6308 = vmatmul.mubr.f32.gmra.mrb[0].mxu0 %v6168
  %v6309 = vpop.f32.mrb[0].mxu0
  %v6310 = vadd.f32 0.0, %v6309
  %v6311 = vpop.f32.mrb[0].mxu0
  %6312 = vmatprep.mubr.f32.mxu0 0.0
  %6313 = vmatmul.mubr.f32.gmra.mrb[0].mxu0 %v6171
  %v6314 = vpop.f32.mrb[0].mxu0
  %v6315 = vadd.f32 0.0, %v6314
  %v6316 = vpop.f32.mrb[0].mxu0
  %6317 = vmatprep.mubr.f32.mxu0 0.0
  %6318 = vmatmul.mubr.f32.gmra.mrb[0].mxu0 %v6174
  %v6319 = vpop.f32.mrb[0].mxu0
  %v6320 = vadd.f32 0.0, %v6319
  %v6321 = vpop.f32.mrb[0].mxu0
  %6322 = vmatprep.mubr.f32.mxu0 0.0
  %6323 = vmatmul.mubr.f32.gmra.mrb[0].mxu0 %v6177
  %v6324 = vpop.f32.mrb[0].mxu0
  %v6325 = vadd.f32 0.0, %v6324
  %v6326 = vpop.f32.mrb[0].mxu0
  %6327 = vmatprep.mubr.f32.mxu0 0.0
  %6328 = vmatmul.mubr.f32.gmra.mrb[0].mxu0 %v6180
  %v6329 = vpop.f32.mrb[0].mxu0
  %v6330 = vadd.f32 0.0, %v6329
  %v6331 = vpop.f32.mrb[0].mxu0
  %6332 = vmatprep.mubr.f32.mxu0 0.0
  %6333 = vmatmul.mubr.f32.gmra.mrb[0].mxu0 %v6183
  %v6334 = vpop.f32.mrb[0].mxu0
  %v6335 = vadd.f32 0.0, %v6334
  %v6336 = vpop.f32.mrb[0].mxu0
  %6337 = vmatprep.mubr.f32.mxu0 0.0
  %6338 = vmatmul.mubr.f32.gmra.mrb[0].mxu0 %v6186
  %v6339 = vpop.f32.mrb[0].mxu0
  %v6340 = vadd.f32 0.0, %v6339
  %v6341 = vpop.f32.mrb[0].mxu0
  %6342 = vdwg.mxu0
  %v6343 = vmul.f32 %v6255, %v1152
  %v6344 = vmul.f32 %v6260, %v1153
  %v6345 = vmul.f32 %v6265, %v1154
  %v6346 = vmul.f32 %v6270, %v1155
  %v6347 = vmul.f32 %v6275, %v1156
  %v6348 = vmul.f32 %v6280, %v1157
  %v6349 = vmul.f32 %v6285, %v1158
  %v6350 = vmul.f32 %v6290, %v1159
  %v6351 = vmul.f32 %v6295, %v1160
  %v6352 = vmul.f32 %v6300, %v1161
  %v6353 = vmul.f32 %v6305, %v1162
  %v6354 = vmul.f32 %v6310, %v1163
  %v6355 = vmul.f32 %v6315, %v1164
  %v6356 = vmul.f32 %v6320, %v1165
  %v6357 = vmul.f32 %v6325, %v1166
  %v6358 = vmul.f32 %v6330, %v1167
  %v6359 = vmul.f32 %v6335, %v1168
  %v6360 = vmul.f32 %v6340, %v1169
  %6361 = vmatprep.subr.mxu0 0.0
  %6362 = vmatpush1.msra.mxu0 %v5686
  %6363 = vmatprep.subr.mxu0 0.0
  %6364 = vmatpush1.msra.mxu0 %v5687
  %6365 = vmatprep.subr.mxu0 0.0
  %6366 = vmatpush1.msra.mxu0 0.0
  %6367 = vmatprep.subr.mxu0 0.0
  %6368 = vmatpush1.msra.mxu0 0.0
  %6369 = vmatprep.subr.mxu0 0.0
  %6370 = vmatpush1.msra.mxu0 0.0
  %6371 = vmatprep.subr.mxu0 0.0
  %6372 = vmatpush1.msra.mxu0 0.0
  %6373 = vmatprep.subr.mxu0 0.0
  %6374 = vmatpush1.msra.mxu0 0.0
  %6375 = vmatprep.subr.mxu0 0.0
  %6376 = vmatpush1.msra.mxu0 0.0
  %6377 = vmatprep.subr.mxu0 0.0
  %6378 = vmatpush1.msra.mxu0 0.0
  %6379 = vmatprep.subr.mxu0 0.0
  %6380 = vmatpush1.msra.mxu0 0.0
  %6381 = vmatprep.subr.mxu0 0.0
  %6382 = vmatpush1.msra.mxu0 0.0
  %6383 = vmatprep.subr.mxu0 0.0
  %6384 = vmatpush1.msra.mxu0 0.0
  %6385 = vmatprep.subr.mxu0 0.0
  %6386 = vmatpush1.msra.mxu0 0.0
  %6387 = vmatprep.subr.mxu0 0.0
  %6388 = vmatpush1.msra.mxu0 0.0
  %6389 = vmatprep.subr.mxu0 0.0
  %6390 = vmatpush1.msra.mxu0 0.0
  %6391 = vmatprep.subr.mxu0 0.0
  %6392 = vmatpush1.msra.mxu0 0.0
  %6393 = vmatprep.subr.mxu0 0.0
  %6394 = vmatpush1.msra.mxu0 0.0
  %6395 = vmatprep.subr.mxu0 0.0
  %6396 = vmatpush1.msra.mxu0 0.0
  %6397 = vmatprep.subr.mxu0 0.0
  %6398 = vmatpush1.msra.mxu0 0.0
  %6399 = vmatprep.subr.mxu0 0.0
  %6400 = vmatpush1.msra.mxu0 0.0
  %6401 = vmatprep.subr.mxu0 0.0
  %6402 = vmatpush1.msra.mxu0 0.0
  %6403 = vmatprep.subr.mxu0 0.0
  %6404 = vmatpush1.msra.mxu0 0.0
  %6405 = vmatprep.subr.mxu0 0.0
  %6406 = vmatpush1.msra.mxu0 0.0
  %6407 = vmatprep.subr.mxu0 0.0
  %6408 = vmatpush1.msra.mxu0 0.0
  %6409 = vmatprep.subr.mxu0 0.0
  %6410 = vmatpush1.msra.mxu0 0.0
  %6411 = vmatprep.subr.mxu0 0.0
  %6412 = vmatpush1.msra.mxu0 0.0
  %6413 = vmatprep.subr.mxu0 0.0
  %6414 = vmatpush1.msra.mxu0 0.0
  %6415 = vmatprep.subr.mxu0 0.0
  %6416 = vmatpush1.msra.mxu0 0.0
  %6417 = vmatprep.subr.mxu0 0.0
  %6418 = vmatpush1.msra.mxu0 0.0
  %6419 = vmatprep.subr.mxu0 0.0
  %6420 = vmatpush1.msra.mxu0 0.0
  %6421 = vmatprep.subr.mxu0 0.0
  %6422 = vmatpush1.msra.mxu0 0.0
  %6423 = vmatprep.subr.mxu0 0.0
  %6424 = vmatpush1.msra.mxu0 0.0
  %6425 = vmatprep.mubr.f32.mxu0 0.0
  %6426 = vmatmul.mubr.f32.gmra.mrb[0].mxu0 %v1879
  %v6427 = vpop.f32.mrb[0].mxu0
  %v6428 = vadd.f32 %v5694, %v6427
  %v6429 = vpop.f32.mrb[0].mxu0
  %6430 = vmatprep.mubr.f32.mxu0 0.0
  %6431 = vmatmul.mubr.f32.gmra.mrb[0].mxu0 %v1882
  %v6432 = vpop.f32.mrb[0].mxu0
  %v6433 = vadd.f32 %v5694, %v6432
  %v6434 = vpop.f32.mrb[0].mxu0
  %6435 = vmatprep.mubr.f32.mxu0 0.0
  %6436 = vmatmul.mubr.f32.gmra.mrb[0].mxu0 %v1885
  %v6437 = vpop.f32.mrb[0].mxu0
  %v6438 = vadd.f32 %v5694, %v6437
  %v6439 = vpop.f32.mrb[0].mxu0
  %6440 = vmatprep.mubr.f32.mxu0 0.0
  %6441 = vmatmul.mubr.f32.gmra.mrb[0].mxu0 %v1888
  %v6442 = vpop.f32.mrb[0].mxu0
  %v6443 = vadd.f32 %v5694, %v6442
  %v6444 = vpop.f32.mrb[0].mxu0
  %6445 = vmatprep.mubr.f32.mxu0 0.0
  %6446 = vmatmul.mubr.f32.gmra.mrb[0].mxu0 %v1891
  %v6447 = vpop.f32.mrb[0].mxu0
  %v6448 = vadd.f32 %v5694, %v6447
  %v6449 = vpop.f32.mrb[0].mxu0
  %6450 = vmatprep.mubr.f32.mxu0 0.0
  %6451 = vmatmul.mubr.f32.gmra.mrb[0].mxu0 %v1894
  %v6452 = vpop.f32.mrb[0].mxu0
  %v6453 = vadd.f32 %v5694, %v6452
  %v6454 = vpop.f32.mrb[0].mxu0
  %6455 = vmatprep.mubr.f32.mxu0 0.0
  %6456 = vmatmul.mubr.f32.gmra.mrb[0].mxu0 %v1897
  %v6457 = vpop.f32.mrb[0].mxu0
  %v6458 = vadd.f32 %v5694, %v6457
  %v6459 = vpop.f32.mrb[0].mxu0
  %6460 = vdwg.mxu0
  %v6461 = vmul.f32 %v6428, %v1177
  %v6462 = vmul.f32 %v6433, %v1178
  %v6463 = vmul.f32 %v6438, %v1179
  %v6464 = vmul.f32 %v6443, %v1180
  %v6465 = vmul.f32 %v6448, %v1181
  %v6466 = vmul.f32 %v6453, %v1182
  %v6467 = vmul.f32 %v6458, %v1183
  %v6469 = vsel %vm1212, %v5953, 0
  %v6472 = vsel %vm1212, %v5954, 0
  %v6475 = vsel %vm1212, %v5955, 0
  %v6478 = vsel %vm1212, %v5956, 0
  %v6481 = vsel %vm1212, %v5957, 0
  %v6484 = vsel %vm1212, %v5958, 0
  %v6487 = vsel %vm1212, %v5959, 0
  %v6490 = vsel %vm1212, %v5960, 0
  %6492 = vmatprep.subr.mxu0 %v281
  %6493 = vmatpush1.msra.mxu0 %v280
  %6494 = vmatprep.subr.mxu0 %v283
  %6495 = vmatpush1.msra.mxu0 %v282
  %6496 = vmatprep.subr.mxu0 0.0
  %6497 = vmatpush1.msra.mxu0 0.0
  %6498 = vmatprep.subr.mxu0 0.0
  %6499 = vmatpush1.msra.mxu0 0.0
  %6500 = vmatprep.subr.mxu0 0.0
  %6501 = vmatpush1.msra.mxu0 0.0
  %6502 = vmatprep.subr.mxu0 0.0
  %6503 = vmatpush1.msra.mxu0 0.0
  %6504 = vmatprep.subr.mxu0 0.0
  %6505 = vmatpush1.msra.mxu0 0.0
  %6506 = vmatprep.subr.mxu0 0.0
  %6507 = vmatpush1.msra.mxu0 0.0
  %6508 = vmatprep.subr.mxu0 0.0
  %6509 = vmatpush1.msra.mxu0 0.0
  %6510 = vmatprep.subr.mxu0 0.0
  %6511 = vmatpush1.msra.mxu0 0.0
  %6512 = vmatprep.subr.mxu0 0.0
  %6513 = vmatpush1.msra.mxu0 0.0
  %6514 = vmatprep.subr.mxu0 0.0
  %6515 = vmatpush1.msra.mxu0 0.0
  %6516 = vmatprep.subr.mxu0 0.0
  %6517 = vmatpush1.msra.mxu0 0.0
  %6518 = vmatprep.subr.mxu0 0.0
  %6519 = vmatpush1.msra.mxu0 0.0
  %6520 = vmatprep.subr.mxu0 0.0
  %6521 = vmatpush1.msra.mxu0 0.0
  %6522 = vmatprep.subr.mxu0 0.0
  %6523 = vmatpush1.msra.mxu0 0.0
  %6524 = vmatprep.subr.mxu0 0.0
  %6525 = vmatpush1.msra.mxu0 0.0
  %6526 = vmatprep.subr.mxu0 0.0
  %6527 = vmatpush1.msra.mxu0 0.0
  %6528 = vmatprep.subr.mxu0 0.0
  %6529 = vmatpush1.msra.mxu0 0.0
  %6530 = vmatprep.subr.mxu0 0.0
  %6531 = vmatpush1.msra.mxu0 0.0
  %6532 = vmatprep.subr.mxu0 0.0
  %6533 = vmatpush1.msra.mxu0 0.0
  %6534 = vmatprep.subr.mxu0 0.0
  %6535 = vmatpush1.msra.mxu0 0.0
  %6536 = vmatprep.subr.mxu0 0.0
  %6537 = vmatpush1.msra.mxu0 0.0
  %6538 = vmatprep.subr.mxu0 0.0
  %6539 = vmatpush1.msra.mxu0 0.0
  %6540 = vmatprep.subr.mxu0 0.0
  %6541 = vmatpush1.msra.mxu0 0.0
  %6542 = vmatprep.subr.mxu0 0.0
  %6543 = vmatpush1.msra.mxu0 0.0
  %6544 = vmatprep.subr.mxu0 0.0
  %6545 = vmatpush1.msra.mxu0 0.0
  %6546 = vmatprep.subr.mxu0 0.0
  %6547 = vmatpush1.msra.mxu0 0.0
  %6548 = vmatprep.subr.mxu0 0.0
  %6549 = vmatpush1.msra.mxu0 0.0
  %6550 = vmatprep.subr.mxu0 0.0
  %6551 = vmatpush1.msra.mxu0 0.0
  %6552 = vmatprep.subr.mxu0 0.0
  %6553 = vmatpush1.msra.mxu0 0.0
  %6554 = vmatprep.subr.mxu0 0.0
  %6555 = vmatpush1.msra.mxu0 0.0
  %6556 = vmatprep.mubr.f32.mxu0 0.0
  %6557 = vmatmul.mubr.f32.gmra.mrb[0].mxu0 %v6469
  %v6558 = vpop.f32.mrb[0].mxu0
  %v6559 = vadd.f32 0.0, %v6558
  %v6560 = vpop.f32.mrb[0].mxu0
  %v6561 = vadd.f32 0.0, %v6560
  %6562 = vmatprep.mubr.f32.mxu0 0.0
  %6563 = vmatmul.mubr.f32.gmra.mrb[0].mxu0 %v6472
  %v6564 = vpop.f32.mrb[0].mxu0
  %v6565 = vadd.f32 0.0, %v6564
  %v6566 = vpop.f32.mrb[0].mxu0
  %v6567 = vadd.f32 0.0, %v6566
  %6568 = vmatprep.mubr.f32.mxu0 0.0
  %6569 = vmatmul.mubr.f32.gmra.mrb[0].mxu0 %v6475
  %v6570 = vpop.f32.mrb[0].mxu0
  %v6571 = vadd.f32 0.0, %v6570
  %v6572 = vpop.f32.mrb[0].mxu0
  %v6573 = vadd.f32 0.0, %v6572
  %6574 = vmatprep.mubr.f32.mxu0 0.0
  %6575 = vmatmul.mubr.f32.gmra.mrb[0].mxu0 %v6478
  %v6576 = vpop.f32.mrb[0].mxu0
  %v6577 = vadd.f32 0.0, %v6576
  %v6578 = vpop.f32.mrb[0].mxu0
  %v6579 = vadd.f32 0.0, %v6578
  %6580 = vmatprep.mubr.f32.mxu0 0.0
  %6581 = vmatmul.mubr.f32.gmra.mrb[0].mxu0 %v6481
  %v6582 = vpop.f32.mrb[0].mxu0
  %v6583 = vadd.f32 0.0, %v6582
  %v6584 = vpop.f32.mrb[0].mxu0
  %v6585 = vadd.f32 0.0, %v6584
  %6586 = vmatprep.mubr.f32.mxu0 0.0
  %6587 = vmatmul.mubr.f32.gmra.mrb[0].mxu0 %v6484
  %v6588 = vpop.f32.mrb[0].mxu0
  %v6589 = vadd.f32 0.0, %v6588
  %v6590 = vpop.f32.mrb[0].mxu0
  %v6591 = vadd.f32 0.0, %v6590
  %6592 = vmatprep.mubr.f32.mxu0 0.0
  %6593 = vmatmul.mubr.f32.gmra.mrb[0].mxu0 %v6487
  %v6594 = vpop.f32.mrb[0].mxu0
  %v6595 = vadd.f32 0.0, %v6594
  %v6596 = vpop.f32.mrb[0].mxu0
  %v6597 = vadd.f32 0.0, %v6596
  %6598 = vmatprep.mubr.f32.mxu0 0.0
  %6599 = vmatmul.mubr.f32.gmra.mrb[0].mxu0 %v6490
  %v6600 = vpop.f32.mrb[0].mxu0
  %v6601 = vadd.f32 0.0, %v6600
  %v6602 = vpop.f32.mrb[0].mxu0
  %v6603 = vadd.f32 0.0, %v6602
  %6604 = vdwg.mxu0
  %v6605 = vmul.f32 %v6559, %v370
  %v6606 = vmul.f32 %v6561, %v371
  %v6607 = vmul.f32 %v6565, %v372
  %v6608 = vmul.f32 %v6567, %v373
  %v6609 = vmul.f32 %v6571, %v374
  %v6610 = vmul.f32 %v6573, %v375
  %v6611 = vmul.f32 %v6577, %v376
  %v6612 = vmul.f32 %v6579, %v377
  %v6613 = vmul.f32 %v6583, %v378
  %v6614 = vmul.f32 %v6585, %v379
  %v6615 = vmul.f32 %v6589, %v380
  %v6616 = vmul.f32 %v6591, %v381
  %v6617 = vmul.f32 %v6595, %v382
  %v6618 = vmul.f32 %v6597, %v383
  %v6619 = vmul.f32 %v6601, %v384
  %v6620 = vmul.f32 %v6603, %v385
  %v6621 = vmul.f32 %v6559, %v386
  %v6622 = vmul.f32 %v6561, %v387
  %v6623 = vmul.f32 %v6565, %v388
  %v6624 = vmul.f32 %v6567, %v389
  %v6625 = vmul.f32 %v6571, %v390
  %v6626 = vmul.f32 %v6573, %v391
  %v6627 = vmul.f32 %v6577, %v392
  %v6628 = vmul.f32 %v6579, %v393
  %v6629 = vmul.f32 %v6583, %v394
  %v6630 = vmul.f32 %v6585, %v395
  %v6631 = vmul.f32 %v6589, %v396
  %v6632 = vmul.f32 %v6591, %v397
  %v6633 = vmul.f32 %v6595, %v398
  %v6634 = vmul.f32 %v6597, %v399
  %v6635 = vmul.f32 %v6601, %v400
  %v6636 = vmul.f32 %v6603, %v401
  %v6637 = vmul.f32 %v6559, %v402
  %v6638 = vmul.f32 %v6561, %v403
  %v6639 = vmul.f32 %v6565, %v404
  %v6640 = vmul.f32 %v6567, %v405
  %v6641 = vmul.f32 %v6571, %v406
  %v6642 = vmul.f32 %v6573, %v407
  %v6643 = vmul.f32 %v6577, %v408
  %v6644 = vmul.f32 %v6579, %v409
  %v6645 = vmul.f32 %v6583, %v410
  %v6646 = vmul.f32 %v6585, %v411
  %v6647 = vmul.f32 %v6589, %v412
  %v6648 = vmul.f32 %v6591, %v413
  %v6649 = vmul.f32 %v6595, %v414
  %v6650 = vmul.f32 %v6597, %v415
  %v6651 = vmul.f32 %v6601, %v416
  %v6652 = vmul.f32 %v6603, %v417
  %v6653 = vmul.f32 %v6559, %v418
  %v6654 = vmul.f32 %v6561, %v419
  %v6655 = vmul.f32 %v6565, %v420
  %v6656 = vmul.f32 %v6567, %v421
  %v6657 = vmul.f32 %v6571, %v422
  %v6658 = vmul.f32 %v6573, %v423
  %v6659 = vmul.f32 %v6577, %v424
  %v6660 = vmul.f32 %v6579, %v425
  %v6661 = vmul.f32 %v6583, %v426
  %v6662 = vmul.f32 %v6585, %v427
  %v6663 = vmul.f32 %v6589, %v428
  %v6664 = vmul.f32 %v6591, %v429
  %v6665 = vmul.f32 %v6595, %v430
  %v6666 = vmul.f32 %v6597, %v431
  %v6667 = vmul.f32 %v6601, %v432
  %v6668 = vmul.f32 %v6603, %v433
  %v6669 = vmul.f32 %v6559, %v434
  %v6670 = vmul.f32 %v6561, %v435
  %v6671 = vmul.f32 %v6565, %v436
  %v6672 = vmul.f32 %v6567, %v437
  %v6673 = vmul.f32 %v6571, %v438
  %v6674 = vmul.f32 %v6573, %v439
  %v6675 = vmul.f32 %v6577, %v440
  %v6676 = vmul.f32 %v6579, %v441
  %v6677 = vmul.f32 %v6583, %v442
  %v6678 = vmul.f32 %v6585, %v443
  %v6679 = vmul.f32 %v6589, %v444
  %v6680 = vmul.f32 %v6591, %v445
  %v6681 = vmul.f32 %v6595, %v446
  %v6682 = vmul.f32 %v6597, %v447
  %v6683 = vmul.f32 %v6601, %v448
  %v6684 = vmul.f32 %v6603, %v449
  %v6685 = vmul.f32 %v6559, %v450
  %v6686 = vmul.f32 %v6561, %v451
  %v6687 = vmul.f32 %v6565, %v452
  %v6688 = vmul.f32 %v6567, %v453
  %v6689 = vmul.f32 %v6571, %v454
  %v6690 = vmul.f32 %v6573, %v455
  %v6691 = vmul.f32 %v6577, %v456
  %v6692 = vmul.f32 %v6579, %v457
  %v6693 = vmul.f32 %v6583, %v458
  %v6694 = vmul.f32 %v6585, %v459
  %v6695 = vmul.f32 %v6589, %v460
  %v6696 = vmul.f32 %v6591, %v461
  %v6697 = vmul.f32 %v6595, %v462
  %v6698 = vmul.f32 %v6597, %v463
  %v6699 = vmul.f32 %v6601, %v464
  %v6700 = vmul.f32 %v6603, %v465
  %v6701 = vmul.f32 %v6559, %v466
  %v6702 = vmul.f32 %v6561, %v467
  %v6703 = vmul.f32 %v6565, %v468
  %v6704 = vmul.f32 %v6567, %v469
  %v6705 = vmul.f32 %v6571, %v470
  %v6706 = vmul.f32 %v6573, %v471
  %v6707 = vmul.f32 %v6577, %v472
  %v6708 = vmul.f32 %v6579, %v473
  %v6709 = vmul.f32 %v6583, %v474
  %v6710 = vmul.f32 %v6585, %v475
  %v6711 = vmul.f32 %v6589, %v476
  %v6712 = vmul.f32 %v6591, %v477
  %v6713 = vmul.f32 %v6595, %v478
  %v6714 = vmul.f32 %v6597, %v479
  %v6715 = vmul.f32 %v6601, %v480
  %v6716 = vmul.f32 %v6603, %v481
  %v6717 = vmul.f32 %v6559, %v482
  %v6718 = vmul.f32 %v6561, %v483
  %v6719 = vmul.f32 %v6565, %v484
  %v6720 = vmul.f32 %v6567, %v485
  %v6721 = vmul.f32 %v6571, %v486
  %v6722 = vmul.f32 %v6573, %v487
  %v6723 = vmul.f32 %v6577, %v488
  %v6724 = vmul.f32 %v6579, %v489
  %v6725 = vmul.f32 %v6583, %v490
  %v6726 = vmul.f32 %v6585, %v491
  %v6727 = vmul.f32 %v6589, %v492
  %v6728 = vmul.f32 %v6591, %v493
  %v6729 = vmul.f32 %v6595, %v494
  %v6730 = vmul.f32 %v6597, %v495
  %v6731 = vmul.f32 %v6601, %v496
  %v6732 = vmul.f32 %v6603, %v497
  %v6733 = vmul.f32 %v6559, %v498
  %v6734 = vmul.f32 %v6561, %v499
  %v6735 = vmul.f32 %v6565, %v500
  %v6736 = vmul.f32 %v6567, %v501
  %v6737 = vmul.f32 %v6571, %v502
  %v6738 = vmul.f32 %v6573, %v503
  %v6739 = vmul.f32 %v6577, %v504
  %v6740 = vmul.f32 %v6579, %v505
  %v6741 = vmul.f32 %v6583, %v506
  %v6742 = vmul.f32 %v6585, %v507
  %v6743 = vmul.f32 %v6589, %v508
  %v6744 = vmul.f32 %v6591, %v509
  %v6745 = vmul.f32 %v6595, %v510
  %v6746 = vmul.f32 %v6597, %v511
  %v6747 = vmul.f32 %v6601, %v512
  %v6748 = vmul.f32 %v6603, %v513
  %6749 = vmatprep.subr.mxu0 %v6606
  %6750 = vmatpush1.msra.mxu0 %v6605
  %6751 = vmatprep.subr.mxu0 %v6608
  %6752 = vmatpush1.msra.mxu0 %v6607
  %6753 = vmatprep.subr.mxu0 %v6610
  %6754 = vmatpush1.msra.mxu0 %v6609
  %6755 = vmatprep.subr.mxu0 %v6612
  %6756 = vmatpush1.msra.mxu0 %v6611
  %6757 = vmatprep.subr.mxu0 %v6614
  %6758 = vmatpush1.msra.mxu0 %v6613
  %6759 = vmatprep.subr.mxu0 %v6616
  %6760 = vmatpush1.msra.mxu0 %v6615
  %6761 = vmatprep.subr.mxu0 %v6618
  %6762 = vmatpush1.msra.mxu0 %v6617
  %6763 = vmatprep.subr.mxu0 %v6620
  %6764 = vmatpush1.msra.mxu0 %v6619
  %6765 = vmatprep.subr.mxu0 %v6622
  %6766 = vmatpush1.msra.mxu0 %v6621
  %6767 = vmatprep.subr.mxu0 %v6624
  %6768 = vmatpush1.msra.mxu0 %v6623
  %6769 = vmatprep.subr.mxu0 %v6626
  %6770 = vmatpush1.msra.mxu0 %v6625
  %6771 = vmatprep.subr.mxu0 %v6628
  %6772 = vmatpush1.msra.mxu0 %v6627
  %6773 = vmatprep.subr.mxu0 %v6630
  %6774 = vmatpush1.msra.mxu0 %v6629
  %6775 = vmatprep.subr.mxu0 %v6632
  %6776 = vmatpush1.msra.mxu0 %v6631
  %6777 = vmatprep.subr.mxu0 %v6634
  %6778 = vmatpush1.msra.mxu0 %v6633
  %6779 = vmatprep.subr.mxu0 %v6636
  %6780 = vmatpush1.msra.mxu0 %v6635
  %6781 = vmatprep.subr.mxu0 %v6638
  %6782 = vmatpush1.msra.mxu0 %v6637
  %6783 = vmatprep.subr.mxu0 %v6640
  %6784 = vmatpush1.msra.mxu0 %v6639
  %6785 = vmatprep.subr.mxu0 %v6642
  %6786 = vmatpush1.msra.mxu0 %v6641
  %6787 = vmatprep.subr.mxu0 %v6644
  %6788 = vmatpush1.msra.mxu0 %v6643
  %6789 = vmatprep.subr.mxu0 %v6646
  %6790 = vmatpush1.msra.mxu0 %v6645
  %6791 = vmatprep.subr.mxu0 %v6648
  %6792 = vmatpush1.msra.mxu0 %v6647
  %6793 = vmatprep.subr.mxu0 %v6650
  %6794 = vmatpush1.msra.mxu0 %v6649
  %6795 = vmatprep.subr.mxu0 %v6652
  %6796 = vmatpush1.msra.mxu0 %v6651
  %6797 = vmatprep.subr.mxu0 %v6654
  %6798 = vmatpush1.msra.mxu0 %v6653
  %6799 = vmatprep.subr.mxu0 %v6656
  %6800 = vmatpush1.msra.mxu0 %v6655
  %6801 = vmatprep.subr.mxu0 %v6658
  %6802 = vmatpush1.msra.mxu0 %v6657
  %6803 = vmatprep.subr.mxu0 %v6660
  %6804 = vmatpush1.msra.mxu0 %v6659
  %6805 = vmatprep.subr.mxu0 %v6662
  %6806 = vmatpush1.msra.mxu0 %v6661
  %6807 = vmatprep.subr.mxu0 %v6664
  %6808 = vmatpush1.msra.mxu0 %v6663
  %6809 = vmatprep.subr.mxu0 %v6666
  %6810 = vmatpush1.msra.mxu0 %v6665
  %6811 = vmatprep.subr.mxu0 %v6668
  %6812 = vmatpush1.msra.mxu0 %v6667
  %6813 = vmatprep.mubr.f32.mxu0 %v175
  %6814 = vmatmul.mubr.f32.gmra.mrb[0].mxu0 %v174
  %v6815 = vpop.f32.mrb[0].mxu0
  %v6816 = vadd.f32 0.0, %v6815
  %v6817 = vpop.f32.mrb[0].mxu0
  %v6818 = vadd.f32 0.0, %v6817
  %6819 = vmatprep.mubr.f32.mxu0 %v180
  %6820 = vmatmul.mubr.f32.gmra.mrb[0].mxu0 %v179
  %v6821 = vpop.f32.mrb[0].mxu0
  %v6822 = vadd.f32 0.0, %v6821
  %v6823 = vpop.f32.mrb[0].mxu0
  %v6824 = vadd.f32 0.0, %v6823
  %6825 = vmatprep.mubr.f32.mxu0 %v185
  %6826 = vmatmul.mubr.f32.gmra.mrb[0].mxu0 %v184
  %v6827 = vpop.f32.mrb[0].mxu0
  %v6828 = vadd.f32 0.0, %v6827
  %v6829 = vpop.f32.mrb[0].mxu0
  %v6830 = vadd.f32 0.0, %v6829
  %6831 = vmatprep.mubr.f32.mxu0 %v190
  %6832 = vmatmul.mubr.f32.gmra.mrb[0].mxu0 %v189
  %v6833 = vpop.f32.mrb[0].mxu0
  %v6834 = vadd.f32 0.0, %v6833
  %v6835 = vpop.f32.mrb[0].mxu0
  %v6836 = vadd.f32 0.0, %v6835
  %6837 = vmatprep.mubr.f32.mxu0 %v195
  %6838 = vmatmul.mubr.f32.gmra.mrb[0].mxu0 %v194
  %v6839 = vpop.f32.mrb[0].mxu0
  %v6840 = vadd.f32 0.0, %v6839
  %v6841 = vpop.f32.mrb[0].mxu0
  %v6842 = vadd.f32 0.0, %v6841
  %6843 = vmatprep.mubr.f32.mxu0 %v200
  %6844 = vmatmul.mubr.f32.gmra.mrb[0].mxu0 %v199
  %v6845 = vpop.f32.mrb[0].mxu0
  %v6846 = vadd.f32 0.0, %v6845
  %v6847 = vpop.f32.mrb[0].mxu0
  %v6848 = vadd.f32 0.0, %v6847
  %6849 = vmatprep.mubr.f32.mxu0 %v205
  %6850 = vmatmul.mubr.f32.gmra.mrb[0].mxu0 %v204
  %v6851 = vpop.f32.mrb[0].mxu0
  %v6852 = vadd.f32 0.0, %v6851
  %v6853 = vpop.f32.mrb[0].mxu0
  %v6854 = vadd.f32 0.0, %v6853
  %6855 = vmatprep.mubr.f32.mxu0 %v210
  %6856 = vmatmul.mubr.f32.gmra.mrb[0].mxu0 %v209
  %v6857 = vpop.f32.mrb[0].mxu0
  %v6858 = vadd.f32 0.0, %v6857
  %v6859 = vpop.f32.mrb[0].mxu0
  %v6860 = vadd.f32 0.0, %v6859
  %6861 = vdwg.mxu0
  %6862 = vmatprep.subr.mxu0 %v6670
  %6863 = vmatpush1.msra.mxu0 %v6669
  %6864 = vmatprep.subr.mxu0 %v6672
  %6865 = vmatpush1.msra.mxu0 %v6671
  %6866 = vmatprep.subr.mxu0 %v6674
  %6867 = vmatpush1.msra.mxu0 %v6673
  %6868 = vmatprep.subr.mxu0 %v6676
  %6869 = vmatpush1.msra.mxu0 %v6675
  %6870 = vmatprep.subr.mxu0 %v6678
  %6871 = vmatpush1.msra.mxu0 %v6677
  %6872 = vmatprep.subr.mxu0 %v6680
  %6873 = vmatpush1.msra.mxu0 %v6679
  %6874 = vmatprep.subr.mxu0 %v6682
  %6875 = vmatpush1.msra.mxu0 %v6681
  %6876 = vmatprep.subr.mxu0 %v6684
  %6877 = vmatpush1.msra.mxu0 %v6683
  %6878 = vmatprep.subr.mxu0 %v6686
  %6879 = vmatpush1.msra.mxu0 %v6685
  %6880 = vmatprep.subr.mxu0 %v6688
  %6881 = vmatpush1.msra.mxu0 %v6687
  %6882 = vmatprep.subr.mxu0 %v6690
  %6883 = vmatpush1.msra.mxu0 %v6689
  %6884 = vmatprep.subr.mxu0 %v6692
  %6885 = vmatpush1.msra.mxu0 %v6691
  %6886 = vmatprep.subr.mxu0 %v6694
  %6887 = vmatpush1.msra.mxu0 %v6693
  %6888 = vmatprep.subr.mxu0 %v6696
  %6889 = vmatpush1.msra.mxu0 %v6695
  %6890 = vmatprep.subr.mxu0 %v6698
  %6891 = vmatpush1.msra.mxu0 %v6697
  %6892 = vmatprep.subr.mxu0 %v6700
  %6893 = vmatpush1.msra.mxu0 %v6699
  %6894 = vmatprep.subr.mxu0 %v6702
  %6895 = vmatpush1.msra.mxu0 %v6701
  %6896 = vmatprep.subr.mxu0 %v6704
  %6897 = vmatpush1.msra.mxu0 %v6703
  %6898 = vmatprep.subr.mxu0 %v6706
  %6899 = vmatpush1.msra.mxu0 %v6705
  %6900 = vmatprep.subr.mxu0 %v6708
  %6901 = vmatpush1.msra.mxu0 %v6707
  %6902 = vmatprep.subr.mxu0 %v6710
  %6903 = vmatpush1.msra.mxu0 %v6709
  %6904 = vmatprep.subr.mxu0 %v6712
  %6905 = vmatpush1.msra.mxu0 %v6711
  %6906 = vmatprep.subr.mxu0 %v6714
  %6907 = vmatpush1.msra.mxu0 %v6713
  %6908 = vmatprep.subr.mxu0 %v6716
  %6909 = vmatpush1.msra.mxu0 %v6715
  %6910 = vmatprep.subr.mxu0 %v6718
  %6911 = vmatpush1.msra.mxu0 %v6717
  %6912 = vmatprep.subr.mxu0 %v6720
  %6913 = vmatpush1.msra.mxu0 %v6719
  %6914 = vmatprep.subr.mxu0 %v6722
  %6915 = vmatpush1.msra.mxu0 %v6721
  %6916 = vmatprep.subr.mxu0 %v6724
  %6917 = vmatpush1.msra.mxu0 %v6723
  %6918 = vmatprep.subr.mxu0 %v6726
  %6919 = vmatpush1.msra.mxu0 %v6725
  %6920 = vmatprep.subr.mxu0 %v6728
  %6921 = vmatpush1.msra.mxu0 %v6727
  %6922 = vmatprep.subr.mxu0 %v6730
  %6923 = vmatpush1.msra.mxu0 %v6729
  %6924 = vmatprep.subr.mxu0 %v6732
  %6925 = vmatpush1.msra.mxu0 %v6731
  %6926 = vmatprep.mubr.f32.mxu0 %v177
  %6927 = vmatmul.mubr.f32.gmra.mrb[0].mxu0 %v176
  %v6928 = vpop.f32.mrb[0].mxu0
  %v6929 = vadd.f32 %v6816, %v6928
  %v6930 = vpop.f32.mrb[0].mxu0
  %v6931 = vadd.f32 %v6818, %v6930
  %6932 = vmatprep.mubr.f32.mxu0 %v182
  %6933 = vmatmul.mubr.f32.gmra.mrb[0].mxu0 %v181
  %v6934 = vpop.f32.mrb[0].mxu0
  %v6935 = vadd.f32 %v6822, %v6934
  %v6936 = vpop.f32.mrb[0].mxu0
  %v6937 = vadd.f32 %v6824, %v6936
  %6938 = vmatprep.mubr.f32.mxu0 %v187
  %6939 = vmatmul.mubr.f32.gmra.mrb[0].mxu0 %v186
  %v6940 = vpop.f32.mrb[0].mxu0
  %v6941 = vadd.f32 %v6828, %v6940
  %v6942 = vpop.f32.mrb[0].mxu0
  %v6943 = vadd.f32 %v6830, %v6942
  %6944 = vmatprep.mubr.f32.mxu0 %v192
  %6945 = vmatmul.mubr.f32.gmra.mrb[0].mxu0 %v191
  %v6946 = vpop.f32.mrb[0].mxu0
  %v6947 = vadd.f32 %v6834, %v6946
  %v6948 = vpop.f32.mrb[0].mxu0
  %v6949 = vadd.f32 %v6836, %v6948
  %6950 = vmatprep.mubr.f32.mxu0 %v197
  %6951 = vmatmul.mubr.f32.gmra.mrb[0].mxu0 %v196
  %v6952 = vpop.f32.mrb[0].mxu0
  %v6953 = vadd.f32 %v6840, %v6952
  %v6954 = vpop.f32.mrb[0].mxu0
  %v6955 = vadd.f32 %v6842, %v6954
  %6956 = vmatprep.mubr.f32.mxu0 %v202
  %6957 = vmatmul.mubr.f32.gmra.mrb[0].mxu0 %v201
  %v6958 = vpop.f32.mrb[0].mxu0
  %v6959 = vadd.f32 %v6846, %v6958
  %v6960 = vpop.f32.mrb[0].mxu0
  %v6961 = vadd.f32 %v6848, %v6960
  %6962 = vmatprep.mubr.f32.mxu0 %v207
  %6963 = vmatmul.mubr.f32.gmra.mrb[0].mxu0 %v206
  %v6964 = vpop.f32.mrb[0].mxu0
  %v6965 = vadd.f32 %v6852, %v6964
  %v6966 = vpop.f32.mrb[0].mxu0
  %v6967 = vadd.f32 %v6854, %v6966
  %6968 = vmatprep.mubr.f32.mxu0 %v212
  %6969 = vmatmul.mubr.f32.gmra.mrb[0].mxu0 %v211
  %v6970 = vpop.f32.mrb[0].mxu0
  %v6971 = vadd.f32 %v6858, %v6970
  %v6972 = vpop.f32.mrb[0].mxu0
  %v6973 = vadd.f32 %v6860, %v6972
  %6974 = vdwg.mxu0
  %6975 = vmatprep.subr.mxu0 %v6734
  %6976 = vmatpush1.msra.mxu0 %v6733
  %6977 = vmatprep.subr.mxu0 %v6736
  %6978 = vmatpush1.msra.mxu0 %v6735
  %6979 = vmatprep.subr.mxu0 %v6738
  %6980 = vmatpush1.msra.mxu0 %v6737
  %6981 = vmatprep.subr.mxu0 %v6740
  %6982 = vmatpush1.msra.mxu0 %v6739
  %6983 = vmatprep.subr.mxu0 %v6742
  %6984 = vmatpush1.msra.mxu0 %v6741
  %6985 = vmatprep.subr.mxu0 %v6744
  %6986 = vmatpush1.msra.mxu0 %v6743
  %6987 = vmatprep.subr.mxu0 %v6746
  %6988 = vmatpush1.msra.mxu0 %v6745
  %6989 = vmatprep.subr.mxu0 %v6748
  %6990 = vmatpush1.msra.mxu0 %v6747
  %6991 = vmatprep.subr.mxu0 0.0
  %6992 = vmatpush1.msra.mxu0 0.0
  %6993 = vmatprep.subr.mxu0 0.0
  %6994 = vmatpush1.msra.mxu0 0.0
  %6995 = vmatprep.subr.mxu0 0.0
  %6996 = vmatpush1.msra.mxu0 0.0
  %6997 = vmatprep.subr.mxu0 0.0
  %6998 = vmatpush1.msra.mxu0 0.0
  %6999 = vmatprep.subr.mxu0 0.0
  %7000 = vmatpush1.msra.mxu0 0.0
  %7001 = vmatprep.subr.mxu0 0.0
  %7002 = vmatpush1.msra.mxu0 0.0
  %7003 = vmatprep.subr.mxu0 0.0
  %7004 = vmatpush1.msra.mxu0 0.0
  %7005 = vmatprep.subr.mxu0 0.0
  %7006 = vmatpush1.msra.mxu0 0.0
  %7007 = vmatprep.subr.mxu0 0.0
  %7008 = vmatpush1.msra.mxu0 0.0
  %7009 = vmatprep.subr.mxu0 0.0
  %7010 = vmatpush1.msra.mxu0 0.0
  %7011 = vmatprep.subr.mxu0 0.0
  %7012 = vmatpush1.msra.mxu0 0.0
  %7013 = vmatprep.subr.mxu0 0.0
  %7014 = vmatpush1.msra.mxu0 0.0
  %7015 = vmatprep.subr.mxu0 0.0
  %7016 = vmatpush1.msra.mxu0 0.0
  %7017 = vmatprep.subr.mxu0 0.0
  %7018 = vmatpush1.msra.mxu0 0.0
  %7019 = vmatprep.subr.mxu0 0.0
  %7020 = vmatpush1.msra.mxu0 0.0
  %7021 = vmatprep.subr.mxu0 0.0
  %7022 = vmatpush1.msra.mxu0 0.0
  %7023 = vmatprep.subr.mxu0 0.0
  %7024 = vmatpush1.msra.mxu0 0.0
  %7025 = vmatprep.subr.mxu0 0.0
  %7026 = vmatpush1.msra.mxu0 0.0
  %7027 = vmatprep.subr.mxu0 0.0
  %7028 = vmatpush1.msra.mxu0 0.0
  %7029 = vmatprep.subr.mxu0 0.0
  %7030 = vmatpush1.msra.mxu0 0.0
  %7031 = vmatprep.subr.mxu0 0.0
  %7032 = vmatpush1.msra.mxu0 0.0
  %7033 = vmatprep.subr.mxu0 0.0
  %7034 = vmatpush1.msra.mxu0 0.0
  %7035 = vmatprep.subr.mxu0 0.0
  %7036 = vmatpush1.msra.mxu0 0.0
  %7037 = vmatprep.subr.mxu0 0.0
  %7038 = vmatpush1.msra.mxu0 0.0
  %7039 = vmatprep.mubr.f32.mxu0 0.0
  %7040 = vmatmul.mubr.f32.gmra.mrb[0].mxu0 %v2289
  %v7041 = vpop.f32.mrb[0].mxu0
  %v7042 = vadd.f32 %v6929, %v7041
  %v7043 = vpop.f32.mrb[0].mxu0
  %v7044 = vadd.f32 %v6931, %v7043
  %7045 = vmatprep.mubr.f32.mxu0 0.0
  %7046 = vmatmul.mubr.f32.gmra.mrb[0].mxu0 %v2292
  %v7047 = vpop.f32.mrb[0].mxu0
  %v7048 = vadd.f32 %v6935, %v7047
  %v7049 = vpop.f32.mrb[0].mxu0
  %v7050 = vadd.f32 %v6937, %v7049
  %7051 = vmatprep.mubr.f32.mxu0 0.0
  %7052 = vmatmul.mubr.f32.gmra.mrb[0].mxu0 %v2295
  %v7053 = vpop.f32.mrb[0].mxu0
  %v7054 = vadd.f32 %v6941, %v7053
  %v7055 = vpop.f32.mrb[0].mxu0
  %v7056 = vadd.f32 %v6943, %v7055
  %7057 = vmatprep.mubr.f32.mxu0 0.0
  %7058 = vmatmul.mubr.f32.gmra.mrb[0].mxu0 %v2298
  %v7059 = vpop.f32.mrb[0].mxu0
  %v7060 = vadd.f32 %v6947, %v7059
  %v7061 = vpop.f32.mrb[0].mxu0
  %v7062 = vadd.f32 %v6949, %v7061
  %7063 = vmatprep.mubr.f32.mxu0 0.0
  %7064 = vmatmul.mubr.f32.gmra.mrb[0].mxu0 %v2301
  %v7065 = vpop.f32.mrb[0].mxu0
  %v7066 = vadd.f32 %v6953, %v7065
  %v7067 = vpop.f32.mrb[0].mxu0
  %v7068 = vadd.f32 %v6955, %v7067
  %7069 = vmatprep.mubr.f32.mxu0 0.0
  %7070 = vmatmul.mubr.f32.gmra.mrb[0].mxu0 %v2304
  %v7071 = vpop.f32.mrb[0].mxu0
  %v7072 = vadd.f32 %v6959, %v7071
  %v7073 = vpop.f32.mrb[0].mxu0
  %v7074 = vadd.f32 %v6961, %v7073
  %7075 = vmatprep.mubr.f32.mxu0 0.0
  %7076 = vmatmul.mubr.f32.gmra.mrb[0].mxu0 %v2307
  %v7077 = vpop.f32.mrb[0].mxu0
  %v7078 = vadd.f32 %v6965, %v7077
  %v7079 = vpop.f32.mrb[0].mxu0
  %v7080 = vadd.f32 %v6967, %v7079
  %7081 = vmatprep.mubr.f32.mxu0 0.0
  %7082 = vmatmul.mubr.f32.gmra.mrb[0].mxu0 %v2310
  %v7083 = vpop.f32.mrb[0].mxu0
  %v7084 = vadd.f32 %v6971, %v7083
  %v7085 = vpop.f32.mrb[0].mxu0
  %v7086 = vadd.f32 %v6973, %v7085
  %7087 = vdwg.mxu0
  %v7089 = vsel %vm1212, %v7044, 0
  %v7092 = vsel %vm1212, %v7050, 0
  %v7095 = vsel %vm1212, %v7056, 0
  %v7098 = vsel %vm1212, %v7062, 0
  %v7101 = vsel %vm1212, %v7068, 0
  %v7104 = vsel %vm1212, %v7074, 0
  %v7107 = vsel %vm1212, %v7080, 0
  %v7110 = vsel %vm1212, %v7086, 0
  %7112 = vmatprep.subr.mxu0 0.0
  %7113 = vmatpush1.msra.mxu0 %v6343
  %7114 = vmatprep.subr.mxu0 0.0
  %7115 = vmatpush1.msra.mxu0 %v6344
  %7116 = vmatprep.subr.mxu0 0.0
  %7117 = vmatpush1.msra.mxu0 %v6345
  %7118 = vmatprep.subr.mxu0 0.0
  %7119 = vmatpush1.msra.mxu0 %v6346
  %7120 = vmatprep.subr.mxu0 0.0
  %7121 = vmatpush1.msra.mxu0 %v6347
  %7122 = vmatprep.subr.mxu0 0.0
  %7123 = vmatpush1.msra.mxu0 %v6348
  %7124 = vmatprep.subr.mxu0 0.0
  %7125 = vmatpush1.msra.mxu0 %v6349
  %7126 = vmatprep.subr.mxu0 0.0
  %7127 = vmatpush1.msra.mxu0 %v6350
  %7128 = vmatprep.subr.mxu0 0.0
  %7129 = vmatpush1.msra.mxu0 %v6351
  %7130 = vmatprep.subr.mxu0 0.0
  %7131 = vmatpush1.msra.mxu0 %v6352
  %7132 = vmatprep.subr.mxu0 0.0
  %7133 = vmatpush1.msra.mxu0 %v6353
  %7134 = vmatprep.subr.mxu0 0.0
  %7135 = vmatpush1.msra.mxu0 %v6354
  %7136 = vmatprep.subr.mxu0 0.0
  %7137 = vmatpush1.msra.mxu0 %v6355
  %7138 = vmatprep.subr.mxu0 0.0
  %7139 = vmatpush1.msra.mxu0 %v6356
  %7140 = vmatprep.subr.mxu0 0.0
  %7141 = vmatpush1.msra.mxu0 %v6357
  %7142 = vmatprep.subr.mxu0 0.0
  %7143 = vmatpush1.msra.mxu0 %v6358
  %7144 = vmatprep.subr.mxu0 0.0
  %7145 = vmatpush1.msra.mxu0 %v6359
  %7146 = vmatprep.subr.mxu0 0.0
  %7147 = vmatpush1.msra.mxu0 %v6360
  %7148 = vmatprep.subr.mxu0 0.0
  %7149 = vmatpush1.msra.mxu0 0.0
  %7150 = vmatprep.subr.mxu0 0.0
  %7151 = vmatpush1.msra.mxu0 0.0
  %7152 = vmatprep.subr.mxu0 0.0
  %7153 = vmatpush1.msra.mxu0 0.0
  %7154 = vmatprep.subr.mxu0 0.0
  %7155 = vmatpush1.msra.mxu0 0.0
  %7156 = vmatprep.subr.mxu0 0.0
  %7157 = vmatpush1.msra.mxu0 0.0
  %7158 = vmatprep.subr.mxu0 0.0
  %7159 = vmatpush1.msra.mxu0 0.0
  %7160 = vmatprep.subr.mxu0 0.0
  %7161 = vmatpush1.msra.mxu0 0.0
  %7162 = vmatprep.subr.mxu0 0.0
  %7163 = vmatpush1.msra.mxu0 0.0
  %7164 = vmatprep.subr.mxu0 0.0
  %7165 = vmatpush1.msra.mxu0 0.0
  %7166 = vmatprep.subr.mxu0 0.0
  %7167 = vmatpush1.msra.mxu0 0.0
  %7168 = vmatprep.subr.mxu0 0.0
  %7169 = vmatpush1.msra.mxu0 0.0
  %7170 = vmatprep.subr.mxu0 0.0
  %7171 = vmatpush1.msra.mxu0 0.0
  %7172 = vmatprep.subr.mxu0 0.0
  %7173 = vmatpush1.msra.mxu0 0.0
  %7174 = vmatprep.subr.mxu0 0.0
  %7175 = vmatpush1.msra.mxu0 0.0
  %7176 = vmatprep.mubr.f32.mxu0 %v7089
  %7177 = vmatmul.mubr.f32.gmra.mrb[0].mxu0 %v7042
  %v7178 = vpop.f32.mrb[0].mxu0
  %v7179 = vadd.f32 0.0, %v7178
  %v7180 = vpop.f32.mrb[0].mxu0
  %7181 = vmatprep.mubr.f32.mxu0 %v7092
  %7182 = vmatmul.mubr.f32.gmra.mrb[0].mxu0 %v7048
  %v7183 = vpop.f32.mrb[0].mxu0
  %v7184 = vadd.f32 0.0, %v7183
  %v7185 = vpop.f32.mrb[0].mxu0
  %7186 = vmatprep.mubr.f32.mxu0 %v7095
  %7187 = vmatmul.mubr.f32.gmra.mrb[0].mxu0 %v7054
  %v7188 = vpop.f32.mrb[0].mxu0
  %v7189 = vadd.f32 0.0, %v7188
  %v7190 = vpop.f32.mrb[0].mxu0
  %7191 = vmatprep.mubr.f32.mxu0 %v7098
  %7192 = vmatmul.mubr.f32.gmra.mrb[0].mxu0 %v7060
  %v7193 = vpop.f32.mrb[0].mxu0
  %v7194 = vadd.f32 0.0, %v7193
  %v7195 = vpop.f32.mrb[0].mxu0
  %7196 = vmatprep.mubr.f32.mxu0 %v7101
  %7197 = vmatmul.mubr.f32.gmra.mrb[0].mxu0 %v7066
  %v7198 = vpop.f32.mrb[0].mxu0
  %v7199 = vadd.f32 0.0, %v7198
  %v7200 = vpop.f32.mrb[0].mxu0
  %7201 = vmatprep.mubr.f32.mxu0 %v7104
  %7202 = vmatmul.mubr.f32.gmra.mrb[0].mxu0 %v7072
  %v7203 = vpop.f32.mrb[0].mxu0
  %v7204 = vadd.f32 0.0, %v7203
  %v7205 = vpop.f32.mrb[0].mxu0
  %7206 = vmatprep.mubr.f32.mxu0 %v7107
  %7207 = vmatmul.mubr.f32.gmra.mrb[0].mxu0 %v7078
  %v7208 = vpop.f32.mrb[0].mxu0
  %v7209 = vadd.f32 0.0, %v7208
  %v7210 = vpop.f32.mrb[0].mxu0
  %7211 = vmatprep.mubr.f32.mxu0 %v7110
  %7212 = vmatmul.mubr.f32.gmra.mrb[0].mxu0 %v7084
  %v7213 = vpop.f32.mrb[0].mxu0
  %v7214 = vadd.f32 0.0, %v7213
  %v7215 = vpop.f32.mrb[0].mxu0
  %7216 = vdwg.mxu0
  %v7217 = vmul.f32 %v7179, 0.083333336
  %v7218 = vmul.f32 %v7184, 0.083333336
  %v7219 = vmul.f32 %v7189, 0.083333336
  %v7220 = vmul.f32 %v7194, 0.083333336
  %v7221 = vmul.f32 %v7199, 0.083333336
  %v7222 = vmul.f32 %v7204, 0.083333336
  %v7223 = vmul.f32 %v7209, 0.083333336
  %v7224 = vmul.f32 %v7214, 0.083333336
  %v7225 = vsel %vm2788, %v7217, -inf
  %v7226 = vsel %vm2788, %v7218, -inf
  %v7227 = vsel %vm2788, %v7219, -inf
  %v7228 = vsel %vm2788, %v7220, -inf
  %v7229 = vsel %vm2788, %v7221, -inf
  %v7230 = vmax.f32 %v7225, %v7229
  %v7231 = vsel %vm2788, %v7222, -inf
  %v7232 = vmax.f32 %v7226, %v7231
  %v7233 = vsel %vm2788, %v7223, -inf
  %v7234 = vmax.f32 %v7227, %v7233
  %v7235 = vsel %vm2788, %v7224, -inf
  %v7236 = vmax.f32 %v7228, %v7235
  %v7237 = vmax.f32 %v7230, %v7232
  %v7238 = vmax.f32 %v7234, %v7236
  %v7239 = vmax.f32 %v7237, %v7238
  %v7240 = vrot.slane %v7239, 4
  %v7241 = vmax.f32 %v7239, %v7240
  %v7242 = vrot.slane %v7241, 2
  %v7243 = vmax.f32 %v7241, %v7242
  %v7244 = vrot.slane %v7243, 1
  %v7245 = vmax.f32 %v7243, %v7244
  %v7246 = vsub.f32 %v7217, %v7245
  %v7247 = vsub.f32 %v7218, %v7245
  %v7248 = vsub.f32 %v7219, %v7245
  %v7249 = vsub.f32 %v7220, %v7245
  %v7250 = vsub.f32 %v7221, %v7245
  %v7251 = vsub.f32 %v7222, %v7245
  %v7252 = vsub.f32 %v7223, %v7245
  %v7253 = vsub.f32 %v7224, %v7245
  %v7254 = vmul.f32 %v7246, 1.442695
  %v7255 = vpow.pop %v7254
  %v7256 = vmul.f32 %v7247, 1.442695
  %v7257 = vpow.pop %v7256
  %v7258 = vmul.f32 %v7248, 1.442695
  %v7259 = vpow.pop %v7258
  %v7260 = vmul.f32 %v7249, 1.442695
  %v7261 = vpow.pop %v7260
  %v7262 = vmul.f32 %v7250, 1.442695
  %v7263 = vpow.pop %v7262
  %v7264 = vmul.f32 %v7251, 1.442695
  %v7265 = vpow.pop %v7264
  %v7266 = vmul.f32 %v7252, 1.442695
  %v7267 = vpow.pop %v7266
  %v7268 = vmul.f32 %v7253, 1.442695
  %v7269 = vpow.pop %v7268
  %7270 = vmax.xlane.f32.xlu0 %v7225
  %v7271 = vpop.xlane.xlu0 %7270
  %7272 = vmax.xlane.f32.xlu0 %v7226
  %v7273 = vpop.xlane.xlu0 %7272
  %7274 = vmax.xlane.f32.xlu0 %v7227
  %v7275 = vpop.xlane.xlu0 %7274
  %7276 = vmax.xlane.f32.xlu0 %v7228
  %v7277 = vpop.xlane.xlu0 %7276
  %7278 = vmax.xlane.f32.xlu0 %v7229
  %v7279 = vpop.xlane.xlu0 %7278
  %7280 = vmax.xlane.f32.xlu0 %v7231
  %v7281 = vpop.xlane.xlu0 %7280
  %7282 = vmax.xlane.f32.xlu0 %v7233
  %v7283 = vpop.xlane.xlu0 %7282
  %7284 = vmax.xlane.f32.xlu0 %v7235
  %v7285 = vpop.xlane.xlu0 %7284
  %v7286 = vsub.f32 %v7217, %v7271
  %v7287 = vsub.f32 %v7218, %v7273
  %v7288 = vsub.f32 %v7219, %v7275
  %v7289 = vsub.f32 %v7220, %v7277
  %v7290 = vsub.f32 %v7221, %v7279
  %v7291 = vsub.f32 %v7222, %v7281
  %v7292 = vsub.f32 %v7223, %v7283
  %v7293 = vsub.f32 %v7224, %v7285
  %v7294 = vmul.f32 %v7286, 1.442695
  %v7295 = vpow.pop %v7294
  %v7296 = vmul.f32 %v7287, 1.442695
  %v7297 = vpow.pop %v7296
  %v7298 = vmul.f32 %v7288, 1.442695
  %v7299 = vpow.pop %v7298
  %v7300 = vmul.f32 %v7289, 1.442695
  %v7301 = vpow.pop %v7300
  %v7302 = vmul.f32 %v7290, 1.442695
  %v7303 = vpow.pop %v7302
  %v7304 = vmul.f32 %v7291, 1.442695
  %v7305 = vpow.pop %v7304
  %v7306 = vmul.f32 %v7292, 1.442695
  %v7307 = vpow.pop %v7306
  %v7308 = vmul.f32 %v7293, 1.442695
  %v7309 = vpow.pop %v7308
  %v7311 = vsel %vm2788, %v7295, 0
  %v7314 = vsel %vm2788, %v7297, 0
  %v7317 = vsel %vm2788, %v7299, 0
  %v7320 = vsel %vm2788, %v7301, 0
  %v7323 = vsel %vm2788, %v7303, 0
  %v7326 = vsel %vm2788, %v7305, 0
  %v7329 = vsel %vm2788, %v7307, 0
  %v7332 = vsel %vm2788, %v7309, 0
  %7334 = vmatprep.subr.mxu0 0.0
  %7335 = vmatpush1.msra.mxu0 %v2900
  %7336 = vmatprep.subr.mxu0 0.0
  %7337 = vmatpush1.msra.mxu0 0.0
  %7338 = vmatprep.subr.mxu0 0.0
  %7339 = vmatpush1.msra.mxu0 0.0
  %7340 = vmatprep.subr.mxu0 0.0
  %7341 = vmatpush1.msra.mxu0 0.0
  %7342 = vmatprep.subr.mxu0 0.0
  %7343 = vmatpush1.msra.mxu0 0.0
  %7344 = vmatprep.subr.mxu0 0.0
  %7345 = vmatpush1.msra.mxu0 0.0
  %7346 = vmatprep.subr.mxu0 0.0
  %7347 = vmatpush1.msra.mxu0 0.0
  %7348 = vmatprep.subr.mxu0 0.0
  %7349 = vmatpush1.msra.mxu0 0.0
  %7350 = vmatprep.subr.mxu0 0.0
  %7351 = vmatpush1.msra.mxu0 0.0
  %7352 = vmatprep.subr.mxu0 0.0
  %7353 = vmatpush1.msra.mxu0 0.0
  %7354 = vmatprep.subr.mxu0 0.0
  %7355 = vmatpush1.msra.mxu0 0.0
  %7356 = vmatprep.subr.mxu0 0.0
  %7357 = vmatpush1.msra.mxu0 0.0
  %7358 = vmatprep.subr.mxu0 0.0
  %7359 = vmatpush1.msra.mxu0 0.0
  %7360 = vmatprep.subr.mxu0 0.0
  %7361 = vmatpush1.msra.mxu0 0.0
  %7362 = vmatprep.subr.mxu0 0.0
  %7363 = vmatpush1.msra.mxu0 0.0
  %7364 = vmatprep.subr.mxu0 0.0
  %7365 = vmatpush1.msra.mxu0 0.0
  %7366 = vmatprep.subr.mxu0 0.0
  %7367 = vmatpush1.msra.mxu0 0.0
  %7368 = vmatprep.subr.mxu0 0.0
  %7369 = vmatpush1.msra.mxu0 0.0
  %7370 = vmatprep.subr.mxu0 0.0
  %7371 = vmatpush1.msra.mxu0 0.0
  %7372 = vmatprep.subr.mxu0 0.0
  %7373 = vmatpush1.msra.mxu0 0.0
  %7374 = vmatprep.subr.mxu0 0.0
  %7375 = vmatpush1.msra.mxu0 0.0
  %7376 = vmatprep.subr.mxu0 0.0
  %7377 = vmatpush1.msra.mxu0 0.0
  %7378 = vmatprep.subr.mxu0 0.0
  %7379 = vmatpush1.msra.mxu0 0.0
  %7380 = vmatprep.subr.mxu0 0.0
  %7381 = vmatpush1.msra.mxu0 0.0
  %7382 = vmatprep.subr.mxu0 0.0
  %7383 = vmatpush1.msra.mxu0 0.0
  %7384 = vmatprep.subr.mxu0 0.0
  %7385 = vmatpush1.msra.mxu0 0.0
  %7386 = vmatprep.subr.mxu0 0.0
  %7387 = vmatpush1.msra.mxu0 0.0
  %7388 = vmatprep.subr.mxu0 0.0
  %7389 = vmatpush1.msra.mxu0 0.0
  %7390 = vmatprep.subr.mxu0 0.0
  %7391 = vmatpush1.msra.mxu0 0.0
  %7392 = vmatprep.subr.mxu0 0.0
  %7393 = vmatpush1.msra.mxu0 0.0
  %7394 = vmatprep.subr.mxu0 0.0
  %7395 = vmatpush1.msra.mxu0 0.0
  %7396 = vmatprep.subr.mxu0 0.0
  %7397 = vmatpush1.msra.mxu0 0.0
  %7398 = vmatprep.mubr.f32.mxu0 0.0
  %7399 = vmatmul.mubr.f32.gmra.mrb[0].mxu0 %v7311
  %v7400 = vpop.f32.mrb[0].mxu0
  %v7401 = vadd.f32 0.0, %v7400
  %v7402 = vpop.f32.mrb[0].mxu0
  %7403 = vmatprep.mubr.f32.mxu0 0.0
  %7404 = vmatmul.mubr.f32.gmra.mrb[0].mxu0 %v7314
  %v7405 = vpop.f32.mrb[0].mxu0
  %v7406 = vadd.f32 0.0, %v7405
  %v7407 = vpop.f32.mrb[0].mxu0
  %7408 = vmatprep.mubr.f32.mxu0 0.0
  %7409 = vmatmul.mubr.f32.gmra.mrb[0].mxu0 %v7317
  %v7410 = vpop.f32.mrb[0].mxu0
  %v7411 = vadd.f32 0.0, %v7410
  %v7412 = vpop.f32.mrb[0].mxu0
  %7413 = vmatprep.mubr.f32.mxu0 0.0
  %7414 = vmatmul.mubr.f32.gmra.mrb[0].mxu0 %v7320
  %v7415 = vpop.f32.mrb[0].mxu0
  %v7416 = vadd.f32 0.0, %v7415
  %v7417 = vpop.f32.mrb[0].mxu0
  %7418 = vmatprep.mubr.f32.mxu0 0.0
  %7419 = vmatmul.mubr.f32.gmra.mrb[0].mxu0 %v7323
  %v7420 = vpop.f32.mrb[0].mxu0
  %v7421 = vadd.f32 0.0, %v7420
  %v7422 = vpop.f32.mrb[0].mxu0
  %7423 = vmatprep.mubr.f32.mxu0 0.0
  %7424 = vmatmul.mubr.f32.gmra.mrb[0].mxu0 %v7326
  %v7425 = vpop.f32.mrb[0].mxu0
  %v7426 = vadd.f32 0.0, %v7425
  %v7427 = vpop.f32.mrb[0].mxu0
  %7428 = vmatprep.mubr.f32.mxu0 0.0
  %7429 = vmatmul.mubr.f32.gmra.mrb[0].mxu0 %v7329
  %v7430 = vpop.f32.mrb[0].mxu0
  %v7431 = vadd.f32 0.0, %v7430
  %v7432 = vpop.f32.mrb[0].mxu0
  %7433 = vmatprep.mubr.f32.mxu0 0.0
  %7434 = vmatmul.mubr.f32.gmra.mrb[0].mxu0 %v7332
  %v7435 = vpop.f32.mrb[0].mxu0
  %v7436 = vadd.f32 0.0, %v7435
  %v7437 = vpop.f32.mrb[0].mxu0
  %7438 = vdwg.mxu0
  %v7439 = vrcp.pop %v7401
  %v7440 = vmul.f32 %v7295, %v7439
  %v7441 = vrcp.pop %v7406
  %v7442 = vmul.f32 %v7297, %v7441
  %v7443 = vrcp.pop %v7411
  %v7444 = vmul.f32 %v7299, %v7443
  %v7445 = vrcp.pop %v7416
  %v7446 = vmul.f32 %v7301, %v7445
  %v7447 = vrcp.pop %v7421
  %v7448 = vmul.f32 %v7303, %v7447
  %v7449 = vrcp.pop %v7426
  %v7450 = vmul.f32 %v7305, %v7449
  %v7451 = vrcp.pop %v7431
  %v7452 = vmul.f32 %v7307, %v7451
  %v7453 = vrcp.pop %v7436
  %v7454 = vmul.f32 %v7309, %v7453
  %v7455 = vmul.f32 %v7255, %v7440
  %v7456 = vmul.f32 %v7257, %v7442
  %v7457 = vmul.f32 %v7259, %v7444
  %v7458 = vmul.f32 %v7261, %v7446
  %v7459 = vmul.f32 %v7263, %v7448
  %v7460 = vmul.f32 %v7265, %v7450
  %v7461 = vmul.f32 %v7267, %v7452
  %v7462 = vmul.f32 %v7269, %v7454
  %v7464 = vsel %vm2788, %v7455, 0
  %v7467 = vsel %vm2788, %v7456, 0
  %v7470 = vsel %vm2788, %v7457, 0
  %v7473 = vsel %vm2788, %v7458, 0
  %v7476 = vsel %vm2788, %v7459, 0
  %v7479 = vsel %vm2788, %v7460, 0
  %v7482 = vsel %vm2788, %v7461, 0
  %v7485 = vsel %vm2788, %v7462, 0
  %7487 = vmatprep.subr.mxu0 0.0
  %7488 = vmatpush1.msra.mxu0 %v3056
  %7489 = vmatprep.subr.mxu0 0.0
  %7490 = vmatpush1.msra.mxu0 0.0
  %7491 = vmatprep.subr.mxu0 0.0
  %7492 = vmatpush1.msra.mxu0 0.0
  %7493 = vmatprep.subr.mxu0 0.0
  %7494 = vmatpush1.msra.mxu0 0.0
  %7495 = vmatprep.subr.mxu0 0.0
  %7496 = vmatpush1.msra.mxu0 0.0
  %7497 = vmatprep.subr.mxu0 0.0
  %7498 = vmatpush1.msra.mxu0 0.0
  %7499 = vmatprep.subr.mxu0 0.0
  %7500 = vmatpush1.msra.mxu0 0.0
  %7501 = vmatprep.subr.mxu0 0.0
  %7502 = vmatpush1.msra.mxu0 0.0
  %7503 = vmatprep.subr.mxu0 0.0
  %7504 = vmatpush1.msra.mxu0 0.0
  %7505 = vmatprep.subr.mxu0 0.0
  %7506 = vmatpush1.msra.mxu0 0.0
  %7507 = vmatprep.subr.mxu0 0.0
  %7508 = vmatpush1.msra.mxu0 0.0
  %7509 = vmatprep.subr.mxu0 0.0
  %7510 = vmatpush1.msra.mxu0 0.0
  %7511 = vmatprep.subr.mxu0 0.0
  %7512 = vmatpush1.msra.mxu0 0.0
  %7513 = vmatprep.subr.mxu0 0.0
  %7514 = vmatpush1.msra.mxu0 0.0
  %7515 = vmatprep.subr.mxu0 0.0
  %7516 = vmatpush1.msra.mxu0 0.0
  %7517 = vmatprep.subr.mxu0 0.0
  %7518 = vmatpush1.msra.mxu0 0.0
  %7519 = vmatprep.subr.mxu0 0.0
  %7520 = vmatpush1.msra.mxu0 0.0
  %7521 = vmatprep.subr.mxu0 0.0
  %7522 = vmatpush1.msra.mxu0 0.0
  %7523 = vmatprep.subr.mxu0 0.0
  %7524 = vmatpush1.msra.mxu0 0.0
  %7525 = vmatprep.subr.mxu0 0.0
  %7526 = vmatpush1.msra.mxu0 0.0
  %7527 = vmatprep.subr.mxu0 0.0
  %7528 = vmatpush1.msra.mxu0 0.0
  %7529 = vmatprep.subr.mxu0 0.0
  %7530 = vmatpush1.msra.mxu0 0.0
  %7531 = vmatprep.subr.mxu0 0.0
  %7532 = vmatpush1.msra.mxu0 0.0
  %7533 = vmatprep.subr.mxu0 0.0
  %7534 = vmatpush1.msra.mxu0 0.0
  %7535 = vmatprep.subr.mxu0 0.0
  %7536 = vmatpush1.msra.mxu0 0.0
  %7537 = vmatprep.subr.mxu0 0.0
  %7538 = vmatpush1.msra.mxu0 0.0
  %7539 = vmatprep.subr.mxu0 0.0
  %7540 = vmatpush1.msra.mxu0 0.0
  %7541 = vmatprep.subr.mxu0 0.0
  %7542 = vmatpush1.msra.mxu0 0.0
  %7543 = vmatprep.subr.mxu0 0.0
  %7544 = vmatpush1.msra.mxu0 0.0
  %7545 = vmatprep.subr.mxu0 0.0
  %7546 = vmatpush1.msra.mxu0 0.0
  %7547 = vmatprep.subr.mxu0 0.0
  %7548 = vmatpush1.msra.mxu0 0.0
  %7549 = vmatprep.subr.mxu0 0.0
  %7550 = vmatpush1.msra.mxu0 0.0
  %7551 = vmatprep.mubr.f32.mxu0 0.0
  %7552 = vmatmul.mubr.f32.gmra.mrb[0].mxu0 %v7464
  %v7553 = vpop.f32.mrb[0].mxu0
  %v7554 = vadd.f32 0.0, %v7553
  %v7555 = vpop.f32.mrb[0].mxu0
  %7556 = vmatprep.mubr.f32.mxu0 0.0
  %7557 = vmatmul.mubr.f32.gmra.mrb[0].mxu0 %v7467
  %v7558 = vpop.f32.mrb[0].mxu0
  %v7559 = vadd.f32 0.0, %v7558
  %v7560 = vpop.f32.mrb[0].mxu0
  %7561 = vmatprep.mubr.f32.mxu0 0.0
  %7562 = vmatmul.mubr.f32.gmra.mrb[0].mxu0 %v7470
  %v7563 = vpop.f32.mrb[0].mxu0
  %v7564 = vadd.f32 0.0, %v7563
  %v7565 = vpop.f32.mrb[0].mxu0
  %7566 = vmatprep.mubr.f32.mxu0 0.0
  %7567 = vmatmul.mubr.f32.gmra.mrb[0].mxu0 %v7473
  %v7568 = vpop.f32.mrb[0].mxu0
  %v7569 = vadd.f32 0.0, %v7568
  %v7570 = vpop.f32.mrb[0].mxu0
  %7571 = vmatprep.mubr.f32.mxu0 0.0
  %7572 = vmatmul.mubr.f32.gmra.mrb[0].mxu0 %v7476
  %v7573 = vpop.f32.mrb[0].mxu0
  %v7574 = vadd.f32 0.0, %v7573
  %v7575 = vpop.f32.mrb[0].mxu0
  %7576 = vmatprep.mubr.f32.mxu0 0.0
  %7577 = vmatmul.mubr.f32.gmra.mrb[0].mxu0 %v7479
  %v7578 = vpop.f32.mrb[0].mxu0
  %v7579 = vadd.f32 0.0, %v7578
  %v7580 = vpop.f32.mrb[0].mxu0
  %7581 = vmatprep.mubr.f32.mxu0 0.0
  %7582 = vmatmul.mubr.f32.gmra.mrb[0].mxu0 %v7482
  %v7583 = vpop.f32.mrb[0].mxu0
  %v7584 = vadd.f32 0.0, %v7583
  %v7585 = vpop.f32.mrb[0].mxu0
  %7586 = vmatprep.mubr.f32.mxu0 0.0
  %7587 = vmatmul.mubr.f32.gmra.mrb[0].mxu0 %v7485
  %v7588 = vpop.f32.mrb[0].mxu0
  %v7589 = vadd.f32 0.0, %v7588
  %v7590 = vpop.f32.mrb[0].mxu0
  %7591 = vdwg.mxu0
  %v7592 = vmul.f32 %v7554, %v586
  %v7593 = vmul.f32 %v7559, %v587
  %v7594 = vmul.f32 %v7564, %v588
  %v7595 = vmul.f32 %v7569, %v589
  %v7596 = vmul.f32 %v7574, %v590
  %v7597 = vmul.f32 %v7579, %v591
  %v7598 = vmul.f32 %v7584, %v592
  %v7599 = vmul.f32 %v7589, %v593
  %v7600 = vmul.f32 %v7554, %v594
  %v7601 = vmul.f32 %v7559, %v595
  %v7602 = vmul.f32 %v7564, %v596
  %v7603 = vmul.f32 %v7569, %v597
  %v7604 = vmul.f32 %v7574, %v598
  %v7605 = vmul.f32 %v7579, %v599
  %v7606 = vmul.f32 %v7584, %v600
  %v7607 = vmul.f32 %v7589, %v601
  %v7608 = vmul.f32 %v7554, %v602
  %v7609 = vmul.f32 %v7559, %v603
  %v7610 = vmul.f32 %v7564, %v604
  %v7611 = vmul.f32 %v7569, %v605
  %v7612 = vmul.f32 %v7574, %v606
  %v7613 = vmul.f32 %v7579, %v607
  %v7614 = vmul.f32 %v7584, %v608
  %v7615 = vmul.f32 %v7589, %v609
  %v7616 = vmul.f32 %v7554, %v610
  %v7617 = vmul.f32 %v7559, %v611
  %v7618 = vmul.f32 %v7564, %v612
  %v7619 = vmul.f32 %v7569, %v613
  %v7620 = vmul.f32 %v7574, %v614
  %v7621 = vmul.f32 %v7579, %v615
  %v7622 = vmul.f32 %v7584, %v616
  %v7623 = vmul.f32 %v7589, %v617
  %v7624 = vmul.f32 %v7554, %v618
  %v7625 = vmul.f32 %v7559, %v619
  %v7626 = vmul.f32 %v7564, %v620
  %v7627 = vmul.f32 %v7569, %v621
  %v7628 = vmul.f32 %v7574, %v622
  %v7629 = vmul.f32 %v7579, %v623
  %v7630 = vmul.f32 %v7584, %v624
  %v7631 = vmul.f32 %v7589, %v625
  %v7632 = vmul.f32 %v7554, %v626
  %v7633 = vmul.f32 %v7559, %v627
  %v7634 = vmul.f32 %v7564, %v628
  %v7635 = vmul.f32 %v7569, %v629
  %v7636 = vmul.f32 %v7574, %v630
  %v7637 = vmul.f32 %v7579, %v631
  %v7638 = vmul.f32 %v7584, %v632
  %v7639 = vmul.f32 %v7589, %v633
  %v7640 = vmul.f32 %v7554, %v634
  %v7641 = vmul.f32 %v7559, %v635
  %v7642 = vmul.f32 %v7564, %v636
  %v7643 = vmul.f32 %v7569, %v637
  %v7644 = vmul.f32 %v7574, %v638
  %v7645 = vmul.f32 %v7579, %v639
  %v7646 = vmul.f32 %v7584, %v640
  %v7647 = vmul.f32 %v7589, %v641
  %v7648 = vmul.f32 %v7554, %v642
  %v7649 = vmul.f32 %v7559, %v643
  %v7650 = vmul.f32 %v7564, %v644
  %v7651 = vmul.f32 %v7569, %v645
  %v7652 = vmul.f32 %v7574, %v646
  %v7653 = vmul.f32 %v7579, %v647
  %v7654 = vmul.f32 %v7584, %v648
  %v7655 = vmul.f32 %v7589, %v649
  %v7656 = vmul.f32 %v7554, %v650
  %v7657 = vmul.f32 %v7559, %v651
  %v7658 = vmul.f32 %v7564, %v652
  %v7659 = vmul.f32 %v7569, %v653
  %v7660 = vmul.f32 %v7574, %v654
  %v7661 = vmul.f32 %v7579, %v655
  %v7662 = vmul.f32 %v7584, %v656
  %v7663 = vmul.f32 %v7589, %v657
  %7664 = vmatprep.subr.mxu0 0.0
  %7665 = vmatpush1.msra.mxu0 %v7592
  %7666 = vmatprep.subr.mxu0 0.0
  %7667 = vmatpush1.msra.mxu0 %v7593
  %7668 = vmatprep.subr.mxu0 0.0
  %7669 = vmatpush1.msra.mxu0 %v7594
  %7670 = vmatprep.subr.mxu0 0.0
  %7671 = vmatpush1.msra.mxu0 %v7595
  %7672 = vmatprep.subr.mxu0 0.0
  %7673 = vmatpush1.msra.mxu0 %v7596
  %7674 = vmatprep.subr.mxu0 0.0
  %7675 = vmatpush1.msra.mxu0 %v7597
  %7676 = vmatprep.subr.mxu0 0.0
  %7677 = vmatpush1.msra.mxu0 %v7598
  %7678 = vmatprep.subr.mxu0 0.0
  %7679 = vmatpush1.msra.mxu0 %v7599
  %7680 = vmatprep.subr.mxu0 0.0
  %7681 = vmatpush1.msra.mxu0 %v7600
  %7682 = vmatprep.subr.mxu0 0.0
  %7683 = vmatpush1.msra.mxu0 %v7601
  %7684 = vmatprep.subr.mxu0 0.0
  %7685 = vmatpush1.msra.mxu0 %v7602
  %7686 = vmatprep.subr.mxu0 0.0
  %7687 = vmatpush1.msra.mxu0 %v7603
  %7688 = vmatprep.subr.mxu0 0.0
  %7689 = vmatpush1.msra.mxu0 %v7604
  %7690 = vmatprep.subr.mxu0 0.0
  %7691 = vmatpush1.msra.mxu0 %v7605
  %7692 = vmatprep.subr.mxu0 0.0
  %7693 = vmatpush1.msra.mxu0 %v7606
  %7694 = vmatprep.subr.mxu0 0.0
  %7695 = vmatpush1.msra.mxu0 %v7607
  %7696 = vmatprep.subr.mxu0 0.0
  %7697 = vmatpush1.msra.mxu0 %v7608
  %7698 = vmatprep.subr.mxu0 0.0
  %7699 = vmatpush1.msra.mxu0 %v7609
  %7700 = vmatprep.subr.mxu0 0.0
  %7701 = vmatpush1.msra.mxu0 %v7610
  %7702 = vmatprep.subr.mxu0 0.0
  %7703 = vmatpush1.msra.mxu0 %v7611
  %7704 = vmatprep.subr.mxu0 0.0
  %7705 = vmatpush1.msra.mxu0 %v7612
  %7706 = vmatprep.subr.mxu0 0.0
  %7707 = vmatpush1.msra.mxu0 %v7613
  %7708 = vmatprep.subr.mxu0 0.0
  %7709 = vmatpush1.msra.mxu0 %v7614
  %7710 = vmatprep.subr.mxu0 0.0
  %7711 = vmatpush1.msra.mxu0 %v7615
  %7712 = vmatprep.subr.mxu0 0.0
  %7713 = vmatpush1.msra.mxu0 %v7616
  %7714 = vmatprep.subr.mxu0 0.0
  %7715 = vmatpush1.msra.mxu0 %v7617
  %7716 = vmatprep.subr.mxu0 0.0
  %7717 = vmatpush1.msra.mxu0 %v7618
  %7718 = vmatprep.subr.mxu0 0.0
  %7719 = vmatpush1.msra.mxu0 %v7619
  %7720 = vmatprep.subr.mxu0 0.0
  %7721 = vmatpush1.msra.mxu0 %v7620
  %7722 = vmatprep.subr.mxu0 0.0
  %7723 = vmatpush1.msra.mxu0 %v7621
  %7724 = vmatprep.subr.mxu0 0.0
  %7725 = vmatpush1.msra.mxu0 %v7622
  %7726 = vmatprep.subr.mxu0 0.0
  %7727 = vmatpush1.msra.mxu0 %v7623
  %7728 = vmatprep.mubr.f32.mxu0 %v175
  %7729 = vmatmul.mubr.f32.gmra.mrb[0].mxu0 %v174
  %v7730 = vpop.f32.mrb[0].mxu0
  %v7731 = vadd.f32 0.0, %v7730
  %v7732 = vpop.f32.mrb[0].mxu0
  %7733 = vmatprep.mubr.f32.mxu0 %v180
  %7734 = vmatmul.mubr.f32.gmra.mrb[0].mxu0 %v179
  %v7735 = vpop.f32.mrb[0].mxu0
  %v7736 = vadd.f32 0.0, %v7735
  %v7737 = vpop.f32.mrb[0].mxu0
  %7738 = vmatprep.mubr.f32.mxu0 %v185
  %7739 = vmatmul.mubr.f32.gmra.mrb[0].mxu0 %v184
  %v7740 = vpop.f32.mrb[0].mxu0
  %v7741 = vadd.f32 0.0, %v7740
  %v7742 = vpop.f32.mrb[0].mxu0
  %7743 = vmatprep.mubr.f32.mxu0 %v190
  %7744 = vmatmul.mubr.f32.gmra.mrb[0].mxu0 %v189
  %v7745 = vpop.f32.mrb[0].mxu0
  %v7746 = vadd.f32 0.0, %v7745
  %v7747 = vpop.f32.mrb[0].mxu0
  %7748 = vmatprep.mubr.f32.mxu0 %v195
  %7749 = vmatmul.mubr.f32.gmra.mrb[0].mxu0 %v194
  %v7750 = vpop.f32.mrb[0].mxu0
  %v7751 = vadd.f32 0.0, %v7750
  %v7752 = vpop.f32.mrb[0].mxu0
  %7753 = vmatprep.mubr.f32.mxu0 %v200
  %7754 = vmatmul.mubr.f32.gmra.mrb[0].mxu0 %v199
  %v7755 = vpop.f32.mrb[0].mxu0
  %v7756 = vadd.f32 0.0, %v7755
  %v7757 = vpop.f32.mrb[0].mxu0
  %7758 = vmatprep.mubr.f32.mxu0 %v205
  %7759 = vmatmul.mubr.f32.gmra.mrb[0].mxu0 %v204
  %v7760 = vpop.f32.mrb[0].mxu0
  %v7761 = vadd.f32 0.0, %v7760
  %v7762 = vpop.f32.mrb[0].mxu0
  %7763 = vmatprep.mubr.f32.mxu0 %v210
  %7764 = vmatmul.mubr.f32.gmra.mrb[0].mxu0 %v209
  %v7765 = vpop.f32.mrb[0].mxu0
  %v7766 = vadd.f32 0.0, %v7765
  %v7767 = vpop.f32.mrb[0].mxu0
  %7768 = vdwg.mxu0
  %7769 = vmatprep.subr.mxu0 0.0
  %7770 = vmatpush1.msra.mxu0 %v7624
  %7771 = vmatprep.subr.mxu0 0.0
  %7772 = vmatpush1.msra.mxu0 %v7625
  %7773 = vmatprep.subr.mxu0 0.0
  %7774 = vmatpush1.msra.mxu0 %v7626
  %7775 = vmatprep.subr.mxu0 0.0
  %7776 = vmatpush1.msra.mxu0 %v7627
  %7777 = vmatprep.subr.mxu0 0.0
  %7778 = vmatpush1.msra.mxu0 %v7628
  %7779 = vmatprep.subr.mxu0 0.0
  %7780 = vmatpush1.msra.mxu0 %v7629
  %7781 = vmatprep.subr.mxu0 0.0
  %7782 = vmatpush1.msra.mxu0 %v7630
  %7783 = vmatprep.subr.mxu0 0.0
  %7784 = vmatpush1.msra.mxu0 %v7631
  %7785 = vmatprep.subr.mxu0 0.0
  %7786 = vmatpush1.msra.mxu0 %v7632
  %7787 = vmatprep.subr.mxu0 0.0
  %7788 = vmatpush1.msra.mxu0 %v7633
  %7789 = vmatprep.subr.mxu0 0.0
  %7790 = vmatpush1.msra.mxu0 %v7634
  %7791 = vmatprep.subr.mxu0 0.0
  %7792 = vmatpush1.msra.mxu0 %v7635
  %7793 = vmatprep.subr.mxu0 0.0
  %7794 = vmatpush1.msra.mxu0 %v7636
  %7795 = vmatprep.subr.mxu0 0.0
  %7796 = vmatpush1.msra.mxu0 %v7637
  %7797 = vmatprep.subr.mxu0 0.0
  %7798 = vmatpush1.msra.mxu0 %v7638
  %7799 = vmatprep.subr.mxu0 0.0
  %7800 = vmatpush1.msra.mxu0 %v7639
  %7801 = vmatprep.subr.mxu0 0.0
  %7802 = vmatpush1.msra.mxu0 %v7640
  %7803 = vmatprep.subr.mxu0 0.0
  %7804 = vmatpush1.msra.mxu0 %v7641
  %7805 = vmatprep.subr.mxu0 0.0
  %7806 = vmatpush1.msra.mxu0 %v7642
  %7807 = vmatprep.subr.mxu0 0.0
  %7808 = vmatpush1.msra.mxu0 %v7643
  %7809 = vmatprep.subr.mxu0 0.0
  %7810 = vmatpush1.msra.mxu0 %v7644
  %7811 = vmatprep.subr.mxu0 0.0
  %7812 = vmatpush1.msra.mxu0 %v7645
  %7813 = vmatprep.subr.mxu0 0.0
  %7814 = vmatpush1.msra.mxu0 %v7646
  %7815 = vmatprep.subr.mxu0 0.0
  %7816 = vmatpush1.msra.mxu0 %v7647
  %7817 = vmatprep.subr.mxu0 0.0
  %7818 = vmatpush1.msra.mxu0 %v7648
  %7819 = vmatprep.subr.mxu0 0.0
  %7820 = vmatpush1.msra.mxu0 %v7649
  %7821 = vmatprep.subr.mxu0 0.0
  %7822 = vmatpush1.msra.mxu0 %v7650
  %7823 = vmatprep.subr.mxu0 0.0
  %7824 = vmatpush1.msra.mxu0 %v7651
  %7825 = vmatprep.subr.mxu0 0.0
  %7826 = vmatpush1.msra.mxu0 %v7652
  %7827 = vmatprep.subr.mxu0 0.0
  %7828 = vmatpush1.msra.mxu0 %v7653
  %7829 = vmatprep.subr.mxu0 0.0
  %7830 = vmatpush1.msra.mxu0 %v7654
  %7831 = vmatprep.subr.mxu0 0.0
  %7832 = vmatpush1.msra.mxu0 %v7655
  %7833 = vmatprep.mubr.f32.mxu0 %v177
  %7834 = vmatmul.mubr.f32.gmra.mrb[0].mxu0 %v176
  %v7835 = vpop.f32.mrb[0].mxu0
  %v7836 = vadd.f32 %v7731, %v7835
  %v7837 = vpop.f32.mrb[0].mxu0
  %7838 = vmatprep.mubr.f32.mxu0 %v182
  %7839 = vmatmul.mubr.f32.gmra.mrb[0].mxu0 %v181
  %v7840 = vpop.f32.mrb[0].mxu0
  %v7841 = vadd.f32 %v7736, %v7840
  %v7842 = vpop.f32.mrb[0].mxu0
  %7843 = vmatprep.mubr.f32.mxu0 %v187
  %7844 = vmatmul.mubr.f32.gmra.mrb[0].mxu0 %v186
  %v7845 = vpop.f32.mrb[0].mxu0
  %v7846 = vadd.f32 %v7741, %v7845
  %v7847 = vpop.f32.mrb[0].mxu0
  %7848 = vmatprep.mubr.f32.mxu0 %v192
  %7849 = vmatmul.mubr.f32.gmra.mrb[0].mxu0 %v191
  %v7850 = vpop.f32.mrb[0].mxu0
  %v7851 = vadd.f32 %v7746, %v7850
  %v7852 = vpop.f32.mrb[0].mxu0
  %7853 = vmatprep.mubr.f32.mxu0 %v197
  %7854 = vmatmul.mubr.f32.gmra.mrb[0].mxu0 %v196
  %v7855 = vpop.f32.mrb[0].mxu0
  %v7856 = vadd.f32 %v7751, %v7855
  %v7857 = vpop.f32.mrb[0].mxu0
  %7858 = vmatprep.mubr.f32.mxu0 %v202
  %7859 = vmatmul.mubr.f32.gmra.mrb[0].mxu0 %v201
  %v7860 = vpop.f32.mrb[0].mxu0
  %v7861 = vadd.f32 %v7756, %v7860
  %v7862 = vpop.f32.mrb[0].mxu0
  %7863 = vmatprep.mubr.f32.mxu0 %v207
  %7864 = vmatmul.mubr.f32.gmra.mrb[0].mxu0 %v206
  %v7865 = vpop.f32.mrb[0].mxu0
  %v7866 = vadd.f32 %v7761, %v7865
  %v7867 = vpop.f32.mrb[0].mxu0
  %7868 = vmatprep.mubr.f32.mxu0 %v212
  %7869 = vmatmul.mubr.f32.gmra.mrb[0].mxu0 %v211
  %v7870 = vpop.f32.mrb[0].mxu0
  %v7871 = vadd.f32 %v7766, %v7870
  %v7872 = vpop.f32.mrb[0].mxu0
  %7873 = vdwg.mxu0
  %7874 = vmatprep.subr.mxu0 0.0
  %7875 = vmatpush1.msra.mxu0 %v7656
  %7876 = vmatprep.subr.mxu0 0.0
  %7877 = vmatpush1.msra.mxu0 %v7657
  %7878 = vmatprep.subr.mxu0 0.0
  %7879 = vmatpush1.msra.mxu0 %v7658
  %7880 = vmatprep.subr.mxu0 0.0
  %7881 = vmatpush1.msra.mxu0 %v7659
  %7882 = vmatprep.subr.mxu0 0.0
  %7883 = vmatpush1.msra.mxu0 %v7660
  %7884 = vmatprep.subr.mxu0 0.0
  %7885 = vmatpush1.msra.mxu0 %v7661
  %7886 = vmatprep.subr.mxu0 0.0
  %7887 = vmatpush1.msra.mxu0 %v7662
  %7888 = vmatprep.subr.mxu0 0.0
  %7889 = vmatpush1.msra.mxu0 %v7663
  %7890 = vmatprep.subr.mxu0 0.0
  %7891 = vmatpush1.msra.mxu0 0.0
  %7892 = vmatprep.subr.mxu0 0.0
  %7893 = vmatpush1.msra.mxu0 0.0
  %7894 = vmatprep.subr.mxu0 0.0
  %7895 = vmatpush1.msra.mxu0 0.0
  %7896 = vmatprep.subr.mxu0 0.0
  %7897 = vmatpush1.msra.mxu0 0.0
  %7898 = vmatprep.subr.mxu0 0.0
  %7899 = vmatpush1.msra.mxu0 0.0
  %7900 = vmatprep.subr.mxu0 0.0
  %7901 = vmatpush1.msra.mxu0 0.0
  %7902 = vmatprep.subr.mxu0 0.0
  %7903 = vmatpush1.msra.mxu0 0.0
  %7904 = vmatprep.subr.mxu0 0.0
  %7905 = vmatpush1.msra.mxu0 0.0
  %7906 = vmatprep.subr.mxu0 0.0
  %7907 = vmatpush1.msra.mxu0 0.0
  %7908 = vmatprep.subr.mxu0 0.0
  %7909 = vmatpush1.msra.mxu0 0.0
  %7910 = vmatprep.subr.mxu0 0.0
  %7911 = vmatpush1.msra.mxu0 0.0
  %7912 = vmatprep.subr.mxu0 0.0
  %7913 = vmatpush1.msra.mxu0 0.0
  %7914 = vmatprep.subr.mxu0 0.0
  %7915 = vmatpush1.msra.mxu0 0.0
  %7916 = vmatprep.subr.mxu0 0.0
  %7917 = vmatpush1.msra.mxu0 0.0
  %7918 = vmatprep.subr.mxu0 0.0
  %7919 = vmatpush1.msra.mxu0 0.0
  %7920 = vmatprep.subr.mxu0 0.0
  %7921 = vmatpush1.msra.mxu0 0.0
  %7922 = vmatprep.subr.mxu0 0.0
  %7923 = vmatpush1.msra.mxu0 0.0
  %7924 = vmatprep.subr.mxu0 0.0
  %7925 = vmatpush1.msra.mxu0 0.0
  %7926 = vmatprep.subr.mxu0 0.0
  %7927 = vmatpush1.msra.mxu0 0.0
  %7928 = vmatprep.subr.mxu0 0.0
  %7929 = vmatpush1.msra.mxu0 0.0
  %7930 = vmatprep.subr.mxu0 0.0
  %7931 = vmatpush1.msra.mxu0 0.0
  %7932 = vmatprep.subr.mxu0 0.0
  %7933 = vmatpush1.msra.mxu0 0.0
  %7934 = vmatprep.subr.mxu0 0.0
  %7935 = vmatpush1.msra.mxu0 0.0
  %7936 = vmatprep.subr.mxu0 0.0
  %7937 = vmatpush1.msra.mxu0 0.0
  %7938 = vmatprep.mubr.f32.mxu0 0.0
  %7939 = vmatmul.mubr.f32.gmra.mrb[0].mxu0 %v2289
  %v7940 = vpop.f32.mrb[0].mxu0
  %v7941 = vadd.f32 %v7836, %v7940
  %v7942 = vpop.f32.mrb[0].mxu0
  %7943 = vmatprep.mubr.f32.mxu0 0.0
  %7944 = vmatmul.mubr.f32.gmra.mrb[0].mxu0 %v2292
  %v7945 = vpop.f32.mrb[0].mxu0
  %v7946 = vadd.f32 %v7841, %v7945
  %v7947 = vpop.f32.mrb[0].mxu0
  %7948 = vmatprep.mubr.f32.mxu0 0.0
  %7949 = vmatmul.mubr.f32.gmra.mrb[0].mxu0 %v2295
  %v7950 = vpop.f32.mrb[0].mxu0
  %v7951 = vadd.f32 %v7846, %v7950
  %v7952 = vpop.f32.mrb[0].mxu0
  %7953 = vmatprep.mubr.f32.mxu0 0.0
  %7954 = vmatmul.mubr.f32.gmra.mrb[0].mxu0 %v2298
  %v7955 = vpop.f32.mrb[0].mxu0
  %v7956 = vadd.f32 %v7851, %v7955
  %v7957 = vpop.f32.mrb[0].mxu0
  %7958 = vmatprep.mubr.f32.mxu0 0.0
  %7959 = vmatmul.mubr.f32.gmra.mrb[0].mxu0 %v2301
  %v7960 = vpop.f32.mrb[0].mxu0
  %v7961 = vadd.f32 %v7856, %v7960
  %v7962 = vpop.f32.mrb[0].mxu0
  %7963 = vmatprep.mubr.f32.mxu0 0.0
  %7964 = vmatmul.mubr.f32.gmra.mrb[0].mxu0 %v2304
  %v7965 = vpop.f32.mrb[0].mxu0
  %v7966 = vadd.f32 %v7861, %v7965
  %v7967 = vpop.f32.mrb[0].mxu0
  %7968 = vmatprep.mubr.f32.mxu0 0.0
  %7969 = vmatmul.mubr.f32.gmra.mrb[0].mxu0 %v2307
  %v7970 = vpop.f32.mrb[0].mxu0
  %v7971 = vadd.f32 %v7866, %v7970
  %v7972 = vpop.f32.mrb[0].mxu0
  %7973 = vmatprep.mubr.f32.mxu0 0.0
  %7974 = vmatmul.mubr.f32.gmra.mrb[0].mxu0 %v2310
  %v7975 = vpop.f32.mrb[0].mxu0
  %v7976 = vadd.f32 %v7871, %v7975
  %v7977 = vpop.f32.mrb[0].mxu0
  %7978 = vdwg.mxu0
  %v7980 = vsel %vm3550, %v7941, 0
  %v7983 = vsel %vm3550, %v7946, 0
  %v7986 = vsel %vm3550, %v7951, 0
  %v7989 = vsel %vm3550, %v7956, 0
  %v7992 = vsel %vm3550, %v7961, 0
  %v7995 = vsel %vm3550, %v7966, 0
  %v7998 = vsel %vm3550, %v7971, 0
  %v8001 = vsel %vm3550, %v7976, 0
  %v8004 = vsel %vm2898, %v6467, 0
  %8006 = vmatprep.subr.mxu0 0.0
  %8007 = vmatpush1.msra.mxu0 %v6461
  %8008 = vmatprep.subr.mxu0 0.0
  %8009 = vmatpush1.msra.mxu0 %v6462
  %8010 = vmatprep.subr.mxu0 0.0
  %8011 = vmatpush1.msra.mxu0 %v6463
  %8012 = vmatprep.subr.mxu0 0.0
  %8013 = vmatpush1.msra.mxu0 %v6464
  %8014 = vmatprep.subr.mxu0 0.0
  %8015 = vmatpush1.msra.mxu0 %v6465
  %8016 = vmatprep.subr.mxu0 0.0
  %8017 = vmatpush1.msra.mxu0 %v6466
  %8018 = vmatprep.subr.mxu0 0.0
  %8019 = vmatpush1.msra.mxu0 %v8004
  %8020 = vmatprep.subr.mxu0 0.0
  %8021 = vmatpush1.msra.mxu0 0.0
  %8022 = vmatprep.subr.mxu0 0.0
  %8023 = vmatpush1.msra.mxu0 0.0
  %8024 = vmatprep.subr.mxu0 0.0
  %8025 = vmatpush1.msra.mxu0 0.0
  %8026 = vmatprep.subr.mxu0 0.0
  %8027 = vmatpush1.msra.mxu0 0.0
  %8028 = vmatprep.subr.mxu0 0.0
  %8029 = vmatpush1.msra.mxu0 0.0
  %8030 = vmatprep.subr.mxu0 0.0
  %8031 = vmatpush1.msra.mxu0 0.0
  %8032 = vmatprep.subr.mxu0 0.0
  %8033 = vmatpush1.msra.mxu0 0.0
  %8034 = vmatprep.subr.mxu0 0.0
  %8035 = vmatpush1.msra.mxu0 0.0
  %8036 = vmatprep.subr.mxu0 0.0
  %8037 = vmatpush1.msra.mxu0 0.0
  %8038 = vmatprep.subr.mxu0 0.0
  %8039 = vmatpush1.msra.mxu0 0.0
  %8040 = vmatprep.subr.mxu0 0.0
  %8041 = vmatpush1.msra.mxu0 0.0
  %8042 = vmatprep.subr.mxu0 0.0
  %8043 = vmatpush1.msra.mxu0 0.0
  %8044 = vmatprep.subr.mxu0 0.0
  %8045 = vmatpush1.msra.mxu0 0.0
  %8046 = vmatprep.subr.mxu0 0.0
  %8047 = vmatpush1.msra.mxu0 0.0
  %8048 = vmatprep.subr.mxu0 0.0
  %8049 = vmatpush1.msra.mxu0 0.0
  %8050 = vmatprep.subr.mxu0 0.0
  %8051 = vmatpush1.msra.mxu0 0.0
  %8052 = vmatprep.subr.mxu0 0.0
  %8053 = vmatpush1.msra.mxu0 0.0
  %8054 = vmatprep.subr.mxu0 0.0
  %8055 = vmatpush1.msra.mxu0 0.0
  %8056 = vmatprep.subr.mxu0 0.0
  %8057 = vmatpush1.msra.mxu0 0.0
  %8058 = vmatprep.subr.mxu0 0.0
  %8059 = vmatpush1.msra.mxu0 0.0
  %8060 = vmatprep.subr.mxu0 0.0
  %8061 = vmatpush1.msra.mxu0 0.0
  %8062 = vmatprep.subr.mxu0 0.0
  %8063 = vmatpush1.msra.mxu0 0.0
  %8064 = vmatprep.subr.mxu0 0.0
  %8065 = vmatpush1.msra.mxu0 0.0
  %8066 = vmatprep.subr.mxu0 0.0
  %8067 = vmatpush1.msra.mxu0 0.0
  %8068 = vmatprep.subr.mxu0 0.0
  %8069 = vmatpush1.msra.mxu0 0.0
  %8070 = vmatprep.mubr.f32.mxu0 0.0
  %8071 = vmatmul.mubr.f32.gmra.mrb[0].mxu0 %v7980
  %v8072 = vpop.f32.mrb[0].mxu0
  %v8073 = vadd.f32 0.0, %v8072
  %v8074 = vpop.f32.mrb[0].mxu0
  %8075 = vmatprep.mubr.f32.mxu0 0.0
  %8076 = vmatmul.mubr.f32.gmra.mrb[0].mxu0 %v7983
  %v8077 = vpop.f32.mrb[0].mxu0
  %v8078 = vadd.f32 0.0, %v8077
  %v8079 = vpop.f32.mrb[0].mxu0
  %8080 = vmatprep.mubr.f32.mxu0 0.0
  %8081 = vmatmul.mubr.f32.gmra.mrb[0].mxu0 %v7986
  %v8082 = vpop.f32.mrb[0].mxu0
  %v8083 = vadd.f32 0.0, %v8082
  %v8084 = vpop.f32.mrb[0].mxu0
  %8085 = vmatprep.mubr.f32.mxu0 0.0
  %8086 = vmatmul.mubr.f32.gmra.mrb[0].mxu0 %v7989
  %v8087 = vpop.f32.mrb[0].mxu0
  %v8088 = vadd.f32 0.0, %v8087
  %v8089 = vpop.f32.mrb[0].mxu0
  %8090 = vmatprep.mubr.f32.mxu0 0.0
  %8091 = vmatmul.mubr.f32.gmra.mrb[0].mxu0 %v7992
  %v8092 = vpop.f32.mrb[0].mxu0
  %v8093 = vadd.f32 0.0, %v8092
  %v8094 = vpop.f32.mrb[0].mxu0
  %8095 = vmatprep.mubr.f32.mxu0 0.0
  %8096 = vmatmul.mubr.f32.gmra.mrb[0].mxu0 %v7995
  %v8097 = vpop.f32.mrb[0].mxu0
  %v8098 = vadd.f32 0.0, %v8097
  %v8099 = vpop.f32.mrb[0].mxu0
  %8100 = vmatprep.mubr.f32.mxu0 0.0
  %8101 = vmatmul.mubr.f32.gmra.mrb[0].mxu0 %v7998
  %v8102 = vpop.f32.mrb[0].mxu0
  %v8103 = vadd.f32 0.0, %v8102
  %v8104 = vpop.f32.mrb[0].mxu0
  %8105 = vmatprep.mubr.f32.mxu0 0.0
  %8106 = vmatmul.mubr.f32.gmra.mrb[0].mxu0 %v8001
  %v8107 = vpop.f32.mrb[0].mxu0
  %v8108 = vadd.f32 0.0, %v8107
  %v8109 = vpop.f32.mrb[0].mxu0
  %8110 = vdwg.mxu0
  %s8111 = scalar_lea.vmem %s53, 16
  %v8112 = vld [vmem:[%s8111] sm:$0xff]
  %v8113 = vld [vmem:[%s8111 + $0x8] sm:$0xff]
  %s8114 = scalar_lea.vmem %s55, 1
  %v8115 = vld [vmem:[%s8114] sm:$0x1]
  %v8117 = vlaneseq
  %v8118 = vshrl.u32 %v8117, 7
  %v8119 = vsub.s32 0, %v8118
  %v8120 = vrot.slane %v8115, %v8119
  %v8123 = vsel %vm1212, %v8073, 0
  %v8126 = vsel %vm1212, %v8078, 0
  %v8129 = vsel %vm1212, %v8083, 0
  %v8132 = vsel %vm1212, %v8088, 0
  %v8135 = vsel %vm1212, %v8093, 0
  %v8138 = vsel %vm1212, %v8098, 0
  %v8141 = vsel %vm1212, %v8103, 0
  %v8144 = vsel %vm1212, %v8108, 0
  %8146 = vmatprep.subr.mxu0 0.0
  %8147 = vmatpush1.msra.mxu0 %v8112
  %8148 = vmatprep.subr.mxu0 0.0
  %8149 = vmatpush1.msra.mxu0 %v8113
  %8150 = vmatprep.subr.mxu0 0.0
  %8151 = vmatpush1.msra.mxu0 0.0
  %8152 = vmatprep.subr.mxu0 0.0
  %8153 = vmatpush1.msra.mxu0 0.0
  %8154 = vmatprep.subr.mxu0 0.0
  %8155 = vmatpush1.msra.mxu0 0.0
  %8156 = vmatprep.subr.mxu0 0.0
  %8157 = vmatpush1.msra.mxu0 0.0
  %8158 = vmatprep.subr.mxu0 0.0
  %8159 = vmatpush1.msra.mxu0 0.0
  %8160 = vmatprep.subr.mxu0 0.0
  %8161 = vmatpush1.msra.mxu0 0.0
  %8162 = vmatprep.subr.mxu0 0.0
  %8163 = vmatpush1.msra.mxu0 0.0
  %8164 = vmatprep.subr.mxu0 0.0
  %8165 = vmatpush1.msra.mxu0 0.0
  %8166 = vmatprep.subr.mxu0 0.0
  %8167 = vmatpush1.msra.mxu0 0.0
  %8168 = vmatprep.subr.mxu0 0.0
  %8169 = vmatpush1.msra.mxu0 0.0
  %8170 = vmatprep.subr.mxu0 0.0
  %8171 = vmatpush1.msra.mxu0 0.0
  %8172 = vmatprep.subr.mxu0 0.0
  %8173 = vmatpush1.msra.mxu0 0.0
  %8174 = vmatprep.subr.mxu0 0.0
  %8175 = vmatpush1.msra.mxu0 0.0
  %8176 = vmatprep.subr.mxu0 0.0
  %8177 = vmatpush1.msra.mxu0 0.0
  %8178 = vmatprep.subr.mxu0 0.0
  %8179 = vmatpush1.msra.mxu0 0.0
  %8180 = vmatprep.subr.mxu0 0.0
  %8181 = vmatpush1.msra.mxu0 0.0
  %8182 = vmatprep.subr.mxu0 0.0
  %8183 = vmatpush1.msra.mxu0 0.0
  %8184 = vmatprep.subr.mxu0 0.0
  %8185 = vmatpush1.msra.mxu0 0.0
  %8186 = vmatprep.subr.mxu0 0.0
  %8187 = vmatpush1.msra.mxu0 0.0
  %8188 = vmatprep.subr.mxu0 0.0
  %8189 = vmatpush1.msra.mxu0 0.0
  %8190 = vmatprep.subr.mxu0 0.0
  %8191 = vmatpush1.msra.mxu0 0.0
  %8192 = vmatprep.subr.mxu0 0.0
  %8193 = vmatpush1.msra.mxu0 0.0
  %8194 = vmatprep.subr.mxu0 0.0
  %8195 = vmatpush1.msra.mxu0 0.0
  %8196 = vmatprep.subr.mxu0 0.0
  %8197 = vmatpush1.msra.mxu0 0.0
  %8198 = vmatprep.subr.mxu0 0.0
  %8199 = vmatpush1.msra.mxu0 0.0
  %8200 = vmatprep.subr.mxu0 0.0
  %8201 = vmatpush1.msra.mxu0 0.0
  %8202 = vmatprep.subr.mxu0 0.0
  %8203 = vmatpush1.msra.mxu0 0.0
  %8204 = vmatprep.subr.mxu0 0.0
  %8205 = vmatpush1.msra.mxu0 0.0
  %8206 = vmatprep.subr.mxu0 0.0
  %8207 = vmatpush1.msra.mxu0 0.0
  %8208 = vmatprep.subr.mxu0 0.0
  %8209 = vmatpush1.msra.mxu0 0.0
  %8210 = vmatprep.mubr.f32.mxu0 0.0
  %8211 = vmatmul.mubr.f32.gmra.mrb[0].mxu0 %v8123
  %v8212 = vpop.f32.mrb[0].mxu0
  %v8213 = vadd.f32 %v8120, %v8212
  %v8214 = vpop.f32.mrb[0].mxu0
  %8215 = vmatprep.mubr.f32.mxu0 0.0
  %8216 = vmatmul.mubr.f32.gmra.mrb[0].mxu0 %v8126
  %v8217 = vpop.f32.mrb[0].mxu0
  %v8218 = vadd.f32 %v8120, %v8217
  %v8219 = vpop.f32.mrb[0].mxu0
  %8220 = vmatprep.mubr.f32.mxu0 0.0
  %8221 = vmatmul.mubr.f32.gmra.mrb[0].mxu0 %v8129
  %v8222 = vpop.f32.mrb[0].mxu0
  %v8223 = vadd.f32 %v8120, %v8222
  %v8224 = vpop.f32.mrb[0].mxu0
  %8225 = vmatprep.mubr.f32.mxu0 0.0
  %8226 = vmatmul.mubr.f32.gmra.mrb[0].mxu0 %v8132
  %v8227 = vpop.f32.mrb[0].mxu0
  %v8228 = vadd.f32 %v8120, %v8227
  %v8229 = vpop.f32.mrb[0].mxu0
  %8230 = vmatprep.mubr.f32.mxu0 0.0
  %8231 = vmatmul.mubr.f32.gmra.mrb[0].mxu0 %v8135
  %v8232 = vpop.f32.mrb[0].mxu0
  %v8233 = vadd.f32 %v8120, %v8232
  %v8234 = vpop.f32.mrb[0].mxu0
  %8235 = vmatprep.mubr.f32.mxu0 0.0
  %8236 = vmatmul.mubr.f32.gmra.mrb[0].mxu0 %v8138
  %v8237 = vpop.f32.mrb[0].mxu0
  %v8238 = vadd.f32 %v8120, %v8237
  %v8239 = vpop.f32.mrb[0].mxu0
  %8240 = vmatprep.mubr.f32.mxu0 0.0
  %8241 = vmatmul.mubr.f32.gmra.mrb[0].mxu0 %v8141
  %v8242 = vpop.f32.mrb[0].mxu0
  %v8243 = vadd.f32 %v8120, %v8242
  %v8244 = vpop.f32.mrb[0].mxu0
  %8245 = vmatprep.mubr.f32.mxu0 0.0
  %8246 = vmatmul.mubr.f32.gmra.mrb[0].mxu0 %v8144
  %v8247 = vpop.f32.mrb[0].mxu0
  %v8248 = vadd.f32 %v8120, %v8247
  %v8249 = vpop.f32.mrb[0].mxu0
  %8250 = vdwg.mxu0
  %v8251 = vadd.f32 %v5677, %v8213
  %v8252 = vadd.f32 %v5678, %v8218
  %v8253 = vadd.f32 %v5679, %v8223
  %v8254 = vadd.f32 %v5680, %v8228
  %v8255 = vadd.f32 %v5681, %v8233
  %v8256 = vadd.f32 %v5682, %v8238
  %v8257 = vadd.f32 %v5683, %v8243
  %v8258 = vadd.f32 %v5684, %v8248
  %s8259 = scalar_lea.vmem %s65, 1
  %v8260 = vld [vmem:[%s8259] sm:$0x1]
  %s8261 = scalar_lea.vmem %s67, 1
  %v8262 = vld [vmem:[%s8261] sm:$0x1]
  %v8263 = vsel %vm1212, %v8251, 0.0
  %8264 = vadd.xlane.f32.xlu0 %v8263
  %v8265 = vpop.xlane.xlu0 %8264
  %v8266 = vsel %vm1212, %v8252, 0.0
  %8267 = vadd.xlane.f32.xlu0 %v8266
  %v8268 = vpop.xlane.xlu0 %8267
  %v8269 = vsel %vm1212, %v8253, 0.0
  %8270 = vadd.xlane.f32.xlu0 %v8269
  %v8271 = vpop.xlane.xlu0 %8270
  %v8272 = vsel %vm1212, %v8254, 0.0
  %8273 = vadd.xlane.f32.xlu0 %v8272
  %v8274 = vpop.xlane.xlu0 %8273
  %v8275 = vsel %vm1212, %v8255, 0.0
  %8276 = vadd.xlane.f32.xlu0 %v8275
  %v8277 = vpop.xlane.xlu0 %8276
  %v8278 = vsel %vm1212, %v8256, 0.0
  %8279 = vadd.xlane.f32.xlu0 %v8278
  %v8280 = vpop.xlane.xlu0 %8279
  %v8281 = vsel %vm1212, %v8257, 0.0
  %8282 = vadd.xlane.f32.xlu0 %v8281
  %v8283 = vpop.xlane.xlu0 %8282
  %v8284 = vsel %vm1212, %v8258, 0.0
  %8285 = vadd.xlane.f32.xlu0 %v8284
  %v8286 = vpop.xlane.xlu0 %8285
  %v8287 = vmul.f32 %v8265, %v1368
  %v8288 = vmul.f32 %v8268, %v1368
  %v8289 = vmul.f32 %v8271, %v1368
  %v8290 = vmul.f32 %v8274, %v1368
  %v8291 = vmul.f32 %v8277, %v1368
  %v8292 = vmul.f32 %v8280, %v1368
  %v8293 = vmul.f32 %v8283, %v1368
  %v8294 = vmul.f32 %v8286, %v1368
  %v8295 = vsub.f32 %v8251, %v8287
  %v8296 = vsub.f32 %v8252, %v8288
  %v8297 = vsub.f32 %v8253, %v8289
  %v8298 = vsub.f32 %v8254, %v8290
  %v8299 = vsub.f32 %v8255, %v8291
  %v8300 = vsub.f32 %v8256, %v8292
  %v8301 = vsub.f32 %v8257, %v8293
  %v8302 = vsub.f32 %v8258, %v8294
  %v8303 = vmul.f32 %v8295, %v8295
  %v8304 = vmul.f32 %v8296, %v8296
  %v8305 = vmul.f32 %v8297, %v8297
  %v8306 = vmul.f32 %v8298, %v8298
  %v8307 = vmul.f32 %v8299, %v8299
  %v8308 = vmul.f32 %v8300, %v8300
  %v8309 = vmul.f32 %v8301, %v8301
  %v8310 = vmul.f32 %v8302, %v8302
  %v8311 = vsel %vm1212, %v8303, 0.0
  %8312 = vadd.xlane.f32.xlu0 %v8311
  %v8313 = vpop.xlane.xlu0 %8312
  %v8314 = vsel %vm1212, %v8304, 0.0
  %8315 = vadd.xlane.f32.xlu0 %v8314
  %v8316 = vpop.xlane.xlu0 %8315
  %v8317 = vsel %vm1212, %v8305, 0.0
  %8318 = vadd.xlane.f32.xlu0 %v8317
  %v8319 = vpop.xlane.xlu0 %8318
  %v8320 = vsel %vm1212, %v8306, 0.0
  %8321 = vadd.xlane.f32.xlu0 %v8320
  %v8322 = vpop.xlane.xlu0 %8321
  %v8323 = vsel %vm1212, %v8307, 0.0
  %8324 = vadd.xlane.f32.xlu0 %v8323
  %v8325 = vpop.xlane.xlu0 %8324
  %v8326 = vsel %vm1212, %v8308, 0.0
  %8327 = vadd.xlane.f32.xlu0 %v8326
  %v8328 = vpop.xlane.xlu0 %8327
  %v8329 = vsel %vm1212, %v8309, 0.0
  %8330 = vadd.xlane.f32.xlu0 %v8329
  %v8331 = vpop.xlane.xlu0 %8330
  %v8332 = vsel %vm1212, %v8310, 0.0
  %8333 = vadd.xlane.f32.xlu0 %v8332
  %v8334 = vpop.xlane.xlu0 %8333
  %v8335 = vmul.f32 %v8313, %v1368
  %v8336 = vmul.f32 %v8316, %v1368
  %v8337 = vmul.f32 %v8319, %v1368
  %v8338 = vmul.f32 %v8322, %v1368
  %v8339 = vmul.f32 %v8325, %v1368
  %v8340 = vmul.f32 %v8328, %v1368
  %v8341 = vmul.f32 %v8331, %v1368
  %v8342 = vmul.f32 %v8334, %v1368
  %v8343 = vadd.f32 %v8335, 1e-05
  %v8344 = vadd.f32 %v8336, 1e-05
  %v8345 = vadd.f32 %v8337, 1e-05
  %v8346 = vadd.f32 %v8338, 1e-05
  %v8347 = vadd.f32 %v8339, 1e-05
  %v8348 = vadd.f32 %v8340, 1e-05
  %v8349 = vadd.f32 %v8341, 1e-05
  %v8350 = vadd.f32 %v8342, 1e-05
  %v8351 = vrsqrt.pop %v8343
  %v8352 = vrsqrt.pop %v8344
  %v8353 = vrsqrt.pop %v8345
  %v8354 = vrsqrt.pop %v8346
  %v8355 = vrsqrt.pop %v8347
  %v8356 = vrsqrt.pop %v8348
  %v8357 = vrsqrt.pop %v8349
  %v8358 = vrsqrt.pop %v8350
  %v8359 = vmul.f32 %v8295, %v8351
  %v8360 = vmul.f32 %v8296, %v8352
  %v8361 = vmul.f32 %v8297, %v8353
  %v8362 = vmul.f32 %v8298, %v8354
  %v8363 = vmul.f32 %v8299, %v8355
  %v8364 = vmul.f32 %v8300, %v8356
  %v8365 = vmul.f32 %v8301, %v8357
  %v8366 = vmul.f32 %v8302, %v8358
  %v8368 = vlaneseq
  %v8369 = vshrl.u32 %v8368, 7
  %v8370 = vsub.s32 0, %v8369
  %v8371 = vrot.slane %v8260, %v8370
  %v8373 = vmul.f32 %v8359, %v8371
  %v8374 = vmul.f32 %v8360, %v8371
  %v8375 = vmul.f32 %v8361, %v8371
  %v8376 = vmul.f32 %v8362, %v8371
  %v8377 = vmul.f32 %v8363, %v8371
  %v8378 = vmul.f32 %v8364, %v8371
  %v8379 = vmul.f32 %v8365, %v8371
  %v8380 = vmul.f32 %v8366, %v8371
  %v8382 = vlaneseq
  %v8383 = vshrl.u32 %v8382, 7
  %v8384 = vsub.s32 0, %v8383
  %v8385 = vrot.slane %v8262, %v8384
  %v8387 = vadd.f32 %v8373, %v8385
  %v8388 = vadd.f32 %v8374, %v8385
  %v8389 = vadd.f32 %v8375, %v8385
  %v8390 = vadd.f32 %v8376, %v8385
  %v8391 = vadd.f32 %v8377, %v8385
  %v8392 = vadd.f32 %v8378, %v8385
  %v8393 = vadd.f32 %v8379, %v8385
  %v8394 = vadd.f32 %v8380, %v8385
  %v8396 = vsel %vm1212, %v8387, 0
  %v8399 = vsel %vm1212, %v8388, 0
  %v8402 = vsel %vm1212, %v8389, 0
  %v8405 = vsel %vm1212, %v8390, 0
  %v8408 = vsel %vm1212, %v8391, 0
  %v8411 = vsel %vm1212, %v8392, 0
  %v8414 = vsel %vm1212, %v8393, 0
  %v8417 = vsel %vm1212, %v8394, 0
  %8419 = vmatprep.subr.mxu0 %v289
  %8420 = vmatpush1.msra.mxu0 %v288
  %8421 = vmatprep.subr.mxu0 %v291
  %8422 = vmatpush1.msra.mxu0 %v290
  %8423 = vmatprep.subr.mxu0 0.0
  %8424 = vmatpush1.msra.mxu0 0.0
  %8425 = vmatprep.subr.mxu0 0.0
  %8426 = vmatpush1.msra.mxu0 0.0
  %8427 = vmatprep.subr.mxu0 0.0
  %8428 = vmatpush1.msra.mxu0 0.0
  %8429 = vmatprep.subr.mxu0 0.0
  %8430 = vmatpush1.msra.mxu0 0.0
  %8431 = vmatprep.subr.mxu0 0.0
  %8432 = vmatpush1.msra.mxu0 0.0
  %8433 = vmatprep.subr.mxu0 0.0
  %8434 = vmatpush1.msra.mxu0 0.0
  %8435 = vmatprep.subr.mxu0 0.0
  %8436 = vmatpush1.msra.mxu0 0.0
  %8437 = vmatprep.subr.mxu0 0.0
  %8438 = vmatpush1.msra.mxu0 0.0
  %8439 = vmatprep.subr.mxu0 0.0
  %8440 = vmatpush1.msra.mxu0 0.0
  %8441 = vmatprep.subr.mxu0 0.0
  %8442 = vmatpush1.msra.mxu0 0.0
  %8443 = vmatprep.subr.mxu0 0.0
  %8444 = vmatpush1.msra.mxu0 0.0
  %8445 = vmatprep.subr.mxu0 0.0
  %8446 = vmatpush1.msra.mxu0 0.0
  %8447 = vmatprep.subr.mxu0 0.0
  %8448 = vmatpush1.msra.mxu0 0.0
  %8449 = vmatprep.subr.mxu0 0.0
  %8450 = vmatpush1.msra.mxu0 0.0
  %8451 = vmatprep.subr.mxu0 0.0
  %8452 = vmatpush1.msra.mxu0 0.0
  %8453 = vmatprep.subr.mxu0 0.0
  %8454 = vmatpush1.msra.mxu0 0.0
  %8455 = vmatprep.subr.mxu0 0.0
  %8456 = vmatpush1.msra.mxu0 0.0
  %8457 = vmatprep.subr.mxu0 0.0
  %8458 = vmatpush1.msra.mxu0 0.0
  %8459 = vmatprep.subr.mxu0 0.0
  %8460 = vmatpush1.msra.mxu0 0.0
  %8461 = vmatprep.subr.mxu0 0.0
  %8462 = vmatpush1.msra.mxu0 0.0
  %8463 = vmatprep.subr.mxu0 0.0
  %8464 = vmatpush1.msra.mxu0 0.0
  %8465 = vmatprep.subr.mxu0 0.0
  %8466 = vmatpush1.msra.mxu0 0.0
  %8467 = vmatprep.subr.mxu0 0.0
  %8468 = vmatpush1.msra.mxu0 0.0
  %8469 = vmatprep.subr.mxu0 0.0
  %8470 = vmatpush1.msra.mxu0 0.0
  %8471 = vmatprep.subr.mxu0 0.0
  %8472 = vmatpush1.msra.mxu0 0.0
  %8473 = vmatprep.subr.mxu0 0.0
  %8474 = vmatpush1.msra.mxu0 0.0
  %8475 = vmatprep.subr.mxu0 0.0
  %8476 = vmatpush1.msra.mxu0 0.0
  %8477 = vmatprep.subr.mxu0 0.0
  %8478 = vmatpush1.msra.mxu0 0.0
  %8479 = vmatprep.subr.mxu0 0.0
  %8480 = vmatpush1.msra.mxu0 0.0
  %8481 = vmatprep.subr.mxu0 0.0
  %8482 = vmatpush1.msra.mxu0 0.0
  %8483 = vmatprep.mubr.f32.mxu0 0.0
  %8484 = vmatmul.mubr.f32.gmra.mrb[0].mxu0 %v8396
  %v8485 = vpop.f32.mrb[0].mxu0
  %v8486 = vadd.f32 0.0, %v8485
  %v8487 = vpop.f32.mrb[0].mxu0
  %v8488 = vadd.f32 0.0, %v8487
  %8489 = vmatprep.mubr.f32.mxu0 0.0
  %8490 = vmatmul.mubr.f32.gmra.mrb[0].mxu0 %v8399
  %v8491 = vpop.f32.mrb[0].mxu0
  %v8492 = vadd.f32 0.0, %v8491
  %v8493 = vpop.f32.mrb[0].mxu0
  %v8494 = vadd.f32 0.0, %v8493
  %8495 = vmatprep.mubr.f32.mxu0 0.0
  %8496 = vmatmul.mubr.f32.gmra.mrb[0].mxu0 %v8402
  %v8497 = vpop.f32.mrb[0].mxu0
  %v8498 = vadd.f32 0.0, %v8497
  %v8499 = vpop.f32.mrb[0].mxu0
  %v8500 = vadd.f32 0.0, %v8499
  %8501 = vmatprep.mubr.f32.mxu0 0.0
  %8502 = vmatmul.mubr.f32.gmra.mrb[0].mxu0 %v8405
  %v8503 = vpop.f32.mrb[0].mxu0
  %v8504 = vadd.f32 0.0, %v8503
  %v8505 = vpop.f32.mrb[0].mxu0
  %v8506 = vadd.f32 0.0, %v8505
  %8507 = vmatprep.mubr.f32.mxu0 0.0
  %8508 = vmatmul.mubr.f32.gmra.mrb[0].mxu0 %v8408
  %v8509 = vpop.f32.mrb[0].mxu0
  %v8510 = vadd.f32 0.0, %v8509
  %v8511 = vpop.f32.mrb[0].mxu0
  %v8512 = vadd.f32 0.0, %v8511
  %8513 = vmatprep.mubr.f32.mxu0 0.0
  %8514 = vmatmul.mubr.f32.gmra.mrb[0].mxu0 %v8411
  %v8515 = vpop.f32.mrb[0].mxu0
  %v8516 = vadd.f32 0.0, %v8515
  %v8517 = vpop.f32.mrb[0].mxu0
  %v8518 = vadd.f32 0.0, %v8517
  %8519 = vmatprep.mubr.f32.mxu0 0.0
  %8520 = vmatmul.mubr.f32.gmra.mrb[0].mxu0 %v8414
  %v8521 = vpop.f32.mrb[0].mxu0
  %v8522 = vadd.f32 0.0, %v8521
  %v8523 = vpop.f32.mrb[0].mxu0
  %v8524 = vadd.f32 0.0, %v8523
  %8525 = vmatprep.mubr.f32.mxu0 0.0
  %8526 = vmatmul.mubr.f32.gmra.mrb[0].mxu0 %v8417
  %v8527 = vpop.f32.mrb[0].mxu0
  %v8528 = vadd.f32 0.0, %v8527
  %v8529 = vpop.f32.mrb[0].mxu0
  %v8530 = vadd.f32 0.0, %v8529
  %8531 = vdwg.mxu0
  %v8532 = vmul.f32 %v8486, %v730
  %v8533 = vmul.f32 %v8488, %v731
  %v8534 = vmul.f32 %v8492, %v732
  %v8535 = vmul.f32 %v8494, %v733
  %v8536 = vmul.f32 %v8498, %v734
  %v8537 = vmul.f32 %v8500, %v735
  %v8538 = vmul.f32 %v8504, %v736
  %v8539 = vmul.f32 %v8506, %v737
  %v8540 = vmul.f32 %v8510, %v738
  %v8541 = vmul.f32 %v8512, %v739
  %v8542 = vmul.f32 %v8516, %v740
  %v8543 = vmul.f32 %v8518, %v741
  %v8544 = vmul.f32 %v8522, %v742
  %v8545 = vmul.f32 %v8524, %v743
  %v8546 = vmul.f32 %v8528, %v744
  %v8547 = vmul.f32 %v8530, %v745
  %v8548 = vmul.f32 %v8486, %v746
  %v8549 = vmul.f32 %v8488, %v747
  %v8550 = vmul.f32 %v8492, %v748
  %v8551 = vmul.f32 %v8494, %v749
  %v8552 = vmul.f32 %v8498, %v750
  %v8553 = vmul.f32 %v8500, %v751
  %v8554 = vmul.f32 %v8504, %v752
  %v8555 = vmul.f32 %v8506, %v753
  %v8556 = vmul.f32 %v8510, %v754
  %v8557 = vmul.f32 %v8512, %v755
  %v8558 = vmul.f32 %v8516, %v756
  %v8559 = vmul.f32 %v8518, %v757
  %v8560 = vmul.f32 %v8522, %v758
  %v8561 = vmul.f32 %v8524, %v759
  %v8562 = vmul.f32 %v8528, %v760
  %v8563 = vmul.f32 %v8530, %v761
  %v8564 = vmul.f32 %v8486, %v762
  %v8565 = vmul.f32 %v8488, %v763
  %v8566 = vmul.f32 %v8492, %v764
  %v8567 = vmul.f32 %v8494, %v765
  %v8568 = vmul.f32 %v8498, %v766
  %v8569 = vmul.f32 %v8500, %v767
  %v8570 = vmul.f32 %v8504, %v768
  %v8571 = vmul.f32 %v8506, %v769
  %v8572 = vmul.f32 %v8510, %v770
  %v8573 = vmul.f32 %v8512, %v771
  %v8574 = vmul.f32 %v8516, %v772
  %v8575 = vmul.f32 %v8518, %v773
  %v8576 = vmul.f32 %v8522, %v774
  %v8577 = vmul.f32 %v8524, %v775
  %v8578 = vmul.f32 %v8528, %v776
  %v8579 = vmul.f32 %v8530, %v777
  %v8580 = vmul.f32 %v8486, %v778
  %v8581 = vmul.f32 %v8488, %v779
  %v8582 = vmul.f32 %v8492, %v780
  %v8583 = vmul.f32 %v8494, %v781
  %v8584 = vmul.f32 %v8498, %v782
  %v8585 = vmul.f32 %v8500, %v783
  %v8586 = vmul.f32 %v8504, %v784
  %v8587 = vmul.f32 %v8506, %v785
  %v8588 = vmul.f32 %v8510, %v786
  %v8589 = vmul.f32 %v8512, %v787
  %v8590 = vmul.f32 %v8516, %v788
  %v8591 = vmul.f32 %v8518, %v789
  %v8592 = vmul.f32 %v8522, %v790
  %v8593 = vmul.f32 %v8524, %v791
  %v8594 = vmul.f32 %v8528, %v792
  %v8595 = vmul.f32 %v8530, %v793
  %v8596 = vmul.f32 %v8486, %v794
  %v8597 = vmul.f32 %v8488, %v795
  %v8598 = vmul.f32 %v8492, %v796
  %v8599 = vmul.f32 %v8494, %v797
  %v8600 = vmul.f32 %v8498, %v798
  %v8601 = vmul.f32 %v8500, %v799
  %v8602 = vmul.f32 %v8504, %v800
  %v8603 = vmul.f32 %v8506, %v801
  %v8604 = vmul.f32 %v8510, %v802
  %v8605 = vmul.f32 %v8512, %v803
  %v8606 = vmul.f32 %v8516, %v804
  %v8607 = vmul.f32 %v8518, %v805
  %v8608 = vmul.f32 %v8522, %v806
  %v8609 = vmul.f32 %v8524, %v807
  %v8610 = vmul.f32 %v8528, %v808
  %v8611 = vmul.f32 %v8530, %v809
  %v8612 = vmul.f32 %v8486, %v810
  %v8613 = vmul.f32 %v8488, %v811
  %v8614 = vmul.f32 %v8492, %v812
  %v8615 = vmul.f32 %v8494, %v813
  %v8616 = vmul.f32 %v8498, %v814
  %v8617 = vmul.f32 %v8500, %v815
  %v8618 = vmul.f32 %v8504, %v816
  %v8619 = vmul.f32 %v8506, %v817
  %v8620 = vmul.f32 %v8510, %v818
  %v8621 = vmul.f32 %v8512, %v819
  %v8622 = vmul.f32 %v8516, %v820
  %v8623 = vmul.f32 %v8518, %v821
  %v8624 = vmul.f32 %v8522, %v822
  %v8625 = vmul.f32 %v8524, %v823
  %v8626 = vmul.f32 %v8528, %v824
  %v8627 = vmul.f32 %v8530, %v825
  %v8628 = vmul.f32 %v8486, %v826
  %v8629 = vmul.f32 %v8488, %v827
  %v8630 = vmul.f32 %v8492, %v828
  %v8631 = vmul.f32 %v8494, %v829
  %v8632 = vmul.f32 %v8498, %v830
  %v8633 = vmul.f32 %v8500, %v831
  %v8634 = vmul.f32 %v8504, %v832
  %v8635 = vmul.f32 %v8506, %v833
  %v8636 = vmul.f32 %v8510, %v834
  %v8637 = vmul.f32 %v8512, %v835
  %v8638 = vmul.f32 %v8516, %v836
  %v8639 = vmul.f32 %v8518, %v837
  %v8640 = vmul.f32 %v8522, %v838
  %v8641 = vmul.f32 %v8524, %v839
  %v8642 = vmul.f32 %v8528, %v840
  %v8643 = vmul.f32 %v8530, %v841
  %v8644 = vmul.f32 %v8486, %v842
  %v8645 = vmul.f32 %v8488, %v843
  %v8646 = vmul.f32 %v8492, %v844
  %v8647 = vmul.f32 %v8494, %v845
  %v8648 = vmul.f32 %v8498, %v846
  %v8649 = vmul.f32 %v8500, %v847
  %v8650 = vmul.f32 %v8504, %v848
  %v8651 = vmul.f32 %v8506, %v849
  %v8652 = vmul.f32 %v8510, %v850
  %v8653 = vmul.f32 %v8512, %v851
  %v8654 = vmul.f32 %v8516, %v852
  %v8655 = vmul.f32 %v8518, %v853
  %v8656 = vmul.f32 %v8522, %v854
  %v8657 = vmul.f32 %v8524, %v855
  %v8658 = vmul.f32 %v8528, %v856
  %v8659 = vmul.f32 %v8530, %v857
  %v8660 = vmul.f32 %v8486, %v858
  %v8661 = vmul.f32 %v8488, %v859
  %v8662 = vmul.f32 %v8492, %v860
  %v8663 = vmul.f32 %v8494, %v861
  %v8664 = vmul.f32 %v8498, %v862
  %v8665 = vmul.f32 %v8500, %v863
  %v8666 = vmul.f32 %v8504, %v864
  %v8667 = vmul.f32 %v8506, %v865
  %v8668 = vmul.f32 %v8510, %v866
  %v8669 = vmul.f32 %v8512, %v867
  %v8670 = vmul.f32 %v8516, %v868
  %v8671 = vmul.f32 %v8518, %v869
  %v8672 = vmul.f32 %v8522, %v870
  %v8673 = vmul.f32 %v8524, %v871
  %v8674 = vmul.f32 %v8528, %v872
  %v8675 = vmul.f32 %v8530, %v873
  %8676 = vmatprep.subr.mxu0 %v8533
  %8677 = vmatpush1.msra.mxu0 %v8532
  %8678 = vmatprep.subr.mxu0 %v8535
  %8679 = vmatpush1.msra.mxu0 %v8534
  %8680 = vmatprep.subr.mxu0 %v8537
  %8681 = vmatpush1.msra.mxu0 %v8536
  %8682 = vmatprep.subr.mxu0 %v8539
  %8683 = vmatpush1.msra.mxu0 %v8538
  %8684 = vmatprep.subr.mxu0 %v8541
  %8685 = vmatpush1.msra.mxu0 %v8540
  %8686 = vmatprep.subr.mxu0 %v8543
  %8687 = vmatpush1.msra.mxu0 %v8542
  %8688 = vmatprep.subr.mxu0 %v8545
  %8689 = vmatpush1.msra.mxu0 %v8544
  %8690 = vmatprep.subr.mxu0 %v8547
  %8691 = vmatpush1.msra.mxu0 %v8546
  %8692 = vmatprep.subr.mxu0 %v8549
  %8693 = vmatpush1.msra.mxu0 %v8548
  %8694 = vmatprep.subr.mxu0 %v8551
  %8695 = vmatpush1.msra.mxu0 %v8550
  %8696 = vmatprep.subr.mxu0 %v8553
  %8697 = vmatpush1.msra.mxu0 %v8552
  %8698 = vmatprep.subr.mxu0 %v8555
  %8699 = vmatpush1.msra.mxu0 %v8554
  %8700 = vmatprep.subr.mxu0 %v8557
  %8701 = vmatpush1.msra.mxu0 %v8556
  %8702 = vmatprep.subr.mxu0 %v8559
  %8703 = vmatpush1.msra.mxu0 %v8558
  %8704 = vmatprep.subr.mxu0 %v8561
  %8705 = vmatpush1.msra.mxu0 %v8560
  %8706 = vmatprep.subr.mxu0 %v8563
  %8707 = vmatpush1.msra.mxu0 %v8562
  %8708 = vmatprep.subr.mxu0 %v8565
  %8709 = vmatpush1.msra.mxu0 %v8564
  %8710 = vmatprep.subr.mxu0 %v8567
  %8711 = vmatpush1.msra.mxu0 %v8566
  %8712 = vmatprep.subr.mxu0 %v8569
  %8713 = vmatpush1.msra.mxu0 %v8568
  %8714 = vmatprep.subr.mxu0 %v8571
  %8715 = vmatpush1.msra.mxu0 %v8570
  %8716 = vmatprep.subr.mxu0 %v8573
  %8717 = vmatpush1.msra.mxu0 %v8572
  %8718 = vmatprep.subr.mxu0 %v8575
  %8719 = vmatpush1.msra.mxu0 %v8574
  %8720 = vmatprep.subr.mxu0 %v8577
  %8721 = vmatpush1.msra.mxu0 %v8576
  %8722 = vmatprep.subr.mxu0 %v8579
  %8723 = vmatpush1.msra.mxu0 %v8578
  %8724 = vmatprep.subr.mxu0 %v8581
  %8725 = vmatpush1.msra.mxu0 %v8580
  %8726 = vmatprep.subr.mxu0 %v8583
  %8727 = vmatpush1.msra.mxu0 %v8582
  %8728 = vmatprep.subr.mxu0 %v8585
  %8729 = vmatpush1.msra.mxu0 %v8584
  %8730 = vmatprep.subr.mxu0 %v8587
  %8731 = vmatpush1.msra.mxu0 %v8586
  %8732 = vmatprep.subr.mxu0 %v8589
  %8733 = vmatpush1.msra.mxu0 %v8588
  %8734 = vmatprep.subr.mxu0 %v8591
  %8735 = vmatpush1.msra.mxu0 %v8590
  %8736 = vmatprep.subr.mxu0 %v8593
  %8737 = vmatpush1.msra.mxu0 %v8592
  %8738 = vmatprep.subr.mxu0 %v8595
  %8739 = vmatpush1.msra.mxu0 %v8594
  %8740 = vmatprep.mubr.f32.mxu0 %v239
  %8741 = vmatmul.mubr.f32.gmra.mrb[0].mxu0 %v238
  %v8742 = vpop.f32.mrb[0].mxu0
  %v8743 = vadd.f32 0.0, %v8742
  %v8744 = vpop.f32.mrb[0].mxu0
  %v8745 = vadd.f32 0.0, %v8744
  %8746 = vmatprep.mubr.f32.mxu0 %v244
  %8747 = vmatmul.mubr.f32.gmra.mrb[0].mxu0 %v243
  %v8748 = vpop.f32.mrb[0].mxu0
  %v8749 = vadd.f32 0.0, %v8748
  %v8750 = vpop.f32.mrb[0].mxu0
  %v8751 = vadd.f32 0.0, %v8750
  %8752 = vmatprep.mubr.f32.mxu0 %v249
  %8753 = vmatmul.mubr.f32.gmra.mrb[0].mxu0 %v248
  %v8754 = vpop.f32.mrb[0].mxu0
  %v8755 = vadd.f32 0.0, %v8754
  %v8756 = vpop.f32.mrb[0].mxu0
  %v8757 = vadd.f32 0.0, %v8756
  %8758 = vmatprep.mubr.f32.mxu0 %v254
  %8759 = vmatmul.mubr.f32.gmra.mrb[0].mxu0 %v253
  %v8760 = vpop.f32.mrb[0].mxu0
  %v8761 = vadd.f32 0.0, %v8760
  %v8762 = vpop.f32.mrb[0].mxu0
  %v8763 = vadd.f32 0.0, %v8762
  %8764 = vmatprep.mubr.f32.mxu0 %v259
  %8765 = vmatmul.mubr.f32.gmra.mrb[0].mxu0 %v258
  %v8766 = vpop.f32.mrb[0].mxu0
  %v8767 = vadd.f32 0.0, %v8766
  %v8768 = vpop.f32.mrb[0].mxu0
  %v8769 = vadd.f32 0.0, %v8768
  %8770 = vmatprep.mubr.f32.mxu0 %v264
  %8771 = vmatmul.mubr.f32.gmra.mrb[0].mxu0 %v263
  %v8772 = vpop.f32.mrb[0].mxu0
  %v8773 = vadd.f32 0.0, %v8772
  %v8774 = vpop.f32.mrb[0].mxu0
  %v8775 = vadd.f32 0.0, %v8774
  %8776 = vmatprep.mubr.f32.mxu0 %v269
  %8777 = vmatmul.mubr.f32.gmra.mrb[0].mxu0 %v268
  %v8778 = vpop.f32.mrb[0].mxu0
  %v8779 = vadd.f32 0.0, %v8778
  %v8780 = vpop.f32.mrb[0].mxu0
  %v8781 = vadd.f32 0.0, %v8780
  %8782 = vmatprep.mubr.f32.mxu0 %v274
  %8783 = vmatmul.mubr.f32.gmra.mrb[0].mxu0 %v273
  %v8784 = vpop.f32.mrb[0].mxu0
  %v8785 = vadd.f32 0.0, %v8784
  %v8786 = vpop.f32.mrb[0].mxu0
  %v8787 = vadd.f32 0.0, %v8786
  %8788 = vdwg.mxu0
  %8789 = vmatprep.subr.mxu0 %v8597
  %8790 = vmatpush1.msra.mxu0 %v8596
  %8791 = vmatprep.subr.mxu0 %v8599
  %8792 = vmatpush1.msra.mxu0 %v8598
  %8793 = vmatprep.subr.mxu0 %v8601
  %8794 = vmatpush1.msra.mxu0 %v8600
  %8795 = vmatprep.subr.mxu0 %v8603
  %8796 = vmatpush1.msra.mxu0 %v8602
  %8797 = vmatprep.subr.mxu0 %v8605
  %8798 = vmatpush1.msra.mxu0 %v8604
  %8799 = vmatprep.subr.mxu0 %v8607
  %8800 = vmatpush1.msra.mxu0 %v8606
  %8801 = vmatprep.subr.mxu0 %v8609
  %8802 = vmatpush1.msra.mxu0 %v8608
  %8803 = vmatprep.subr.mxu0 %v8611
  %8804 = vmatpush1.msra.mxu0 %v8610
  %8805 = vmatprep.subr.mxu0 %v8613
  %8806 = vmatpush1.msra.mxu0 %v8612
  %8807 = vmatprep.subr.mxu0 %v8615
  %8808 = vmatpush1.msra.mxu0 %v8614
  %8809 = vmatprep.subr.mxu0 %v8617
  %8810 = vmatpush1.msra.mxu0 %v8616
  %8811 = vmatprep.subr.mxu0 %v8619
  %8812 = vmatpush1.msra.mxu0 %v8618
  %8813 = vmatprep.subr.mxu0 %v8621
  %8814 = vmatpush1.msra.mxu0 %v8620
  %8815 = vmatprep.subr.mxu0 %v8623
  %8816 = vmatpush1.msra.mxu0 %v8622
  %8817 = vmatprep.subr.mxu0 %v8625
  %8818 = vmatpush1.msra.mxu0 %v8624
  %8819 = vmatprep.subr.mxu0 %v8627
  %8820 = vmatpush1.msra.mxu0 %v8626
  %8821 = vmatprep.subr.mxu0 %v8629
  %8822 = vmatpush1.msra.mxu0 %v8628
  %8823 = vmatprep.subr.mxu0 %v8631
  %8824 = vmatpush1.msra.mxu0 %v8630
  %8825 = vmatprep.subr.mxu0 %v8633
  %8826 = vmatpush1.msra.mxu0 %v8632
  %8827 = vmatprep.subr.mxu0 %v8635
  %8828 = vmatpush1.msra.mxu0 %v8634
  %8829 = vmatprep.subr.mxu0 %v8637
  %8830 = vmatpush1.msra.mxu0 %v8636
  %8831 = vmatprep.subr.mxu0 %v8639
  %8832 = vmatpush1.msra.mxu0 %v8638
  %8833 = vmatprep.subr.mxu0 %v8641
  %8834 = vmatpush1.msra.mxu0 %v8640
  %8835 = vmatprep.subr.mxu0 %v8643
  %8836 = vmatpush1.msra.mxu0 %v8642
  %8837 = vmatprep.subr.mxu0 %v8645
  %8838 = vmatpush1.msra.mxu0 %v8644
  %8839 = vmatprep.subr.mxu0 %v8647
  %8840 = vmatpush1.msra.mxu0 %v8646
  %8841 = vmatprep.subr.mxu0 %v8649
  %8842 = vmatpush1.msra.mxu0 %v8648
  %8843 = vmatprep.subr.mxu0 %v8651
  %8844 = vmatpush1.msra.mxu0 %v8650
  %8845 = vmatprep.subr.mxu0 %v8653
  %8846 = vmatpush1.msra.mxu0 %v8652
  %8847 = vmatprep.subr.mxu0 %v8655
  %8848 = vmatpush1.msra.mxu0 %v8654
  %8849 = vmatprep.subr.mxu0 %v8657
  %8850 = vmatpush1.msra.mxu0 %v8656
  %8851 = vmatprep.subr.mxu0 %v8659
  %8852 = vmatpush1.msra.mxu0 %v8658
  %8853 = vmatprep.mubr.f32.mxu0 %v241
  %8854 = vmatmul.mubr.f32.gmra.mrb[0].mxu0 %v240
  %v8855 = vpop.f32.mrb[0].mxu0
  %v8856 = vadd.f32 %v8743, %v8855
  %v8857 = vpop.f32.mrb[0].mxu0
  %v8858 = vadd.f32 %v8745, %v8857
  %8859 = vmatprep.mubr.f32.mxu0 %v246
  %8860 = vmatmul.mubr.f32.gmra.mrb[0].mxu0 %v245
  %v8861 = vpop.f32.mrb[0].mxu0
  %v8862 = vadd.f32 %v8749, %v8861
  %v8863 = vpop.f32.mrb[0].mxu0
  %v8864 = vadd.f32 %v8751, %v8863
  %8865 = vmatprep.mubr.f32.mxu0 %v251
  %8866 = vmatmul.mubr.f32.gmra.mrb[0].mxu0 %v250
  %v8867 = vpop.f32.mrb[0].mxu0
  %v8868 = vadd.f32 %v8755, %v8867
  %v8869 = vpop.f32.mrb[0].mxu0
  %v8870 = vadd.f32 %v8757, %v8869
  %8871 = vmatprep.mubr.f32.mxu0 %v256
  %8872 = vmatmul.mubr.f32.gmra.mrb[0].mxu0 %v255
  %v8873 = vpop.f32.mrb[0].mxu0
  %v8874 = vadd.f32 %v8761, %v8873
  %v8875 = vpop.f32.mrb[0].mxu0
  %v8876 = vadd.f32 %v8763, %v8875
  %8877 = vmatprep.mubr.f32.mxu0 %v261
  %8878 = vmatmul.mubr.f32.gmra.mrb[0].mxu0 %v260
  %v8879 = vpop.f32.mrb[0].mxu0
  %v8880 = vadd.f32 %v8767, %v8879
  %v8881 = vpop.f32.mrb[0].mxu0
  %v8882 = vadd.f32 %v8769, %v8881
  %8883 = vmatprep.mubr.f32.mxu0 %v266
  %8884 = vmatmul.mubr.f32.gmra.mrb[0].mxu0 %v265
  %v8885 = vpop.f32.mrb[0].mxu0
  %v8886 = vadd.f32 %v8773, %v8885
  %v8887 = vpop.f32.mrb[0].mxu0
  %v8888 = vadd.f32 %v8775, %v8887
  %8889 = vmatprep.mubr.f32.mxu0 %v271
  %8890 = vmatmul.mubr.f32.gmra.mrb[0].mxu0 %v270
  %v8891 = vpop.f32.mrb[0].mxu0
  %v8892 = vadd.f32 %v8779, %v8891
  %v8893 = vpop.f32.mrb[0].mxu0
  %v8894 = vadd.f32 %v8781, %v8893
  %8895 = vmatprep.mubr.f32.mxu0 %v276
  %8896 = vmatmul.mubr.f32.gmra.mrb[0].mxu0 %v275
  %v8897 = vpop.f32.mrb[0].mxu0
  %v8898 = vadd.f32 %v8785, %v8897
  %v8899 = vpop.f32.mrb[0].mxu0
  %v8900 = vadd.f32 %v8787, %v8899
  %8901 = vdwg.mxu0
  %8902 = vmatprep.subr.mxu0 %v8661
  %8903 = vmatpush1.msra.mxu0 %v8660
  %8904 = vmatprep.subr.mxu0 %v8663
  %8905 = vmatpush1.msra.mxu0 %v8662
  %8906 = vmatprep.subr.mxu0 %v8665
  %8907 = vmatpush1.msra.mxu0 %v8664
  %8908 = vmatprep.subr.mxu0 %v8667
  %8909 = vmatpush1.msra.mxu0 %v8666
  %8910 = vmatprep.subr.mxu0 %v8669
  %8911 = vmatpush1.msra.mxu0 %v8668
  %8912 = vmatprep.subr.mxu0 %v8671
  %8913 = vmatpush1.msra.mxu0 %v8670
  %8914 = vmatprep.subr.mxu0 %v8673
  %8915 = vmatpush1.msra.mxu0 %v8672
  %8916 = vmatprep.subr.mxu0 %v8675
  %8917 = vmatpush1.msra.mxu0 %v8674
  %8918 = vmatprep.subr.mxu0 0.0
  %8919 = vmatpush1.msra.mxu0 0.0
  %8920 = vmatprep.subr.mxu0 0.0
  %8921 = vmatpush1.msra.mxu0 0.0
  %8922 = vmatprep.subr.mxu0 0.0
  %8923 = vmatpush1.msra.mxu0 0.0
  %8924 = vmatprep.subr.mxu0 0.0
  %8925 = vmatpush1.msra.mxu0 0.0
  %8926 = vmatprep.subr.mxu0 0.0
  %8927 = vmatpush1.msra.mxu0 0.0
  %8928 = vmatprep.subr.mxu0 0.0
  %8929 = vmatpush1.msra.mxu0 0.0
  %8930 = vmatprep.subr.mxu0 0.0
  %8931 = vmatpush1.msra.mxu0 0.0
  %8932 = vmatprep.subr.mxu0 0.0
  %8933 = vmatpush1.msra.mxu0 0.0
  %8934 = vmatprep.subr.mxu0 0.0
  %8935 = vmatpush1.msra.mxu0 0.0
  %8936 = vmatprep.subr.mxu0 0.0
  %8937 = vmatpush1.msra.mxu0 0.0
  %8938 = vmatprep.subr.mxu0 0.0
  %8939 = vmatpush1.msra.mxu0 0.0
  %8940 = vmatprep.subr.mxu0 0.0
  %8941 = vmatpush1.msra.mxu0 0.0
  %8942 = vmatprep.subr.mxu0 0.0
  %8943 = vmatpush1.msra.mxu0 0.0
  %8944 = vmatprep.subr.mxu0 0.0
  %8945 = vmatpush1.msra.mxu0 0.0
  %8946 = vmatprep.subr.mxu0 0.0
  %8947 = vmatpush1.msra.mxu0 0.0
  %8948 = vmatprep.subr.mxu0 0.0
  %8949 = vmatpush1.msra.mxu0 0.0
  %8950 = vmatprep.subr.mxu0 0.0
  %8951 = vmatpush1.msra.mxu0 0.0
  %8952 = vmatprep.subr.mxu0 0.0
  %8953 = vmatpush1.msra.mxu0 0.0
  %8954 = vmatprep.subr.mxu0 0.0
  %8955 = vmatpush1.msra.mxu0 0.0
  %8956 = vmatprep.subr.mxu0 0.0
  %8957 = vmatpush1.msra.mxu0 0.0
  %8958 = vmatprep.subr.mxu0 0.0
  %8959 = vmatpush1.msra.mxu0 0.0
  %8960 = vmatprep.subr.mxu0 0.0
  %8961 = vmatpush1.msra.mxu0 0.0
  %8962 = vmatprep.subr.mxu0 0.0
  %8963 = vmatpush1.msra.mxu0 0.0
  %8964 = vmatprep.subr.mxu0 0.0
  %8965 = vmatpush1.msra.mxu0 0.0
  %8966 = vmatprep.mubr.f32.mxu0 0.0
  %8967 = vmatmul.mubr.f32.gmra.mrb[0].mxu0 %v4245
  %v8968 = vpop.f32.mrb[0].mxu0
  %v8969 = vadd.f32 %v8856, %v8968
  %v8970 = vpop.f32.mrb[0].mxu0
  %v8971 = vadd.f32 %v8858, %v8970
  %8972 = vmatprep.mubr.f32.mxu0 0.0
  %8973 = vmatmul.mubr.f32.gmra.mrb[0].mxu0 %v4248
  %v8974 = vpop.f32.mrb[0].mxu0
  %v8975 = vadd.f32 %v8862, %v8974
  %v8976 = vpop.f32.mrb[0].mxu0
  %v8977 = vadd.f32 %v8864, %v8976
  %8978 = vmatprep.mubr.f32.mxu0 0.0
  %8979 = vmatmul.mubr.f32.gmra.mrb[0].mxu0 %v4251
  %v8980 = vpop.f32.mrb[0].mxu0
  %v8981 = vadd.f32 %v8868, %v8980
  %v8982 = vpop.f32.mrb[0].mxu0
  %v8983 = vadd.f32 %v8870, %v8982
  %8984 = vmatprep.mubr.f32.mxu0 0.0
  %8985 = vmatmul.mubr.f32.gmra.mrb[0].mxu0 %v4254
  %v8986 = vpop.f32.mrb[0].mxu0
  %v8987 = vadd.f32 %v8874, %v8986
  %v8988 = vpop.f32.mrb[0].mxu0
  %v8989 = vadd.f32 %v8876, %v8988
  %8990 = vmatprep.mubr.f32.mxu0 0.0
  %8991 = vmatmul.mubr.f32.gmra.mrb[0].mxu0 %v4257
  %v8992 = vpop.f32.mrb[0].mxu0
  %v8993 = vadd.f32 %v8880, %v8992
  %v8994 = vpop.f32.mrb[0].mxu0
  %v8995 = vadd.f32 %v8882, %v8994
  %8996 = vmatprep.mubr.f32.mxu0 0.0
  %8997 = vmatmul.mubr.f32.gmra.mrb[0].mxu0 %v4260
  %v8998 = vpop.f32.mrb[0].mxu0
  %v8999 = vadd.f32 %v8886, %v8998
  %v9000 = vpop.f32.mrb[0].mxu0
  %v9001 = vadd.f32 %v8888, %v9000
  %9002 = vmatprep.mubr.f32.mxu0 0.0
  %9003 = vmatmul.mubr.f32.gmra.mrb[0].mxu0 %v4263
  %v9004 = vpop.f32.mrb[0].mxu0
  %v9005 = vadd.f32 %v8892, %v9004
  %v9006 = vpop.f32.mrb[0].mxu0
  %v9007 = vadd.f32 %v8894, %v9006
  %9008 = vmatprep.mubr.f32.mxu0 0.0
  %9009 = vmatmul.mubr.f32.gmra.mrb[0].mxu0 %v4266
  %v9010 = vpop.f32.mrb[0].mxu0
  %v9011 = vadd.f32 %v8898, %v9010
  %v9012 = vpop.f32.mrb[0].mxu0
  %v9013 = vadd.f32 %v8900, %v9012
  %9014 = vdwg.mxu0
  %s9015 = scalar_lea.vmem %s57, 144
  %v9016 = vld [vmem:[%s9015] sm:$0xff]
  %v9017 = vld [vmem:[%s9015 + $0x8] sm:$0xff]
  %v9018 = vld [vmem:[%s9015 + $0x10] sm:$0xff]
  %v9019 = vld [vmem:[%s9015 + $0x18] sm:$0xff]
  %v9020 = vld [vmem:[%s9015 + $0x20] sm:$0xff]
  %v9021 = vld [vmem:[%s9015 + $0x28] sm:$0xff]
  %v9022 = vld [vmem:[%s9015 + $0x30] sm:$0xff]
  %v9023 = vld [vmem:[%s9015 + $0x38] sm:$0xff]
  %v9024 = vld [vmem:[%s9015 + $0x40] sm:$0xff]
  %v9025 = vld [vmem:[%s9015 + $0x48] sm:$0xff]
  %v9026 = vld [vmem:[%s9015 + $0x50] sm:$0xff]
  %v9027 = vld [vmem:[%s9015 + $0x58] sm:$0xff]
  %v9028 = vld [vmem:[%s9015 + $0x60] sm:$0xff]
  %v9029 = vld [vmem:[%s9015 + $0x68] sm:$0xff]
  %v9030 = vld [vmem:[%s9015 + $0x70] sm:$0xff]
  %v9031 = vld [vmem:[%s9015 + $0x78] sm:$0xff]
  %v9032 = vld [vmem:[%s9015 + $0x80] sm:$0xff]
  %v9033 = vld [vmem:[%s9015 + $0x88] sm:$0xff]
  %s9034 = scalar_lea.vmem %s59, 1
  %v9035 = vld [vmem:[%s9034] sm:$0x1]
  %v9037 = vlaneseq
  %v9038 = vshrl.u32 %v9037, 7
  %v9039 = vsub.s32 0, %v9038
  %v9040 = vrot.slane %v9035, %v9039
  %v9043 = vsel %vm1212, %v8971, 0
  %v9046 = vsel %vm1212, %v8977, 0
  %v9049 = vsel %vm1212, %v8983, 0
  %v9052 = vsel %vm1212, %v8989, 0
  %v9055 = vsel %vm1212, %v8995, 0
  %v9058 = vsel %vm1212, %v9001, 0
  %v9061 = vsel %vm1212, %v9007, 0
  %v9064 = vsel %vm1212, %v9013, 0
  %9066 = vmatprep.subr.mxu0 0.0
  %9067 = vmatpush1.msra.mxu0 %v9016
  %9068 = vmatprep.subr.mxu0 0.0
  %9069 = vmatpush1.msra.mxu0 %v9017
  %9070 = vmatprep.subr.mxu0 0.0
  %9071 = vmatpush1.msra.mxu0 %v9018
  %9072 = vmatprep.subr.mxu0 0.0
  %9073 = vmatpush1.msra.mxu0 %v9019
  %9074 = vmatprep.subr.mxu0 0.0
  %9075 = vmatpush1.msra.mxu0 %v9020
  %9076 = vmatprep.subr.mxu0 0.0
  %9077 = vmatpush1.msra.mxu0 %v9021
  %9078 = vmatprep.subr.mxu0 0.0
  %9079 = vmatpush1.msra.mxu0 %v9022
  %9080 = vmatprep.subr.mxu0 0.0
  %9081 = vmatpush1.msra.mxu0 %v9023
  %9082 = vmatprep.subr.mxu0 0.0
  %9083 = vmatpush1.msra.mxu0 %v9024
  %9084 = vmatprep.subr.mxu0 0.0
  %9085 = vmatpush1.msra.mxu0 %v9025
  %9086 = vmatprep.subr.mxu0 0.0
  %9087 = vmatpush1.msra.mxu0 %v9026
  %9088 = vmatprep.subr.mxu0 0.0
  %9089 = vmatpush1.msra.mxu0 %v9027
  %9090 = vmatprep.subr.mxu0 0.0
  %9091 = vmatpush1.msra.mxu0 %v9028
  %9092 = vmatprep.subr.mxu0 0.0
  %9093 = vmatpush1.msra.mxu0 %v9029
  %9094 = vmatprep.subr.mxu0 0.0
  %9095 = vmatpush1.msra.mxu0 %v9030
  %9096 = vmatprep.subr.mxu0 0.0
  %9097 = vmatpush1.msra.mxu0 %v9031
  %9098 = vmatprep.subr.mxu0 0.0
  %9099 = vmatpush1.msra.mxu0 %v9032
  %9100 = vmatprep.subr.mxu0 0.0
  %9101 = vmatpush1.msra.mxu0 %v9033
  %9102 = vmatprep.subr.mxu0 0.0
  %9103 = vmatpush1.msra.mxu0 0.0
  %9104 = vmatprep.subr.mxu0 0.0
  %9105 = vmatpush1.msra.mxu0 0.0
  %9106 = vmatprep.subr.mxu0 0.0
  %9107 = vmatpush1.msra.mxu0 0.0
  %9108 = vmatprep.subr.mxu0 0.0
  %9109 = vmatpush1.msra.mxu0 0.0
  %9110 = vmatprep.subr.mxu0 0.0
  %9111 = vmatpush1.msra.mxu0 0.0
  %9112 = vmatprep.subr.mxu0 0.0
  %9113 = vmatpush1.msra.mxu0 0.0
  %9114 = vmatprep.subr.mxu0 0.0
  %9115 = vmatpush1.msra.mxu0 0.0
  %9116 = vmatprep.subr.mxu0 0.0
  %9117 = vmatpush1.msra.mxu0 0.0
  %9118 = vmatprep.subr.mxu0 0.0
  %9119 = vmatpush1.msra.mxu0 0.0
  %9120 = vmatprep.subr.mxu0 0.0
  %9121 = vmatpush1.msra.mxu0 0.0
  %9122 = vmatprep.subr.mxu0 0.0
  %9123 = vmatpush1.msra.mxu0 0.0
  %9124 = vmatprep.subr.mxu0 0.0
  %9125 = vmatpush1.msra.mxu0 0.0
  %9126 = vmatprep.subr.mxu0 0.0
  %9127 = vmatpush1.msra.mxu0 0.0
  %9128 = vmatprep.subr.mxu0 0.0
  %9129 = vmatpush1.msra.mxu0 0.0
  %9130 = vmatprep.mubr.f32.mxu0 %v9043
  %9131 = vmatmul.mubr.f32.gmra.mrb[0].mxu0 %v8969
  %v9132 = vpop.f32.mrb[0].mxu0
  %v9133 = vadd.f32 %v9040, %v9132
  %v9134 = vpop.f32.mrb[0].mxu0
  %9135 = vmatprep.mubr.f32.mxu0 %v9046
  %9136 = vmatmul.mubr.f32.gmra.mrb[0].mxu0 %v8975
  %v9137 = vpop.f32.mrb[0].mxu0
  %v9138 = vadd.f32 %v9040, %v9137
  %v9139 = vpop.f32.mrb[0].mxu0
  %9140 = vmatprep.mubr.f32.mxu0 %v9049
  %9141 = vmatmul.mubr.f32.gmra.mrb[0].mxu0 %v8981
  %v9142 = vpop.f32.mrb[0].mxu0
  %v9143 = vadd.f32 %v9040, %v9142
  %v9144 = vpop.f32.mrb[0].mxu0
  %9145 = vmatprep.mubr.f32.mxu0 %v9052
  %9146 = vmatmul.mubr.f32.gmra.mrb[0].mxu0 %v8987
  %v9147 = vpop.f32.mrb[0].mxu0
  %v9148 = vadd.f32 %v9040, %v9147
  %v9149 = vpop.f32.mrb[0].mxu0
  %9150 = vmatprep.mubr.f32.mxu0 %v9055
  %9151 = vmatmul.mubr.f32.gmra.mrb[0].mxu0 %v8993
  %v9152 = vpop.f32.mrb[0].mxu0
  %v9153 = vadd.f32 %v9040, %v9152
  %v9154 = vpop.f32.mrb[0].mxu0
  %9155 = vmatprep.mubr.f32.mxu0 %v9058
  %9156 = vmatmul.mubr.f32.gmra.mrb[0].mxu0 %v8999
  %v9157 = vpop.f32.mrb[0].mxu0
  %v9158 = vadd.f32 %v9040, %v9157
  %v9159 = vpop.f32.mrb[0].mxu0
  %9160 = vmatprep.mubr.f32.mxu0 %v9061
  %9161 = vmatmul.mubr.f32.gmra.mrb[0].mxu0 %v9005
  %v9162 = vpop.f32.mrb[0].mxu0
  %v9163 = vadd.f32 %v9040, %v9162
  %v9164 = vpop.f32.mrb[0].mxu0
  %9165 = vmatprep.mubr.f32.mxu0 %v9064
  %9166 = vmatmul.mubr.f32.gmra.mrb[0].mxu0 %v9011
  %v9167 = vpop.f32.mrb[0].mxu0
  %v9168 = vadd.f32 %v9040, %v9167
  %v9169 = vpop.f32.mrb[0].mxu0
  %9170 = vdwg.mxu0
  %v9171 = vmax.f32 %v9133, 0.0
  %v9172 = vmax.f32 %v9138, 0.0
  %v9173 = vmax.f32 %v9143, 0.0
  %v9174 = vmax.f32 %v9148, 0.0
  %v9175 = vmax.f32 %v9153, 0.0
  %v9176 = vmax.f32 %v9158, 0.0
  %v9177 = vmax.f32 %v9163, 0.0
  %v9178 = vmax.f32 %v9168, 0.0
  %v9180 = vsel %vm1212, %v9171, 0
  %v9183 = vsel %vm1212, %v9172, 0
  %v9186 = vsel %vm1212, %v9173, 0
  %v9189 = vsel %vm1212, %v9174, 0
  %v9192 = vsel %vm1212, %v9175, 0
  %v9195 = vsel %vm1212, %v9176, 0
  %v9198 = vsel %vm1212, %v9177, 0
  %v9201 = vsel %vm1212, %v9178, 0
  %9203 = vmatprep.subr.mxu0 %v295
  %9204 = vmatpush1.msra.mxu0 %v294
  %9205 = vmatprep.subr.mxu0 %v297
  %9206 = vmatpush1.msra.mxu0 %v296
  %9207 = vmatprep.subr.mxu0 0.0
  %9208 = vmatpush1.msra.mxu0 0.0
  %9209 = vmatprep.subr.mxu0 0.0
  %9210 = vmatpush1.msra.mxu0 0.0
  %9211 = vmatprep.subr.mxu0 0.0
  %9212 = vmatpush1.msra.mxu0 0.0
  %9213 = vmatprep.subr.mxu0 0.0
  %9214 = vmatpush1.msra.mxu0 0.0
  %9215 = vmatprep.subr.mxu0 0.0
  %9216 = vmatpush1.msra.mxu0 0.0
  %9217 = vmatprep.subr.mxu0 0.0
  %9218 = vmatpush1.msra.mxu0 0.0
  %9219 = vmatprep.subr.mxu0 0.0
  %9220 = vmatpush1.msra.mxu0 0.0
  %9221 = vmatprep.subr.mxu0 0.0
  %9222 = vmatpush1.msra.mxu0 0.0
  %9223 = vmatprep.subr.mxu0 0.0
  %9224 = vmatpush1.msra.mxu0 0.0
  %9225 = vmatprep.subr.mxu0 0.0
  %9226 = vmatpush1.msra.mxu0 0.0
  %9227 = vmatprep.subr.mxu0 0.0
  %9228 = vmatpush1.msra.mxu0 0.0
  %9229 = vmatprep.subr.mxu0 0.0
  %9230 = vmatpush1.msra.mxu0 0.0
  %9231 = vmatprep.subr.mxu0 0.0
  %9232 = vmatpush1.msra.mxu0 0.0
  %9233 = vmatprep.subr.mxu0 0.0
  %9234 = vmatpush1.msra.mxu0 0.0
  %9235 = vmatprep.subr.mxu0 0.0
  %9236 = vmatpush1.msra.mxu0 0.0
  %9237 = vmatprep.subr.mxu0 0.0
  %9238 = vmatpush1.msra.mxu0 0.0
  %9239 = vmatprep.subr.mxu0 0.0
  %9240 = vmatpush1.msra.mxu0 0.0
  %9241 = vmatprep.subr.mxu0 0.0
  %9242 = vmatpush1.msra.mxu0 0.0
  %9243 = vmatprep.subr.mxu0 0.0
  %9244 = vmatpush1.msra.mxu0 0.0
  %9245 = vmatprep.subr.mxu0 0.0
  %9246 = vmatpush1.msra.mxu0 0.0
  %9247 = vmatprep.subr.mxu0 0.0
  %9248 = vmatpush1.msra.mxu0 0.0
  %9249 = vmatprep.subr.mxu0 0.0
  %9250 = vmatpush1.msra.mxu0 0.0
  %9251 = vmatprep.subr.mxu0 0.0
  %9252 = vmatpush1.msra.mxu0 0.0
  %9253 = vmatprep.subr.mxu0 0.0
  %9254 = vmatpush1.msra.mxu0 0.0
  %9255 = vmatprep.subr.mxu0 0.0
  %9256 = vmatpush1.msra.mxu0 0.0
  %9257 = vmatprep.subr.mxu0 0.0
  %9258 = vmatpush1.msra.mxu0 0.0
  %9259 = vmatprep.subr.mxu0 0.0
  %9260 = vmatpush1.msra.mxu0 0.0
  %9261 = vmatprep.subr.mxu0 0.0
  %9262 = vmatpush1.msra.mxu0 0.0
  %9263 = vmatprep.subr.mxu0 0.0
  %9264 = vmatpush1.msra.mxu0 0.0
  %9265 = vmatprep.subr.mxu0 0.0
  %9266 = vmatpush1.msra.mxu0 0.0
  %9267 = vmatprep.mubr.f32.mxu0 0.0
  %9268 = vmatmul.mubr.f32.gmra.mrb[0].mxu0 %v9180
  %v9269 = vpop.f32.mrb[0].mxu0
  %v9270 = vadd.f32 0.0, %v9269
  %v9271 = vpop.f32.mrb[0].mxu0
  %v9272 = vadd.f32 0.0, %v9271
  %9273 = vmatprep.mubr.f32.mxu0 0.0
  %9274 = vmatmul.mubr.f32.gmra.mrb[0].mxu0 %v9183
  %v9275 = vpop.f32.mrb[0].mxu0
  %v9276 = vadd.f32 0.0, %v9275
  %v9277 = vpop.f32.mrb[0].mxu0
  %v9278 = vadd.f32 0.0, %v9277
  %9279 = vmatprep.mubr.f32.mxu0 0.0
  %9280 = vmatmul.mubr.f32.gmra.mrb[0].mxu0 %v9186
  %v9281 = vpop.f32.mrb[0].mxu0
  %v9282 = vadd.f32 0.0, %v9281
  %v9283 = vpop.f32.mrb[0].mxu0
  %v9284 = vadd.f32 0.0, %v9283
  %9285 = vmatprep.mubr.f32.mxu0 0.0
  %9286 = vmatmul.mubr.f32.gmra.mrb[0].mxu0 %v9189
  %v9287 = vpop.f32.mrb[0].mxu0
  %v9288 = vadd.f32 0.0, %v9287
  %v9289 = vpop.f32.mrb[0].mxu0
  %v9290 = vadd.f32 0.0, %v9289
  %9291 = vmatprep.mubr.f32.mxu0 0.0
  %9292 = vmatmul.mubr.f32.gmra.mrb[0].mxu0 %v9192
  %v9293 = vpop.f32.mrb[0].mxu0
  %v9294 = vadd.f32 0.0, %v9293
  %v9295 = vpop.f32.mrb[0].mxu0
  %v9296 = vadd.f32 0.0, %v9295
  %9297 = vmatprep.mubr.f32.mxu0 0.0
  %9298 = vmatmul.mubr.f32.gmra.mrb[0].mxu0 %v9195
  %v9299 = vpop.f32.mrb[0].mxu0
  %v9300 = vadd.f32 0.0, %v9299
  %v9301 = vpop.f32.mrb[0].mxu0
  %v9302 = vadd.f32 0.0, %v9301
  %9303 = vmatprep.mubr.f32.mxu0 0.0
  %9304 = vmatmul.mubr.f32.gmra.mrb[0].mxu0 %v9198
  %v9305 = vpop.f32.mrb[0].mxu0
  %v9306 = vadd.f32 0.0, %v9305
  %v9307 = vpop.f32.mrb[0].mxu0
  %v9308 = vadd.f32 0.0, %v9307
  %9309 = vmatprep.mubr.f32.mxu0 0.0
  %9310 = vmatmul.mubr.f32.gmra.mrb[0].mxu0 %v9201
  %v9311 = vpop.f32.mrb[0].mxu0
  %v9312 = vadd.f32 0.0, %v9311
  %v9313 = vpop.f32.mrb[0].mxu0
  %v9314 = vadd.f32 0.0, %v9313
  %9315 = vdwg.mxu0
  %v9316 = vmul.f32 %v9270, %v946
  %v9317 = vmul.f32 %v9272, %v947
  %v9318 = vmul.f32 %v9276, %v948
  %v9319 = vmul.f32 %v9278, %v949
  %v9320 = vmul.f32 %v9282, %v950
  %v9321 = vmul.f32 %v9284, %v951
  %v9322 = vmul.f32 %v9288, %v952
  %v9323 = vmul.f32 %v9290, %v953
  %v9324 = vmul.f32 %v9294, %v954
  %v9325 = vmul.f32 %v9296, %v955
  %v9326 = vmul.f32 %v9300, %v956
  %v9327 = vmul.f32 %v9302, %v957
  %v9328 = vmul.f32 %v9306, %v958
  %v9329 = vmul.f32 %v9308, %v959
  %v9330 = vmul.f32 %v9312, %v960
  %v9331 = vmul.f32 %v9314, %v961
  %v9332 = vmul.f32 %v9270, %v962
  %v9333 = vmul.f32 %v9272, %v963
  %v9334 = vmul.f32 %v9276, %v964
  %v9335 = vmul.f32 %v9278, %v965
  %v9336 = vmul.f32 %v9282, %v966
  %v9337 = vmul.f32 %v9284, %v967
  %v9338 = vmul.f32 %v9288, %v968
  %v9339 = vmul.f32 %v9290, %v969
  %v9340 = vmul.f32 %v9294, %v970
  %v9341 = vmul.f32 %v9296, %v971
  %v9342 = vmul.f32 %v9300, %v972
  %v9343 = vmul.f32 %v9302, %v973
  %v9344 = vmul.f32 %v9306, %v974
  %v9345 = vmul.f32 %v9308, %v975
  %v9346 = vmul.f32 %v9312, %v976
  %v9347 = vmul.f32 %v9314, %v977
  %v9348 = vmul.f32 %v9270, %v978
  %v9349 = vmul.f32 %v9272, %v979
  %v9350 = vmul.f32 %v9276, %v980
  %v9351 = vmul.f32 %v9278, %v981
  %v9352 = vmul.f32 %v9282, %v982
  %v9353 = vmul.f32 %v9284, %v983
  %v9354 = vmul.f32 %v9288, %v984
  %v9355 = vmul.f32 %v9290, %v985
  %v9356 = vmul.f32 %v9294, %v986
  %v9357 = vmul.f32 %v9296, %v987
  %v9358 = vmul.f32 %v9300, %v988
  %v9359 = vmul.f32 %v9302, %v989
  %v9360 = vmul.f32 %v9306, %v990
  %v9361 = vmul.f32 %v9308, %v991
  %v9362 = vmul.f32 %v9312, %v992
  %v9363 = vmul.f32 %v9314, %v993
  %v9364 = vmul.f32 %v9270, %v994
  %v9365 = vmul.f32 %v9272, %v995
  %v9366 = vmul.f32 %v9276, %v996
  %v9367 = vmul.f32 %v9278, %v997
  %v9368 = vmul.f32 %v9282, %v998
  %v9369 = vmul.f32 %v9284, %v999
  %v9370 = vmul.f32 %v9288, %v1000
  %v9371 = vmul.f32 %v9290, %v1001
  %v9372 = vmul.f32 %v9294, %v1002
  %v9373 = vmul.f32 %v9296, %v1003
  %v9374 = vmul.f32 %v9300, %v1004
  %v9375 = vmul.f32 %v9302, %v1005
  %v9376 = vmul.f32 %v9306, %v1006
  %v9377 = vmul.f32 %v9308, %v1007
  %v9378 = vmul.f32 %v9312, %v1008
  %v9379 = vmul.f32 %v9314, %v1009
  %v9380 = vmul.f32 %v9270, %v1010
  %v9381 = vmul.f32 %v9272, %v1011
  %v9382 = vmul.f32 %v9276, %v1012
  %v9383 = vmul.f32 %v9278, %v1013
  %v9384 = vmul.f32 %v9282, %v1014
  %v9385 = vmul.f32 %v9284, %v1015
  %v9386 = vmul.f32 %v9288, %v1016
  %v9387 = vmul.f32 %v9290, %v1017
  %v9388 = vmul.f32 %v9294, %v1018
  %v9389 = vmul.f32 %v9296, %v1019
  %v9390 = vmul.f32 %v9300, %v1020
  %v9391 = vmul.f32 %v9302, %v1021
  %v9392 = vmul.f32 %v9306, %v1022
  %v9393 = vmul.f32 %v9308, %v1023
  %v9394 = vmul.f32 %v9312, %v1024
  %v9395 = vmul.f32 %v9314, %v1025
  %v9396 = vmul.f32 %v9270, %v1026
  %v9397 = vmul.f32 %v9272, %v1027
  %v9398 = vmul.f32 %v9276, %v1028
  %v9399 = vmul.f32 %v9278, %v1029
  %v9400 = vmul.f32 %v9282, %v1030
  %v9401 = vmul.f32 %v9284, %v1031
  %v9402 = vmul.f32 %v9288, %v1032
  %v9403 = vmul.f32 %v9290, %v1033
  %v9404 = vmul.f32 %v9294, %v1034
  %v9405 = vmul.f32 %v9296, %v1035
  %v9406 = vmul.f32 %v9300, %v1036
  %v9407 = vmul.f32 %v9302, %v1037
  %v9408 = vmul.f32 %v9306, %v1038
  %v9409 = vmul.f32 %v9308, %v1039
  %v9410 = vmul.f32 %v9312, %v1040
  %v9411 = vmul.f32 %v9314, %v1041
  %v9412 = vmul.f32 %v9270, %v1042
  %v9413 = vmul.f32 %v9272, %v1043
  %v9414 = vmul.f32 %v9276, %v1044
  %v9415 = vmul.f32 %v9278, %v1045
  %v9416 = vmul.f32 %v9282, %v1046
  %v9417 = vmul.f32 %v9284, %v1047
  %v9418 = vmul.f32 %v9288, %v1048
  %v9419 = vmul.f32 %v9290, %v1049
  %v9420 = vmul.f32 %v9294, %v1050
  %v9421 = vmul.f32 %v9296, %v1051
  %v9422 = vmul.f32 %v9300, %v1052
  %v9423 = vmul.f32 %v9302, %v1053
  %v9424 = vmul.f32 %v9306, %v1054
  %v9425 = vmul.f32 %v9308, %v1055
  %v9426 = vmul.f32 %v9312, %v1056
  %v9427 = vmul.f32 %v9314, %v1057
  %v9428 = vmul.f32 %v9270, %v1058
  %v9429 = vmul.f32 %v9272, %v1059
  %v9430 = vmul.f32 %v9276, %v1060
  %v9431 = vmul.f32 %v9278, %v1061
  %v9432 = vmul.f32 %v9282, %v1062
  %v9433 = vmul.f32 %v9284, %v1063
  %v9434 = vmul.f32 %v9288, %v1064
  %v9435 = vmul.f32 %v9290, %v1065
  %v9436 = vmul.f32 %v9294, %v1066
  %v9437 = vmul.f32 %v9296, %v1067
  %v9438 = vmul.f32 %v9300, %v1068
  %v9439 = vmul.f32 %v9302, %v1069
  %v9440 = vmul.f32 %v9306, %v1070
  %v9441 = vmul.f32 %v9308, %v1071
  %v9442 = vmul.f32 %v9312, %v1072
  %v9443 = vmul.f32 %v9314, %v1073
  %v9444 = vmul.f32 %v9270, %v1074
  %v9445 = vmul.f32 %v9272, %v1075
  %v9446 = vmul.f32 %v9276, %v1076
  %v9447 = vmul.f32 %v9278, %v1077
  %v9448 = vmul.f32 %v9282, %v1078
  %v9449 = vmul.f32 %v9284, %v1079
  %v9450 = vmul.f32 %v9288, %v1080
  %v9451 = vmul.f32 %v9290, %v1081
  %v9452 = vmul.f32 %v9294, %v1082
  %v9453 = vmul.f32 %v9296, %v1083
  %v9454 = vmul.f32 %v9300, %v1084
  %v9455 = vmul.f32 %v9302, %v1085
  %v9456 = vmul.f32 %v9306, %v1086
  %v9457 = vmul.f32 %v9308, %v1087
  %v9458 = vmul.f32 %v9312, %v1088
  %v9459 = vmul.f32 %v9314, %v1089
  %9460 = vmatprep.subr.mxu0 %v9317
  %9461 = vmatpush1.msra.mxu0 %v9316
  %9462 = vmatprep.subr.mxu0 %v9319
  %9463 = vmatpush1.msra.mxu0 %v9318
  %9464 = vmatprep.subr.mxu0 %v9321
  %9465 = vmatpush1.msra.mxu0 %v9320
  %9466 = vmatprep.subr.mxu0 %v9323
  %9467 = vmatpush1.msra.mxu0 %v9322
  %9468 = vmatprep.subr.mxu0 %v9325
  %9469 = vmatpush1.msra.mxu0 %v9324
  %9470 = vmatprep.subr.mxu0 %v9327
  %9471 = vmatpush1.msra.mxu0 %v9326
  %9472 = vmatprep.subr.mxu0 %v9329
  %9473 = vmatpush1.msra.mxu0 %v9328
  %9474 = vmatprep.subr.mxu0 %v9331
  %9475 = vmatpush1.msra.mxu0 %v9330
  %9476 = vmatprep.subr.mxu0 %v9333
  %9477 = vmatpush1.msra.mxu0 %v9332
  %9478 = vmatprep.subr.mxu0 %v9335
  %9479 = vmatpush1.msra.mxu0 %v9334
  %9480 = vmatprep.subr.mxu0 %v9337
  %9481 = vmatpush1.msra.mxu0 %v9336
  %9482 = vmatprep.subr.mxu0 %v9339
  %9483 = vmatpush1.msra.mxu0 %v9338
  %9484 = vmatprep.subr.mxu0 %v9341
  %9485 = vmatpush1.msra.mxu0 %v9340
  %9486 = vmatprep.subr.mxu0 %v9343
  %9487 = vmatpush1.msra.mxu0 %v9342
  %9488 = vmatprep.subr.mxu0 %v9345
  %9489 = vmatpush1.msra.mxu0 %v9344
  %9490 = vmatprep.subr.mxu0 %v9347
  %9491 = vmatpush1.msra.mxu0 %v9346
  %9492 = vmatprep.subr.mxu0 %v9349
  %9493 = vmatpush1.msra.mxu0 %v9348
  %9494 = vmatprep.subr.mxu0 %v9351
  %9495 = vmatpush1.msra.mxu0 %v9350
  %9496 = vmatprep.subr.mxu0 %v9353
  %9497 = vmatpush1.msra.mxu0 %v9352
  %9498 = vmatprep.subr.mxu0 %v9355
  %9499 = vmatpush1.msra.mxu0 %v9354
  %9500 = vmatprep.subr.mxu0 %v9357
  %9501 = vmatpush1.msra.mxu0 %v9356
  %9502 = vmatprep.subr.mxu0 %v9359
  %9503 = vmatpush1.msra.mxu0 %v9358
  %9504 = vmatprep.subr.mxu0 %v9361
  %9505 = vmatpush1.msra.mxu0 %v9360
  %9506 = vmatprep.subr.mxu0 %v9363
  %9507 = vmatpush1.msra.mxu0 %v9362
  %9508 = vmatprep.subr.mxu0 %v9365
  %9509 = vmatpush1.msra.mxu0 %v9364
  %9510 = vmatprep.subr.mxu0 %v9367
  %9511 = vmatpush1.msra.mxu0 %v9366
  %9512 = vmatprep.subr.mxu0 %v9369
  %9513 = vmatpush1.msra.mxu0 %v9368
  %9514 = vmatprep.subr.mxu0 %v9371
  %9515 = vmatpush1.msra.mxu0 %v9370
  %9516 = vmatprep.subr.mxu0 %v9373
  %9517 = vmatpush1.msra.mxu0 %v9372
  %9518 = vmatprep.subr.mxu0 %v9375
  %9519 = vmatpush1.msra.mxu0 %v9374
  %9520 = vmatprep.subr.mxu0 %v9377
  %9521 = vmatpush1.msra.mxu0 %v9376
  %9522 = vmatprep.subr.mxu0 %v9379
  %9523 = vmatpush1.msra.mxu0 %v9378
  %9524 = vmatprep.mubr.f32.mxu0 %v239
  %9525 = vmatmul.mubr.f32.gmra.mrb[0].mxu0 %v238
  %v9526 = vpop.f32.mrb[0].mxu0
  %v9527 = vadd.f32 0.0, %v9526
  %v9528 = vpop.f32.mrb[0].mxu0
  %v9529 = vadd.f32 0.0, %v9528
  %9530 = vmatprep.mubr.f32.mxu0 %v244
  %9531 = vmatmul.mubr.f32.gmra.mrb[0].mxu0 %v243
  %v9532 = vpop.f32.mrb[0].mxu0
  %v9533 = vadd.f32 0.0, %v9532
  %v9534 = vpop.f32.mrb[0].mxu0
  %v9535 = vadd.f32 0.0, %v9534
  %9536 = vmatprep.mubr.f32.mxu0 %v249
  %9537 = vmatmul.mubr.f32.gmra.mrb[0].mxu0 %v248
  %v9538 = vpop.f32.mrb[0].mxu0
  %v9539 = vadd.f32 0.0, %v9538
  %v9540 = vpop.f32.mrb[0].mxu0
  %v9541 = vadd.f32 0.0, %v9540
  %9542 = vmatprep.mubr.f32.mxu0 %v254
  %9543 = vmatmul.mubr.f32.gmra.mrb[0].mxu0 %v253
  %v9544 = vpop.f32.mrb[0].mxu0
  %v9545 = vadd.f32 0.0, %v9544
  %v9546 = vpop.f32.mrb[0].mxu0
  %v9547 = vadd.f32 0.0, %v9546
  %9548 = vmatprep.mubr.f32.mxu0 %v259
  %9549 = vmatmul.mubr.f32.gmra.mrb[0].mxu0 %v258
  %v9550 = vpop.f32.mrb[0].mxu0
  %v9551 = vadd.f32 0.0, %v9550
  %v9552 = vpop.f32.mrb[0].mxu0
  %v9553 = vadd.f32 0.0, %v9552
  %9554 = vmatprep.mubr.f32.mxu0 %v264
  %9555 = vmatmul.mubr.f32.gmra.mrb[0].mxu0 %v263
  %v9556 = vpop.f32.mrb[0].mxu0
  %v9557 = vadd.f32 0.0, %v9556
  %v9558 = vpop.f32.mrb[0].mxu0
  %v9559 = vadd.f32 0.0, %v9558
  %9560 = vmatprep.mubr.f32.mxu0 %v269
  %9561 = vmatmul.mubr.f32.gmra.mrb[0].mxu0 %v268
  %v9562 = vpop.f32.mrb[0].mxu0
  %v9563 = vadd.f32 0.0, %v9562
  %v9564 = vpop.f32.mrb[0].mxu0
  %v9565 = vadd.f32 0.0, %v9564
  %9566 = vmatprep.mubr.f32.mxu0 %v274
  %9567 = vmatmul.mubr.f32.gmra.mrb[0].mxu0 %v273
  %v9568 = vpop.f32.mrb[0].mxu0
  %v9569 = vadd.f32 0.0, %v9568
  %v9570 = vpop.f32.mrb[0].mxu0
  %v9571 = vadd.f32 0.0, %v9570
  %9572 = vdwg.mxu0
  %9573 = vmatprep.subr.mxu0 %v9381
  %9574 = vmatpush1.msra.mxu0 %v9380
  %9575 = vmatprep.subr.mxu0 %v9383
  %9576 = vmatpush1.msra.mxu0 %v9382
  %9577 = vmatprep.subr.mxu0 %v9385
  %9578 = vmatpush1.msra.mxu0 %v9384
  %9579 = vmatprep.subr.mxu0 %v9387
  %9580 = vmatpush1.msra.mxu0 %v9386
  %9581 = vmatprep.subr.mxu0 %v9389
  %9582 = vmatpush1.msra.mxu0 %v9388
  %9583 = vmatprep.subr.mxu0 %v9391
  %9584 = vmatpush1.msra.mxu0 %v9390
  %9585 = vmatprep.subr.mxu0 %v9393
  %9586 = vmatpush1.msra.mxu0 %v9392
  %9587 = vmatprep.subr.mxu0 %v9395
  %9588 = vmatpush1.msra.mxu0 %v9394
  %9589 = vmatprep.subr.mxu0 %v9397
  %9590 = vmatpush1.msra.mxu0 %v9396
  %9591 = vmatprep.subr.mxu0 %v9399
  %9592 = vmatpush1.msra.mxu0 %v9398
  %9593 = vmatprep.subr.mxu0 %v9401
  %9594 = vmatpush1.msra.mxu0 %v9400
  %9595 = vmatprep.subr.mxu0 %v9403
  %9596 = vmatpush1.msra.mxu0 %v9402
  %9597 = vmatprep.subr.mxu0 %v9405
  %9598 = vmatpush1.msra.mxu0 %v9404
  %9599 = vmatprep.subr.mxu0 %v9407
  %9600 = vmatpush1.msra.mxu0 %v9406
  %9601 = vmatprep.subr.mxu0 %v9409
  %9602 = vmatpush1.msra.mxu0 %v9408
  %9603 = vmatprep.subr.mxu0 %v9411
  %9604 = vmatpush1.msra.mxu0 %v9410
  %9605 = vmatprep.subr.mxu0 %v9413
  %9606 = vmatpush1.msra.mxu0 %v9412
  %9607 = vmatprep.subr.mxu0 %v9415
  %9608 = vmatpush1.msra.mxu0 %v9414
  %9609 = vmatprep.subr.mxu0 %v9417
  %9610 = vmatpush1.msra.mxu0 %v9416
  %9611 = vmatprep.subr.mxu0 %v9419
  %9612 = vmatpush1.msra.mxu0 %v9418
  %9613 = vmatprep.subr.mxu0 %v9421
  %9614 = vmatpush1.msra.mxu0 %v9420
  %9615 = vmatprep.subr.mxu0 %v9423
  %9616 = vmatpush1.msra.mxu0 %v9422
  %9617 = vmatprep.subr.mxu0 %v9425
  %9618 = vmatpush1.msra.mxu0 %v9424
  %9619 = vmatprep.subr.mxu0 %v9427
  %9620 = vmatpush1.msra.mxu0 %v9426
  %9621 = vmatprep.subr.mxu0 %v9429
  %9622 = vmatpush1.msra.mxu0 %v9428
  %9623 = vmatprep.subr.mxu0 %v9431
  %9624 = vmatpush1.msra.mxu0 %v9430
  %9625 = vmatprep.subr.mxu0 %v9433
  %9626 = vmatpush1.msra.mxu0 %v9432
  %9627 = vmatprep.subr.mxu0 %v9435
  %9628 = vmatpush1.msra.mxu0 %v9434
  %9629 = vmatprep.subr.mxu0 %v9437
  %9630 = vmatpush1.msra.mxu0 %v9436
  %9631 = vmatprep.subr.mxu0 %v9439
  %9632 = vmatpush1.msra.mxu0 %v9438
  %9633 = vmatprep.subr.mxu0 %v9441
  %9634 = vmatpush1.msra.mxu0 %v9440
  %9635 = vmatprep.subr.mxu0 %v9443
  %9636 = vmatpush1.msra.mxu0 %v9442
  %9637 = vmatprep.mubr.f32.mxu0 %v241
  %9638 = vmatmul.mubr.f32.gmra.mrb[0].mxu0 %v240
  %v9639 = vpop.f32.mrb[0].mxu0
  %v9640 = vadd.f32 %v9527, %v9639
  %v9641 = vpop.f32.mrb[0].mxu0
  %v9642 = vadd.f32 %v9529, %v9641
  %9643 = vmatprep.mubr.f32.mxu0 %v246
  %9644 = vmatmul.mubr.f32.gmra.mrb[0].mxu0 %v245
  %v9645 = vpop.f32.mrb[0].mxu0
  %v9646 = vadd.f32 %v9533, %v9645
  %v9647 = vpop.f32.mrb[0].mxu0
  %v9648 = vadd.f32 %v9535, %v9647
  %9649 = vmatprep.mubr.f32.mxu0 %v251
  %9650 = vmatmul.mubr.f32.gmra.mrb[0].mxu0 %v250
  %v9651 = vpop.f32.mrb[0].mxu0
  %v9652 = vadd.f32 %v9539, %v9651
  %v9653 = vpop.f32.mrb[0].mxu0
  %v9654 = vadd.f32 %v9541, %v9653
  %9655 = vmatprep.mubr.f32.mxu0 %v256
  %9656 = vmatmul.mubr.f32.gmra.mrb[0].mxu0 %v255
  %v9657 = vpop.f32.mrb[0].mxu0
  %v9658 = vadd.f32 %v9545, %v9657
  %v9659 = vpop.f32.mrb[0].mxu0
  %v9660 = vadd.f32 %v9547, %v9659
  %9661 = vmatprep.mubr.f32.mxu0 %v261
  %9662 = vmatmul.mubr.f32.gmra.mrb[0].mxu0 %v260
  %v9663 = vpop.f32.mrb[0].mxu0
  %v9664 = vadd.f32 %v9551, %v9663
  %v9665 = vpop.f32.mrb[0].mxu0
  %v9666 = vadd.f32 %v9553, %v9665
  %9667 = vmatprep.mubr.f32.mxu0 %v266
  %9668 = vmatmul.mubr.f32.gmra.mrb[0].mxu0 %v265
  %v9669 = vpop.f32.mrb[0].mxu0
  %v9670 = vadd.f32 %v9557, %v9669
  %v9671 = vpop.f32.mrb[0].mxu0
  %v9672 = vadd.f32 %v9559, %v9671
  %9673 = vmatprep.mubr.f32.mxu0 %v271
  %9674 = vmatmul.mubr.f32.gmra.mrb[0].mxu0 %v270
  %v9675 = vpop.f32.mrb[0].mxu0
  %v9676 = vadd.f32 %v9563, %v9675
  %v9677 = vpop.f32.mrb[0].mxu0
  %v9678 = vadd.f32 %v9565, %v9677
  %9679 = vmatprep.mubr.f32.mxu0 %v276
  %9680 = vmatmul.mubr.f32.gmra.mrb[0].mxu0 %v275
  %v9681 = vpop.f32.mrb[0].mxu0
  %v9682 = vadd.f32 %v9569, %v9681
  %v9683 = vpop.f32.mrb[0].mxu0
  %v9684 = vadd.f32 %v9571, %v9683
  %9685 = vdwg.mxu0
  %9686 = vmatprep.subr.mxu0 %v9445
  %9687 = vmatpush1.msra.mxu0 %v9444
  %9688 = vmatprep.subr.mxu0 %v9447
  %9689 = vmatpush1.msra.mxu0 %v9446
  %9690 = vmatprep.subr.mxu0 %v9449
  %9691 = vmatpush1.msra.mxu0 %v9448
  %9692 = vmatprep.subr.mxu0 %v9451
  %9693 = vmatpush1.msra.mxu0 %v9450
  %9694 = vmatprep.subr.mxu0 %v9453
  %9695 = vmatpush1.msra.mxu0 %v9452
  %9696 = vmatprep.subr.mxu0 %v9455
  %9697 = vmatpush1.msra.mxu0 %v9454
  %9698 = vmatprep.subr.mxu0 %v9457
  %9699 = vmatpush1.msra.mxu0 %v9456
  %9700 = vmatprep.subr.mxu0 %v9459
  %9701 = vmatpush1.msra.mxu0 %v9458
  %9702 = vmatprep.subr.mxu0 0.0
  %9703 = vmatpush1.msra.mxu0 0.0
  %9704 = vmatprep.subr.mxu0 0.0
  %9705 = vmatpush1.msra.mxu0 0.0
  %9706 = vmatprep.subr.mxu0 0.0
  %9707 = vmatpush1.msra.mxu0 0.0
  %9708 = vmatprep.subr.mxu0 0.0
  %9709 = vmatpush1.msra.mxu0 0.0
  %9710 = vmatprep.subr.mxu0 0.0
  %9711 = vmatpush1.msra.mxu0 0.0
  %9712 = vmatprep.subr.mxu0 0.0
  %9713 = vmatpush1.msra.mxu0 0.0
  %9714 = vmatprep.subr.mxu0 0.0
  %9715 = vmatpush1.msra.mxu0 0.0
  %9716 = vmatprep.subr.mxu0 0.0
  %9717 = vmatpush1.msra.mxu0 0.0
  %9718 = vmatprep.subr.mxu0 0.0
  %9719 = vmatpush1.msra.mxu0 0.0
  %9720 = vmatprep.subr.mxu0 0.0
  %9721 = vmatpush1.msra.mxu0 0.0
  %9722 = vmatprep.subr.mxu0 0.0
  %9723 = vmatpush1.msra.mxu0 0.0
  %9724 = vmatprep.subr.mxu0 0.0
  %9725 = vmatpush1.msra.mxu0 0.0
  %9726 = vmatprep.subr.mxu0 0.0
  %9727 = vmatpush1.msra.mxu0 0.0
  %9728 = vmatprep.subr.mxu0 0.0
  %9729 = vmatpush1.msra.mxu0 0.0
  %9730 = vmatprep.subr.mxu0 0.0
  %9731 = vmatpush1.msra.mxu0 0.0
  %9732 = vmatprep.subr.mxu0 0.0
  %9733 = vmatpush1.msra.mxu0 0.0
  %9734 = vmatprep.subr.mxu0 0.0
  %9735 = vmatpush1.msra.mxu0 0.0
  %9736 = vmatprep.subr.mxu0 0.0
  %9737 = vmatpush1.msra.mxu0 0.0
  %9738 = vmatprep.subr.mxu0 0.0
  %9739 = vmatpush1.msra.mxu0 0.0
  %9740 = vmatprep.subr.mxu0 0.0
  %9741 = vmatpush1.msra.mxu0 0.0
  %9742 = vmatprep.subr.mxu0 0.0
  %9743 = vmatpush1.msra.mxu0 0.0
  %9744 = vmatprep.subr.mxu0 0.0
  %9745 = vmatpush1.msra.mxu0 0.0
  %9746 = vmatprep.subr.mxu0 0.0
  %9747 = vmatpush1.msra.mxu0 0.0
  %9748 = vmatprep.subr.mxu0 0.0
  %9749 = vmatpush1.msra.mxu0 0.0
  %9750 = vmatprep.mubr.f32.mxu0 0.0
  %9751 = vmatmul.mubr.f32.gmra.mrb[0].mxu0 %v4245
  %v9752 = vpop.f32.mrb[0].mxu0
  %v9753 = vadd.f32 %v9640, %v9752
  %v9754 = vpop.f32.mrb[0].mxu0
  %v9755 = vadd.f32 %v9642, %v9754
  %9756 = vmatprep.mubr.f32.mxu0 0.0
  %9757 = vmatmul.mubr.f32.gmra.mrb[0].mxu0 %v4248
  %v9758 = vpop.f32.mrb[0].mxu0
  %v9759 = vadd.f32 %v9646, %v9758
  %v9760 = vpop.f32.mrb[0].mxu0
  %v9761 = vadd.f32 %v9648, %v9760
  %9762 = vmatprep.mubr.f32.mxu0 0.0
  %9763 = vmatmul.mubr.f32.gmra.mrb[0].mxu0 %v4251
  %v9764 = vpop.f32.mrb[0].mxu0
  %v9765 = vadd.f32 %v9652, %v9764
  %v9766 = vpop.f32.mrb[0].mxu0
  %v9767 = vadd.f32 %v9654, %v9766
  %9768 = vmatprep.mubr.f32.mxu0 0.0
  %9769 = vmatmul.mubr.f32.gmra.mrb[0].mxu0 %v4254
  %v9770 = vpop.f32.mrb[0].mxu0
  %v9771 = vadd.f32 %v9658, %v9770
  %v9772 = vpop.f32.mrb[0].mxu0
  %v9773 = vadd.f32 %v9660, %v9772
  %9774 = vmatprep.mubr.f32.mxu0 0.0
  %9775 = vmatmul.mubr.f32.gmra.mrb[0].mxu0 %v4257
  %v9776 = vpop.f32.mrb[0].mxu0
  %v9777 = vadd.f32 %v9664, %v9776
  %v9778 = vpop.f32.mrb[0].mxu0
  %v9779 = vadd.f32 %v9666, %v9778
  %9780 = vmatprep.mubr.f32.mxu0 0.0
  %9781 = vmatmul.mubr.f32.gmra.mrb[0].mxu0 %v4260
  %v9782 = vpop.f32.mrb[0].mxu0
  %v9783 = vadd.f32 %v9670, %v9782
  %v9784 = vpop.f32.mrb[0].mxu0
  %v9785 = vadd.f32 %v9672, %v9784
  %9786 = vmatprep.mubr.f32.mxu0 0.0
  %9787 = vmatmul.mubr.f32.gmra.mrb[0].mxu0 %v4263
  %v9788 = vpop.f32.mrb[0].mxu0
  %v9789 = vadd.f32 %v9676, %v9788
  %v9790 = vpop.f32.mrb[0].mxu0
  %v9791 = vadd.f32 %v9678, %v9790
  %9792 = vmatprep.mubr.f32.mxu0 0.0
  %9793 = vmatmul.mubr.f32.gmra.mrb[0].mxu0 %v4266
  %v9794 = vpop.f32.mrb[0].mxu0
  %v9795 = vadd.f32 %v9682, %v9794
  %v9796 = vpop.f32.mrb[0].mxu0
  %v9797 = vadd.f32 %v9684, %v9796
  %9798 = vdwg.mxu0
  %s9799 = scalar_lea.vmem %s61, 144
  %v9800 = vld [vmem:[%s9799] sm:$0xff]
  %v9801 = vld [vmem:[%s9799 + $0x8] sm:$0xff]
  %v9802 = vld [vmem:[%s9799 + $0x10] sm:$0xff]
  %v9803 = vld [vmem:[%s9799 + $0x18] sm:$0xff]
  %v9804 = vld [vmem:[%s9799 + $0x20] sm:$0xff]
  %v9805 = vld [vmem:[%s9799 + $0x28] sm:$0xff]
  %v9806 = vld [vmem:[%s9799 + $0x30] sm:$0xff]
  %v9807 = vld [vmem:[%s9799 + $0x38] sm:$0xff]
  %v9808 = vld [vmem:[%s9799 + $0x40] sm:$0xff]
  %v9809 = vld [vmem:[%s9799 + $0x48] sm:$0xff]
  %v9810 = vld [vmem:[%s9799 + $0x50] sm:$0xff]
  %v9811 = vld [vmem:[%s9799 + $0x58] sm:$0xff]
  %v9812 = vld [vmem:[%s9799 + $0x60] sm:$0xff]
  %v9813 = vld [vmem:[%s9799 + $0x68] sm:$0xff]
  %v9814 = vld [vmem:[%s9799 + $0x70] sm:$0xff]
  %v9815 = vld [vmem:[%s9799 + $0x78] sm:$0xff]
  %v9816 = vld [vmem:[%s9799 + $0x80] sm:$0xff]
  %v9817 = vld [vmem:[%s9799 + $0x88] sm:$0xff]
  %s9818 = scalar_lea.vmem %s63, 1
  %v9819 = vld [vmem:[%s9818] sm:$0x1]
  %v9821 = vlaneseq
  %v9822 = vshrl.u32 %v9821, 7
  %v9823 = vsub.s32 0, %v9822
  %v9824 = vrot.slane %v9819, %v9823
  %v9827 = vsel %vm1212, %v9755, 0
  %v9830 = vsel %vm1212, %v9761, 0
  %v9833 = vsel %vm1212, %v9767, 0
  %v9836 = vsel %vm1212, %v9773, 0
  %v9839 = vsel %vm1212, %v9779, 0
  %v9842 = vsel %vm1212, %v9785, 0
  %v9845 = vsel %vm1212, %v9791, 0
  %v9848 = vsel %vm1212, %v9797, 0
  %9850 = vmatprep.subr.mxu0 0.0
  %9851 = vmatpush1.msra.mxu0 %v9800
  %9852 = vmatprep.subr.mxu0 0.0
  %9853 = vmatpush1.msra.mxu0 %v9801
  %9854 = vmatprep.subr.mxu0 0.0
  %9855 = vmatpush1.msra.mxu0 %v9802
  %9856 = vmatprep.subr.mxu0 0.0
  %9857 = vmatpush1.msra.mxu0 %v9803
  %9858 = vmatprep.subr.mxu0 0.0
  %9859 = vmatpush1.msra.mxu0 %v9804
  %9860 = vmatprep.subr.mxu0 0.0
  %9861 = vmatpush1.msra.mxu0 %v9805
  %9862 = vmatprep.subr.mxu0 0.0
  %9863 = vmatpush1.msra.mxu0 %v9806
  %9864 = vmatprep.subr.mxu0 0.0
  %9865 = vmatpush1.msra.mxu0 %v9807
  %9866 = vmatprep.subr.mxu0 0.0
  %9867 = vmatpush1.msra.mxu0 %v9808
  %9868 = vmatprep.subr.mxu0 0.0
  %9869 = vmatpush1.msra.mxu0 %v9809
  %9870 = vmatprep.subr.mxu0 0.0
  %9871 = vmatpush1.msra.mxu0 %v9810
  %9872 = vmatprep.subr.mxu0 0.0
  %9873 = vmatpush1.msra.mxu0 %v9811
  %9874 = vmatprep.subr.mxu0 0.0
  %9875 = vmatpush1.msra.mxu0 %v9812
  %9876 = vmatprep.subr.mxu0 0.0
  %9877 = vmatpush1.msra.mxu0 %v9813
  %9878 = vmatprep.subr.mxu0 0.0
  %9879 = vmatpush1.msra.mxu0 %v9814
  %9880 = vmatprep.subr.mxu0 0.0
  %9881 = vmatpush1.msra.mxu0 %v9815
  %9882 = vmatprep.subr.mxu0 0.0
  %9883 = vmatpush1.msra.mxu0 %v9816
  %9884 = vmatprep.subr.mxu0 0.0
  %9885 = vmatpush1.msra.mxu0 %v9817
  %9886 = vmatprep.subr.mxu0 0.0
  %9887 = vmatpush1.msra.mxu0 0.0
  %9888 = vmatprep.subr.mxu0 0.0
  %9889 = vmatpush1.msra.mxu0 0.0
  %9890 = vmatprep.subr.mxu0 0.0
  %9891 = vmatpush1.msra.mxu0 0.0
  %9892 = vmatprep.subr.mxu0 0.0
  %9893 = vmatpush1.msra.mxu0 0.0
  %9894 = vmatprep.subr.mxu0 0.0
  %9895 = vmatpush1.msra.mxu0 0.0
  %9896 = vmatprep.subr.mxu0 0.0
  %9897 = vmatpush1.msra.mxu0 0.0
  %9898 = vmatprep.subr.mxu0 0.0
  %9899 = vmatpush1.msra.mxu0 0.0
  %9900 = vmatprep.subr.mxu0 0.0
  %9901 = vmatpush1.msra.mxu0 0.0
  %9902 = vmatprep.subr.mxu0 0.0
  %9903 = vmatpush1.msra.mxu0 0.0
  %9904 = vmatprep.subr.mxu0 0.0
  %9905 = vmatpush1.msra.mxu0 0.0
  %9906 = vmatprep.subr.mxu0 0.0
  %9907 = vmatpush1.msra.mxu0 0.0
  %9908 = vmatprep.subr.mxu0 0.0
  %9909 = vmatpush1.msra.mxu0 0.0
  %9910 = vmatprep.subr.mxu0 0.0
  %9911 = vmatpush1.msra.mxu0 0.0
  %9912 = vmatprep.subr.mxu0 0.0
  %9913 = vmatpush1.msra.mxu0 0.0
  %9914 = vmatprep.mubr.f32.mxu0 %v9827
  %9915 = vmatmul.mubr.f32.gmra.mrb[0].mxu0 %v9753
  %v9916 = vpop.f32.mrb[0].mxu0
  %v9917 = vadd.f32 %v9824, %v9916
  %v9918 = vpop.f32.mrb[0].mxu0
  %9919 = vmatprep.mubr.f32.mxu0 %v9830
  %9920 = vmatmul.mubr.f32.gmra.mrb[0].mxu0 %v9759
  %v9921 = vpop.f32.mrb[0].mxu0
  %v9922 = vadd.f32 %v9824, %v9921
  %v9923 = vpop.f32.mrb[0].mxu0
  %9924 = vmatprep.mubr.f32.mxu0 %v9833
  %9925 = vmatmul.mubr.f32.gmra.mrb[0].mxu0 %v9765
  %v9926 = vpop.f32.mrb[0].mxu0
  %v9927 = vadd.f32 %v9824, %v9926
  %v9928 = vpop.f32.mrb[0].mxu0
  %9929 = vmatprep.mubr.f32.mxu0 %v9836
  %9930 = vmatmul.mubr.f32.gmra.mrb[0].mxu0 %v9771
  %v9931 = vpop.f32.mrb[0].mxu0
  %v9932 = vadd.f32 %v9824, %v9931
  %v9933 = vpop.f32.mrb[0].mxu0
  %9934 = vmatprep.mubr.f32.mxu0 %v9839
  %9935 = vmatmul.mubr.f32.gmra.mrb[0].mxu0 %v9777
  %v9936 = vpop.f32.mrb[0].mxu0
  %v9937 = vadd.f32 %v9824, %v9936
  %v9938 = vpop.f32.mrb[0].mxu0
  %9939 = vmatprep.mubr.f32.mxu0 %v9842
  %9940 = vmatmul.mubr.f32.gmra.mrb[0].mxu0 %v9783
  %v9941 = vpop.f32.mrb[0].mxu0
  %v9942 = vadd.f32 %v9824, %v9941
  %v9943 = vpop.f32.mrb[0].mxu0
  %9944 = vmatprep.mubr.f32.mxu0 %v9845
  %9945 = vmatmul.mubr.f32.gmra.mrb[0].mxu0 %v9789
  %v9946 = vpop.f32.mrb[0].mxu0
  %v9947 = vadd.f32 %v9824, %v9946
  %v9948 = vpop.f32.mrb[0].mxu0
  %9949 = vmatprep.mubr.f32.mxu0 %v9848
  %9950 = vmatmul.mubr.f32.gmra.mrb[0].mxu0 %v9795
  %v9951 = vpop.f32.mrb[0].mxu0
  %v9952 = vadd.f32 %v9824, %v9951
  %v9953 = vpop.f32.mrb[0].mxu0
  %9954 = vdwg.mxu0
  %v9955 = vadd.f32 %v8387, %v9917
  %v9956 = vadd.f32 %v8388, %v9922
  %v9957 = vadd.f32 %v8389, %v9927
  %v9958 = vadd.f32 %v8390, %v9932
  %v9959 = vadd.f32 %v8391, %v9937
  %v9960 = vadd.f32 %v8392, %v9942
  %v9961 = vadd.f32 %v8393, %v9947
  %v9962 = vadd.f32 %v8394, %v9952
  %s9963 = scalar_lea.vmem %s69, 1
  %v9964 = vld [vmem:[%s9963] sm:$0x1]
  %s9965 = scalar_lea.vmem %s71, 1
  %v9966 = vld [vmem:[%s9965] sm:$0x1]
  %v9967 = vsel %vm1212, %v9955, 0.0
  %9968 = vadd.xlane.f32.xlu0 %v9967
  %v9969 = vpop.xlane.xlu0 %9968
  %v9970 = vsel %vm1212, %v9956, 0.0
  %9971 = vadd.xlane.f32.xlu0 %v9970
  %v9972 = vpop.xlane.xlu0 %9971
  %v9973 = vsel %vm1212, %v9957, 0.0
  %9974 = vadd.xlane.f32.xlu0 %v9973
  %v9975 = vpop.xlane.xlu0 %9974
  %v9976 = vsel %vm1212, %v9958, 0.0
  %9977 = vadd.xlane.f32.xlu0 %v9976
  %v9978 = vpop.xlane.xlu0 %9977
  %v9979 = vsel %vm1212, %v9959, 0.0
  %9980 = vadd.xlane.f32.xlu0 %v9979
  %v9981 = vpop.xlane.xlu0 %9980
  %v9982 = vsel %vm1212, %v9960, 0.0
  %9983 = vadd.xlane.f32.xlu0 %v9982
  %v9984 = vpop.xlane.xlu0 %9983
  %v9985 = vsel %vm1212, %v9961, 0.0
  %9986 = vadd.xlane.f32.xlu0 %v9985
  %v9987 = vpop.xlane.xlu0 %9986
  %v9988 = vsel %vm1212, %v9962, 0.0
  %9989 = vadd.xlane.f32.xlu0 %v9988
  %v9990 = vpop.xlane.xlu0 %9989
  %v9991 = vmul.f32 %v9969, %v1368
  %v9992 = vmul.f32 %v9972, %v1368
  %v9993 = vmul.f32 %v9975, %v1368
  %v9994 = vmul.f32 %v9978, %v1368
  %v9995 = vmul.f32 %v9981, %v1368
  %v9996 = vmul.f32 %v9984, %v1368
  %v9997 = vmul.f32 %v9987, %v1368
  %v9998 = vmul.f32 %v9990, %v1368
  %v9999 = vsub.f32 %v9955, %v9991
  %v10000 = vsub.f32 %v9956, %v9992
  %v10001 = vsub.f32 %v9957, %v9993
  %v10002 = vsub.f32 %v9958, %v9994
  %v10003 = vsub.f32 %v9959, %v9995
  %v10004 = vsub.f32 %v9960, %v9996
  %v10005 = vsub.f32 %v9961, %v9997
  %v10006 = vsub.f32 %v9962, %v9998
  %v10007 = vmul.f32 %v9999, %v9999
  %v10008 = vmul.f32 %v10000, %v10000
  %v10009 = vmul.f32 %v10001, %v10001
  %v10010 = vmul.f32 %v10002, %v10002
  %v10011 = vmul.f32 %v10003, %v10003
  %v10012 = vmul.f32 %v10004, %v10004
  %v10013 = vmul.f32 %v10005, %v10005
  %v10014 = vmul.f32 %v10006, %v10006
  %v10015 = vsel %vm1212, %v10007, 0.0
  %10016 = vadd.xlane.f32.xlu0 %v10015
  %v10017 = vpop.xlane.xlu0 %10016
  %v10018 = vsel %vm1212, %v10008, 0.0
  %10019 = vadd.xlane.f32.xlu0 %v10018
  %v10020 = vpop.xlane.xlu0 %10019
  %v10021 = vsel %vm1212, %v10009, 0.0
  %10022 = vadd.xlane.f32.xlu0 %v10021
  %v10023 = vpop.xlane.xlu0 %10022
  %v10024 = vsel %vm1212, %v10010, 0.0
  %10025 = vadd.xlane.f32.xlu0 %v10024
  %v10026 = vpop.xlane.xlu0 %10025
  %v10027 = vsel %vm1212, %v10011, 0.0
  %10028 = vadd.xlane.f32.xlu0 %v10027
  %v10029 = vpop.xlane.xlu0 %10028
  %v10030 = vsel %vm1212, %v10012, 0.0
  %10031 = vadd.xlane.f32.xlu0 %v10030
  %v10032 = vpop.xlane.xlu0 %10031
  %v10033 = vsel %vm1212, %v10013, 0.0
  %10034 = vadd.xlane.f32.xlu0 %v10033
  %v10035 = vpop.xlane.xlu0 %10034
  %v10036 = vsel %vm1212, %v10014, 0.0
  %10037 = vadd.xlane.f32.xlu0 %v10036
  %v10038 = vpop.xlane.xlu0 %10037
  %v10039 = vmul.f32 %v10017, %v1368
  %v10040 = vmul.f32 %v10020, %v1368
  %v10041 = vmul.f32 %v10023, %v1368
  %v10042 = vmul.f32 %v10026, %v1368
  %v10043 = vmul.f32 %v10029, %v1368
  %v10044 = vmul.f32 %v10032, %v1368
  %v10045 = vmul.f32 %v10035, %v1368
  %v10046 = vmul.f32 %v10038, %v1368
  %v10047 = vadd.f32 %v10039, 1e-05
  %v10048 = vadd.f32 %v10040, 1e-05
  %v10049 = vadd.f32 %v10041, 1e-05
  %v10050 = vadd.f32 %v10042, 1e-05
  %v10051 = vadd.f32 %v10043, 1e-05
  %v10052 = vadd.f32 %v10044, 1e-05
  %v10053 = vadd.f32 %v10045, 1e-05
  %v10054 = vadd.f32 %v10046, 1e-05
  %v10055 = vrsqrt.pop %v10047
  %v10056 = vrsqrt.pop %v10048
  %v10057 = vrsqrt.pop %v10049
  %v10058 = vrsqrt.pop %v10050
  %v10059 = vrsqrt.pop %v10051
  %v10060 = vrsqrt.pop %v10052
  %v10061 = vrsqrt.pop %v10053
  %v10062 = vrsqrt.pop %v10054
  %v10063 = vmul.f32 %v9999, %v10055
  %v10064 = vmul.f32 %v10000, %v10056
  %v10065 = vmul.f32 %v10001, %v10057
  %v10066 = vmul.f32 %v10002, %v10058
  %v10067 = vmul.f32 %v10003, %v10059
  %v10068 = vmul.f32 %v10004, %v10060
  %v10069 = vmul.f32 %v10005, %v10061
  %v10070 = vmul.f32 %v10006, %v10062
  %v10072 = vlaneseq
  %v10073 = vshrl.u32 %v10072, 7
  %v10074 = vsub.s32 0, %v10073
  %v10075 = vrot.slane %v9964, %v10074
  %v10077 = vmul.f32 %v10063, %v10075
  %v10078 = vmul.f32 %v10064, %v10075
  %v10079 = vmul.f32 %v10065, %v10075
  %v10080 = vmul.f32 %v10066, %v10075
  %v10081 = vmul.f32 %v10067, %v10075
  %v10082 = vmul.f32 %v10068, %v10075
  %v10083 = vmul.f32 %v10069, %v10075
  %v10084 = vmul.f32 %v10070, %v10075
  %v10086 = vlaneseq
  %v10087 = vshrl.u32 %v10086, 7
  %v10088 = vsub.s32 0, %v10087
  %v10089 = vrot.slane %v9966, %v10088
  %v10091 = vadd.f32 %v10077, %v10089
  %v10092 = vadd.f32 %v10078, %v10089
  %v10093 = vadd.f32 %v10079, %v10089
  %v10094 = vadd.f32 %v10080, %v10089
  %v10095 = vadd.f32 %v10081, %v10089
  %v10096 = vadd.f32 %v10082, %v10089
  %v10097 = vadd.f32 %v10083, %v10089
  %v10098 = vadd.f32 %v10084, %v10089
  %10099 = vst.msk [vmem:[%s73] sm:$0xff] %vm1212, %v10091
  %10100 = vst.msk [vmem:[%s73 + $0x8] sm:$0xff] %vm1212, %v10092
  %10101 = vst.msk [vmem:[%s73 + $0x10] sm:$0xff] %vm1212, %v10093
  %10102 = vst.msk [vmem:[%s73 + $0x18] sm:$0xff] %vm1212, %v10094
  %10103 = vst.msk [vmem:[%s73 + $0x20] sm:$0xff] %vm1212, %v10095
  %10104 = vst.msk [vmem:[%s73 + $0x28] sm:$0xff] %vm1212, %v10096
  %10105 = vst.msk [vmem:[%s73 + $0x30] sm:$0xff] %vm1212, %v10097
  %10106 = vst.msk [vmem:[%s73 + $0x38] sm:$0xff] %vm1212, %v10098
  // Predicated region
  $region146: #{tpu_custom_call.1} parent=0 // pred_check
    _
  $region147: #{tpu_custom_call.1} parent=0 // pred_check_branch
    %10108 = sbr.rel (0) target = $region149
  $region148: #{tpu_custom_call.1} parent=0 // pred_region
    _
  $region149: #{tpu_custom_call.1} parent=0 // pred_fallthru
    _
  // Predicated region
  $region150: #{tpu_custom_call.1} parent=0 // pred_check
    _
  $region151: #{tpu_custom_call.1} parent=0 // pred_check_branch
    %10110 = sbr.rel (0) target = $region153
  $region152: #{tpu_custom_call.1} parent=0 // pred_region
    _
  $region153: #{tpu_custom_call.1} parent=0 // pred_fallthru
    _

</llo_original>
